<compile_context>
chip_gen: v7x
topology: tpu7x:2x2x1
jax: 0.10.0
libtpu: 0.0.40
codegen_flags: <defaults>
</compile_context>

<pallas_src>
import numpy as np
import jax
import jax.numpy as jnp
from jax.experimental import pallas as pl
from jax.experimental.pallas import tpu as pltpu

PIXELS = 28
X_DIM = PIXELS * PIXELS          # 784
Z_DIM = 2                        # torus latent
BN_EPS = 1e-5
VMEM_LIMIT = 32 * 1024 * 1024    # guard-rail: fits v5e/v6e/v7x scoped-VMEM limits
CONV_BATCH_TILE = 16             # images per conv grid step (per-step VMEM ~2 MiB)
LIN_BATCH_TILE = 256             # rows per grid step for the fused linear tail
MATMUL_BF16 = False              # bf16 GEMM operands (deviates from exact f32 reference)


# ---------------------------------------------------------------------------
# Small helpers
# ---------------------------------------------------------------------------
def _batch_tile(batch, cap):
    """Largest divisor of `batch` <= cap (exact tiling keeps BN statistics exact)."""
    for t in range(min(batch, cap), 0, -1):
        if batch % t == 0:
            return t
    return 1


def _round_up(n, m):
    return ((n + m - 1) // m) * m


def _maybe_bf16(a):
    return a.astype(jnp.bfloat16) if MATMUL_BF16 else a


def _apply_act(y, act):
    if act == "relu":
        return jnp.maximum(y, 0.0)
    if act == "sigmoid":
        return jax.nn.sigmoid(y)
    return y


# ---------------------------------------------------------------------------
# Conv kernels: stride-1 KxK conv as ONE stacked-tap GEMM per image.
#   out[:, r] = W @ slab[:, r],  slab row (t*c_in + ci) = x[ci, r + offs[t]]
# Columns r with (r % Wp) >= Wo are row-wrap garbage; the wrapper crops them and the
# BN statistics mask excludes them (plus the per-phase positions dropped by phase-merge).
# ---------------------------------------------------------------------------
def _make_conv_compute(TB, T, c_in, L, offs):
    def conv_one(x_ref, w, slab_ref, b):
        if c_in == 1:
            # rank-1 taps: VPU broadcast-FMA, no slab / MXU needed.
            acc = w[:, 0:1] * x_ref[b, :, offs[0]:offs[0] + L]
            for t in range(1, T):
                acc = acc + w[:, t:t + 1] * x_ref[b, :, offs[t]:offs[t] + L]
            return acc.astype(jnp.float32)
        for t in range(T):
            slab_ref[t * c_in:(t + 1) * c_in, :] = x_ref[b, :, offs[t]:offs[t] + L]
        return jnp.dot(w, _maybe_bf16(slab_ref[...]),
                       preferred_element_type=jnp.float32)
    return conv_one


def _make_conv_bias_kernel(TB, T, c_in, c_exp, L, offs, act):
    conv_one = _make_conv_compute(TB, T, c_in, L, offs)

    def kernel(x_ref, w_ref, b_ref, o_ref, slab_ref):
        w = _maybe_bf16(w_ref[...])              # hoisted out of the image loop
        bias = b_ref[...]
        for b in range(TB):
            acc = conv_one(x_ref, w, slab_ref, b)
            o_ref[b] = _apply_act(acc + bias, act)
    return kernel


def _make_conv_bn_kernel(TB, T, c_in, c_exp, L, offs):
    conv_one = _make_conv_compute(TB, T, c_in, L, offs)

    def kernel(x_ref, w_ref, m_ref, o_ref, s_ref, q_ref, slab_ref):
        w = _maybe_bf16(w_ref[...])
        mask = m_ref[...]                        # precomputed validity mask (c_exp, L)
        s = jnp.zeros((c_exp, 1), jnp.float32)
        q = jnp.zeros((c_exp, 1), jnp.float32)
        for b in range(TB):
            acc = conv_one(x_ref, w, slab_ref, b)
            o_ref[b] = acc                       # raw (pre-BN) conv output
            am = acc * mask
            s = s + jnp.sum(am, axis=1, keepdims=True)
            q = q + jnp.sum(am * acc, axis=1, keepdims=True)
        s_ref[0] = s                             # per-tile partial stats
        q_ref[0] = q
    return kernel


# ---------------------------------------------------------------------------
# BN validity mask (host-side constant): excludes row-wrap columns and, for group=4
# transposed-conv phases with crop=True, the per-phase positions removed by phase merge.
# ---------------------------------------------------------------------------
def _bn_mask(c_exp, group, Ho, Wp, Wo, crop):
    cg = c_exp // group
    col = np.arange(Ho * Wp)
    ho, wp = col // Wp, col % Wp
    base = wp < Wo
    blocks, n_valid = [], 0.0
    for qph in range(group):
        ri, rj = (qph // 2, qph % 2) if group == 4 else (0, 0)
        v = base.copy()
        if crop and group == 4:
            if ri == 1:
                v &= ho < (Ho - 1)
            if rj == 1:
                v &= wp < (Wo - 1)
        n_valid += float(v.sum())
        blocks.append(np.repeat(v[None, :].astype(np.float32), cg, axis=0))
    return jnp.asarray(np.concatenate(blocks, axis=0)), n_valid


# ---------------------------------------------------------------------------
# Conv wrapper (bias+act fused in-kernel, or BN: raw output + partial stats, epilogue in XLA)
# ---------------------------------------------------------------------------
def conv_stride1(x, w_stk, *, kh, kw, act, bias=None, gamma=None, beta=None,
                 group=1, crop_phase=False):
    """Stride-1 (kh,kw) conv of an already zero-padded NCHW activation.

    x:     (B, c_in, Hp, Wp) f32.
    w_stk: (c_exp, kh*kw*c_in) stacked-tap weights (phase-major expanded channels for
           transposed convs).  Returns (B, c_exp, Ho, Wo)."""
    B, c_in, Hp, Wp = x.shape
    c_exp, K = w_stk.shape
    T = kh * kw
    assert K == T * c_in
    Ho, Wo = Hp - kh + 1, Wp - kw + 1
    L, S = Ho * Wp, Hp * Wp + (kw - 1)
    offs = tuple(ki * Wp + kj for ki in range(kh) for kj in range(kw))

    xf = jnp.pad(x.reshape(B, c_in, Hp * Wp), ((0, 0), (0, 0), (0, kw - 1)))
    TB = _batch_tile(B, CONV_BATCH_TILE)
    nbt = B // TB
    use_bn = gamma is not None

    cp = pltpu.CompilerParams(dimension_semantics=("parallel",),
                              vmem_limit_bytes=VMEM_LIMIT)
    scratch = [pltpu.VMEM((K, L), jnp.float32)]
    x_spec = pl.BlockSpec((TB, c_in, S), lambda b: (b, 0, 0))
    w_spec = pl.BlockSpec((c_exp, K), lambda b: (0, 0))
    o_spec = pl.BlockSpec((TB, c_exp, L), lambda b: (b, 0, 0))

    if not use_bn:
        kern = _make_conv_bias_kernel(TB, T, c_in, c_exp, L, offs, act)
        y = pl.pallas_call(
            kern,
            out_shape=jax.ShapeDtypeStruct((B, c_exp, L), jnp.float32),
            grid=(nbt,),
            in_specs=[x_spec, w_spec, pl.BlockSpec((c_exp, 1), lambda b: (0, 0))],
            out_specs=o_spec,
            scratch_shapes=scratch,
            compiler_params=cp,
        )(xf, w_stk, bias)
    else:
        mask, n_hw = _bn_mask(c_exp, group, Ho, Wp, Wo, crop_phase)
        kern = _make_conv_bn_kernel(TB, T, c_in, c_exp, L, offs)
        stat_shape = jax.ShapeDtypeStruct((nbt, c_exp, 1), jnp.float32)
        stat_spec = pl.BlockSpec((1, c_exp, 1), lambda b: (b, 0, 0))
        raw, ssum, ssq = pl.pallas_call(
            kern,
            out_shape=(jax.ShapeDtypeStruct((B, c_exp, L), jnp.float32),
                       stat_shape, stat_shape),
            grid=(nbt,),
            in_specs=[x_spec, w_spec, pl.BlockSpec((c_exp, L), lambda b: (0, 0))],
            out_specs=(o_spec, stat_spec, stat_spec),
            scratch_shapes=scratch,
            compiler_params=cp,
        )(xf, w_stk, mask)
        # Finish exact batch statistics (tiny) + affine + act in XLA: fuses with the
        # caller's crop/pad/space-to-depth glue; keeps the kernel's batch axis "parallel".
        cg = c_exp // group
        n = float(B) * n_hw
        s = jnp.sum(ssum, axis=0).reshape(group, cg, 1).sum(axis=0)
        q = jnp.sum(ssq, axis=0).reshape(group, cg, 1).sum(axis=0)
        mean = s / n
        var = jnp.maximum(q / n - mean * mean, 0.0)
        scale = gamma * jax.lax.rsqrt(var + BN_EPS)          # (cg, 1)
        shift = beta - mean * scale
        scale_e = jnp.tile(scale, (group, 1))[None]          # (1, c_exp, 1)
        shift_e = jnp.tile(shift, (group, 1))[None]
        y = _apply_act(raw * scale_e + shift_e, act)

    return y.reshape(B, c_exp, Ho, Wp)[:, :, :, :Wo]


# ---------------------------------------------------------------------------
# Cheap XLA layout glue (same-size rearrangements only; no data blow-ups)
# ---------------------------------------------------------------------------
def _space_to_depth(x):
    """(B, C, H, W), H/W even -> (B, 4C, H/2, W/2); channel = (pi*2+pj)*C + c."""
    B, C, H, W = x.shape
    x = x.reshape(B, C, H // 2, 2, W // 2, 2)
    x = jnp.transpose(x, (0, 3, 5, 1, 2, 4))
    return x.reshape(B, 4 * C, H // 2, W // 2)


def _phase_merge(y, crop):
    """(B, 4*Co, Hq, Wq), phase-major (q = 2*ri+rj) -> (B, Co, 2Hq[-1], 2Wq[-1])."""
    B, c_exp, hq, wq = y.shape
    co = c_exp // 4
    y = y.reshape(B, 2, 2, co, hq, wq)
    y = jnp.transpose(y, (0, 3, 4, 1, 5, 2))              # (B, co, hq, ri, wq, rj)
    y = y.reshape(B, co, 2 * hq, 2 * wq)
    if crop:                                              # padding=0 transposed conv
        y = y[:, :, :2 * hq - 1, :2 * wq - 1]
    return y


# ---------------------------------------------------------------------------
# Fused linear tail: encoder_lin -> (cos, sin) -> decoder_lin in ONE kernel
# ---------------------------------------------------------------------------
def _tail_kernel(h_ref, w1_ref, b1_ref, w2_ref, b2_ref, w3_ref, b3_ref,
                 w4_ref, b4_ref, z_ref, d_ref):
    h = h_ref[...]
    a1 = jnp.maximum(
        jnp.dot(h, w1_ref[...], preferred_element_type=jnp.float32) + b1_ref[...], 0.0)
    zz = jnp.dot(a1, w2_ref[...], preferred_element_type=jnp.float32) + b2_ref[...]
    cz = jnp.cos(zz)
    sz = jnp.sin(zz)
    z_ref[:, 0:Z_DIM] = cz
    z_ref[:, Z_DIM:2 * Z_DIM] = sz
    d1 = (jnp.dot(cz, w3_ref[0:Z_DIM, :], preferred_element_type=jnp.float32)
          + jnp.dot(sz, w3_ref[Z_DIM:2 * Z_DIM, :], preferred_element_type=jnp.float32)
          + b3_ref[...])
    d1 = jnp.maximum(d1, 0.0)
    d2 = jnp.maximum(
        jnp.dot(d1, w4_ref[...], preferred_element_type=jnp.float32) + b4_ref[...], 0.0)
    d_ref[...] = d2


def fused_tail(p, h5):
    B = h5.shape[0]
    TB = min(LIN_BATCH_TILE, _round_up(B, 8))             # multiple of 8 (sublane rule)
    Bp = _round_up(B, TB)                                 # pad batch instead of whole-batch block
    h5p = h5 if Bp == B else jnp.pad(h5, ((0, Bp - B), (0, 0)))
    weights = (p["el1_w"], p["el1_b"], p["el2_w"], p["el2_b"],
               p["dl1_w"], p["dl1_b"], p["dl2_w"], p["dl2_b"])
    cmap = lambda b: (0, 0)
    z4, hdec = pl.pallas_call(
        _tail_kernel,
        out_shape=(jax.ShapeDtypeStruct((Bp, 2 * Z_DIM), jnp.float32),
                   jax.ShapeDtypeStruct((Bp, 288), jnp.float32)),
        grid=(Bp // TB,),
        in_specs=[pl.BlockSpec((TB, 288), lambda b: (b, 0))]
                 + [pl.BlockSpec(w.shape, cmap) for w in weights],
        out_specs=(pl.BlockSpec((TB, 2 * Z_DIM), lambda b: (b, 0)),
                   pl.BlockSpec((TB, 288), lambda b: (b, 0))),
        compiler_params=pltpu.CompilerParams(
            dimension_semantics=("parallel",), vmem_limit_bytes=VMEM_LIMIT),
    )(h5p, *weights)
    return z4[:B], hdec[:B]


# ---------------------------------------------------------------------------
# Weight folding (done once at init)
# ---------------------------------------------------------------------------
def _stack_taps(w_taps):
    """Per-tap (T, Co, Ci) -> stacked (Co, T*Ci), matching slab row order t*Ci + ci."""
    T, co, ci = w_taps.shape
    return jnp.transpose(w_taps, (1, 0, 2)).reshape(co, T * ci)


def _conv_taps(w):
    """Conv2d weight (Co, Ci, kh, kw) -> per-tap (kh*kw, Co, Ci)."""
    co, ci, kh, kw = w.shape
    return jnp.transpose(w, (2, 3, 0, 1)).reshape(kh * kw, co, ci)


def _s2d_conv_taps(w):
    """3x3 stride-2 Conv2d weight -> 2x2 stride-1 taps over a space-to-depth input."""
    co, ci = w.shape[0], w.shape[1]
    wt = jnp.zeros((2, 2, co, 4 * ci), jnp.float32)
    for ai in range(2):
        for aj in range(2):
            for pi in range(2):
                for pj in range(2):
                    ki, kj = 2 * ai + pi, 2 * aj + pj
                    if ki < 3 and kj < 3:
                        s = (pi * 2 + pj) * ci
                        wt = wt.at[ai, aj, :, s:s + ci].set(w[:, :, ki, kj])
    return wt.reshape(4, co, 4 * ci)


def _tconv_phase_taps(w, pad):
    """ConvTranspose2d(3x3, stride 2) weight (Ci, Co, 3, 3) -> 2x2 stride-1 taps producing
    the 4 output-parity phases (phase-major expanded channels q*Co + co)."""
    ci, co = w.shape[0], w.shape[1]
    tap = [[1, None], [2, 0]] if pad == 1 else [[2, 0], [None, 1]]
    wt = jnp.zeros((2, 2, 4 * co, ci), jnp.float32)
    for ri in range(2):
        for rj in range(2):
            qph = 2 * ri + rj
            for ai in range(2):
                for aj in range(2):
                    ki, kj = tap[ri][ai], tap[rj][aj]
                    if ki is None or kj is None:
                        continue
                    wt = wt.at[ai, aj, qph * co:(qph + 1) * co, :].set(
                        jnp.transpose(w[:, :, ki, kj]))
    return wt.reshape(4, 4 * co, ci)


# ---------------------------------------------------------------------------
# Parameters (deterministic synthetic init; shapes from the nn.Module)
# ---------------------------------------------------------------------------
def init_params(key):
    keys = iter(jax.random.split(key, 24))

    def rnd(shape, fan_in):
        return jax.random.normal(next(keys), shape, jnp.float32) / jnp.sqrt(float(fan_in))

    def ones(c):
        return jnp.ones((c, 1), jnp.float32)

    def zeros(c):
        return jnp.zeros((c, 1), jnp.float32)

    p = {}
    # encoder_cnn (conv biases feeding straight into BatchNorm are exact no-ops: omitted)
    p["c1_w"] = _stack_taps(_conv_taps(rnd((8, 1, 3, 3), 9)))            # (8, 9)
    p["bn1_g"], p["bn1_b"] = ones(8), zeros(8)
    p["c2_w"] = _stack_taps(_conv_taps(rnd((8, 8, 3, 3), 72)))           # (8, 72)
    p["bn2_g"], p["bn2_b"] = ones(8), zeros(8)
    p["c3_w"] = _stack_taps(_s2d_conv_taps(rnd((8, 8, 3, 3), 72)))       # (8, 128)
    p["c3_b"] = rnd((8, 1), 72)
    p["c4_w"] = _stack_taps(_s2d_conv_taps(rnd((16, 8, 3, 3), 72)))      # (16, 128)
    p["bn4_g"], p["bn4_b"] = ones(16), zeros(16)
    p["c5_w"] = _stack_taps(_s2d_conv_taps(rnd((32, 16, 3, 3), 144)))    # (32, 256)
    p["c5_b"] = rnd((32, 1), 144)
    # encoder_lin / decoder_lin (pre-transposed to (in, out))
    p["el1_w"], p["el1_b"] = rnd((288, 128), 288), rnd((1, 128), 288)
    p["el2_w"], p["el2_b"] = rnd((128, Z_DIM), 128), rnd((1, Z_DIM), 128)
    p["dl1_w"], p["dl1_b"] = rnd((2 * Z_DIM, 128), 2 * Z_DIM), rnd((1, 128), 2 * Z_DIM)
    p["dl2_w"], p["dl2_b"] = rnd((128, 288), 128), rnd((1, 288), 128)
    # decoder_conv (ConvTranspose2d weights, PyTorch layout (C_in, C_out, kH, kW))
    p["t1_w"] = _stack_taps(_tconv_phase_taps(rnd((32, 16, 3, 3), 32 * 9), pad=0))  # (64, 128)
    p["tb1_g"], p["tb1_b"] = ones(16), zeros(16)
    p["t2_w"] = _stack_taps(_tconv_phase_taps(rnd((16, 8, 3, 3), 16 * 9), pad=1))   # (32, 64)
    p["tb2_g"], p["tb2_b"] = ones(8), zeros(8)
    p["t3_w"] = _stack_taps(_tconv_phase_taps(rnd((8, 1, 3, 3), 8 * 9), pad=1))     # (4, 32)
    p["t3_b"] = jnp.tile(rnd((1, 1), 8 * 9), (4, 1))           # phase-expanded bias
    return p


# ---------------------------------------------------------------------------
# Forward pass (mirrors TorusConvAE.forward)
# ---------------------------------------------------------------------------
def encoder_cnn(p, x):
    B = x.shape[0]
    h = x.reshape(B, 1, PIXELS, PIXELS)                        # x.view(-1, 1, 28, 28)
    pad1 = ((0, 0), (0, 0), (1, 1), (1, 1))
    padbr = ((0, 0), (0, 0), (0, 1), (0, 1))
    # Conv2d(1,8,3,s1,p1) + BN + ReLU
    h = conv_stride1(jnp.pad(h, pad1), p["c1_w"], kh=3, kw=3, act="relu",
                     gamma=p["bn1_g"], beta=p["bn1_b"])
    # Conv2d(8,8,3,s1,p1) + BN + ReLU
    h = conv_stride1(jnp.pad(h, pad1), p["c2_w"], kh=3, kw=3, act="relu",
                     gamma=p["bn2_g"], beta=p["bn2_b"])
    # Conv2d(8,8,3,s2,p1) + ReLU          (stride 2 = space-to-depth + 2x2 conv)
    h = conv_stride1(_space_to_depth(jnp.pad(h, pad1)), p["c3_w"], kh=2, kw=2,
                     act="relu", bias=p["c3_b"])
    # Conv2d(8,16,3,s2,p1) + BN + ReLU
    h = conv_stride1(_space_to_depth(jnp.pad(h, pad1)), p["c4_w"], kh=2, kw=2,
                     act="relu", gamma=p["bn4_g"], beta=p["bn4_b"])
    # Conv2d(16,32,3,s2,p0) + ReLU        (7x7 -> 8x8 pad only hits zero taps)
    h = conv_stride1(_space_to_depth(jnp.pad(h, padbr)), p["c5_w"], kh=2, kw=2,
                     act="relu", bias=p["c5_b"])
    return h                                                    # (B, 32, 3, 3)


def decoder_cnn(p, hdec):
    B = hdec.shape[0]
    h = hdec.reshape(B, 32, 3, 3)                               # nn.Unflatten (NCHW)
    pad1 = ((0, 0), (0, 0), (1, 1), (1, 1))
    padbr = ((0, 0), (0, 0), (0, 1), (0, 1))
    # ConvTranspose2d(32,16,3,s2) + BN + ReLU -> 7x7   (per-phase crop-aware BN mask)
    y = conv_stride1(jnp.pad(h, pad1), p["t1_w"], kh=2, kw=2, act="relu",
                     gamma=p["tb1_g"], beta=p["tb1_b"], group=4, crop_phase=True)
    h = _phase_merge(y, crop=True)
    # ConvTranspose2d(16,8,3,s2,p1,op1) + BN + ReLU -> 14x14
    y = conv_stride1(jnp.pad(h, padbr), p["t2_w"], kh=2, kw=2, act="relu",
                     gamma=p["tb2_g"], beta=p["tb2_b"], group=4, crop_phase=False)
    h = _phase_merge(y, crop=False)
    # ConvTranspose2d(8,1,3,s2,p1,op1) + sigmoid -> 28x28
    y = conv_stride1(jnp.pad(h, padbr), p["t3_w"], kh=2, kw=2, act="sigmoid",
                     bias=p["t3_b"])
    h = _phase_merge(y, crop=False)
    return h.reshape(B, X_DIM)                                  # h.view(-1, x_dim); C == 1


def torus_conv_ae_forward(p, x):
    h5 = encoder_cnn(p, x).reshape(x.shape[0], 3 * 3 * 32)      # nn.Flatten on NCHW
    z, hdec = fused_tail(p, h5)                                 # encoder_lin+cos/sin+decoder_lin
    x_rec = decoder_cnn(p, hdec)
    return x_rec, z


# ---------------------------------------------------------------------------
if __name__ == "__main__":
    key = jax.random.PRNGKey(0)
    pkey, xkey = jax.random.split(key)
    params = init_params(pkey)
    x = jax.random.uniform(xkey, (2, X_DIM), jnp.float32)       # batch=2 flat 28x28 images

    fwd = jax.jit(torus_conv_ae_forward)
    x_rec, z = fwd(params, x)
    jax.block_until_ready((x_rec, z))

    assert x_rec.shape == (2, X_DIM) and x_rec.dtype == jnp.float32
    assert z.shape == (2, 2 * Z_DIM) and z.dtype == jnp.float32
    assert bool(jnp.all(jnp.isfinite(x_rec))) and bool(jnp.all(jnp.isfinite(z)))
    assert bool(jnp.all((x_rec >= 0.0) & (x_rec <= 1.0)))       # sigmoid output
    print("KERNEL_OK")
</pallas_src>

<mosaic_0001>
module attributes {stable_mosaic.version = 11 : i64} {
  func.func @kernel(%arg0: i32, %arg1: memref<2x1x902xf32, #tpu.memory_space<vmem>>, %arg2: memref<8x9xf32, #tpu.memory_space<vmem>>, %arg3: memref<8x840xf32, #tpu.memory_space<vmem>>, %arg4: memref<2x8x840xf32, #tpu.memory_space<vmem>>, %arg5: memref<1x8x1xf32, #tpu.memory_space<vmem>>, %arg6: memref<1x8x1xf32, #tpu.memory_space<vmem>>, %arg7: memref<9x840xf32, #tpu.memory_space<vmem>>) attributes {dimension_semantics = [#tpu.dimension_semantics<parallel>], iteration_bounds = array<i64: 1>, scalar_prefetch = 0 : i64, scratch_operands = 1 : i64, tpu.core_type = #tpu.core_type<tc>, window_params = [{transform_indices = @transform_0, window_bounds = array<i64: 2, 1, 902>}, {pipeline_mode = #tpu.pipeline_mode<synchronous>, transform_indices = @transform_1, window_bounds = array<i64: 8, 9>}, {pipeline_mode = #tpu.pipeline_mode<synchronous>, transform_indices = @transform_2, window_bounds = array<i64: 8, 840>}, {transform_indices = @transform_3, window_bounds = array<i64: 2, 8, 840>}, {transform_indices = @transform_4, window_bounds = array<i64: 1, 8, 1>}, {transform_indices = @transform_5, window_bounds = array<i64: 1, 8, 1>}]} {
    %c0 = arith.constant 0 : index
    %c0_0 = arith.constant 0 : index
    %0 = vector.load %arg2[%c0, %c0_0] : memref<8x9xf32, #tpu.memory_space<vmem>>, vector<8x9xf32>
    %c0_1 = arith.constant 0 : index
    %c0_2 = arith.constant 0 : index
    %1 = vector.load %arg3[%c0_1, %c0_2] : memref<8x840xf32, #tpu.memory_space<vmem>>, vector<8x840xf32>
    %cst = arith.constant 0.000000e+00 : f32
    %2 = vector.broadcast %cst : f32 to vector<8x1xf32>
    %cst_3 = arith.constant 0.000000e+00 : f32
    %3 = vector.broadcast %cst_3 : f32 to vector<8x1xf32>
    %4 = vector.extract_strided_slice %0 {offsets = [0, 0], sizes = [8, 1], strides = [1, 1]} : vector<8x9xf32> to vector<8x1xf32>
    %c0_4 = arith.constant 0 : index
    %c0_5 = arith.constant 0 : index
    %c0_6 = arith.constant 0 : index
    %5 = vector.load %arg1[%c0_4, %c0_5, %c0_6] : memref<2x1x902xf32, #tpu.memory_space<vmem>>, vector<1x1x840xf32>
    %6 = vector.shape_cast %5 : vector<1x1x840xf32> to vector<1x840xf32>
    %7 = vector.broadcast %4 : vector<8x1xf32> to vector<8x840xf32>
    %8 = vector.broadcast %6 : vector<1x840xf32> to vector<8x840xf32>
    %9 = arith.mulf %7, %8 : vector<8x840xf32>
    %10 = vector.extract_strided_slice %0 {offsets = [0, 1], sizes = [8, 1], strides = [1, 1]} : vector<8x9xf32> to vector<8x1xf32>
    %c0_7 = arith.constant 0 : index
    %c0_8 = arith.constant 0 : index
    %c1 = arith.constant 1 : index
    %11 = vector.load %arg1[%c0_7, %c0_8, %c1] : memref<2x1x902xf32, #tpu.memory_space<vmem>>, vector<1x1x840xf32>
    %12 = vector.shape_cast %11 : vector<1x1x840xf32> to vector<1x840xf32>
    %13 = vector.broadcast %10 : vector<8x1xf32> to vector<8x840xf32>
    %14 = vector.broadcast %12 : vector<1x840xf32> to vector<8x840xf32>
    %15 = arith.mulf %13, %14 : vector<8x840xf32>
    %16 = arith.addf %9, %15 : vector<8x840xf32>
    %17 = vector.extract_strided_slice %0 {offsets = [0, 2], sizes = [8, 1], strides = [1, 1]} : vector<8x9xf32> to vector<8x1xf32>
    %c0_9 = arith.constant 0 : index
    %c0_10 = arith.constant 0 : index
    %c2 = arith.constant 2 : index
    %18 = vector.load %arg1[%c0_9, %c0_10, %c2] : memref<2x1x902xf32, #tpu.memory_space<vmem>>, vector<1x1x840xf32>
    %19 = vector.shape_cast %18 : vector<1x1x840xf32> to vector<1x840xf32>
    %20 = vector.broadcast %17 : vector<8x1xf32> to vector<8x840xf32>
    %21 = vector.broadcast %19 : vector<1x840xf32> to vector<8x840xf32>
    %22 = arith.mulf %20, %21 : vector<8x840xf32>
    %23 = arith.addf %16, %22 : vector<8x840xf32>
    %24 = vector.extract_strided_slice %0 {offsets = [0, 3], sizes = [8, 1], strides = [1, 1]} : vector<8x9xf32> to vector<8x1xf32>
    %c0_11 = arith.constant 0 : index
    %c0_12 = arith.constant 0 : index
    %c30 = arith.constant 30 : index
    %25 = vector.load %arg1[%c0_11, %c0_12, %c30] : memref<2x1x902xf32, #tpu.memory_space<vmem>>, vector<1x1x840xf32>
    %26 = vector.shape_cast %25 : vector<1x1x840xf32> to vector<1x840xf32>
    %27 = vector.broadcast %24 : vector<8x1xf32> to vector<8x840xf32>
    %28 = vector.broadcast %26 : vector<1x840xf32> to vector<8x840xf32>
    %29 = arith.mulf %27, %28 : vector<8x840xf32>
    %30 = arith.addf %23, %29 : vector<8x840xf32>
    %31 = vector.extract_strided_slice %0 {offsets = [0, 4], sizes = [8, 1], strides = [1, 1]} : vector<8x9xf32> to vector<8x1xf32>
    %c0_13 = arith.constant 0 : index
    %c0_14 = arith.constant 0 : index
    %c31 = arith.constant 31 : index
    %32 = vector.load %arg1[%c0_13, %c0_14, %c31] : memref<2x1x902xf32, #tpu.memory_space<vmem>>, vector<1x1x840xf32>
    %33 = vector.shape_cast %32 : vector<1x1x840xf32> to vector<1x840xf32>
    %34 = vector.broadcast %31 : vector<8x1xf32> to vector<8x840xf32>
    %35 = vector.broadcast %33 : vector<1x840xf32> to vector<8x840xf32>
    %36 = arith.mulf %34, %35 : vector<8x840xf32>
    %37 = arith.addf %30, %36 : vector<8x840xf32>
    %38 = vector.extract_strided_slice %0 {offsets = [0, 5], sizes = [8, 1], strides = [1, 1]} : vector<8x9xf32> to vector<8x1xf32>
    %c0_15 = arith.constant 0 : index
    %c0_16 = arith.constant 0 : index
    %c32 = arith.constant 32 : index
    %39 = vector.load %arg1[%c0_15, %c0_16, %c32] : memref<2x1x902xf32, #tpu.memory_space<vmem>>, vector<1x1x840xf32>
    %40 = vector.shape_cast %39 : vector<1x1x840xf32> to vector<1x840xf32>
    %41 = vector.broadcast %38 : vector<8x1xf32> to vector<8x840xf32>
    %42 = vector.broadcast %40 : vector<1x840xf32> to vector<8x840xf32>
    %43 = arith.mulf %41, %42 : vector<8x840xf32>
    %44 = arith.addf %37, %43 : vector<8x840xf32>
    %45 = vector.extract_strided_slice %0 {offsets = [0, 6], sizes = [8, 1], strides = [1, 1]} : vector<8x9xf32> to vector<8x1xf32>
    %c0_17 = arith.constant 0 : index
    %c0_18 = arith.constant 0 : index
    %c60 = arith.constant 60 : index
    %46 = vector.load %arg1[%c0_17, %c0_18, %c60] : memref<2x1x902xf32, #tpu.memory_space<vmem>>, vector<1x1x840xf32>
    %47 = vector.shape_cast %46 : vector<1x1x840xf32> to vector<1x840xf32>
    %48 = vector.broadcast %45 : vector<8x1xf32> to vector<8x840xf32>
    %49 = vector.broadcast %47 : vector<1x840xf32> to vector<8x840xf32>
    %50 = arith.mulf %48, %49 : vector<8x840xf32>
    %51 = arith.addf %44, %50 : vector<8x840xf32>
    %52 = vector.extract_strided_slice %0 {offsets = [0, 7], sizes = [8, 1], strides = [1, 1]} : vector<8x9xf32> to vector<8x1xf32>
    %c0_19 = arith.constant 0 : index
    %c0_20 = arith.constant 0 : index
    %c61 = arith.constant 61 : index
    %53 = vector.load %arg1[%c0_19, %c0_20, %c61] : memref<2x1x902xf32, #tpu.memory_space<vmem>>, vector<1x1x840xf32>
    %54 = vector.shape_cast %53 : vector<1x1x840xf32> to vector<1x840xf32>
    %55 = vector.broadcast %52 : vector<8x1xf32> to vector<8x840xf32>
    %56 = vector.broadcast %54 : vector<1x840xf32> to vector<8x840xf32>
    %57 = arith.mulf %55, %56 : vector<8x840xf32>
    %58 = arith.addf %51, %57 : vector<8x840xf32>
    %59 = vector.extract_strided_slice %0 {offsets = [0, 8], sizes = [8, 1], strides = [1, 1]} : vector<8x9xf32> to vector<8x1xf32>
    %c0_21 = arith.constant 0 : index
    %c0_22 = arith.constant 0 : index
    %c62 = arith.constant 62 : index
    %60 = vector.load %arg1[%c0_21, %c0_22, %c62] : memref<2x1x902xf32, #tpu.memory_space<vmem>>, vector<1x1x840xf32>
    %61 = vector.shape_cast %60 : vector<1x1x840xf32> to vector<1x840xf32>
    %62 = vector.broadcast %59 : vector<8x1xf32> to vector<8x840xf32>
    %63 = vector.broadcast %61 : vector<1x840xf32> to vector<8x840xf32>
    %64 = arith.mulf %62, %63 : vector<8x840xf32>
    %65 = arith.addf %58, %64 : vector<8x840xf32>
    %c0_23 = arith.constant 0 : index
    %c0_24 = arith.constant 0 : index
    %c0_25 = arith.constant 0 : index
    %66 = vector.load %arg4[%c0_23, %c0_24, %c0_25] : memref<2x8x840xf32, #tpu.memory_space<vmem>>, vector<1x8x840xf32>
    %67 = vector.shape_cast %66 : vector<1x8x840xf32> to vector<8x840xf32>
    %68 = vector.shape_cast %65 : vector<8x840xf32> to vector<1x8x840xf32>
    tpu.vector_store %arg4[%c0_23, %c0_24, %c0_25], %68 {strides = array<i32>} : memref<2x8x840xf32, #tpu.memory_space<vmem>>, vector<1x8x840xf32>,
    %69 = arith.mulf %65, %1 : vector<8x840xf32>
    %cst_26 = arith.constant dense<0.000000e+00> : vector<8xf32>
    %70 = vector.multi_reduction <add>, %69, %cst_26 [1] : vector<8x840xf32> to vector<8xf32>
    %71 = vector.shape_cast %70 : vector<8xf32> to vector<8x1xf32>
    %72 = arith.addf %2, %71 : vector<8x1xf32>
    %73 = arith.mulf %69, %65 : vector<8x840xf32>
    %cst_27 = arith.constant dense<0.000000e+00> : vector<8xf32>
    %74 = vector.multi_reduction <add>, %73, %cst_27 [1] : vector<8x840xf32> to vector<8xf32>
    %75 = vector.shape_cast %74 : vector<8xf32> to vector<8x1xf32>
    %76 = arith.addf %3, %75 : vector<8x1xf32>
    %77 = vector.extract_strided_slice %0 {offsets = [0, 0], sizes = [8, 1], strides = [1, 1]} : vector<8x9xf32> to vector<8x1xf32>
    %c1_28 = arith.constant 1 : index
    %c0_29 = arith.constant 0 : index
    %c0_30 = arith.constant 0 : index
    %78 = vector.load %arg1[%c1_28, %c0_29, %c0_30] : memref<2x1x902xf32, #tpu.memory_space<vmem>>, vector<1x1x840xf32>
    %79 = vector.shape_cast %78 : vector<1x1x840xf32> to vector<1x840xf32>
    %80 = vector.broadcast %77 : vector<8x1xf32> to vector<8x840xf32>
    %81 = vector.broadcast %79 : vector<1x840xf32> to vector<8x840xf32>
    %82 = arith.mulf %80, %81 : vector<8x840xf32>
    %83 = vector.extract_strided_slice %0 {offsets = [0, 1], sizes = [8, 1], strides = [1, 1]} : vector<8x9xf32> to vector<8x1xf32>
    %c1_31 = arith.constant 1 : index
    %c0_32 = arith.constant 0 : index
    %c1_33 = arith.constant 1 : index
    %84 = vector.load %arg1[%c1_31, %c0_32, %c1_33] : memref<2x1x902xf32, #tpu.memory_space<vmem>>, vector<1x1x840xf32>
    %85 = vector.shape_cast %84 : vector<1x1x840xf32> to vector<1x840xf32>
    %86 = vector.broadcast %83 : vector<8x1xf32> to vector<8x840xf32>
    %87 = vector.broadcast %85 : vector<1x840xf32> to vector<8x840xf32>
    %88 = arith.mulf %86, %87 : vector<8x840xf32>
    %89 = arith.addf %82, %88 : vector<8x840xf32>
    %90 = vector.extract_strided_slice %0 {offsets = [0, 2], sizes = [8, 1], strides = [1, 1]} : vector<8x9xf32> to vector<8x1xf32>
    %c1_34 = arith.constant 1 : index
    %c0_35 = arith.constant 0 : index
    %c2_36 = arith.constant 2 : index
    %91 = vector.load %arg1[%c1_34, %c0_35, %c2_36] : memref<2x1x902xf32, #tpu.memory_space<vmem>>, vector<1x1x840xf32>
    %92 = vector.shape_cast %91 : vector<1x1x840xf32> to vector<1x840xf32>
    %93 = vector.broadcast %90 : vector<8x1xf32> to vector<8x840xf32>
    %94 = vector.broadcast %92 : vector<1x840xf32> to vector<8x840xf32>
    %95 = arith.mulf %93, %94 : vector<8x840xf32>
    %96 = arith.addf %89, %95 : vector<8x840xf32>
    %97 = vector.extract_strided_slice %0 {offsets = [0, 3], sizes = [8, 1], strides = [1, 1]} : vector<8x9xf32> to vector<8x1xf32>
    %c1_37 = arith.constant 1 : index
    %c0_38 = arith.constant 0 : index
    %c30_39 = arith.constant 30 : index
    %98 = vector.load %arg1[%c1_37, %c0_38, %c30_39] : memref<2x1x902xf32, #tpu.memory_space<vmem>>, vector<1x1x840xf32>
    %99 = vector.shape_cast %98 : vector<1x1x840xf32> to vector<1x840xf32>
    %100 = vector.broadcast %97 : vector<8x1xf32> to vector<8x840xf32>
    %101 = vector.broadcast %99 : vector<1x840xf32> to vector<8x840xf32>
    %102 = arith.mulf %100, %101 : vector<8x840xf32>
    %103 = arith.addf %96, %102 : vector<8x840xf32>
    %104 = vector.extract_strided_slice %0 {offsets = [0, 4], sizes = [8, 1], strides = [1, 1]} : vector<8x9xf32> to vector<8x1xf32>
    %c1_40 = arith.constant 1 : index
    %c0_41 = arith.constant 0 : index
    %c31_42 = arith.constant 31 : index
    %105 = vector.load %arg1[%c1_40, %c0_41, %c31_42] : memref<2x1x902xf32, #tpu.memory_space<vmem>>, vector<1x1x840xf32>
    %106 = vector.shape_cast %105 : vector<1x1x840xf32> to vector<1x840xf32>
    %107 = vector.broadcast %104 : vector<8x1xf32> to vector<8x840xf32>
    %108 = vector.broadcast %106 : vector<1x840xf32> to vector<8x840xf32>
    %109 = arith.mulf %107, %108 : vector<8x840xf32>
    %110 = arith.addf %103, %109 : vector<8x840xf32>
    %111 = vector.extract_strided_slice %0 {offsets = [0, 5], sizes = [8, 1], strides = [1, 1]} : vector<8x9xf32> to vector<8x1xf32>
    %c1_43 = arith.constant 1 : index
    %c0_44 = arith.constant 0 : index
    %c32_45 = arith.constant 32 : index
    %112 = vector.load %arg1[%c1_43, %c0_44, %c32_45] : memref<2x1x902xf32, #tpu.memory_space<vmem>>, vector<1x1x840xf32>
    %113 = vector.shape_cast %112 : vector<1x1x840xf32> to vector<1x840xf32>
    %114 = vector.broadcast %111 : vector<8x1xf32> to vector<8x840xf32>
    %115 = vector.broadcast %113 : vector<1x840xf32> to vector<8x840xf32>
    %116 = arith.mulf %114, %115 : vector<8x840xf32>
    %117 = arith.addf %110, %116 : vector<8x840xf32>
    %118 = vector.extract_strided_slice %0 {offsets = [0, 6], sizes = [8, 1], strides = [1, 1]} : vector<8x9xf32> to vector<8x1xf32>
    %c1_46 = arith.constant 1 : index
    %c0_47 = arith.constant 0 : index
    %c60_48 = arith.constant 60 : index
    %119 = vector.load %arg1[%c1_46, %c0_47, %c60_48] : memref<2x1x902xf32, #tpu.memory_space<vmem>>, vector<1x1x840xf32>
    %120 = vector.shape_cast %119 : vector<1x1x840xf32> to vector<1x840xf32>
    %121 = vector.broadcast %118 : vector<8x1xf32> to vector<8x840xf32>
    %122 = vector.broadcast %120 : vector<1x840xf32> to vector<8x840xf32>
    %123 = arith.mulf %121, %122 : vector<8x840xf32>
    %124 = arith.addf %117, %123 : vector<8x840xf32>
    %125 = vector.extract_strided_slice %0 {offsets = [0, 7], sizes = [8, 1], strides = [1, 1]} : vector<8x9xf32> to vector<8x1xf32>
    %c1_49 = arith.constant 1 : index
    %c0_50 = arith.constant 0 : index
    %c61_51 = arith.constant 61 : index
    %126 = vector.load %arg1[%c1_49, %c0_50, %c61_51] : memref<2x1x902xf32, #tpu.memory_space<vmem>>, vector<1x1x840xf32>
    %127 = vector.shape_cast %126 : vector<1x1x840xf32> to vector<1x840xf32>
    %128 = vector.broadcast %125 : vector<8x1xf32> to vector<8x840xf32>
    %129 = vector.broadcast %127 : vector<1x840xf32> to vector<8x840xf32>
    %130 = arith.mulf %128, %129 : vector<8x840xf32>
    %131 = arith.addf %124, %130 : vector<8x840xf32>
    %132 = vector.extract_strided_slice %0 {offsets = [0, 8], sizes = [8, 1], strides = [1, 1]} : vector<8x9xf32> to vector<8x1xf32>
    %c1_52 = arith.constant 1 : index
    %c0_53 = arith.constant 0 : index
    %c62_54 = arith.constant 62 : index
    %133 = vector.load %arg1[%c1_52, %c0_53, %c62_54] : memref<2x1x902xf32, #tpu.memory_space<vmem>>, vector<1x1x840xf32>
    %134 = vector.shape_cast %133 : vector<1x1x840xf32> to vector<1x840xf32>
    %135 = vector.broadcast %132 : vector<8x1xf32> to vector<8x840xf32>
    %136 = vector.broadcast %134 : vector<1x840xf32> to vector<8x840xf32>
    %137 = arith.mulf %135, %136 : vector<8x840xf32>
    %138 = arith.addf %131, %137 : vector<8x840xf32>
    %c1_55 = arith.constant 1 : index
    %c0_56 = arith.constant 0 : index
    %c0_57 = arith.constant 0 : index
    %139 = vector.load %arg4[%c1_55, %c0_56, %c0_57] : memref<2x8x840xf32, #tpu.memory_space<vmem>>, vector<1x8x840xf32>
    %140 = vector.shape_cast %139 : vector<1x8x840xf32> to vector<8x840xf32>
    %141 = vector.shape_cast %138 : vector<8x840xf32> to vector<1x8x840xf32>
    tpu.vector_store %arg4[%c1_55, %c0_56, %c0_57], %141 {strides = array<i32>} : memref<2x8x840xf32, #tpu.memory_space<vmem>>, vector<1x8x840xf32>,
    %142 = arith.mulf %138, %1 : vector<8x840xf32>
    %cst_58 = arith.constant dense<0.000000e+00> : vector<8xf32>
    %143 = vector.multi_reduction <add>, %142, %cst_58 [1] : vector<8x840xf32> to vector<8xf32>
    %144 = vector.shape_cast %143 : vector<8xf32> to vector<8x1xf32>
    %145 = arith.addf %72, %144 : vector<8x1xf32>
    %146 = arith.mulf %142, %138 : vector<8x840xf32>
    %cst_59 = arith.constant dense<0.000000e+00> : vector<8xf32>
    %147 = vector.multi_reduction <add>, %146, %cst_59 [1] : vector<8x840xf32> to vector<8xf32>
    %148 = vector.shape_cast %147 : vector<8xf32> to vector<8x1xf32>
    %149 = arith.addf %76, %148 : vector<8x1xf32>
    %c0_60 = arith.constant 0 : index
    %c0_61 = arith.constant 0 : index
    %c0_62 = arith.constant 0 : index
    %150 = vector.load %arg5[%c0_60, %c0_61, %c0_62] : memref<1x8x1xf32, #tpu.memory_space<vmem>>, vector<1x8x1xf32>
    %151 = vector.shape_cast %150 : vector<1x8x1xf32> to vector<8x1xf32>
    %152 = vector.shape_cast %145 : vector<8x1xf32> to vector<1x8x1xf32>
    tpu.vector_store %arg5[%c0_60, %c0_61, %c0_62], %152 {strides = array<i32>} : memref<1x8x1xf32, #tpu.memory_space<vmem>>, vector<1x8x1xf32>,
    %c0_63 = arith.constant 0 : index
    %c0_64 = arith.constant 0 : index
    %c0_65 = arith.constant 0 : index
    %153 = vector.load %arg6[%c0_63, %c0_64, %c0_65] : memref<1x8x1xf32, #tpu.memory_space<vmem>>, vector<1x8x1xf32>
    %154 = vector.shape_cast %153 : vector<1x8x1xf32> to vector<8x1xf32>
    %155 = vector.shape_cast %149 : vector<8x1xf32> to vector<1x8x1xf32>
    tpu.vector_store %arg6[%c0_63, %c0_64, %c0_65], %155 {strides = array<i32>} : memref<1x8x1xf32, #tpu.memory_space<vmem>>, vector<1x8x1xf32>,
    return
  }
  func.func @transform_0(%arg0: i32) -> (i32, i32, i32) {
    %c0_i32 = arith.constant 0 : i32
    %c0_i32_0 = arith.constant 0 : i32
    %c0_i32_1 = arith.constant 0 : i32
    return %arg0, %c0_i32, %c0_i32_0 : i32, i32, i32
  }
  func.func @transform_1(%arg0: i32) -> (i32, i32) {
    %c0_i32 = arith.constant 0 : i32
    %c0_i32_0 = arith.constant 0 : i32
    %c0_i32_1 = arith.constant 0 : i32
    return %c0_i32, %c0_i32_0 : i32, i32
  }
  func.func @transform_2(%arg0: i32) -> (i32, i32) {
    %c0_i32 = arith.constant 0 : i32
    %c0_i32_0 = arith.constant 0 : i32
    %c0_i32_1 = arith.constant 0 : i32
    return %c0_i32, %c0_i32_0 : i32, i32
  }
  func.func @transform_3(%arg0: i32) -> (i32, i32, i32) {
    %c0_i32 = arith.constant 0 : i32
    %c0_i32_0 = arith.constant 0 : i32
    %c0_i32_1 = arith.constant 0 : i32
    return %arg0, %c0_i32, %c0_i32_0 : i32, i32, i32
  }
  func.func @transform_4(%arg0: i32) -> (i32, i32, i32) {
    %c0_i32 = arith.constant 0 : i32
    %c0_i32_0 = arith.constant 0 : i32
    %c0_i32_1 = arith.constant 0 : i32
    return %arg0, %c0_i32, %c0_i32_0 : i32, i32, i32
  }
  func.func @transform_5(%arg0: i32) -> (i32, i32, i32) {
    %c0_i32 = arith.constant 0 : i32
    %c0_i32_0 = arith.constant 0 : i32
    %c0_i32_1 = arith.constant 0 : i32
    return %arg0, %c0_i32, %c0_i32_0 : i32, i32, i32
  }
}

module attributes {stable_mosaic.version = 11 : i64} {
  func.func @kernel(%arg0: i32, %arg1: memref<2x8x902xf32, #tpu.memory_space<vmem>>, %arg2: memref<8x72xf32, #tpu.memory_space<vmem>>, %arg3: memref<8x840xf32, #tpu.memory_space<vmem>>, %arg4: memref<2x8x840xf32, #tpu.memory_space<vmem>>, %arg5: memref<1x8x1xf32, #tpu.memory_space<vmem>>, %arg6: memref<1x8x1xf32, #tpu.memory_space<vmem>>, %arg7: memref<72x840xf32, #tpu.memory_space<vmem>>) attributes {dimension_semantics = [#tpu.dimension_semantics<parallel>], iteration_bounds = array<i64: 1>, scalar_prefetch = 0 : i64, scratch_operands = 1 : i64, tpu.core_type = #tpu.core_type<tc>, window_params = [{transform_indices = @transform_0, window_bounds = array<i64: 2, 8, 902>}, {pipeline_mode = #tpu.pipeline_mode<synchronous>, transform_indices = @transform_1, window_bounds = array<i64: 8, 72>}, {pipeline_mode = #tpu.pipeline_mode<synchronous>, transform_indices = @transform_2, window_bounds = array<i64: 8, 840>}, {transform_indices = @transform_3, window_bounds = array<i64: 2, 8, 840>}, {transform_indices = @transform_4, window_bounds = array<i64: 1, 8, 1>}, {transform_indices = @transform_5, window_bounds = array<i64: 1, 8, 1>}]} {
    %c0 = arith.constant 0 : index
    %c0_0 = arith.constant 0 : index
    %0 = vector.load %arg2[%c0, %c0_0] : memref<8x72xf32, #tpu.memory_space<vmem>>, vector<8x72xf32>
    %c0_1 = arith.constant 0 : index
    %c0_2 = arith.constant 0 : index
    %1 = vector.load %arg3[%c0_1, %c0_2] : memref<8x840xf32, #tpu.memory_space<vmem>>, vector<8x840xf32>
    %cst = arith.constant 0.000000e+00 : f32
    %2 = vector.broadcast %cst : f32 to vector<8x1xf32>
    %cst_3 = arith.constant 0.000000e+00 : f32
    %3 = vector.broadcast %cst_3 : f32 to vector<8x1xf32>
    %c0_4 = arith.constant 0 : index
    %c0_5 = arith.constant 0 : index
    %c0_6 = arith.constant 0 : index
    %4 = vector.load %arg1[%c0_4, %c0_5, %c0_6] : memref<2x8x902xf32, #tpu.memory_space<vmem>>, vector<1x8x840xf32>
    %5 = vector.shape_cast %4 : vector<1x8x840xf32> to vector<8x840xf32>
    %c0_7 = arith.constant 0 : index
    %c0_8 = arith.constant 0 : index
    %6 = vector.load %arg7[%c0_7, %c0_8] : memref<72x840xf32, #tpu.memory_space<vmem>>, vector<8x840xf32>
    tpu.vector_store %arg7[%c0_7, %c0_8], %5 {strides = array<i32>} : memref<72x840xf32, #tpu.memory_space<vmem>>, vector<8x840xf32>,
    %c0_9 = arith.constant 0 : index
    %c0_10 = arith.constant 0 : index
    %c1 = arith.constant 1 : index
    %7 = vector.load %arg1[%c0_9, %c0_10, %c1] : memref<2x8x902xf32, #tpu.memory_space<vmem>>, vector<1x8x840xf32>
    %8 = vector.shape_cast %7 : vector<1x8x840xf32> to vector<8x840xf32>
    %c8 = arith.constant 8 : index
    %c0_11 = arith.constant 0 : index
    %9 = vector.load %arg7[%c8, %c0_11] : memref<72x840xf32, #tpu.memory_space<vmem>>, vector<8x840xf32>
    tpu.vector_store %arg7[%c8, %c0_11], %8 {strides = array<i32>} : memref<72x840xf32, #tpu.memory_space<vmem>>, vector<8x840xf32>,
    %c0_12 = arith.constant 0 : index
    %c0_13 = arith.constant 0 : index
    %c2 = arith.constant 2 : index
    %10 = vector.load %arg1[%c0_12, %c0_13, %c2] : memref<2x8x902xf32, #tpu.memory_space<vmem>>, vector<1x8x840xf32>
    %11 = vector.shape_cast %10 : vector<1x8x840xf32> to vector<8x840xf32>
    %c16 = arith.constant 16 : index
    %c0_14 = arith.constant 0 : index
    %12 = vector.load %arg7[%c16, %c0_14] : memref<72x840xf32, #tpu.memory_space<vmem>>, vector<8x840xf32>
    tpu.vector_store %arg7[%c16, %c0_14], %11 {strides = array<i32>} : memref<72x840xf32, #tpu.memory_space<vmem>>, vector<8x840xf32>,
    %c0_15 = arith.constant 0 : index
    %c0_16 = arith.constant 0 : index
    %c30 = arith.constant 30 : index
    %13 = vector.load %arg1[%c0_15, %c0_16, %c30] : memref<2x8x902xf32, #tpu.memory_space<vmem>>, vector<1x8x840xf32>
    %14 = vector.shape_cast %13 : vector<1x8x840xf32> to vector<8x840xf32>
    %c24 = arith.constant 24 : index
    %c0_17 = arith.constant 0 : index
    %15 = vector.load %arg7[%c24, %c0_17] : memref<72x840xf32, #tpu.memory_space<vmem>>, vector<8x840xf32>
    tpu.vector_store %arg7[%c24, %c0_17], %14 {strides = array<i32>} : memref<72x840xf32, #tpu.memory_space<vmem>>, vector<8x840xf32>,
    %c0_18 = arith.constant 0 : index
    %c0_19 = arith.constant 0 : index
    %c31 = arith.constant 31 : index
    %16 = vector.load %arg1[%c0_18, %c0_19, %c31] : memref<2x8x902xf32, #tpu.memory_space<vmem>>, vector<1x8x840xf32>
    %17 = vector.shape_cast %16 : vector<1x8x840xf32> to vector<8x840xf32>
    %c32 = arith.constant 32 : index
    %c0_20 = arith.constant 0 : index
    %18 = vector.load %arg7[%c32, %c0_20] : memref<72x840xf32, #tpu.memory_space<vmem>>, vector<8x840xf32>
    tpu.vector_store %arg7[%c32, %c0_20], %17 {strides = array<i32>} : memref<72x840xf32, #tpu.memory_space<vmem>>, vector<8x840xf32>,
    %c0_21 = arith.constant 0 : index
    %c0_22 = arith.constant 0 : index
    %c32_23 = arith.constant 32 : index
    %19 = vector.load %arg1[%c0_21, %c0_22, %c32_23] : memref<2x8x902xf32, #tpu.memory_space<vmem>>, vector<1x8x840xf32>
    %20 = vector.shape_cast %19 : vector<1x8x840xf32> to vector<8x840xf32>
    %c40 = arith.constant 40 : index
    %c0_24 = arith.constant 0 : index
    %21 = vector.load %arg7[%c40, %c0_24] : memref<72x840xf32, #tpu.memory_space<vmem>>, vector<8x840xf32>
    tpu.vector_store %arg7[%c40, %c0_24], %20 {strides = array<i32>} : memref<72x840xf32, #tpu.memory_space<vmem>>, vector<8x840xf32>,
    %c0_25 = arith.constant 0 : index
    %c0_26 = arith.constant 0 : index
    %c60 = arith.constant 60 : index
    %22 = vector.load %arg1[%c0_25, %c0_26, %c60] : memref<2x8x902xf32, #tpu.memory_space<vmem>>, vector<1x8x840xf32>
    %23 = vector.shape_cast %22 : vector<1x8x840xf32> to vector<8x840xf32>
    %c48 = arith.constant 48 : index
    %c0_27 = arith.constant 0 : index
    %24 = vector.load %arg7[%c48, %c0_27] : memref<72x840xf32, #tpu.memory_space<vmem>>, vector<8x840xf32>
    tpu.vector_store %arg7[%c48, %c0_27], %23 {strides = array<i32>} : memref<72x840xf32, #tpu.memory_space<vmem>>, vector<8x840xf32>,
    %c0_28 = arith.constant 0 : index
    %c0_29 = arith.constant 0 : index
    %c61 = arith.constant 61 : index
    %25 = vector.load %arg1[%c0_28, %c0_29, %c61] : memref<2x8x902xf32, #tpu.memory_space<vmem>>, vector<1x8x840xf32>
    %26 = vector.shape_cast %25 : vector<1x8x840xf32> to vector<8x840xf32>
    %c56 = arith.constant 56 : index
    %c0_30 = arith.constant 0 : index
    %27 = vector.load %arg7[%c56, %c0_30] : memref<72x840xf32, #tpu.memory_space<vmem>>, vector<8x840xf32>
    tpu.vector_store %arg7[%c56, %c0_30], %26 {strides = array<i32>} : memref<72x840xf32, #tpu.memory_space<vmem>>, vector<8x840xf32>,
    %c0_31 = arith.constant 0 : index
    %c0_32 = arith.constant 0 : index
    %c62 = arith.constant 62 : index
    %28 = vector.load %arg1[%c0_31, %c0_32, %c62] : memref<2x8x902xf32, #tpu.memory_space<vmem>>, vector<1x8x840xf32>
    %29 = vector.shape_cast %28 : vector<1x8x840xf32> to vector<8x840xf32>
    %c64 = arith.constant 64 : index
    %c0_33 = arith.constant 0 : index
    %30 = vector.load %arg7[%c64, %c0_33] : memref<72x840xf32, #tpu.memory_space<vmem>>, vector<8x840xf32>
    tpu.vector_store %arg7[%c64, %c0_33], %29 {strides = array<i32>} : memref<72x840xf32, #tpu.memory_space<vmem>>, vector<8x840xf32>,
    %c0_34 = arith.constant 0 : index
    %c0_35 = arith.constant 0 : index
    %31 = vector.load %arg7[%c0_34, %c0_35] : memref<72x840xf32, #tpu.memory_space<vmem>>, vector<72x840xf32>
    %cst_36 = arith.constant dense<0.000000e+00> : vector<8x840xf32>
    %32 = tpu.matmul %0, %31, %cst_36 {dimension_numbers = #tpu.dot_dimension_numbers<[1], [0], [0], [1], [0, 0, 1, 1], [], []>} : vector<8x72xf32>, vector<72x840xf32>, vector<8x840xf32> -> vector<8x840xf32>
    %c0_37 = arith.constant 0 : index
    %c0_38 = arith.constant 0 : index
    %c0_39 = arith.constant 0 : index
    %33 = vector.load %arg4[%c0_37, %c0_38, %c0_39] : memref<2x8x840xf32, #tpu.memory_space<vmem>>, vector<1x8x840xf32>
    %34 = vector.shape_cast %33 : vector<1x8x840xf32> to vector<8x840xf32>
    %35 = vector.shape_cast %32 : vector<8x840xf32> to vector<1x8x840xf32>
    tpu.vector_store %arg4[%c0_37, %c0_38, %c0_39], %35 {strides = array<i32>} : memref<2x8x840xf32, #tpu.memory_space<vmem>>, vector<1x8x840xf32>,
    %36 = arith.mulf %32, %1 : vector<8x840xf32>
    %cst_40 = arith.constant dense<0.000000e+00> : vector<8xf32>
    %37 = vector.multi_reduction <add>, %36, %cst_40 [1] : vector<8x840xf32> to vector<8xf32>
    %38 = vector.shape_cast %37 : vector<8xf32> to vector<8x1xf32>
    %39 = arith.addf %2, %38 : vector<8x1xf32>
    %40 = arith.mulf %36, %32 : vector<8x840xf32>
    %cst_41 = arith.constant dense<0.000000e+00> : vector<8xf32>
    %41 = vector.multi_reduction <add>, %40, %cst_41 [1] : vector<8x840xf32> to vector<8xf32>
    %42 = vector.shape_cast %41 : vector<8xf32> to vector<8x1xf32>
    %43 = arith.addf %3, %42 : vector<8x1xf32>
    %c1_42 = arith.constant 1 : index
    %c0_43 = arith.constant 0 : index
    %c0_44 = arith.constant 0 : index
    %44 = vector.load %arg1[%c1_42, %c0_43, %c0_44] : memref<2x8x902xf32, #tpu.memory_space<vmem>>, vector<1x8x840xf32>
    %45 = vector.shape_cast %44 : vector<1x8x840xf32> to vector<8x840xf32>
    %c0_45 = arith.constant 0 : index
    %c0_46 = arith.constant 0 : index
    %46 = vector.load %arg7[%c0_45, %c0_46] : memref<72x840xf32, #tpu.memory_space<vmem>>, vector<8x840xf32>
    tpu.vector_store %arg7[%c0_45, %c0_46], %45 {strides = array<i32>} : memref<72x840xf32, #tpu.memory_space<vmem>>, vector<8x840xf32>,
    %c1_47 = arith.constant 1 : index
    %c0_48 = arith.constant 0 : index
    %c1_49 = arith.constant 1 : index
    %47 = vector.load %arg1[%c1_47, %c0_48, %c1_49] : memref<2x8x902xf32, #tpu.memory_space<vmem>>, vector<1x8x840xf32>
    %48 = vector.shape_cast %47 : vector<1x8x840xf32> to vector<8x840xf32>
    %c8_50 = arith.constant 8 : index
    %c0_51 = arith.constant 0 : index
    %49 = vector.load %arg7[%c8_50, %c0_51] : memref<72x840xf32, #tpu.memory_space<vmem>>, vector<8x840xf32>
    tpu.vector_store %arg7[%c8_50, %c0_51], %48 {strides = array<i32>} : memref<72x840xf32, #tpu.memory_space<vmem>>, vector<8x840xf32>,
    %c1_52 = arith.constant 1 : index
    %c0_53 = arith.constant 0 : index
    %c2_54 = arith.constant 2 : index
    %50 = vector.load %arg1[%c1_52, %c0_53, %c2_54] : memref<2x8x902xf32, #tpu.memory_space<vmem>>, vector<1x8x840xf32>
    %51 = vector.shape_cast %50 : vector<1x8x840xf32> to vector<8x840xf32>
    %c16_55 = arith.constant 16 : index
    %c0_56 = arith.constant 0 : index
    %52 = vector.load %arg7[%c16_55, %c0_56] : memref<72x840xf32, #tpu.memory_space<vmem>>, vector<8x840xf32>
    tpu.vector_store %arg7[%c16_55, %c0_56], %51 {strides = array<i32>} : memref<72x840xf32, #tpu.memory_space<vmem>>, vector<8x840xf32>,
    %c1_57 = arith.constant 1 : index
    %c0_58 = arith.constant 0 : index
    %c30_59 = arith.constant 30 : index
    %53 = vector.load %arg1[%c1_57, %c0_58, %c30_59] : memref<2x8x902xf32, #tpu.memory_space<vmem>>, vector<1x8x840xf32>
    %54 = vector.shape_cast %53 : vector<1x8x840xf32> to vector<8x840xf32>
    %c24_60 = arith.constant 24 : index
    %c0_61 = arith.constant 0 : index
    %55 = vector.load %arg7[%c24_60, %c0_61] : memref<72x840xf32, #tpu.memory_space<vmem>>, vector<8x840xf32>
    tpu.vector_store %arg7[%c24_60, %c0_61], %54 {strides = array<i32>} : memref<72x840xf32, #tpu.memory_space<vmem>>, vector<8x840xf32>,
    %c1_62 = arith.constant 1 : index
    %c0_63 = arith.constant 0 : index
    %c31_64 = arith.constant 31 : index
    %56 = vector.load %arg1[%c1_62, %c0_63, %c31_64] : memref<2x8x902xf32, #tpu.memory_space<vmem>>, vector<1x8x840xf32>
    %57 = vector.shape_cast %56 : vector<1x8x840xf32> to vector<8x840xf32>
    %c32_65 = arith.constant 32 : index
    %c0_66 = arith.constant 0 : index
    %58 = vector.load %arg7[%c32_65, %c0_66] : memref<72x840xf32, #tpu.memory_space<vmem>>, vector<8x840xf32>
    tpu.vector_store %arg7[%c32_65, %c0_66], %57 {strides = array<i32>} : memref<72x840xf32, #tpu.memory_space<vmem>>, vector<8x840xf32>,
    %c1_67 = arith.constant 1 : index
    %c0_68 = arith.constant 0 : index
    %c32_69 = arith.constant 32 : index
    %59 = vector.load %arg1[%c1_67, %c0_68, %c32_69] : memref<2x8x902xf32, #tpu.memory_space<vmem>>, vector<1x8x840xf32>
    %60 = vector.shape_cast %59 : vector<1x8x840xf32> to vector<8x840xf32>
    %c40_70 = arith.constant 40 : index
    %c0_71 = arith.constant 0 : index
    %61 = vector.load %arg7[%c40_70, %c0_71] : memref<72x840xf32, #tpu.memory_space<vmem>>, vector<8x840xf32>
    tpu.vector_store %arg7[%c40_70, %c0_71], %60 {strides = array<i32>} : memref<72x840xf32, #tpu.memory_space<vmem>>, vector<8x840xf32>,
    %c1_72 = arith.constant 1 : index
    %c0_73 = arith.constant 0 : index
    %c60_74 = arith.constant 60 : index
    %62 = vector.load %arg1[%c1_72, %c0_73, %c60_74] : memref<2x8x902xf32, #tpu.memory_space<vmem>>, vector<1x8x840xf32>
    %63 = vector.shape_cast %62 : vector<1x8x840xf32> to vector<8x840xf32>
    %c48_75 = arith.constant 48 : index
    %c0_76 = arith.constant 0 : index
    %64 = vector.load %arg7[%c48_75, %c0_76] : memref<72x840xf32, #tpu.memory_space<vmem>>, vector<8x840xf32>
    tpu.vector_store %arg7[%c48_75, %c0_76], %63 {strides = array<i32>} : memref<72x840xf32, #tpu.memory_space<vmem>>, vector<8x840xf32>,
    %c1_77 = arith.constant 1 : index
    %c0_78 = arith.constant 0 : index
    %c61_79 = arith.constant 61 : index
    %65 = vector.load %arg1[%c1_77, %c0_78, %c61_79] : memref<2x8x902xf32, #tpu.memory_space<vmem>>, vector<1x8x840xf32>
    %66 = vector.shape_cast %65 : vector<1x8x840xf32> to vector<8x840xf32>
    %c56_80 = arith.constant 56 : index
    %c0_81 = arith.constant 0 : index
    %67 = vector.load %arg7[%c56_80, %c0_81] : memref<72x840xf32, #tpu.memory_space<vmem>>, vector<8x840xf32>
    tpu.vector_store %arg7[%c56_80, %c0_81], %66 {strides = array<i32>} : memref<72x840xf32, #tpu.memory_space<vmem>>, vector<8x840xf32>,
    %c1_82 = arith.constant 1 : index
    %c0_83 = arith.constant 0 : index
    %c62_84 = arith.constant 62 : index
    %68 = vector.load %arg1[%c1_82, %c0_83, %c62_84] : memref<2x8x902xf32, #tpu.memory_space<vmem>>, vector<1x8x840xf32>
    %69 = vector.shape_cast %68 : vector<1x8x840xf32> to vector<8x840xf32>
    %c64_85 = arith.constant 64 : index
    %c0_86 = arith.constant 0 : index
    %70 = vector.load %arg7[%c64_85, %c0_86] : memref<72x840xf32, #tpu.memory_space<vmem>>, vector<8x840xf32>
    tpu.vector_store %arg7[%c64_85, %c0_86], %69 {strides = array<i32>} : memref<72x840xf32, #tpu.memory_space<vmem>>, vector<8x840xf32>,
    %c0_87 = arith.constant 0 : index
    %c0_88 = arith.constant 0 : index
    %71 = vector.load %arg7[%c0_87, %c0_88] : memref<72x840xf32, #tpu.memory_space<vmem>>, vector<72x840xf32>
    %cst_89 = arith.constant dense<0.000000e+00> : vector<8x840xf32>
    %72 = tpu.matmul %0, %71, %cst_89 {dimension_numbers = #tpu.dot_dimension_numbers<[1], [0], [0], [1], [0, 0, 1, 1], [], []>} : vector<8x72xf32>, vector<72x840xf32>, vector<8x840xf32> -> vector<8x840xf32>
    %c1_90 = arith.constant 1 : index
    %c0_91 = arith.constant 0 : index
    %c0_92 = arith.constant 0 : index
    %73 = vector.load %arg4[%c1_90, %c0_91, %c0_92] : memref<2x8x840xf32, #tpu.memory_space<vmem>>, vector<1x8x840xf32>
    %74 = vector.shape_cast %73 : vector<1x8x840xf32> to vector<8x840xf32>
    %75 = vector.shape_cast %72 : vector<8x840xf32> to vector<1x8x840xf32>
    tpu.vector_store %arg4[%c1_90, %c0_91, %c0_92], %75 {strides = array<i32>} : memref<2x8x840xf32, #tpu.memory_space<vmem>>, vector<1x8x840xf32>,
    %76 = arith.mulf %72, %1 : vector<8x840xf32>
    %cst_93 = arith.constant dense<0.000000e+00> : vector<8xf32>
    %77 = vector.multi_reduction <add>, %76, %cst_93 [1] : vector<8x840xf32> to vector<8xf32>
    %78 = vector.shape_cast %77 : vector<8xf32> to vector<8x1xf32>
    %79 = arith.addf %39, %78 : vector<8x1xf32>
    %80 = arith.mulf %76, %72 : vector<8x840xf32>
    %cst_94 = arith.constant dense<0.000000e+00> : vector<8xf32>
    %81 = vector.multi_reduction <add>, %80, %cst_94 [1] : vector<8x840xf32> to vector<8xf32>
    %82 = vector.shape_cast %81 : vector<8xf32> to vector<8x1xf32>
    %83 = arith.addf %43, %82 : vector<8x1xf32>
    %c0_95 = arith.constant 0 : index
    %c0_96 = arith.constant 0 : index
    %c0_97 = arith.constant 0 : index
    %84 = vector.load %arg5[%c0_95, %c0_96, %c0_97] : memref<1x8x1xf32, #tpu.memory_space<vmem>>, vector<1x8x1xf32>
    %85 = vector.shape_cast %84 : vector<1x8x1xf32> to vector<8x1xf32>
    %86 = vector.shape_cast %79 : vector<8x1xf32> to vector<1x8x1xf32>
    tpu.vector_store %arg5[%c0_95, %c0_96, %c0_97], %86 {strides = array<i32>} : memref<1x8x1xf32, #tpu.memory_space<vmem>>, vector<1x8x1xf32>,
    %c0_98 = arith.constant 0 : index
    %c0_99 = arith.constant 0 : index
    %c0_100 = arith.constant 0 : index
    %87 = vector.load %arg6[%c0_98, %c0_99, %c0_100] : memref<1x8x1xf32, #tpu.memory_space<vmem>>, vector<1x8x1xf32>
    %88 = vector.shape_cast %87 : vector<1x8x1xf32> to vector<8x1xf32>
    %89 = vector.shape_cast %83 : vector<8x1xf32> to vector<1x8x1xf32>
    tpu.vector_store %arg6[%c0_98, %c0_99, %c0_100], %89 {strides = array<i32>} : memref<1x8x1xf32, #tpu.memory_space<vmem>>, vector<1x8x1xf32>,
    return
  }
  func.func @transform_0(%arg0: i32) -> (i32, i32, i32) {
    %c0_i32 = arith.constant 0 : i32
    %c0_i32_0 = arith.constant 0 : i32
    %c0_i32_1 = arith.constant 0 : i32
    return %arg0, %c0_i32, %c0_i32_0 : i32, i32, i32
  }
  func.func @transform_1(%arg0: i32) -> (i32, i32) {
    %c0_i32 = arith.constant 0 : i32
    %c0_i32_0 = arith.constant 0 : i32
    %c0_i32_1 = arith.constant 0 : i32
    return %c0_i32, %c0_i32_0 : i32, i32
  }
  func.func @transform_2(%arg0: i32) -> (i32, i32) {
    %c0_i32 = arith.constant 0 : i32
    %c0_i32_0 = arith.constant 0 : i32
    %c0_i32_1 = arith.constant 0 : i32
    return %c0_i32, %c0_i32_0 : i32, i32
  }
  func.func @transform_3(%arg0: i32) -> (i32, i32, i32) {
    %c0_i32 = arith.constant 0 : i32
    %c0_i32_0 = arith.constant 0 : i32
    %c0_i32_1 = arith.constant 0 : i32
    return %arg0, %c0_i32, %c0_i32_0 : i32, i32, i32
  }
  func.func @transform_4(%arg0: i32) -> (i32, i32, i32) {
    %c0_i32 = arith.constant 0 : i32
    %c0_i32_0 = arith.constant 0 : i32
    %c0_i32_1 = arith.constant 0 : i32
    return %arg0, %c0_i32, %c0_i32_0 : i32, i32, i32
  }
  func.func @transform_5(%arg0: i32) -> (i32, i32, i32) {
    %c0_i32 = arith.constant 0 : i32
    %c0_i32_0 = arith.constant 0 : i32
    %c0_i32_1 = arith.constant 0 : i32
    return %arg0, %c0_i32, %c0_i32_0 : i32, i32, i32
  }
}

module attributes {stable_mosaic.version = 11 : i64} {
  func.func @kernel(%arg0: i32, %arg1: memref<2x32x226xf32, #tpu.memory_space<vmem>>, %arg2: memref<8x128xf32, #tpu.memory_space<vmem>>, %arg3: memref<8x1xf32, #tpu.memory_space<vmem>>, %arg4: memref<2x8x210xf32, #tpu.memory_space<vmem>>, %arg5: memref<128x210xf32, #tpu.memory_space<vmem>>) attributes {dimension_semantics = [#tpu.dimension_semantics<parallel>], iteration_bounds = array<i64: 1>, scalar_prefetch = 0 : i64, scratch_operands = 1 : i64, tpu.core_type = #tpu.core_type<tc>, window_params = [{transform_indices = @transform_0, window_bounds = array<i64: 2, 32, 226>}, {pipeline_mode = #tpu.pipeline_mode<synchronous>, transform_indices = @transform_1, window_bounds = array<i64: 8, 128>}, {pipeline_mode = #tpu.pipeline_mode<synchronous>, transform_indices = @transform_2, window_bounds = array<i64: 8, 1>}, {transform_indices = @transform_3, window_bounds = array<i64: 2, 8, 210>}]} {
    %c0 = arith.constant 0 : index
    %c0_0 = arith.constant 0 : index
    %0 = vector.load %arg2[%c0, %c0_0] : memref<8x128xf32, #tpu.memory_space<vmem>>, vector<8x128xf32>
    %c0_1 = arith.constant 0 : index
    %c0_2 = arith.constant 0 : index
    %1 = vector.load %arg3[%c0_1, %c0_2] : memref<8x1xf32, #tpu.memory_space<vmem>>, vector<8x1xf32>
    %c0_3 = arith.constant 0 : index
    %c0_4 = arith.constant 0 : index
    %c0_5 = arith.constant 0 : index
    %2 = vector.load %arg1[%c0_3, %c0_4, %c0_5] : memref<2x32x226xf32, #tpu.memory_space<vmem>>, vector<1x32x210xf32>
    %3 = vector.shape_cast %2 : vector<1x32x210xf32> to vector<32x210xf32>
    %c0_6 = arith.constant 0 : index
    %c0_7 = arith.constant 0 : index
    %4 = vector.load %arg5[%c0_6, %c0_7] : memref<128x210xf32, #tpu.memory_space<vmem>>, vector<32x210xf32>
    tpu.vector_store %arg5[%c0_6, %c0_7], %3 {strides = array<i32>} : memref<128x210xf32, #tpu.memory_space<vmem>>, vector<32x210xf32>,
    %c0_8 = arith.constant 0 : index
    %c0_9 = arith.constant 0 : index
    %c1 = arith.constant 1 : index
    %5 = vector.load %arg1[%c0_8, %c0_9, %c1] : memref<2x32x226xf32, #tpu.memory_space<vmem>>, vector<1x32x210xf32>
    %6 = vector.shape_cast %5 : vector<1x32x210xf32> to vector<32x210xf32>
    %c32 = arith.constant 32 : index
    %c0_10 = arith.constant 0 : index
    %7 = vector.load %arg5[%c32, %c0_10] : memref<128x210xf32, #tpu.memory_space<vmem>>, vector<32x210xf32>
    tpu.vector_store %arg5[%c32, %c0_10], %6 {strides = array<i32>} : memref<128x210xf32, #tpu.memory_space<vmem>>, vector<32x210xf32>,
    %c0_11 = arith.constant 0 : index
    %c0_12 = arith.constant 0 : index
    %c15 = arith.constant 15 : index
    %8 = vector.load %arg1[%c0_11, %c0_12, %c15] : memref<2x32x226xf32, #tpu.memory_space<vmem>>, vector<1x32x210xf32>
    %9 = vector.shape_cast %8 : vector<1x32x210xf32> to vector<32x210xf32>
    %c64 = arith.constant 64 : index
    %c0_13 = arith.constant 0 : index
    %10 = vector.load %arg5[%c64, %c0_13] : memref<128x210xf32, #tpu.memory_space<vmem>>, vector<32x210xf32>
    tpu.vector_store %arg5[%c64, %c0_13], %9 {strides = array<i32>} : memref<128x210xf32, #tpu.memory_space<vmem>>, vector<32x210xf32>,
    %c0_14 = arith.constant 0 : index
    %c0_15 = arith.constant 0 : index
    %c16 = arith.constant 16 : index
    %11 = vector.load %arg1[%c0_14, %c0_15, %c16] : memref<2x32x226xf32, #tpu.memory_space<vmem>>, vector<1x32x210xf32>
    %12 = vector.shape_cast %11 : vector<1x32x210xf32> to vector<32x210xf32>
    %c96 = arith.constant 96 : index
    %c0_16 = arith.constant 0 : index
    %13 = vector.load %arg5[%c96, %c0_16] : memref<128x210xf32, #tpu.memory_space<vmem>>, vector<32x210xf32>
    tpu.vector_store %arg5[%c96, %c0_16], %12 {strides = array<i32>} : memref<128x210xf32, #tpu.memory_space<vmem>>, vector<32x210xf32>,
    %c0_17 = arith.constant 0 : index
    %c0_18 = arith.constant 0 : index
    %14 = vector.load %arg5[%c0_17, %c0_18] : memref<128x210xf32, #tpu.memory_space<vmem>>, vector<128x210xf32>
    %cst = arith.constant dense<0.000000e+00> : vector<8x210xf32>
    %15 = tpu.matmul %0, %14, %cst {dimension_numbers = #tpu.dot_dimension_numbers<[1], [0], [0], [1], [0, 0, 1, 1], [], []>} : vector<8x128xf32>, vector<128x210xf32>, vector<8x210xf32> -> vector<8x210xf32>
    %16 = vector.broadcast %1 : vector<8x1xf32> to vector<8x210xf32>
    %17 = arith.addf %15, %16 : vector<8x210xf32>
    %cst_19 = arith.constant 0.000000e+00 : f32
    %18 = vector.broadcast %cst_19 : f32 to vector<8x210xf32>
    %19 = arith.maximumf %17, %18 : vector<8x210xf32>
    %c0_20 = arith.constant 0 : index
    %c0_21 = arith.constant 0 : index
    %c0_22 = arith.constant 0 : index
    %20 = vector.load %arg4[%c0_20, %c0_21, %c0_22] : memref<2x8x210xf32, #tpu.memory_space<vmem>>, vector<1x8x210xf32>
    %21 = vector.shape_cast %20 : vector<1x8x210xf32> to vector<8x210xf32>
    %22 = vector.shape_cast %19 : vector<8x210xf32> to vector<1x8x210xf32>
    tpu.vector_store %arg4[%c0_20, %c0_21, %c0_22], %22 {strides = array<i32>} : memref<2x8x210xf32, #tpu.memory_space<vmem>>, vector<1x8x210xf32>,
    %c1_23 = arith.constant 1 : index
    %c0_24 = arith.constant 0 : index
    %c0_25 = arith.constant 0 : index
    %23 = vector.load %arg1[%c1_23, %c0_24, %c0_25] : memref<2x32x226xf32, #tpu.memory_space<vmem>>, vector<1x32x210xf32>
    %24 = vector.shape_cast %23 : vector<1x32x210xf32> to vector<32x210xf32>
    %c0_26 = arith.constant 0 : index
    %c0_27 = arith.constant 0 : index
    %25 = vector.load %arg5[%c0_26, %c0_27] : memref<128x210xf32, #tpu.memory_space<vmem>>, vector<32x210xf32>
    tpu.vector_store %arg5[%c0_26, %c0_27], %24 {strides = array<i32>} : memref<128x210xf32, #tpu.memory_space<vmem>>, vector<32x210xf32>,
    %c1_28 = arith.constant 1 : index
    %c0_29 = arith.constant 0 : index
    %c1_30 = arith.constant 1 : index
    %26 = vector.load %arg1[%c1_28, %c0_29, %c1_30] : memref<2x32x226xf32, #tpu.memory_space<vmem>>, vector<1x32x210xf32>
    %27 = vector.shape_cast %26 : vector<1x32x210xf32> to vector<32x210xf32>
    %c32_31 = arith.constant 32 : index
    %c0_32 = arith.constant 0 : index
    %28 = vector.load %arg5[%c32_31, %c0_32] : memref<128x210xf32, #tpu.memory_space<vmem>>, vector<32x210xf32>
    tpu.vector_store %arg5[%c32_31, %c0_32], %27 {strides = array<i32>} : memref<128x210xf32, #tpu.memory_space<vmem>>, vector<32x210xf32>,
    %c1_33 = arith.constant 1 : index
    %c0_34 = arith.constant 0 : index
    %c15_35 = arith.constant 15 : index
    %29 = vector.load %arg1[%c1_33, %c0_34, %c15_35] : memref<2x32x226xf32, #tpu.memory_space<vmem>>, vector<1x32x210xf32>
    %30 = vector.shape_cast %29 : vector<1x32x210xf32> to vector<32x210xf32>
    %c64_36 = arith.constant 64 : index
    %c0_37 = arith.constant 0 : index
    %31 = vector.load %arg5[%c64_36, %c0_37] : memref<128x210xf32, #tpu.memory_space<vmem>>, vector<32x210xf32>
    tpu.vector_store %arg5[%c64_36, %c0_37], %30 {strides = array<i32>} : memref<128x210xf32, #tpu.memory_space<vmem>>, vector<32x210xf32>,
    %c1_38 = arith.constant 1 : index
    %c0_39 = arith.constant 0 : index
    %c16_40 = arith.constant 16 : index
    %32 = vector.load %arg1[%c1_38, %c0_39, %c16_40] : memref<2x32x226xf32, #tpu.memory_space<vmem>>, vector<1x32x210xf32>
    %33 = vector.shape_cast %32 : vector<1x32x210xf32> to vector<32x210xf32>
    %c96_41 = arith.constant 96 : index
    %c0_42 = arith.constant 0 : index
    %34 = vector.load %arg5[%c96_41, %c0_42] : memref<128x210xf32, #tpu.memory_space<vmem>>, vector<32x210xf32>
    tpu.vector_store %arg5[%c96_41, %c0_42], %33 {strides = array<i32>} : memref<128x210xf32, #tpu.memory_space<vmem>>, vector<32x210xf32>,
    %c0_43 = arith.constant 0 : index
    %c0_44 = arith.constant 0 : index
    %35 = vector.load %arg5[%c0_43, %c0_44] : memref<128x210xf32, #tpu.memory_space<vmem>>, vector<128x210xf32>
    %cst_45 = arith.constant dense<0.000000e+00> : vector<8x210xf32>
    %36 = tpu.matmul %0, %35, %cst_45 {dimension_numbers = #tpu.dot_dimension_numbers<[1], [0], [0], [1], [0, 0, 1, 1], [], []>} : vector<8x128xf32>, vector<128x210xf32>, vector<8x210xf32> -> vector<8x210xf32>
    %37 = vector.broadcast %1 : vector<8x1xf32> to vector<8x210xf32>
    %38 = arith.addf %36, %37 : vector<8x210xf32>
    %cst_46 = arith.constant 0.000000e+00 : f32
    %39 = vector.broadcast %cst_46 : f32 to vector<8x210xf32>
    %40 = arith.maximumf %38, %39 : vector<8x210xf32>
    %c1_47 = arith.constant 1 : index
    %c0_48 = arith.constant 0 : index
    %c0_49 = arith.constant 0 : index
    %41 = vector.load %arg4[%c1_47, %c0_48, %c0_49] : memref<2x8x210xf32, #tpu.memory_space<vmem>>, vector<1x8x210xf32>
    %42 = vector.shape_cast %41 : vector<1x8x210xf32> to vector<8x210xf32>
    %43 = vector.shape_cast %40 : vector<8x210xf32> to vector<1x8x210xf32>
    tpu.vector_store %arg4[%c1_47, %c0_48, %c0_49], %43 {strides = array<i32>} : memref<2x8x210xf32, #tpu.memory_space<vmem>>, vector<1x8x210xf32>,
    return
  }
  func.func @transform_0(%arg0: i32) -> (i32, i32, i32) {
    %c0_i32 = arith.constant 0 : i32
    %c0_i32_0 = arith.constant 0 : i32
    %c0_i32_1 = arith.constant 0 : i32
    return %arg0, %c0_i32, %c0_i32_0 : i32, i32, i32
  }
  func.func @transform_1(%arg0: i32) -> (i32, i32) {
    %c0_i32 = arith.constant 0 : i32
    %c0_i32_0 = arith.constant 0 : i32
    %c0_i32_1 = arith.constant 0 : i32
    return %c0_i32, %c0_i32_0 : i32, i32
  }
  func.func @transform_2(%arg0: i32) -> (i32, i32) {
    %c0_i32 = arith.constant 0 : i32
    %c0_i32_0 = arith.constant 0 : i32
    %c0_i32_1 = arith.constant 0 : i32
    return %c0_i32, %c0_i32_0 : i32, i32
  }
  func.func @transform_3(%arg0: i32) -> (i32, i32, i32) {
    %c0_i32 = arith.constant 0 : i32
    %c0_i32_0 = arith.constant 0 : i32
    %c0_i32_1 = arith.constant 0 : i32
    return %arg0, %c0_i32, %c0_i32_0 : i32, i32, i32
  }
}

module attributes {stable_mosaic.version = 11 : i64} {
  func.func @kernel(%arg0: i32, %arg1: memref<2x32x65xf32, #tpu.memory_space<vmem>>, %arg2: memref<16x128xf32, #tpu.memory_space<vmem>>, %arg3: memref<16x56xf32, #tpu.memory_space<vmem>>, %arg4: memref<2x16x56xf32, #tpu.memory_space<vmem>>, %arg5: memref<1x16x1xf32, #tpu.memory_space<vmem>>, %arg6: memref<1x16x1xf32, #tpu.memory_space<vmem>>, %arg7: memref<128x56xf32, #tpu.memory_space<vmem>>) attributes {dimension_semantics = [#tpu.dimension_semantics<parallel>], iteration_bounds = array<i64: 1>, scalar_prefetch = 0 : i64, scratch_operands = 1 : i64, tpu.core_type = #tpu.core_type<tc>, window_params = [{transform_indices = @transform_0, window_bounds = array<i64: 2, 32, 65>}, {pipeline_mode = #tpu.pipeline_mode<synchronous>, transform_indices = @transform_1, window_bounds = array<i64: 16, 128>}, {pipeline_mode = #tpu.pipeline_mode<synchronous>, transform_indices = @transform_2, window_bounds = array<i64: 16, 56>}, {transform_indices = @transform_3, window_bounds = array<i64: 2, 16, 56>}, {transform_indices = @transform_4, window_bounds = array<i64: 1, 16, 1>}, {transform_indices = @transform_5, window_bounds = array<i64: 1, 16, 1>}]} {
    %c0 = arith.constant 0 : index
    %c0_0 = arith.constant 0 : index
    %0 = vector.load %arg2[%c0, %c0_0] : memref<16x128xf32, #tpu.memory_space<vmem>>, vector<16x128xf32>
    %c0_1 = arith.constant 0 : index
    %c0_2 = arith.constant 0 : index
    %1 = vector.load %arg3[%c0_1, %c0_2] : memref<16x56xf32, #tpu.memory_space<vmem>>, vector<16x56xf32>
    %cst = arith.constant 0.000000e+00 : f32
    %2 = vector.broadcast %cst : f32 to vector<16x1xf32>
    %cst_3 = arith.constant 0.000000e+00 : f32
    %3 = vector.broadcast %cst_3 : f32 to vector<16x1xf32>
    %c0_4 = arith.constant 0 : index
    %c0_5 = arith.constant 0 : index
    %c0_6 = arith.constant 0 : index
    %4 = vector.load %arg1[%c0_4, %c0_5, %c0_6] : memref<2x32x65xf32, #tpu.memory_space<vmem>>, vector<1x32x56xf32>
    %5 = vector.shape_cast %4 : vector<1x32x56xf32> to vector<32x56xf32>
    %c0_7 = arith.constant 0 : index
    %c0_8 = arith.constant 0 : index
    %6 = vector.load %arg7[%c0_7, %c0_8] : memref<128x56xf32, #tpu.memory_space<vmem>>, vector<32x56xf32>
    tpu.vector_store %arg7[%c0_7, %c0_8], %5 {strides = array<i32>} : memref<128x56xf32, #tpu.memory_space<vmem>>, vector<32x56xf32>,
    %c0_9 = arith.constant 0 : index
    %c0_10 = arith.constant 0 : index
    %c1 = arith.constant 1 : index
    %7 = vector.load %arg1[%c0_9, %c0_10, %c1] : memref<2x32x65xf32, #tpu.memory_space<vmem>>, vector<1x32x56xf32>
    %8 = vector.shape_cast %7 : vector<1x32x56xf32> to vector<32x56xf32>
    %c32 = arith.constant 32 : index
    %c0_11 = arith.constant 0 : index
    %9 = vector.load %arg7[%c32, %c0_11] : memref<128x56xf32, #tpu.memory_space<vmem>>, vector<32x56xf32>
    tpu.vector_store %arg7[%c32, %c0_11], %8 {strides = array<i32>} : memref<128x56xf32, #tpu.memory_space<vmem>>, vector<32x56xf32>,
    %c0_12 = arith.constant 0 : index
    %c0_13 = arith.constant 0 : index
    %c8 = arith.constant 8 : index
    %10 = vector.load %arg1[%c0_12, %c0_13, %c8] : memref<2x32x65xf32, #tpu.memory_space<vmem>>, vector<1x32x56xf32>
    %11 = vector.shape_cast %10 : vector<1x32x56xf32> to vector<32x56xf32>
    %c64 = arith.constant 64 : index
    %c0_14 = arith.constant 0 : index
    %12 = vector.load %arg7[%c64, %c0_14] : memref<128x56xf32, #tpu.memory_space<vmem>>, vector<32x56xf32>
    tpu.vector_store %arg7[%c64, %c0_14], %11 {strides = array<i32>} : memref<128x56xf32, #tpu.memory_space<vmem>>, vector<32x56xf32>,
    %c0_15 = arith.constant 0 : index
    %c0_16 = arith.constant 0 : index
    %c9 = arith.constant 9 : index
    %13 = vector.load %arg1[%c0_15, %c0_16, %c9] : memref<2x32x65xf32, #tpu.memory_space<vmem>>, vector<1x32x56xf32>
    %14 = vector.shape_cast %13 : vector<1x32x56xf32> to vector<32x56xf32>
    %c96 = arith.constant 96 : index
    %c0_17 = arith.constant 0 : index
    %15 = vector.load %arg7[%c96, %c0_17] : memref<128x56xf32, #tpu.memory_space<vmem>>, vector<32x56xf32>
    tpu.vector_store %arg7[%c96, %c0_17], %14 {strides = array<i32>} : memref<128x56xf32, #tpu.memory_space<vmem>>, vector<32x56xf32>,
    %c0_18 = arith.constant 0 : index
    %c0_19 = arith.constant 0 : index
    %16 = vector.load %arg7[%c0_18, %c0_19] : memref<128x56xf32, #tpu.memory_space<vmem>>, vector<128x56xf32>
    %cst_20 = arith.constant dense<0.000000e+00> : vector<16x56xf32>
    %17 = tpu.matmul %0, %16, %cst_20 {dimension_numbers = #tpu.dot_dimension_numbers<[1], [0], [0], [1], [0, 0, 1, 1], [], []>} : vector<16x128xf32>, vector<128x56xf32>, vector<16x56xf32> -> vector<16x56xf32>
    %c0_21 = arith.constant 0 : index
    %c0_22 = arith.constant 0 : index
    %c0_23 = arith.constant 0 : index
    %18 = vector.load %arg4[%c0_21, %c0_22, %c0_23] : memref<2x16x56xf32, #tpu.memory_space<vmem>>, vector<1x16x56xf32>
    %19 = vector.shape_cast %18 : vector<1x16x56xf32> to vector<16x56xf32>
    %20 = vector.shape_cast %17 : vector<16x56xf32> to vector<1x16x56xf32>
    tpu.vector_store %arg4[%c0_21, %c0_22, %c0_23], %20 {strides = array<i32>} : memref<2x16x56xf32, #tpu.memory_space<vmem>>, vector<1x16x56xf32>,
    %21 = arith.mulf %17, %1 : vector<16x56xf32>
    %cst_24 = arith.constant dense<0.000000e+00> : vector<16xf32>
    %22 = vector.multi_reduction <add>, %21, %cst_24 [1] : vector<16x56xf32> to vector<16xf32>
    %23 = vector.shape_cast %22 : vector<16xf32> to vector<16x1xf32>
    %24 = arith.addf %2, %23 : vector<16x1xf32>
    %25 = arith.mulf %21, %17 : vector<16x56xf32>
    %cst_25 = arith.constant dense<0.000000e+00> : vector<16xf32>
    %26 = vector.multi_reduction <add>, %25, %cst_25 [1] : vector<16x56xf32> to vector<16xf32>
    %27 = vector.shape_cast %26 : vector<16xf32> to vector<16x1xf32>
    %28 = arith.addf %3, %27 : vector<16x1xf32>
    %c1_26 = arith.constant 1 : index
    %c0_27 = arith.constant 0 : index
    %c0_28 = arith.constant 0 : index
    %29 = vector.load %arg1[%c1_26, %c0_27, %c0_28] : memref<2x32x65xf32, #tpu.memory_space<vmem>>, vector<1x32x56xf32>
    %30 = vector.shape_cast %29 : vector<1x32x56xf32> to vector<32x56xf32>
    %c0_29 = arith.constant 0 : index
    %c0_30 = arith.constant 0 : index
    %31 = vector.load %arg7[%c0_29, %c0_30] : memref<128x56xf32, #tpu.memory_space<vmem>>, vector<32x56xf32>
    tpu.vector_store %arg7[%c0_29, %c0_30], %30 {strides = array<i32>} : memref<128x56xf32, #tpu.memory_space<vmem>>, vector<32x56xf32>,
    %c1_31 = arith.constant 1 : index
    %c0_32 = arith.constant 0 : index
    %c1_33 = arith.constant 1 : index
    %32 = vector.load %arg1[%c1_31, %c0_32, %c1_33] : memref<2x32x65xf32, #tpu.memory_space<vmem>>, vector<1x32x56xf32>
    %33 = vector.shape_cast %32 : vector<1x32x56xf32> to vector<32x56xf32>
    %c32_34 = arith.constant 32 : index
    %c0_35 = arith.constant 0 : index
    %34 = vector.load %arg7[%c32_34, %c0_35] : memref<128x56xf32, #tpu.memory_space<vmem>>, vector<32x56xf32>
    tpu.vector_store %arg7[%c32_34, %c0_35], %33 {strides = array<i32>} : memref<128x56xf32, #tpu.memory_space<vmem>>, vector<32x56xf32>,
    %c1_36 = arith.constant 1 : index
    %c0_37 = arith.constant 0 : index
    %c8_38 = arith.constant 8 : index
    %35 = vector.load %arg1[%c1_36, %c0_37, %c8_38] : memref<2x32x65xf32, #tpu.memory_space<vmem>>, vector<1x32x56xf32>
    %36 = vector.shape_cast %35 : vector<1x32x56xf32> to vector<32x56xf32>
    %c64_39 = arith.constant 64 : index
    %c0_40 = arith.constant 0 : index
    %37 = vector.load %arg7[%c64_39, %c0_40] : memref<128x56xf32, #tpu.memory_space<vmem>>, vector<32x56xf32>
    tpu.vector_store %arg7[%c64_39, %c0_40], %36 {strides = array<i32>} : memref<128x56xf32, #tpu.memory_space<vmem>>, vector<32x56xf32>,
    %c1_41 = arith.constant 1 : index
    %c0_42 = arith.constant 0 : index
    %c9_43 = arith.constant 9 : index
    %38 = vector.load %arg1[%c1_41, %c0_42, %c9_43] : memref<2x32x65xf32, #tpu.memory_space<vmem>>, vector<1x32x56xf32>
    %39 = vector.shape_cast %38 : vector<1x32x56xf32> to vector<32x56xf32>
    %c96_44 = arith.constant 96 : index
    %c0_45 = arith.constant 0 : index
    %40 = vector.load %arg7[%c96_44, %c0_45] : memref<128x56xf32, #tpu.memory_space<vmem>>, vector<32x56xf32>
    tpu.vector_store %arg7[%c96_44, %c0_45], %39 {strides = array<i32>} : memref<128x56xf32, #tpu.memory_space<vmem>>, vector<32x56xf32>,
    %c0_46 = arith.constant 0 : index
    %c0_47 = arith.constant 0 : index
    %41 = vector.load %arg7[%c0_46, %c0_47] : memref<128x56xf32, #tpu.memory_space<vmem>>, vector<128x56xf32>
    %cst_48 = arith.constant dense<0.000000e+00> : vector<16x56xf32>
    %42 = tpu.matmul %0, %41, %cst_48 {dimension_numbers = #tpu.dot_dimension_numbers<[1], [0], [0], [1], [0, 0, 1, 1], [], []>} : vector<16x128xf32>, vector<128x56xf32>, vector<16x56xf32> -> vector<16x56xf32>
    %c1_49 = arith.constant 1 : index
    %c0_50 = arith.constant 0 : index
    %c0_51 = arith.constant 0 : index
    %43 = vector.load %arg4[%c1_49, %c0_50, %c0_51] : memref<2x16x56xf32, #tpu.memory_space<vmem>>, vector<1x16x56xf32>
    %44 = vector.shape_cast %43 : vector<1x16x56xf32> to vector<16x56xf32>
    %45 = vector.shape_cast %42 : vector<16x56xf32> to vector<1x16x56xf32>
    tpu.vector_store %arg4[%c1_49, %c0_50, %c0_51], %45 {strides = array<i32>} : memref<2x16x56xf32, #tpu.memory_space<vmem>>, vector<1x16x56xf32>,
    %46 = arith.mulf %42, %1 : vector<16x56xf32>
    %cst_52 = arith.constant dense<0.000000e+00> : vector<16xf32>
    %47 = vector.multi_reduction <add>, %46, %cst_52 [1] : vector<16x56xf32> to vector<16xf32>
    %48 = vector.shape_cast %47 : vector<16xf32> to vector<16x1xf32>
    %49 = arith.addf %24, %48 : vector<16x1xf32>
    %50 = arith.mulf %46, %42 : vector<16x56xf32>
    %cst_53 = arith.constant dense<0.000000e+00> : vector<16xf32>
    %51 = vector.multi_reduction <add>, %50, %cst_53 [1] : vector<16x56xf32> to vector<16xf32>
    %52 = vector.shape_cast %51 : vector<16xf32> to vector<16x1xf32>
    %53 = arith.addf %28, %52 : vector<16x1xf32>
    %c0_54 = arith.constant 0 : index
    %c0_55 = arith.constant 0 : index
    %c0_56 = arith.constant 0 : index
    %54 = vector.load %arg5[%c0_54, %c0_55, %c0_56] : memref<1x16x1xf32, #tpu.memory_space<vmem>>, vector<1x16x1xf32>
    %55 = vector.shape_cast %54 : vector<1x16x1xf32> to vector<16x1xf32>
    %56 = vector.shape_cast %49 : vector<16x1xf32> to vector<1x16x1xf32>
    tpu.vector_store %arg5[%c0_54, %c0_55, %c0_56], %56 {strides = array<i32>} : memref<1x16x1xf32, #tpu.memory_space<vmem>>, vector<1x16x1xf32>,
    %c0_57 = arith.constant 0 : index
    %c0_58 = arith.constant 0 : index
    %c0_59 = arith.constant 0 : index
    %57 = vector.load %arg6[%c0_57, %c0_58, %c0_59] : memref<1x16x1xf32, #tpu.memory_space<vmem>>, vector<1x16x1xf32>
    %58 = vector.shape_cast %57 : vector<1x16x1xf32> to vector<16x1xf32>
    %59 = vector.shape_cast %53 : vector<16x1xf32> to vector<1x16x1xf32>
    tpu.vector_store %arg6[%c0_57, %c0_58, %c0_59], %59 {strides = array<i32>} : memref<1x16x1xf32, #tpu.memory_space<vmem>>, vector<1x16x1xf32>,
    return
  }
  func.func @transform_0(%arg0: i32) -> (i32, i32, i32) {
    %c0_i32 = arith.constant 0 : i32
    %c0_i32_0 = arith.constant 0 : i32
    %c0_i32_1 = arith.constant 0 : i32
    return %arg0, %c0_i32, %c0_i32_0 : i32, i32, i32
  }
  func.func @transform_1(%arg0: i32) -> (i32, i32) {
    %c0_i32 = arith.constant 0 : i32
    %c0_i32_0 = arith.constant 0 : i32
    %c0_i32_1 = arith.constant 0 : i32
    return %c0_i32, %c0_i32_0 : i32, i32
  }
  func.func @transform_2(%arg0: i32) -> (i32, i32) {
    %c0_i32 = arith.constant 0 : i32
    %c0_i32_0 = arith.constant 0 : i32
    %c0_i32_1 = arith.constant 0 : i32
    return %c0_i32, %c0_i32_0 : i32, i32
  }
  func.func @transform_3(%arg0: i32) -> (i32, i32, i32) {
    %c0_i32 = arith.constant 0 : i32
    %c0_i32_0 = arith.constant 0 : i32
    %c0_i32_1 = arith.constant 0 : i32
    return %arg0, %c0_i32, %c0_i32_0 : i32, i32, i32
  }
  func.func @transform_4(%arg0: i32) -> (i32, i32, i32) {
    %c0_i32 = arith.constant 0 : i32
    %c0_i32_0 = arith.constant 0 : i32
    %c0_i32_1 = arith.constant 0 : i32
    return %arg0, %c0_i32, %c0_i32_0 : i32, i32, i32
  }
  func.func @transform_5(%arg0: i32) -> (i32, i32, i32) {
    %c0_i32 = arith.constant 0 : i32
    %c0_i32_0 = arith.constant 0 : i32
    %c0_i32_1 = arith.constant 0 : i32
    return %arg0, %c0_i32, %c0_i32_0 : i32, i32, i32
  }
}

module attributes {stable_mosaic.version = 11 : i64} {
  func.func @kernel(%arg0: i32, %arg1: memref<2x64x17xf32, #tpu.memory_space<vmem>>, %arg2: memref<32x256xf32, #tpu.memory_space<vmem>>, %arg3: memref<32x1xf32, #tpu.memory_space<vmem>>, %arg4: memref<2x32x12xf32, #tpu.memory_space<vmem>>, %arg5: memref<256x12xf32, #tpu.memory_space<vmem>>) attributes {dimension_semantics = [#tpu.dimension_semantics<parallel>], iteration_bounds = array<i64: 1>, scalar_prefetch = 0 : i64, scratch_operands = 1 : i64, tpu.core_type = #tpu.core_type<tc>, window_params = [{transform_indices = @transform_0, window_bounds = array<i64: 2, 64, 17>}, {pipeline_mode = #tpu.pipeline_mode<synchronous>, transform_indices = @transform_1, window_bounds = array<i64: 32, 256>}, {pipeline_mode = #tpu.pipeline_mode<synchronous>, transform_indices = @transform_2, window_bounds = array<i64: 32, 1>}, {transform_indices = @transform_3, window_bounds = array<i64: 2, 32, 12>}]} {
    %c0 = arith.constant 0 : index
    %c0_0 = arith.constant 0 : index
    %0 = vector.load %arg2[%c0, %c0_0] : memref<32x256xf32, #tpu.memory_space<vmem>>, vector<32x256xf32>
    %c0_1 = arith.constant 0 : index
    %c0_2 = arith.constant 0 : index
    %1 = vector.load %arg3[%c0_1, %c0_2] : memref<32x1xf32, #tpu.memory_space<vmem>>, vector<32x1xf32>
    %c0_3 = arith.constant 0 : index
    %c0_4 = arith.constant 0 : index
    %c0_5 = arith.constant 0 : index
    %2 = vector.load %arg1[%c0_3, %c0_4, %c0_5] : memref<2x64x17xf32, #tpu.memory_space<vmem>>, vector<1x64x12xf32>
    %3 = vector.shape_cast %2 : vector<1x64x12xf32> to vector<64x12xf32>
    %c0_6 = arith.constant 0 : index
    %c0_7 = arith.constant 0 : index
    %4 = vector.load %arg5[%c0_6, %c0_7] : memref<256x12xf32, #tpu.memory_space<vmem>>, vector<64x12xf32>
    tpu.vector_store %arg5[%c0_6, %c0_7], %3 {strides = array<i32>} : memref<256x12xf32, #tpu.memory_space<vmem>>, vector<64x12xf32>,
    %c0_8 = arith.constant 0 : index
    %c0_9 = arith.constant 0 : index
    %c1 = arith.constant 1 : index
    %5 = vector.load %arg1[%c0_8, %c0_9, %c1] : memref<2x64x17xf32, #tpu.memory_space<vmem>>, vector<1x64x12xf32>
    %6 = vector.shape_cast %5 : vector<1x64x12xf32> to vector<64x12xf32>
    %c64 = arith.constant 64 : index
    %c0_10 = arith.constant 0 : index
    %7 = vector.load %arg5[%c64, %c0_10] : memref<256x12xf32, #tpu.memory_space<vmem>>, vector<64x12xf32>
    tpu.vector_store %arg5[%c64, %c0_10], %6 {strides = array<i32>} : memref<256x12xf32, #tpu.memory_space<vmem>>, vector<64x12xf32>,
    %c0_11 = arith.constant 0 : index
    %c0_12 = arith.constant 0 : index
    %c4 = arith.constant 4 : index
    %8 = vector.load %arg1[%c0_11, %c0_12, %c4] : memref<2x64x17xf32, #tpu.memory_space<vmem>>, vector<1x64x12xf32>
    %9 = vector.shape_cast %8 : vector<1x64x12xf32> to vector<64x12xf32>
    %c128 = arith.constant 128 : index
    %c0_13 = arith.constant 0 : index
    %10 = vector.load %arg5[%c128, %c0_13] : memref<256x12xf32, #tpu.memory_space<vmem>>, vector<64x12xf32>
    tpu.vector_store %arg5[%c128, %c0_13], %9 {strides = array<i32>} : memref<256x12xf32, #tpu.memory_space<vmem>>, vector<64x12xf32>,
    %c0_14 = arith.constant 0 : index
    %c0_15 = arith.constant 0 : index
    %c5 = arith.constant 5 : index
    %11 = vector.load %arg1[%c0_14, %c0_15, %c5] : memref<2x64x17xf32, #tpu.memory_space<vmem>>, vector<1x64x12xf32>
    %12 = vector.shape_cast %11 : vector<1x64x12xf32> to vector<64x12xf32>
    %c192 = arith.constant 192 : index
    %c0_16 = arith.constant 0 : index
    %13 = vector.load %arg5[%c192, %c0_16] : memref<256x12xf32, #tpu.memory_space<vmem>>, vector<64x12xf32>
    tpu.vector_store %arg5[%c192, %c0_16], %12 {strides = array<i32>} : memref<256x12xf32, #tpu.memory_space<vmem>>, vector<64x12xf32>,
    %c0_17 = arith.constant 0 : index
    %c0_18 = arith.constant 0 : index
    %14 = vector.load %arg5[%c0_17, %c0_18] : memref<256x12xf32, #tpu.memory_space<vmem>>, vector<256x12xf32>
    %cst = arith.constant dense<0.000000e+00> : vector<32x12xf32>
    %15 = tpu.matmul %0, %14, %cst {dimension_numbers = #tpu.dot_dimension_numbers<[1], [0], [0], [1], [0, 0, 1, 1], [], []>} : vector<32x256xf32>, vector<256x12xf32>, vector<32x12xf32> -> vector<32x12xf32>
    %16 = vector.broadcast %1 : vector<32x1xf32> to vector<32x12xf32>
    %17 = arith.addf %15, %16 : vector<32x12xf32>
    %cst_19 = arith.constant 0.000000e+00 : f32
    %18 = vector.broadcast %cst_19 : f32 to vector<32x12xf32>
    %19 = arith.maximumf %17, %18 : vector<32x12xf32>
    %c0_20 = arith.constant 0 : index
    %c0_21 = arith.constant 0 : index
    %c0_22 = arith.constant 0 : index
    %20 = vector.load %arg4[%c0_20, %c0_21, %c0_22] : memref<2x32x12xf32, #tpu.memory_space<vmem>>, vector<1x32x12xf32>
    %21 = vector.shape_cast %20 : vector<1x32x12xf32> to vector<32x12xf32>
    %22 = vector.shape_cast %19 : vector<32x12xf32> to vector<1x32x12xf32>
    tpu.vector_store %arg4[%c0_20, %c0_21, %c0_22], %22 {strides = array<i32>} : memref<2x32x12xf32, #tpu.memory_space<vmem>>, vector<1x32x12xf32>,
    %c1_23 = arith.constant 1 : index
    %c0_24 = arith.constant 0 : index
    %c0_25 = arith.constant 0 : index
    %23 = vector.load %arg1[%c1_23, %c0_24, %c0_25] : memref<2x64x17xf32, #tpu.memory_space<vmem>>, vector<1x64x12xf32>
    %24 = vector.shape_cast %23 : vector<1x64x12xf32> to vector<64x12xf32>
    %c0_26 = arith.constant 0 : index
    %c0_27 = arith.constant 0 : index
    %25 = vector.load %arg5[%c0_26, %c0_27] : memref<256x12xf32, #tpu.memory_space<vmem>>, vector<64x12xf32>
    tpu.vector_store %arg5[%c0_26, %c0_27], %24 {strides = array<i32>} : memref<256x12xf32, #tpu.memory_space<vmem>>, vector<64x12xf32>,
    %c1_28 = arith.constant 1 : index
    %c0_29 = arith.constant 0 : index
    %c1_30 = arith.constant 1 : index
    %26 = vector.load %arg1[%c1_28, %c0_29, %c1_30] : memref<2x64x17xf32, #tpu.memory_space<vmem>>, vector<1x64x12xf32>
    %27 = vector.shape_cast %26 : vector<1x64x12xf32> to vector<64x12xf32>
    %c64_31 = arith.constant 64 : index
    %c0_32 = arith.constant 0 : index
    %28 = vector.load %arg5[%c64_31, %c0_32] : memref<256x12xf32, #tpu.memory_space<vmem>>, vector<64x12xf32>
    tpu.vector_store %arg5[%c64_31, %c0_32], %27 {strides = array<i32>} : memref<256x12xf32, #tpu.memory_space<vmem>>, vector<64x12xf32>,
    %c1_33 = arith.constant 1 : index
    %c0_34 = arith.constant 0 : index
    %c4_35 = arith.constant 4 : index
    %29 = vector.load %arg1[%c1_33, %c0_34, %c4_35] : memref<2x64x17xf32, #tpu.memory_space<vmem>>, vector<1x64x12xf32>
    %30 = vector.shape_cast %29 : vector<1x64x12xf32> to vector<64x12xf32>
    %c128_36 = arith.constant 128 : index
    %c0_37 = arith.constant 0 : index
    %31 = vector.load %arg5[%c128_36, %c0_37] : memref<256x12xf32, #tpu.memory_space<vmem>>, vector<64x12xf32>
    tpu.vector_store %arg5[%c128_36, %c0_37], %30 {strides = array<i32>} : memref<256x12xf32, #tpu.memory_space<vmem>>, vector<64x12xf32>,
    %c1_38 = arith.constant 1 : index
    %c0_39 = arith.constant 0 : index
    %c5_40 = arith.constant 5 : index
    %32 = vector.load %arg1[%c1_38, %c0_39, %c5_40] : memref<2x64x17xf32, #tpu.memory_space<vmem>>, vector<1x64x12xf32>
    %33 = vector.shape_cast %32 : vector<1x64x12xf32> to vector<64x12xf32>
    %c192_41 = arith.constant 192 : index
    %c0_42 = arith.constant 0 : index
    %34 = vector.load %arg5[%c192_41, %c0_42] : memref<256x12xf32, #tpu.memory_space<vmem>>, vector<64x12xf32>
    tpu.vector_store %arg5[%c192_41, %c0_42], %33 {strides = array<i32>} : memref<256x12xf32, #tpu.memory_space<vmem>>, vector<64x12xf32>,
    %c0_43 = arith.constant 0 : index
    %c0_44 = arith.constant 0 : index
    %35 = vector.load %arg5[%c0_43, %c0_44] : memref<256x12xf32, #tpu.memory_space<vmem>>, vector<256x12xf32>
    %cst_45 = arith.constant dense<0.000000e+00> : vector<32x12xf32>
    %36 = tpu.matmul %0, %35, %cst_45 {dimension_numbers = #tpu.dot_dimension_numbers<[1], [0], [0], [1], [0, 0, 1, 1], [], []>} : vector<32x256xf32>, vector<256x12xf32>, vector<32x12xf32> -> vector<32x12xf32>
    %37 = vector.broadcast %1 : vector<32x1xf32> to vector<32x12xf32>
    %38 = arith.addf %36, %37 : vector<32x12xf32>
    %cst_46 = arith.constant 0.000000e+00 : f32
    %39 = vector.broadcast %cst_46 : f32 to vector<32x12xf32>
    %40 = arith.maximumf %38, %39 : vector<32x12xf32>
    %c1_47 = arith.constant 1 : index
    %c0_48 = arith.constant 0 : index
    %c0_49 = arith.constant 0 : index
    %41 = vector.load %arg4[%c1_47, %c0_48, %c0_49] : memref<2x32x12xf32, #tpu.memory_space<vmem>>, vector<1x32x12xf32>
    %42 = vector.shape_cast %41 : vector<1x32x12xf32> to vector<32x12xf32>
    %43 = vector.shape_cast %40 : vector<32x12xf32> to vector<1x32x12xf32>
    tpu.vector_store %arg4[%c1_47, %c0_48, %c0_49], %43 {strides = array<i32>} : memref<2x32x12xf32, #tpu.memory_space<vmem>>, vector<1x32x12xf32>,
    return
  }
  func.func @transform_0(%arg0: i32) -> (i32, i32, i32) {
    %c0_i32 = arith.constant 0 : i32
    %c0_i32_0 = arith.constant 0 : i32
    %c0_i32_1 = arith.constant 0 : i32
    return %arg0, %c0_i32, %c0_i32_0 : i32, i32, i32
  }
  func.func @transform_1(%arg0: i32) -> (i32, i32) {
    %c0_i32 = arith.constant 0 : i32
    %c0_i32_0 = arith.constant 0 : i32
    %c0_i32_1 = arith.constant 0 : i32
    return %c0_i32, %c0_i32_0 : i32, i32
  }
  func.func @transform_2(%arg0: i32) -> (i32, i32) {
    %c0_i32 = arith.constant 0 : i32
    %c0_i32_0 = arith.constant 0 : i32
    %c0_i32_1 = arith.constant 0 : i32
    return %c0_i32, %c0_i32_0 : i32, i32
  }
  func.func @transform_3(%arg0: i32) -> (i32, i32, i32) {
    %c0_i32 = arith.constant 0 : i32
    %c0_i32_0 = arith.constant 0 : i32
    %c0_i32_1 = arith.constant 0 : i32
    return %arg0, %c0_i32, %c0_i32_0 : i32, i32, i32
  }
}

module attributes {stable_mosaic.version = 11 : i64} {
  func.func @_tail_kernel(%arg0: i32, %arg1: memref<8x288xf32, #tpu.memory_space<vmem>>, %arg2: memref<288x128xf32, #tpu.memory_space<vmem>>, %arg3: memref<1x128xf32, #tpu.memory_space<vmem>>, %arg4: memref<128x2xf32, #tpu.memory_space<vmem>>, %arg5: memref<1x2xf32, #tpu.memory_space<vmem>>, %arg6: memref<4x128xf32, #tpu.memory_space<vmem>>, %arg7: memref<1x128xf32, #tpu.memory_space<vmem>>, %arg8: memref<128x288xf32, #tpu.memory_space<vmem>>, %arg9: memref<1x288xf32, #tpu.memory_space<vmem>>, %arg10: memref<8x4xf32, #tpu.memory_space<vmem>>, %arg11: memref<8x288xf32, #tpu.memory_space<vmem>>) attributes {dimension_semantics = [#tpu.dimension_semantics<parallel>], iteration_bounds = array<i64: 1>, scalar_prefetch = 0 : i64, scratch_operands = 0 : i64, tpu.core_type = #tpu.core_type<tc>, window_params = [{transform_indices = @transform_0, window_bounds = array<i64: 8, 288>}, {pipeline_mode = #tpu.pipeline_mode<synchronous>, transform_indices = @transform_1, window_bounds = array<i64: 288, 128>}, {pipeline_mode = #tpu.pipeline_mode<synchronous>, transform_indices = @transform_2, window_bounds = array<i64: 1, 128>}, {pipeline_mode = #tpu.pipeline_mode<synchronous>, transform_indices = @transform_3, window_bounds = array<i64: 128, 2>}, {pipeline_mode = #tpu.pipeline_mode<synchronous>, transform_indices = @transform_4, window_bounds = array<i64: 1, 2>}, {pipeline_mode = #tpu.pipeline_mode<synchronous>, transform_indices = @transform_5, window_bounds = array<i64: 4, 128>}, {pipeline_mode = #tpu.pipeline_mode<synchronous>, transform_indices = @transform_6, window_bounds = array<i64: 1, 128>}, {pipeline_mode = #tpu.pipeline_mode<synchronous>, transform_indices = @transform_7, window_bounds = array<i64: 128, 288>}, {pipeline_mode = #tpu.pipeline_mode<synchronous>, transform_indices = @transform_8, window_bounds = array<i64: 1, 288>}, {transform_indices = @transform_9, window_bounds = array<i64: 8, 4>}, {transform_indices = @transform_10, window_bounds = array<i64: 8, 288>}]} {
    %c0 = arith.constant 0 : index
    %c0_0 = arith.constant 0 : index
    %0 = vector.load %arg1[%c0, %c0_0] : memref<8x288xf32, #tpu.memory_space<vmem>>, vector<8x288xf32>
    %c0_1 = arith.constant 0 : index
    %c0_2 = arith.constant 0 : index
    %1 = vector.load %arg2[%c0_1, %c0_2] : memref<288x128xf32, #tpu.memory_space<vmem>>, vector<288x128xf32>
    %cst = arith.constant dense<0.000000e+00> : vector<8x128xf32>
    %2 = tpu.matmul %0, %1, %cst {dimension_numbers = #tpu.dot_dimension_numbers<[1], [0], [0], [1], [0, 0, 1, 1], [], []>} : vector<8x288xf32>, vector<288x128xf32>, vector<8x128xf32> -> vector<8x128xf32>
    %c0_3 = arith.constant 0 : index
    %c0_4 = arith.constant 0 : index
    %3 = vector.load %arg3[%c0_3, %c0_4] : memref<1x128xf32, #tpu.memory_space<vmem>>, vector<1x128xf32>
    %4 = vector.broadcast %3 : vector<1x128xf32> to vector<8x128xf32>
    %5 = arith.addf %2, %4 : vector<8x128xf32>
    %cst_5 = arith.constant 0.000000e+00 : f32
    %6 = vector.broadcast %cst_5 : f32 to vector<8x128xf32>
    %7 = arith.maximumf %5, %6 : vector<8x128xf32>
    %c0_6 = arith.constant 0 : index
    %c0_7 = arith.constant 0 : index
    %8 = vector.load %arg4[%c0_6, %c0_7] : memref<128x2xf32, #tpu.memory_space<vmem>>, vector<128x2xf32>
    %cst_8 = arith.constant dense<0.000000e+00> : vector<8x2xf32>
    %9 = tpu.matmul %7, %8, %cst_8 {dimension_numbers = #tpu.dot_dimension_numbers<[1], [0], [0], [1], [0, 0, 1, 1], [], []>} : vector<8x128xf32>, vector<128x2xf32>, vector<8x2xf32> -> vector<8x2xf32>
    %c0_9 = arith.constant 0 : index
    %c0_10 = arith.constant 0 : index
    %10 = vector.load %arg5[%c0_9, %c0_10] : memref<1x2xf32, #tpu.memory_space<vmem>>, vector<1x2xf32>
    %11 = vector.broadcast %10 : vector<1x2xf32> to vector<8x2xf32>
    %12 = arith.addf %9, %11 : vector<8x2xf32>
    %13 = math.cos %12 : vector<8x2xf32>
    %14 = math.sin %12 : vector<8x2xf32>
    %c0_11 = arith.constant 0 : index
    %c0_12 = arith.constant 0 : index
    %15 = vector.load %arg10[%c0_11, %c0_12] : memref<8x4xf32, #tpu.memory_space<vmem>>, vector<8x2xf32>
    tpu.vector_store %arg10[%c0_11, %c0_12], %13 {strides = array<i32>} : memref<8x4xf32, #tpu.memory_space<vmem>>, vector<8x2xf32>,
    %c0_13 = arith.constant 0 : index
    %c2 = arith.constant 2 : index
    %16 = vector.load %arg10[%c0_13, %c2] : memref<8x4xf32, #tpu.memory_space<vmem>>, vector<8x2xf32>
    tpu.vector_store %arg10[%c0_13, %c2], %14 {strides = array<i32>} : memref<8x4xf32, #tpu.memory_space<vmem>>, vector<8x2xf32>,
    %c0_14 = arith.constant 0 : index
    %c0_15 = arith.constant 0 : index
    %17 = vector.load %arg6[%c0_14, %c0_15] : memref<4x128xf32, #tpu.memory_space<vmem>>, vector<2x128xf32>
    %cst_16 = arith.constant dense<0.000000e+00> : vector<8x128xf32>
    %18 = tpu.matmul %13, %17, %cst_16 {dimension_numbers = #tpu.dot_dimension_numbers<[1], [0], [0], [1], [0, 0, 1, 1], [], []>} : vector<8x2xf32>, vector<2x128xf32>, vector<8x128xf32> -> vector<8x128xf32>
    %c2_17 = arith.constant 2 : index
    %c0_18 = arith.constant 0 : index
    %19 = vector.load %arg6[%c2_17, %c0_18] : memref<4x128xf32, #tpu.memory_space<vmem>>, vector<2x128xf32>
    %cst_19 = arith.constant dense<0.000000e+00> : vector<8x128xf32>
    %20 = tpu.matmul %14, %19, %cst_19 {dimension_numbers = #tpu.dot_dimension_numbers<[1], [0], [0], [1], [0, 0, 1, 1], [], []>} : vector<8x2xf32>, vector<2x128xf32>, vector<8x128xf32> -> vector<8x128xf32>
    %21 = arith.addf %18, %20 : vector<8x128xf32>
    %c0_20 = arith.constant 0 : index
    %c0_21 = arith.constant 0 : index
    %22 = vector.load %arg7[%c0_20, %c0_21] : memref<1x128xf32, #tpu.memory_space<vmem>>, vector<1x128xf32>
    %23 = vector.broadcast %22 : vector<1x128xf32> to vector<8x128xf32>
    %24 = arith.addf %21, %23 : vector<8x128xf32>
    %cst_22 = arith.constant 0.000000e+00 : f32
    %25 = vector.broadcast %cst_22 : f32 to vector<8x128xf32>
    %26 = arith.maximumf %24, %25 : vector<8x128xf32>
    %c0_23 = arith.constant 0 : index
    %c0_24 = arith.constant 0 : index
    %27 = vector.load %arg8[%c0_23, %c0_24] : memref<128x288xf32, #tpu.memory_space<vmem>>, vector<128x288xf32>
    %cst_25 = arith.constant dense<0.000000e+00> : vector<8x288xf32>
    %28 = tpu.matmul %26, %27, %cst_25 {dimension_numbers = #tpu.dot_dimension_numbers<[1], [0], [0], [1], [0, 0, 1, 1], [], []>} : vector<8x128xf32>, vector<128x288xf32>, vector<8x288xf32> -> vector<8x288xf32>
    %c0_26 = arith.constant 0 : index
    %c0_27 = arith.constant 0 : index
    %29 = vector.load %arg9[%c0_26, %c0_27] : memref<1x288xf32, #tpu.memory_space<vmem>>, vector<1x288xf32>
    %30 = vector.broadcast %29 : vector<1x288xf32> to vector<8x288xf32>
    %31 = arith.addf %28, %30 : vector<8x288xf32>
    %cst_28 = arith.constant 0.000000e+00 : f32
    %32 = vector.broadcast %cst_28 : f32 to vector<8x288xf32>
    %33 = arith.maximumf %31, %32 : vector<8x288xf32>
    %c0_29 = arith.constant 0 : index
    %c0_30 = arith.constant 0 : index
    %34 = vector.load %arg11[%c0_29, %c0_30] : memref<8x288xf32, #tpu.memory_space<vmem>>, vector<8x288xf32>
    tpu.vector_store %arg11[%c0_29, %c0_30], %33 {strides = array<i32>} : memref<8x288xf32, #tpu.memory_space<vmem>>, vector<8x288xf32>,
    return
  }
  func.func @transform_0(%arg0: i32) -> (i32, i32) {
    %c0_i32 = arith.constant 0 : i32
    %c0_i32_0 = arith.constant 0 : i32
    return %arg0, %c0_i32 : i32, i32
  }
  func.func @transform_1(%arg0: i32) -> (i32, i32) {
    %c0_i32 = arith.constant 0 : i32
    %c0_i32_0 = arith.constant 0 : i32
    %c0_i32_1 = arith.constant 0 : i32
    return %c0_i32, %c0_i32_0 : i32, i32
  }
  func.func @transform_2(%arg0: i32) -> (i32, i32) {
    %c0_i32 = arith.constant 0 : i32
    %c0_i32_0 = arith.constant 0 : i32
    %c0_i32_1 = arith.constant 0 : i32
    return %c0_i32, %c0_i32_0 : i32, i32
  }
  func.func @transform_3(%arg0: i32) -> (i32, i32) {
    %c0_i32 = arith.constant 0 : i32
    %c0_i32_0 = arith.constant 0 : i32
    %c0_i32_1 = arith.constant 0 : i32
    return %c0_i32, %c0_i32_0 : i32, i32
  }
  func.func @transform_4(%arg0: i32) -> (i32, i32) {
    %c0_i32 = arith.constant 0 : i32
    %c0_i32_0 = arith.constant 0 : i32
    %c0_i32_1 = arith.constant 0 : i32
    return %c0_i32, %c0_i32_0 : i32, i32
  }
  func.func @transform_5(%arg0: i32) -> (i32, i32) {
    %c0_i32 = arith.constant 0 : i32
    %c0_i32_0 = arith.constant 0 : i32
    %c0_i32_1 = arith.constant 0 : i32
    return %c0_i32, %c0_i32_0 : i32, i32
  }
  func.func @transform_6(%arg0: i32) -> (i32, i32) {
    %c0_i32 = arith.constant 0 : i32
    %c0_i32_0 = arith.constant 0 : i32
    %c0_i32_1 = arith.constant 0 : i32
    return %c0_i32, %c0_i32_0 : i32, i32
  }
  func.func @transform_7(%arg0: i32) -> (i32, i32) {
    %c0_i32 = arith.constant 0 : i32
    %c0_i32_0 = arith.constant 0 : i32
    %c0_i32_1 = arith.constant 0 : i32
    return %c0_i32, %c0_i32_0 : i32, i32
  }
  func.func @transform_8(%arg0: i32) -> (i32, i32) {
    %c0_i32 = arith.constant 0 : i32
    %c0_i32_0 = arith.constant 0 : i32
    %c0_i32_1 = arith.constant 0 : i32
    return %c0_i32, %c0_i32_0 : i32, i32
  }
  func.func @transform_9(%arg0: i32) -> (i32, i32) {
    %c0_i32 = arith.constant 0 : i32
    %c0_i32_0 = arith.constant 0 : i32
    return %arg0, %c0_i32 : i32, i32
  }
  func.func @transform_10(%arg0: i32) -> (i32, i32) {
    %c0_i32 = arith.constant 0 : i32
    %c0_i32_0 = arith.constant 0 : i32
    return %arg0, %c0_i32 : i32, i32
  }
}

module attributes {stable_mosaic.version = 11 : i64} {
  func.func @kernel(%arg0: i32, %arg1: memref<2x32x26xf32, #tpu.memory_space<vmem>>, %arg2: memref<64x128xf32, #tpu.memory_space<vmem>>, %arg3: memref<64x20xf32, #tpu.memory_space<vmem>>, %arg4: memref<2x64x20xf32, #tpu.memory_space<vmem>>, %arg5: memref<1x64x1xf32, #tpu.memory_space<vmem>>, %arg6: memref<1x64x1xf32, #tpu.memory_space<vmem>>, %arg7: memref<128x20xf32, #tpu.memory_space<vmem>>) attributes {dimension_semantics = [#tpu.dimension_semantics<parallel>], iteration_bounds = array<i64: 1>, scalar_prefetch = 0 : i64, scratch_operands = 1 : i64, tpu.core_type = #tpu.core_type<tc>, window_params = [{transform_indices = @transform_0, window_bounds = array<i64: 2, 32, 26>}, {pipeline_mode = #tpu.pipeline_mode<synchronous>, transform_indices = @transform_1, window_bounds = array<i64: 64, 128>}, {pipeline_mode = #tpu.pipeline_mode<synchronous>, transform_indices = @transform_2, window_bounds = array<i64: 64, 20>}, {transform_indices = @transform_3, window_bounds = array<i64: 2, 64, 20>}, {transform_indices = @transform_4, window_bounds = array<i64: 1, 64, 1>}, {transform_indices = @transform_5, window_bounds = array<i64: 1, 64, 1>}]} {
    %c0 = arith.constant 0 : index
    %c0_0 = arith.constant 0 : index
    %0 = vector.load %arg2[%c0, %c0_0] : memref<64x128xf32, #tpu.memory_space<vmem>>, vector<64x128xf32>
    %c0_1 = arith.constant 0 : index
    %c0_2 = arith.constant 0 : index
    %1 = vector.load %arg3[%c0_1, %c0_2] : memref<64x20xf32, #tpu.memory_space<vmem>>, vector<64x20xf32>
    %cst = arith.constant 0.000000e+00 : f32
    %2 = vector.broadcast %cst : f32 to vector<64x1xf32>
    %cst_3 = arith.constant 0.000000e+00 : f32
    %3 = vector.broadcast %cst_3 : f32 to vector<64x1xf32>
    %c0_4 = arith.constant 0 : index
    %c0_5 = arith.constant 0 : index
    %c0_6 = arith.constant 0 : index
    %4 = vector.load %arg1[%c0_4, %c0_5, %c0_6] : memref<2x32x26xf32, #tpu.memory_space<vmem>>, vector<1x32x20xf32>
    %5 = vector.shape_cast %4 : vector<1x32x20xf32> to vector<32x20xf32>
    %c0_7 = arith.constant 0 : index
    %c0_8 = arith.constant 0 : index
    %6 = vector.load %arg7[%c0_7, %c0_8] : memref<128x20xf32, #tpu.memory_space<vmem>>, vector<32x20xf32>
    tpu.vector_store %arg7[%c0_7, %c0_8], %5 {strides = array<i32>} : memref<128x20xf32, #tpu.memory_space<vmem>>, vector<32x20xf32>,
    %c0_9 = arith.constant 0 : index
    %c0_10 = arith.constant 0 : index
    %c1 = arith.constant 1 : index
    %7 = vector.load %arg1[%c0_9, %c0_10, %c1] : memref<2x32x26xf32, #tpu.memory_space<vmem>>, vector<1x32x20xf32>
    %8 = vector.shape_cast %7 : vector<1x32x20xf32> to vector<32x20xf32>
    %c32 = arith.constant 32 : index
    %c0_11 = arith.constant 0 : index
    %9 = vector.load %arg7[%c32, %c0_11] : memref<128x20xf32, #tpu.memory_space<vmem>>, vector<32x20xf32>
    tpu.vector_store %arg7[%c32, %c0_11], %8 {strides = array<i32>} : memref<128x20xf32, #tpu.memory_space<vmem>>, vector<32x20xf32>,
    %c0_12 = arith.constant 0 : index
    %c0_13 = arith.constant 0 : index
    %c5 = arith.constant 5 : index
    %10 = vector.load %arg1[%c0_12, %c0_13, %c5] : memref<2x32x26xf32, #tpu.memory_space<vmem>>, vector<1x32x20xf32>
    %11 = vector.shape_cast %10 : vector<1x32x20xf32> to vector<32x20xf32>
    %c64 = arith.constant 64 : index
    %c0_14 = arith.constant 0 : index
    %12 = vector.load %arg7[%c64, %c0_14] : memref<128x20xf32, #tpu.memory_space<vmem>>, vector<32x20xf32>
    tpu.vector_store %arg7[%c64, %c0_14], %11 {strides = array<i32>} : memref<128x20xf32, #tpu.memory_space<vmem>>, vector<32x20xf32>,
    %c0_15 = arith.constant 0 : index
    %c0_16 = arith.constant 0 : index
    %c6 = arith.constant 6 : index
    %13 = vector.load %arg1[%c0_15, %c0_16, %c6] : memref<2x32x26xf32, #tpu.memory_space<vmem>>, vector<1x32x20xf32>
    %14 = vector.shape_cast %13 : vector<1x32x20xf32> to vector<32x20xf32>
    %c96 = arith.constant 96 : index
    %c0_17 = arith.constant 0 : index
    %15 = vector.load %arg7[%c96, %c0_17] : memref<128x20xf32, #tpu.memory_space<vmem>>, vector<32x20xf32>
    tpu.vector_store %arg7[%c96, %c0_17], %14 {strides = array<i32>} : memref<128x20xf32, #tpu.memory_space<vmem>>, vector<32x20xf32>,
    %c0_18 = arith.constant 0 : index
    %c0_19 = arith.constant 0 : index
    %16 = vector.load %arg7[%c0_18, %c0_19] : memref<128x20xf32, #tpu.memory_space<vmem>>, vector<128x20xf32>
    %cst_20 = arith.constant dense<0.000000e+00> : vector<64x20xf32>
    %17 = tpu.matmul %0, %16, %cst_20 {dimension_numbers = #tpu.dot_dimension_numbers<[1], [0], [0], [1], [0, 0, 1, 1], [], []>} : vector<64x128xf32>, vector<128x20xf32>, vector<64x20xf32> -> vector<64x20xf32>
    %c0_21 = arith.constant 0 : index
    %c0_22 = arith.constant 0 : index
    %c0_23 = arith.constant 0 : index
    %18 = vector.load %arg4[%c0_21, %c0_22, %c0_23] : memref<2x64x20xf32, #tpu.memory_space<vmem>>, vector<1x64x20xf32>
    %19 = vector.shape_cast %18 : vector<1x64x20xf32> to vector<64x20xf32>
    %20 = vector.shape_cast %17 : vector<64x20xf32> to vector<1x64x20xf32>
    tpu.vector_store %arg4[%c0_21, %c0_22, %c0_23], %20 {strides = array<i32>} : memref<2x64x20xf32, #tpu.memory_space<vmem>>, vector<1x64x20xf32>,
    %21 = arith.mulf %17, %1 : vector<64x20xf32>
    %cst_24 = arith.constant dense<0.000000e+00> : vector<64xf32>
    %22 = vector.multi_reduction <add>, %21, %cst_24 [1] : vector<64x20xf32> to vector<64xf32>
    %23 = vector.shape_cast %22 : vector<64xf32> to vector<64x1xf32>
    %24 = arith.addf %2, %23 : vector<64x1xf32>
    %25 = arith.mulf %21, %17 : vector<64x20xf32>
    %cst_25 = arith.constant dense<0.000000e+00> : vector<64xf32>
    %26 = vector.multi_reduction <add>, %25, %cst_25 [1] : vector<64x20xf32> to vector<64xf32>
    %27 = vector.shape_cast %26 : vector<64xf32> to vector<64x1xf32>
    %28 = arith.addf %3, %27 : vector<64x1xf32>
    %c1_26 = arith.constant 1 : index
    %c0_27 = arith.constant 0 : index
    %c0_28 = arith.constant 0 : index
    %29 = vector.load %arg1[%c1_26, %c0_27, %c0_28] : memref<2x32x26xf32, #tpu.memory_space<vmem>>, vector<1x32x20xf32>
    %30 = vector.shape_cast %29 : vector<1x32x20xf32> to vector<32x20xf32>
    %c0_29 = arith.constant 0 : index
    %c0_30 = arith.constant 0 : index
    %31 = vector.load %arg7[%c0_29, %c0_30] : memref<128x20xf32, #tpu.memory_space<vmem>>, vector<32x20xf32>
    tpu.vector_store %arg7[%c0_29, %c0_30], %30 {strides = array<i32>} : memref<128x20xf32, #tpu.memory_space<vmem>>, vector<32x20xf32>,
    %c1_31 = arith.constant 1 : index
    %c0_32 = arith.constant 0 : index
    %c1_33 = arith.constant 1 : index
    %32 = vector.load %arg1[%c1_31, %c0_32, %c1_33] : memref<2x32x26xf32, #tpu.memory_space<vmem>>, vector<1x32x20xf32>
    %33 = vector.shape_cast %32 : vector<1x32x20xf32> to vector<32x20xf32>
    %c32_34 = arith.constant 32 : index
    %c0_35 = arith.constant 0 : index
    %34 = vector.load %arg7[%c32_34, %c0_35] : memref<128x20xf32, #tpu.memory_space<vmem>>, vector<32x20xf32>
    tpu.vector_store %arg7[%c32_34, %c0_35], %33 {strides = array<i32>} : memref<128x20xf32, #tpu.memory_space<vmem>>, vector<32x20xf32>,
    %c1_36 = arith.constant 1 : index
    %c0_37 = arith.constant 0 : index
    %c5_38 = arith.constant 5 : index
    %35 = vector.load %arg1[%c1_36, %c0_37, %c5_38] : memref<2x32x26xf32, #tpu.memory_space<vmem>>, vector<1x32x20xf32>
    %36 = vector.shape_cast %35 : vector<1x32x20xf32> to vector<32x20xf32>
    %c64_39 = arith.constant 64 : index
    %c0_40 = arith.constant 0 : index
    %37 = vector.load %arg7[%c64_39, %c0_40] : memref<128x20xf32, #tpu.memory_space<vmem>>, vector<32x20xf32>
    tpu.vector_store %arg7[%c64_39, %c0_40], %36 {strides = array<i32>} : memref<128x20xf32, #tpu.memory_space<vmem>>, vector<32x20xf32>,
    %c1_41 = arith.constant 1 : index
    %c0_42 = arith.constant 0 : index
    %c6_43 = arith.constant 6 : index
    %38 = vector.load %arg1[%c1_41, %c0_42, %c6_43] : memref<2x32x26xf32, #tpu.memory_space<vmem>>, vector<1x32x20xf32>
    %39 = vector.shape_cast %38 : vector<1x32x20xf32> to vector<32x20xf32>
    %c96_44 = arith.constant 96 : index
    %c0_45 = arith.constant 0 : index
    %40 = vector.load %arg7[%c96_44, %c0_45] : memref<128x20xf32, #tpu.memory_space<vmem>>, vector<32x20xf32>
    tpu.vector_store %arg7[%c96_44, %c0_45], %39 {strides = array<i32>} : memref<128x20xf32, #tpu.memory_space<vmem>>, vector<32x20xf32>,
    %c0_46 = arith.constant 0 : index
    %c0_47 = arith.constant 0 : index
    %41 = vector.load %arg7[%c0_46, %c0_47] : memref<128x20xf32, #tpu.memory_space<vmem>>, vector<128x20xf32>
    %cst_48 = arith.constant dense<0.000000e+00> : vector<64x20xf32>
    %42 = tpu.matmul %0, %41, %cst_48 {dimension_numbers = #tpu.dot_dimension_numbers<[1], [0], [0], [1], [0, 0, 1, 1], [], []>} : vector<64x128xf32>, vector<128x20xf32>, vector<64x20xf32> -> vector<64x20xf32>
    %c1_49 = arith.constant 1 : index
    %c0_50 = arith.constant 0 : index
    %c0_51 = arith.constant 0 : index
    %43 = vector.load %arg4[%c1_49, %c0_50, %c0_51] : memref<2x64x20xf32, #tpu.memory_space<vmem>>, vector<1x64x20xf32>
    %44 = vector.shape_cast %43 : vector<1x64x20xf32> to vector<64x20xf32>
    %45 = vector.shape_cast %42 : vector<64x20xf32> to vector<1x64x20xf32>
    tpu.vector_store %arg4[%c1_49, %c0_50, %c0_51], %45 {strides = array<i32>} : memref<2x64x20xf32, #tpu.memory_space<vmem>>, vector<1x64x20xf32>,
    %46 = arith.mulf %42, %1 : vector<64x20xf32>
    %cst_52 = arith.constant dense<0.000000e+00> : vector<64xf32>
    %47 = vector.multi_reduction <add>, %46, %cst_52 [1] : vector<64x20xf32> to vector<64xf32>
    %48 = vector.shape_cast %47 : vector<64xf32> to vector<64x1xf32>
    %49 = arith.addf %24, %48 : vector<64x1xf32>
    %50 = arith.mulf %46, %42 : vector<64x20xf32>
    %cst_53 = arith.constant dense<0.000000e+00> : vector<64xf32>
    %51 = vector.multi_reduction <add>, %50, %cst_53 [1] : vector<64x20xf32> to vector<64xf32>
    %52 = vector.shape_cast %51 : vector<64xf32> to vector<64x1xf32>
    %53 = arith.addf %28, %52 : vector<64x1xf32>
    %c0_54 = arith.constant 0 : index
    %c0_55 = arith.constant 0 : index
    %c0_56 = arith.constant 0 : index
    %54 = vector.load %arg5[%c0_54, %c0_55, %c0_56] : memref<1x64x1xf32, #tpu.memory_space<vmem>>, vector<1x64x1xf32>
    %55 = vector.shape_cast %54 : vector<1x64x1xf32> to vector<64x1xf32>
    %56 = vector.shape_cast %49 : vector<64x1xf32> to vector<1x64x1xf32>
    tpu.vector_store %arg5[%c0_54, %c0_55, %c0_56], %56 {strides = array<i32>} : memref<1x64x1xf32, #tpu.memory_space<vmem>>, vector<1x64x1xf32>,
    %c0_57 = arith.constant 0 : index
    %c0_58 = arith.constant 0 : index
    %c0_59 = arith.constant 0 : index
    %57 = vector.load %arg6[%c0_57, %c0_58, %c0_59] : memref<1x64x1xf32, #tpu.memory_space<vmem>>, vector<1x64x1xf32>
    %58 = vector.shape_cast %57 : vector<1x64x1xf32> to vector<64x1xf32>
    %59 = vector.shape_cast %53 : vector<64x1xf32> to vector<1x64x1xf32>
    tpu.vector_store %arg6[%c0_57, %c0_58, %c0_59], %59 {strides = array<i32>} : memref<1x64x1xf32, #tpu.memory_space<vmem>>, vector<1x64x1xf32>,
    return
  }
  func.func @transform_0(%arg0: i32) -> (i32, i32, i32) {
    %c0_i32 = arith.constant 0 : i32
    %c0_i32_0 = arith.constant 0 : i32
    %c0_i32_1 = arith.constant 0 : i32
    return %arg0, %c0_i32, %c0_i32_0 : i32, i32, i32
  }
  func.func @transform_1(%arg0: i32) -> (i32, i32) {
    %c0_i32 = arith.constant 0 : i32
    %c0_i32_0 = arith.constant 0 : i32
    %c0_i32_1 = arith.constant 0 : i32
    return %c0_i32, %c0_i32_0 : i32, i32
  }
  func.func @transform_2(%arg0: i32) -> (i32, i32) {
    %c0_i32 = arith.constant 0 : i32
    %c0_i32_0 = arith.constant 0 : i32
    %c0_i32_1 = arith.constant 0 : i32
    return %c0_i32, %c0_i32_0 : i32, i32
  }
  func.func @transform_3(%arg0: i32) -> (i32, i32, i32) {
    %c0_i32 = arith.constant 0 : i32
    %c0_i32_0 = arith.constant 0 : i32
    %c0_i32_1 = arith.constant 0 : i32
    return %arg0, %c0_i32, %c0_i32_0 : i32, i32, i32
  }
  func.func @transform_4(%arg0: i32) -> (i32, i32, i32) {
    %c0_i32 = arith.constant 0 : i32
    %c0_i32_0 = arith.constant 0 : i32
    %c0_i32_1 = arith.constant 0 : i32
    return %arg0, %c0_i32, %c0_i32_0 : i32, i32, i32
  }
  func.func @transform_5(%arg0: i32) -> (i32, i32, i32) {
    %c0_i32 = arith.constant 0 : i32
    %c0_i32_0 = arith.constant 0 : i32
    %c0_i32_1 = arith.constant 0 : i32
    return %arg0, %c0_i32, %c0_i32_0 : i32, i32, i32
  }
}

module attributes {stable_mosaic.version = 11 : i64} {
  func.func @kernel(%arg0: i32, %arg1: memref<2x16x65xf32, #tpu.memory_space<vmem>>, %arg2: memref<32x64xf32, #tpu.memory_space<vmem>>, %arg3: memref<32x56xf32, #tpu.memory_space<vmem>>, %arg4: memref<2x32x56xf32, #tpu.memory_space<vmem>>, %arg5: memref<1x32x1xf32, #tpu.memory_space<vmem>>, %arg6: memref<1x32x1xf32, #tpu.memory_space<vmem>>, %arg7: memref<64x56xf32, #tpu.memory_space<vmem>>) attributes {dimension_semantics = [#tpu.dimension_semantics<parallel>], iteration_bounds = array<i64: 1>, scalar_prefetch = 0 : i64, scratch_operands = 1 : i64, tpu.core_type = #tpu.core_type<tc>, window_params = [{transform_indices = @transform_0, window_bounds = array<i64: 2, 16, 65>}, {pipeline_mode = #tpu.pipeline_mode<synchronous>, transform_indices = @transform_1, window_bounds = array<i64: 32, 64>}, {pipeline_mode = #tpu.pipeline_mode<synchronous>, transform_indices = @transform_2, window_bounds = array<i64: 32, 56>}, {transform_indices = @transform_3, window_bounds = array<i64: 2, 32, 56>}, {transform_indices = @transform_4, window_bounds = array<i64: 1, 32, 1>}, {transform_indices = @transform_5, window_bounds = array<i64: 1, 32, 1>}]} {
    %c0 = arith.constant 0 : index
    %c0_0 = arith.constant 0 : index
    %0 = vector.load %arg2[%c0, %c0_0] : memref<32x64xf32, #tpu.memory_space<vmem>>, vector<32x64xf32>
    %c0_1 = arith.constant 0 : index
    %c0_2 = arith.constant 0 : index
    %1 = vector.load %arg3[%c0_1, %c0_2] : memref<32x56xf32, #tpu.memory_space<vmem>>, vector<32x56xf32>
    %cst = arith.constant 0.000000e+00 : f32
    %2 = vector.broadcast %cst : f32 to vector<32x1xf32>
    %cst_3 = arith.constant 0.000000e+00 : f32
    %3 = vector.broadcast %cst_3 : f32 to vector<32x1xf32>
    %c0_4 = arith.constant 0 : index
    %c0_5 = arith.constant 0 : index
    %c0_6 = arith.constant 0 : index
    %4 = vector.load %arg1[%c0_4, %c0_5, %c0_6] : memref<2x16x65xf32, #tpu.memory_space<vmem>>, vector<1x16x56xf32>
    %5 = vector.shape_cast %4 : vector<1x16x56xf32> to vector<16x56xf32>
    %c0_7 = arith.constant 0 : index
    %c0_8 = arith.constant 0 : index
    %6 = vector.load %arg7[%c0_7, %c0_8] : memref<64x56xf32, #tpu.memory_space<vmem>>, vector<16x56xf32>
    tpu.vector_store %arg7[%c0_7, %c0_8], %5 {strides = array<i32>} : memref<64x56xf32, #tpu.memory_space<vmem>>, vector<16x56xf32>,
    %c0_9 = arith.constant 0 : index
    %c0_10 = arith.constant 0 : index
    %c1 = arith.constant 1 : index
    %7 = vector.load %arg1[%c0_9, %c0_10, %c1] : memref<2x16x65xf32, #tpu.memory_space<vmem>>, vector<1x16x56xf32>
    %8 = vector.shape_cast %7 : vector<1x16x56xf32> to vector<16x56xf32>
    %c16 = arith.constant 16 : index
    %c0_11 = arith.constant 0 : index
    %9 = vector.load %arg7[%c16, %c0_11] : memref<64x56xf32, #tpu.memory_space<vmem>>, vector<16x56xf32>
    tpu.vector_store %arg7[%c16, %c0_11], %8 {strides = array<i32>} : memref<64x56xf32, #tpu.memory_space<vmem>>, vector<16x56xf32>,
    %c0_12 = arith.constant 0 : index
    %c0_13 = arith.constant 0 : index
    %c8 = arith.constant 8 : index
    %10 = vector.load %arg1[%c0_12, %c0_13, %c8] : memref<2x16x65xf32, #tpu.memory_space<vmem>>, vector<1x16x56xf32>
    %11 = vector.shape_cast %10 : vector<1x16x56xf32> to vector<16x56xf32>
    %c32 = arith.constant 32 : index
    %c0_14 = arith.constant 0 : index
    %12 = vector.load %arg7[%c32, %c0_14] : memref<64x56xf32, #tpu.memory_space<vmem>>, vector<16x56xf32>
    tpu.vector_store %arg7[%c32, %c0_14], %11 {strides = array<i32>} : memref<64x56xf32, #tpu.memory_space<vmem>>, vector<16x56xf32>,
    %c0_15 = arith.constant 0 : index
    %c0_16 = arith.constant 0 : index
    %c9 = arith.constant 9 : index
    %13 = vector.load %arg1[%c0_15, %c0_16, %c9] : memref<2x16x65xf32, #tpu.memory_space<vmem>>, vector<1x16x56xf32>
    %14 = vector.shape_cast %13 : vector<1x16x56xf32> to vector<16x56xf32>
    %c48 = arith.constant 48 : index
    %c0_17 = arith.constant 0 : index
    %15 = vector.load %arg7[%c48, %c0_17] : memref<64x56xf32, #tpu.memory_space<vmem>>, vector<16x56xf32>
    tpu.vector_store %arg7[%c48, %c0_17], %14 {strides = array<i32>} : memref<64x56xf32, #tpu.memory_space<vmem>>, vector<16x56xf32>,
    %c0_18 = arith.constant 0 : index
    %c0_19 = arith.constant 0 : index
    %16 = vector.load %arg7[%c0_18, %c0_19] : memref<64x56xf32, #tpu.memory_space<vmem>>, vector<64x56xf32>
    %cst_20 = arith.constant dense<0.000000e+00> : vector<32x56xf32>
    %17 = tpu.matmul %0, %16, %cst_20 {dimension_numbers = #tpu.dot_dimension_numbers<[1], [0], [0], [1], [0, 0, 1, 1], [], []>} : vector<32x64xf32>, vector<64x56xf32>, vector<32x56xf32> -> vector<32x56xf32>
    %c0_21 = arith.constant 0 : index
    %c0_22 = arith.constant 0 : index
    %c0_23 = arith.constant 0 : index
    %18 = vector.load %arg4[%c0_21, %c0_22, %c0_23] : memref<2x32x56xf32, #tpu.memory_space<vmem>>, vector<1x32x56xf32>
    %19 = vector.shape_cast %18 : vector<1x32x56xf32> to vector<32x56xf32>
    %20 = vector.shape_cast %17 : vector<32x56xf32> to vector<1x32x56xf32>
    tpu.vector_store %arg4[%c0_21, %c0_22, %c0_23], %20 {strides = array<i32>} : memref<2x32x56xf32, #tpu.memory_space<vmem>>, vector<1x32x56xf32>,
    %21 = arith.mulf %17, %1 : vector<32x56xf32>
    %cst_24 = arith.constant dense<0.000000e+00> : vector<32xf32>
    %22 = vector.multi_reduction <add>, %21, %cst_24 [1] : vector<32x56xf32> to vector<32xf32>
    %23 = vector.shape_cast %22 : vector<32xf32> to vector<32x1xf32>
    %24 = arith.addf %2, %23 : vector<32x1xf32>
    %25 = arith.mulf %21, %17 : vector<32x56xf32>
    %cst_25 = arith.constant dense<0.000000e+00> : vector<32xf32>
    %26 = vector.multi_reduction <add>, %25, %cst_25 [1] : vector<32x56xf32> to vector<32xf32>
    %27 = vector.shape_cast %26 : vector<32xf32> to vector<32x1xf32>
    %28 = arith.addf %3, %27 : vector<32x1xf32>
    %c1_26 = arith.constant 1 : index
    %c0_27 = arith.constant 0 : index
    %c0_28 = arith.constant 0 : index
    %29 = vector.load %arg1[%c1_26, %c0_27, %c0_28] : memref<2x16x65xf32, #tpu.memory_space<vmem>>, vector<1x16x56xf32>
    %30 = vector.shape_cast %29 : vector<1x16x56xf32> to vector<16x56xf32>
    %c0_29 = arith.constant 0 : index
    %c0_30 = arith.constant 0 : index
    %31 = vector.load %arg7[%c0_29, %c0_30] : memref<64x56xf32, #tpu.memory_space<vmem>>, vector<16x56xf32>
    tpu.vector_store %arg7[%c0_29, %c0_30], %30 {strides = array<i32>} : memref<64x56xf32, #tpu.memory_space<vmem>>, vector<16x56xf32>,
    %c1_31 = arith.constant 1 : index
    %c0_32 = arith.constant 0 : index
    %c1_33 = arith.constant 1 : index
    %32 = vector.load %arg1[%c1_31, %c0_32, %c1_33] : memref<2x16x65xf32, #tpu.memory_space<vmem>>, vector<1x16x56xf32>
    %33 = vector.shape_cast %32 : vector<1x16x56xf32> to vector<16x56xf32>
    %c16_34 = arith.constant 16 : index
    %c0_35 = arith.constant 0 : index
    %34 = vector.load %arg7[%c16_34, %c0_35] : memref<64x56xf32, #tpu.memory_space<vmem>>, vector<16x56xf32>
    tpu.vector_store %arg7[%c16_34, %c0_35], %33 {strides = array<i32>} : memref<64x56xf32, #tpu.memory_space<vmem>>, vector<16x56xf32>,
    %c1_36 = arith.constant 1 : index
    %c0_37 = arith.constant 0 : index
    %c8_38 = arith.constant 8 : index
    %35 = vector.load %arg1[%c1_36, %c0_37, %c8_38] : memref<2x16x65xf32, #tpu.memory_space<vmem>>, vector<1x16x56xf32>
    %36 = vector.shape_cast %35 : vector<1x16x56xf32> to vector<16x56xf32>
    %c32_39 = arith.constant 32 : index
    %c0_40 = arith.constant 0 : index
    %37 = vector.load %arg7[%c32_39, %c0_40] : memref<64x56xf32, #tpu.memory_space<vmem>>, vector<16x56xf32>
    tpu.vector_store %arg7[%c32_39, %c0_40], %36 {strides = array<i32>} : memref<64x56xf32, #tpu.memory_space<vmem>>, vector<16x56xf32>,
    %c1_41 = arith.constant 1 : index
    %c0_42 = arith.constant 0 : index
    %c9_43 = arith.constant 9 : index
    %38 = vector.load %arg1[%c1_41, %c0_42, %c9_43] : memref<2x16x65xf32, #tpu.memory_space<vmem>>, vector<1x16x56xf32>
    %39 = vector.shape_cast %38 : vector<1x16x56xf32> to vector<16x56xf32>
    %c48_44 = arith.constant 48 : index
    %c0_45 = arith.constant 0 : index
    %40 = vector.load %arg7[%c48_44, %c0_45] : memref<64x56xf32, #tpu.memory_space<vmem>>, vector<16x56xf32>
    tpu.vector_store %arg7[%c48_44, %c0_45], %39 {strides = array<i32>} : memref<64x56xf32, #tpu.memory_space<vmem>>, vector<16x56xf32>,
    %c0_46 = arith.constant 0 : index
    %c0_47 = arith.constant 0 : index
    %41 = vector.load %arg7[%c0_46, %c0_47] : memref<64x56xf32, #tpu.memory_space<vmem>>, vector<64x56xf32>
    %cst_48 = arith.constant dense<0.000000e+00> : vector<32x56xf32>
    %42 = tpu.matmul %0, %41, %cst_48 {dimension_numbers = #tpu.dot_dimension_numbers<[1], [0], [0], [1], [0, 0, 1, 1], [], []>} : vector<32x64xf32>, vector<64x56xf32>, vector<32x56xf32> -> vector<32x56xf32>
    %c1_49 = arith.constant 1 : index
    %c0_50 = arith.constant 0 : index
    %c0_51 = arith.constant 0 : index
    %43 = vector.load %arg4[%c1_49, %c0_50, %c0_51] : memref<2x32x56xf32, #tpu.memory_space<vmem>>, vector<1x32x56xf32>
    %44 = vector.shape_cast %43 : vector<1x32x56xf32> to vector<32x56xf32>
    %45 = vector.shape_cast %42 : vector<32x56xf32> to vector<1x32x56xf32>
    tpu.vector_store %arg4[%c1_49, %c0_50, %c0_51], %45 {strides = array<i32>} : memref<2x32x56xf32, #tpu.memory_space<vmem>>, vector<1x32x56xf32>,
    %46 = arith.mulf %42, %1 : vector<32x56xf32>
    %cst_52 = arith.constant dense<0.000000e+00> : vector<32xf32>
    %47 = vector.multi_reduction <add>, %46, %cst_52 [1] : vector<32x56xf32> to vector<32xf32>
    %48 = vector.shape_cast %47 : vector<32xf32> to vector<32x1xf32>
    %49 = arith.addf %24, %48 : vector<32x1xf32>
    %50 = arith.mulf %46, %42 : vector<32x56xf32>
    %cst_53 = arith.constant dense<0.000000e+00> : vector<32xf32>
    %51 = vector.multi_reduction <add>, %50, %cst_53 [1] : vector<32x56xf32> to vector<32xf32>
    %52 = vector.shape_cast %51 : vector<32xf32> to vector<32x1xf32>
    %53 = arith.addf %28, %52 : vector<32x1xf32>
    %c0_54 = arith.constant 0 : index
    %c0_55 = arith.constant 0 : index
    %c0_56 = arith.constant 0 : index
    %54 = vector.load %arg5[%c0_54, %c0_55, %c0_56] : memref<1x32x1xf32, #tpu.memory_space<vmem>>, vector<1x32x1xf32>
    %55 = vector.shape_cast %54 : vector<1x32x1xf32> to vector<32x1xf32>
    %56 = vector.shape_cast %49 : vector<32x1xf32> to vector<1x32x1xf32>
    tpu.vector_store %arg5[%c0_54, %c0_55, %c0_56], %56 {strides = array<i32>} : memref<1x32x1xf32, #tpu.memory_space<vmem>>, vector<1x32x1xf32>,
    %c0_57 = arith.constant 0 : index
    %c0_58 = arith.constant 0 : index
    %c0_59 = arith.constant 0 : index
    %57 = vector.load %arg6[%c0_57, %c0_58, %c0_59] : memref<1x32x1xf32, #tpu.memory_space<vmem>>, vector<1x32x1xf32>
    %58 = vector.shape_cast %57 : vector<1x32x1xf32> to vector<32x1xf32>
    %59 = vector.shape_cast %53 : vector<32x1xf32> to vector<1x32x1xf32>
    tpu.vector_store %arg6[%c0_57, %c0_58, %c0_59], %59 {strides = array<i32>} : memref<1x32x1xf32, #tpu.memory_space<vmem>>, vector<1x32x1xf32>,
    return
  }
  func.func @transform_0(%arg0: i32) -> (i32, i32, i32) {
    %c0_i32 = arith.constant 0 : i32
    %c0_i32_0 = arith.constant 0 : i32
    %c0_i32_1 = arith.constant 0 : i32
    return %arg0, %c0_i32, %c0_i32_0 : i32, i32, i32
  }
  func.func @transform_1(%arg0: i32) -> (i32, i32) {
    %c0_i32 = arith.constant 0 : i32
    %c0_i32_0 = arith.constant 0 : i32
    %c0_i32_1 = arith.constant 0 : i32
    return %c0_i32, %c0_i32_0 : i32, i32
  }
  func.func @transform_2(%arg0: i32) -> (i32, i32) {
    %c0_i32 = arith.constant 0 : i32
    %c0_i32_0 = arith.constant 0 : i32
    %c0_i32_1 = arith.constant 0 : i32
    return %c0_i32, %c0_i32_0 : i32, i32
  }
  func.func @transform_3(%arg0: i32) -> (i32, i32, i32) {
    %c0_i32 = arith.constant 0 : i32
    %c0_i32_0 = arith.constant 0 : i32
    %c0_i32_1 = arith.constant 0 : i32
    return %arg0, %c0_i32, %c0_i32_0 : i32, i32, i32
  }
  func.func @transform_4(%arg0: i32) -> (i32, i32, i32) {
    %c0_i32 = arith.constant 0 : i32
    %c0_i32_0 = arith.constant 0 : i32
    %c0_i32_1 = arith.constant 0 : i32
    return %arg0, %c0_i32, %c0_i32_0 : i32, i32, i32
  }
  func.func @transform_5(%arg0: i32) -> (i32, i32, i32) {
    %c0_i32 = arith.constant 0 : i32
    %c0_i32_0 = arith.constant 0 : i32
    %c0_i32_1 = arith.constant 0 : i32
    return %arg0, %c0_i32, %c0_i32_0 : i32, i32, i32
  }
}

module attributes {stable_mosaic.version = 11 : i64} {
  func.func @kernel(%arg0: i32, %arg1: memref<2x8x226xf32, #tpu.memory_space<vmem>>, %arg2: memref<4x32xf32, #tpu.memory_space<vmem>>, %arg3: memref<4x1xf32, #tpu.memory_space<vmem>>, %arg4: memref<2x4x210xf32, #tpu.memory_space<vmem>>, %arg5: memref<32x210xf32, #tpu.memory_space<vmem>>) attributes {dimension_semantics = [#tpu.dimension_semantics<parallel>], iteration_bounds = array<i64: 1>, scalar_prefetch = 0 : i64, scratch_operands = 1 : i64, tpu.core_type = #tpu.core_type<tc>, window_params = [{transform_indices = @transform_0, window_bounds = array<i64: 2, 8, 226>}, {pipeline_mode = #tpu.pipeline_mode<synchronous>, transform_indices = @transform_1, window_bounds = array<i64: 4, 32>}, {pipeline_mode = #tpu.pipeline_mode<synchronous>, transform_indices = @transform_2, window_bounds = array<i64: 4, 1>}, {transform_indices = @transform_3, window_bounds = array<i64: 2, 4, 210>}]} {
    %c0 = arith.constant 0 : index
    %c0_0 = arith.constant 0 : index
    %0 = vector.load %arg2[%c0, %c0_0] : memref<4x32xf32, #tpu.memory_space<vmem>>, vector<4x32xf32>
    %c0_1 = arith.constant 0 : index
    %c0_2 = arith.constant 0 : index
    %1 = vector.load %arg3[%c0_1, %c0_2] : memref<4x1xf32, #tpu.memory_space<vmem>>, vector<4x1xf32>
    %c0_3 = arith.constant 0 : index
    %c0_4 = arith.constant 0 : index
    %c0_5 = arith.constant 0 : index
    %2 = vector.load %arg1[%c0_3, %c0_4, %c0_5] : memref<2x8x226xf32, #tpu.memory_space<vmem>>, vector<1x8x210xf32>
    %3 = vector.shape_cast %2 : vector<1x8x210xf32> to vector<8x210xf32>
    %c0_6 = arith.constant 0 : index
    %c0_7 = arith.constant 0 : index
    %4 = vector.load %arg5[%c0_6, %c0_7] : memref<32x210xf32, #tpu.memory_space<vmem>>, vector<8x210xf32>
    tpu.vector_store %arg5[%c0_6, %c0_7], %3 {strides = array<i32>} : memref<32x210xf32, #tpu.memory_space<vmem>>, vector<8x210xf32>,
    %c0_8 = arith.constant 0 : index
    %c0_9 = arith.constant 0 : index
    %c1 = arith.constant 1 : index
    %5 = vector.load %arg1[%c0_8, %c0_9, %c1] : memref<2x8x226xf32, #tpu.memory_space<vmem>>, vector<1x8x210xf32>
    %6 = vector.shape_cast %5 : vector<1x8x210xf32> to vector<8x210xf32>
    %c8 = arith.constant 8 : index
    %c0_10 = arith.constant 0 : index
    %7 = vector.load %arg5[%c8, %c0_10] : memref<32x210xf32, #tpu.memory_space<vmem>>, vector<8x210xf32>
    tpu.vector_store %arg5[%c8, %c0_10], %6 {strides = array<i32>} : memref<32x210xf32, #tpu.memory_space<vmem>>, vector<8x210xf32>,
    %c0_11 = arith.constant 0 : index
    %c0_12 = arith.constant 0 : index
    %c15 = arith.constant 15 : index
    %8 = vector.load %arg1[%c0_11, %c0_12, %c15] : memref<2x8x226xf32, #tpu.memory_space<vmem>>, vector<1x8x210xf32>
    %9 = vector.shape_cast %8 : vector<1x8x210xf32> to vector<8x210xf32>
    %c16 = arith.constant 16 : index
    %c0_13 = arith.constant 0 : index
    %10 = vector.load %arg5[%c16, %c0_13] : memref<32x210xf32, #tpu.memory_space<vmem>>, vector<8x210xf32>
    tpu.vector_store %arg5[%c16, %c0_13], %9 {strides = array<i32>} : memref<32x210xf32, #tpu.memory_space<vmem>>, vector<8x210xf32>,
    %c0_14 = arith.constant 0 : index
    %c0_15 = arith.constant 0 : index
    %c16_16 = arith.constant 16 : index
    %11 = vector.load %arg1[%c0_14, %c0_15, %c16_16] : memref<2x8x226xf32, #tpu.memory_space<vmem>>, vector<1x8x210xf32>
    %12 = vector.shape_cast %11 : vector<1x8x210xf32> to vector<8x210xf32>
    %c24 = arith.constant 24 : index
    %c0_17 = arith.constant 0 : index
    %13 = vector.load %arg5[%c24, %c0_17] : memref<32x210xf32, #tpu.memory_space<vmem>>, vector<8x210xf32>
    tpu.vector_store %arg5[%c24, %c0_17], %12 {strides = array<i32>} : memref<32x210xf32, #tpu.memory_space<vmem>>, vector<8x210xf32>,
    %c0_18 = arith.constant 0 : index
    %c0_19 = arith.constant 0 : index
    %14 = vector.load %arg5[%c0_18, %c0_19] : memref<32x210xf32, #tpu.memory_space<vmem>>, vector<32x210xf32>
    %cst = arith.constant dense<0.000000e+00> : vector<4x210xf32>
    %15 = tpu.matmul %0, %14, %cst {dimension_numbers = #tpu.dot_dimension_numbers<[1], [0], [0], [1], [0, 0, 1, 1], [], []>} : vector<4x32xf32>, vector<32x210xf32>, vector<4x210xf32> -> vector<4x210xf32>
    %16 = vector.broadcast %1 : vector<4x1xf32> to vector<4x210xf32>
    %17 = arith.addf %15, %16 : vector<4x210xf32>
    %18 = arith.negf %17 : vector<4x210xf32>
    %19 = math.exp %18 : vector<4x210xf32>
    %cst_20 = arith.constant 1.000000e+00 : f32
    %20 = vector.broadcast %cst_20 : f32 to vector<4x210xf32>
    %21 = arith.addf %20, %19 : vector<4x210xf32>
    %22 = arith.divf %20, %21 : vector<4x210xf32>
    %c0_21 = arith.constant 0 : index
    %c0_22 = arith.constant 0 : index
    %c0_23 = arith.constant 0 : index
    %23 = vector.load %arg4[%c0_21, %c0_22, %c0_23] : memref<2x4x210xf32, #tpu.memory_space<vmem>>, vector<1x4x210xf32>
    %24 = vector.shape_cast %23 : vector<1x4x210xf32> to vector<4x210xf32>
    %25 = vector.shape_cast %22 : vector<4x210xf32> to vector<1x4x210xf32>
    tpu.vector_store %arg4[%c0_21, %c0_22, %c0_23], %25 {strides = array<i32>} : memref<2x4x210xf32, #tpu.memory_space<vmem>>, vector<1x4x210xf32>,
    %c1_24 = arith.constant 1 : index
    %c0_25 = arith.constant 0 : index
    %c0_26 = arith.constant 0 : index
    %26 = vector.load %arg1[%c1_24, %c0_25, %c0_26] : memref<2x8x226xf32, #tpu.memory_space<vmem>>, vector<1x8x210xf32>
    %27 = vector.shape_cast %26 : vector<1x8x210xf32> to vector<8x210xf32>
    %c0_27 = arith.constant 0 : index
    %c0_28 = arith.constant 0 : index
    %28 = vector.load %arg5[%c0_27, %c0_28] : memref<32x210xf32, #tpu.memory_space<vmem>>, vector<8x210xf32>
    tpu.vector_store %arg5[%c0_27, %c0_28], %27 {strides = array<i32>} : memref<32x210xf32, #tpu.memory_space<vmem>>, vector<8x210xf32>,
    %c1_29 = arith.constant 1 : index
    %c0_30 = arith.constant 0 : index
    %c1_31 = arith.constant 1 : index
    %29 = vector.load %arg1[%c1_29, %c0_30, %c1_31] : memref<2x8x226xf32, #tpu.memory_space<vmem>>, vector<1x8x210xf32>
    %30 = vector.shape_cast %29 : vector<1x8x210xf32> to vector<8x210xf32>
    %c8_32 = arith.constant 8 : index
    %c0_33 = arith.constant 0 : index
    %31 = vector.load %arg5[%c8_32, %c0_33] : memref<32x210xf32, #tpu.memory_space<vmem>>, vector<8x210xf32>
    tpu.vector_store %arg5[%c8_32, %c0_33], %30 {strides = array<i32>} : memref<32x210xf32, #tpu.memory_space<vmem>>, vector<8x210xf32>,
    %c1_34 = arith.constant 1 : index
    %c0_35 = arith.constant 0 : index
    %c15_36 = arith.constant 15 : index
    %32 = vector.load %arg1[%c1_34, %c0_35, %c15_36] : memref<2x8x226xf32, #tpu.memory_space<vmem>>, vector<1x8x210xf32>
    %33 = vector.shape_cast %32 : vector<1x8x210xf32> to vector<8x210xf32>
    %c16_37 = arith.constant 16 : index
    %c0_38 = arith.constant 0 : index
    %34 = vector.load %arg5[%c16_37, %c0_38] : memref<32x210xf32, #tpu.memory_space<vmem>>, vector<8x210xf32>
    tpu.vector_store %arg5[%c16_37, %c0_38], %33 {strides = array<i32>} : memref<32x210xf32, #tpu.memory_space<vmem>>, vector<8x210xf32>,
    %c1_39 = arith.constant 1 : index
    %c0_40 = arith.constant 0 : index
    %c16_41 = arith.constant 16 : index
    %35 = vector.load %arg1[%c1_39, %c0_40, %c16_41] : memref<2x8x226xf32, #tpu.memory_space<vmem>>, vector<1x8x210xf32>
    %36 = vector.shape_cast %35 : vector<1x8x210xf32> to vector<8x210xf32>
    %c24_42 = arith.constant 24 : index
    %c0_43 = arith.constant 0 : index
    %37 = vector.load %arg5[%c24_42, %c0_43] : memref<32x210xf32, #tpu.memory_space<vmem>>, vector<8x210xf32>
    tpu.vector_store %arg5[%c24_42, %c0_43], %36 {strides = array<i32>} : memref<32x210xf32, #tpu.memory_space<vmem>>, vector<8x210xf32>,
    %c0_44 = arith.constant 0 : index
    %c0_45 = arith.constant 0 : index
    %38 = vector.load %arg5[%c0_44, %c0_45] : memref<32x210xf32, #tpu.memory_space<vmem>>, vector<32x210xf32>
    %cst_46 = arith.constant dense<0.000000e+00> : vector<4x210xf32>
    %39 = tpu.matmul %0, %38, %cst_46 {dimension_numbers = #tpu.dot_dimension_numbers<[1], [0], [0], [1], [0, 0, 1, 1], [], []>} : vector<4x32xf32>, vector<32x210xf32>, vector<4x210xf32> -> vector<4x210xf32>
    %40 = vector.broadcast %1 : vector<4x1xf32> to vector<4x210xf32>
    %41 = arith.addf %39, %40 : vector<4x210xf32>
    %42 = arith.negf %41 : vector<4x210xf32>
    %43 = math.exp %42 : vector<4x210xf32>
    %cst_47 = arith.constant 1.000000e+00 : f32
    %44 = vector.broadcast %cst_47 : f32 to vector<4x210xf32>
    %45 = arith.addf %44, %43 : vector<4x210xf32>
    %46 = arith.divf %44, %45 : vector<4x210xf32>
    %c1_48 = arith.constant 1 : index
    %c0_49 = arith.constant 0 : index
    %c0_50 = arith.constant 0 : index
    %47 = vector.load %arg4[%c1_48, %c0_49, %c0_50] : memref<2x4x210xf32, #tpu.memory_space<vmem>>, vector<1x4x210xf32>
    %48 = vector.shape_cast %47 : vector<1x4x210xf32> to vector<4x210xf32>
    %49 = vector.shape_cast %46 : vector<4x210xf32> to vector<1x4x210xf32>
    tpu.vector_store %arg4[%c1_48, %c0_49, %c0_50], %49 {strides = array<i32>} : memref<2x4x210xf32, #tpu.memory_space<vmem>>, vector<1x4x210xf32>,
    return
  }
  func.func @transform_0(%arg0: i32) -> (i32, i32, i32) {
    %c0_i32 = arith.constant 0 : i32
    %c0_i32_0 = arith.constant 0 : i32
    %c0_i32_1 = arith.constant 0 : i32
    return %arg0, %c0_i32, %c0_i32_0 : i32, i32, i32
  }
  func.func @transform_1(%arg0: i32) -> (i32, i32) {
    %c0_i32 = arith.constant 0 : i32
    %c0_i32_0 = arith.constant 0 : i32
    %c0_i32_1 = arith.constant 0 : i32
    return %c0_i32, %c0_i32_0 : i32, i32
  }
  func.func @transform_2(%arg0: i32) -> (i32, i32) {
    %c0_i32 = arith.constant 0 : i32
    %c0_i32_0 = arith.constant 0 : i32
    %c0_i32_1 = arith.constant 0 : i32
    return %c0_i32, %c0_i32_0 : i32, i32
  }
  func.func @transform_3(%arg0: i32) -> (i32, i32, i32) {
    %c0_i32 = arith.constant 0 : i32
    %c0_i32_0 = arith.constant 0 : i32
    %c0_i32_1 = arith.constant 0 : i32
    return %arg0, %c0_i32, %c0_i32_0 : i32, i32, i32
  }
}

</mosaic_0001>

<llo_original>
// kernel: torus_conv_ae_forward.9
$region0: #{torus_conv_ae_forward.9}
  #allocation0 [shape = 'u32[]', space=smem, size = 0x4, offset = 0x4, fixed_abs, tag = 'smem constant byte address 0x4 - core index']
  #allocation1 [shape = 'u32[144,128]{1,0:T(1,128)}', space=vmem, size = 0x12000, scoped, tag = 'internal scratch']
  #allocation2 [shape = 'f32[9,840]{1,0:T(8,128)}', space=vmem, size = 0xe000, scoped, tag = 'scratch operand']
  %s0 = inlined_call_operand.vmem [shape: f32[2,1,902], index: 0, kind: input, shape index: {}]
  %s1 = inlined_call_operand.vmem [shape: f32[8,9], index: 1, kind: input, shape index: {}]
  %s2 = inlined_call_operand.vmem [shape: f32[8,840], index: 2, kind: input, shape index: {}]
  %s3 = inlined_call_operand.vmem [shape: f32[2,8,840], index: 3, kind: output, shape index: {0}]
  %s4 = inlined_call_operand.vmem [shape: f32[1,8,1], index: 4, kind: output, shape index: {1}]
  %s5 = inlined_call_operand.vmem [shape: f32[1,8,1], index: 5, kind: output, shape index: {2}]
  %6 = xla_tuple %s3, %s4, %s5
  %s7 = sld [smem:[#allocation0]]
  $region38: #{torus_conv_ae_forward.9} parent=0
    _
  %s9 = ssub.s32 1, %s7
  %s10 = scalar_select 0, %s9, %s7
  // Predicated region
  $region2: #{torus_conv_ae_forward.9} parent=0 // pred_check
    _
  $region3: #{torus_conv_ae_forward.9} parent=0 // pred_check_branch
    %12 = sbr.rel (0) target = $region5
  $region4: #{torus_conv_ae_forward.9} parent=0 // pred_region
    _
  $region5: #{torus_conv_ae_forward.9} parent=0 // pred_fallthru
    _
  // Predicated region
  $region6: #{torus_conv_ae_forward.9} parent=0 // pred_check
    _
  $region7: #{torus_conv_ae_forward.9} parent=0 // pred_check_branch
    %14 = sbr.rel (0) target = $region9
  $region8: #{torus_conv_ae_forward.9} parent=0 // pred_region
    _
  $region9: #{torus_conv_ae_forward.9} parent=0 // pred_fallthru
    _
  // Predicated region
  $region10: #{torus_conv_ae_forward.9} parent=0 // pred_check
    _
  $region11: #{torus_conv_ae_forward.9} parent=0 // pred_check_branch
    %16 = sbr.rel (0) target = $region13
  $region12: #{torus_conv_ae_forward.9} parent=0 // pred_region
    _
  $region13: #{torus_conv_ae_forward.9} parent=0 // pred_fallthru
    _
  %v17 = vld [vmem:[%s1] sm:$0xff]
  %v18 = vld [vmem:[%s2] sm:$0xff]
  %v19 = vld [vmem:[%s2 + $0x8] sm:$0xff]
  %v20 = vld [vmem:[%s2 + $0x10] sm:$0xff]
  %v21 = vld [vmem:[%s2 + $0x18] sm:$0xff]
  %v22 = vld [vmem:[%s2 + $0x20] sm:$0xff]
  %v23 = vld [vmem:[%s2 + $0x28] sm:$0xff]
  %v24 = vld [vmem:[%s2 + $0x30] sm:$0xff]
  %v25 = vld [vmem:[%s0] sm:$0x7f]
  %27 = vset.pattern.permute.xlu0 0
  %28 = vperm.xlu0 %27, %v17
  %v29 = vpop.permute.xlu0 %28
  %v32 = vlaneseq
  %v33 = vshrl.u32 %v32, 7
  %v34 = vsub.s32 0, %v33
  %v35 = vrot.slane %v25, %v34
  %v36 = vlaneseq
  %v37 = vshrl.u32 %v36, 7
  %v38 = vsub.s32 1, %v37
  %v39 = vrot.slane %v25, %v38
  %v40 = vlaneseq
  %v41 = vshrl.u32 %v40, 7
  %v42 = vsub.s32 2, %v41
  %v43 = vrot.slane %v25, %v42
  %v44 = vlaneseq
  %v45 = vshrl.u32 %v44, 7
  %v46 = vsub.s32 3, %v45
  %v47 = vrot.slane %v25, %v46
  %v48 = vlaneseq
  %v49 = vshrl.u32 %v48, 7
  %v50 = vsub.s32 4, %v49
  %v51 = vrot.slane %v25, %v50
  %v52 = vlaneseq
  %v53 = vshrl.u32 %v52, 7
  %v54 = vsub.s32 5, %v53
  %v55 = vrot.slane %v25, %v54
  %v56 = vlaneseq
  %v57 = vshrl.u32 %v56, 7
  %v58 = vsub.s32 6, %v57
  %v59 = vrot.slane %v25, %v58
  %v67 = vmul.f32 %v29, %v35
  %v68 = vmul.f32 %v29, %v39
  %v69 = vmul.f32 %v29, %v43
  %v70 = vmul.f32 %v29, %v47
  %v71 = vmul.f32 %v29, %v51
  %v72 = vmul.f32 %v29, %v55
  %v73 = vmul.f32 %v29, %v59
  %74 = vset.pattern.permute.xlu0 1
  %75 = vperm.xlu0 %74, %v17
  %v76 = vpop.permute.xlu0 %75
  %v78 = vmul.f32 %v76, %v35
  %v79 = vmul.f32 %v76, %v39
  %v80 = vmul.f32 %v76, %v43
  %v81 = vmul.f32 %v76, %v47
  %v82 = vmul.f32 %v76, %v51
  %v83 = vmul.f32 %v76, %v55
  %v84 = vmul.f32 %v76, %v59
  %92 = vrot.lane.b32.xlu0 %v78, 127
  %v93 = vpop.permute.xlu0 %92
  %94 = vrot.lane.b32.xlu0 %v79, 127
  %v95 = vpop.permute.xlu0 %94
  %96 = vrot.lane.b32.xlu0 %v80, 127
  %v97 = vpop.permute.xlu0 %96
  %98 = vrot.lane.b32.xlu0 %v81, 127
  %v99 = vpop.permute.xlu0 %98
  %100 = vrot.lane.b32.xlu0 %v82, 127
  %v101 = vpop.permute.xlu0 %100
  %102 = vrot.lane.b32.xlu0 %v83, 127
  %v103 = vpop.permute.xlu0 %102
  %104 = vrot.lane.b32.xlu0 %v84, 127
  %v105 = vpop.permute.xlu0 %104
  %vm106 = vcmask 1039360
  %v107 = vsel %vm106, %v93, %v95
  %v108 = vsel %vm106, %v95, %v97
  %v109 = vsel %vm106, %v97, %v99
  %v110 = vsel %vm106, %v99, %v101
  %v111 = vsel %vm106, %v101, %v103
  %v112 = vsel %vm106, %v103, %v105
  %v120 = vadd.f32 %v67, %v107
  %v121 = vadd.f32 %v68, %v108
  %v122 = vadd.f32 %v69, %v109
  %v123 = vadd.f32 %v70, %v110
  %v124 = vadd.f32 %v71, %v111
  %v125 = vadd.f32 %v72, %v112
  %v126 = vadd.f32 %v73, %v105
  %127 = vset.pattern.permute.xlu0 2
  %128 = vperm.xlu0 %127, %v17
  %v129 = vpop.permute.xlu0 %128
  %v131 = vmul.f32 %v129, %v35
  %v132 = vmul.f32 %v129, %v39
  %v133 = vmul.f32 %v129, %v43
  %v134 = vmul.f32 %v129, %v47
  %v135 = vmul.f32 %v129, %v51
  %v136 = vmul.f32 %v129, %v55
  %v137 = vmul.f32 %v129, %v59
  %145 = vrot.lane.b32.xlu0 %v131, 126
  %v146 = vpop.permute.xlu0 %145
  %147 = vrot.lane.b32.xlu0 %v132, 126
  %v148 = vpop.permute.xlu0 %147
  %149 = vrot.lane.b32.xlu0 %v133, 126
  %v150 = vpop.permute.xlu0 %149
  %151 = vrot.lane.b32.xlu0 %v134, 126
  %v152 = vpop.permute.xlu0 %151
  %153 = vrot.lane.b32.xlu0 %v135, 126
  %v154 = vpop.permute.xlu0 %153
  %155 = vrot.lane.b32.xlu0 %v136, 126
  %v156 = vpop.permute.xlu0 %155
  %157 = vrot.lane.b32.xlu0 %v137, 126
  %v158 = vpop.permute.xlu0 %157
  %vm159 = vcmask 1031168
  %v160 = vsel %vm159, %v146, %v148
  %v161 = vsel %vm159, %v148, %v150
  %v162 = vsel %vm159, %v150, %v152
  %v163 = vsel %vm159, %v152, %v154
  %v164 = vsel %vm159, %v154, %v156
  %v165 = vsel %vm159, %v156, %v158
  %v173 = vadd.f32 %v120, %v160
  %v174 = vadd.f32 %v121, %v161
  %v175 = vadd.f32 %v122, %v162
  %v176 = vadd.f32 %v123, %v163
  %v177 = vadd.f32 %v124, %v164
  %v178 = vadd.f32 %v125, %v165
  %v179 = vadd.f32 %v126, %v158
  %180 = vset.pattern.permute.xlu0 3
  %181 = vperm.xlu0 %180, %v17
  %v182 = vpop.permute.xlu0 %181
  %v184 = vmul.f32 %v182, %v35
  %v185 = vmul.f32 %v182, %v39
  %v186 = vmul.f32 %v182, %v43
  %v187 = vmul.f32 %v182, %v47
  %v188 = vmul.f32 %v182, %v51
  %v189 = vmul.f32 %v182, %v55
  %v190 = vmul.f32 %v182, %v59
  %198 = vrot.lane.b32.xlu0 %v184, 98
  %v199 = vpop.permute.xlu0 %198
  %200 = vrot.lane.b32.xlu0 %v185, 98
  %v201 = vpop.permute.xlu0 %200
  %202 = vrot.lane.b32.xlu0 %v186, 98
  %v203 = vpop.permute.xlu0 %202
  %204 = vrot.lane.b32.xlu0 %v187, 98
  %v205 = vpop.permute.xlu0 %204
  %206 = vrot.lane.b32.xlu0 %v188, 98
  %v207 = vpop.permute.xlu0 %206
  %208 = vrot.lane.b32.xlu0 %v189, 98
  %v209 = vpop.permute.xlu0 %208
  %210 = vrot.lane.b32.xlu0 %v190, 98
  %v211 = vpop.permute.xlu0 %210
  %vm212 = vcmask 801792
  %v213 = vsel %vm212, %v199, %v201
  %v214 = vsel %vm212, %v201, %v203
  %v215 = vsel %vm212, %v203, %v205
  %v216 = vsel %vm212, %v205, %v207
  %v217 = vsel %vm212, %v207, %v209
  %v218 = vsel %vm212, %v209, %v211
  %v226 = vadd.f32 %v173, %v213
  %v227 = vadd.f32 %v174, %v214
  %v228 = vadd.f32 %v175, %v215
  %v229 = vadd.f32 %v176, %v216
  %v230 = vadd.f32 %v177, %v217
  %v231 = vadd.f32 %v178, %v218
  %v232 = vadd.f32 %v179, %v211
  %233 = vset.pattern.permute.xlu0 4
  %234 = vperm.xlu0 %233, %v17
  %v235 = vpop.permute.xlu0 %234
  %v237 = vmul.f32 %v235, %v35
  %v238 = vmul.f32 %v235, %v39
  %v239 = vmul.f32 %v235, %v43
  %v240 = vmul.f32 %v235, %v47
  %v241 = vmul.f32 %v235, %v51
  %v242 = vmul.f32 %v235, %v55
  %v243 = vmul.f32 %v235, %v59
  %251 = vrot.lane.b32.xlu0 %v237, 97
  %v252 = vpop.permute.xlu0 %251
  %253 = vrot.lane.b32.xlu0 %v238, 97
  %v254 = vpop.permute.xlu0 %253
  %255 = vrot.lane.b32.xlu0 %v239, 97
  %v256 = vpop.permute.xlu0 %255
  %257 = vrot.lane.b32.xlu0 %v240, 97
  %v258 = vpop.permute.xlu0 %257
  %259 = vrot.lane.b32.xlu0 %v241, 97
  %v260 = vpop.permute.xlu0 %259
  %261 = vrot.lane.b32.xlu0 %v242, 97
  %v262 = vpop.permute.xlu0 %261
  %263 = vrot.lane.b32.xlu0 %v243, 97
  %v264 = vpop.permute.xlu0 %263
  %vm265 = vcmask 793600
  %v266 = vsel %vm265, %v252, %v254
  %v267 = vsel %vm265, %v254, %v256
  %v268 = vsel %vm265, %v256, %v258
  %v269 = vsel %vm265, %v258, %v260
  %v270 = vsel %vm265, %v260, %v262
  %v271 = vsel %vm265, %v262, %v264
  %v279 = vadd.f32 %v226, %v266
  %v280 = vadd.f32 %v227, %v267
  %v281 = vadd.f32 %v228, %v268
  %v282 = vadd.f32 %v229, %v269
  %v283 = vadd.f32 %v230, %v270
  %v284 = vadd.f32 %v231, %v271
  %v285 = vadd.f32 %v232, %v264
  %286 = vset.pattern.permute.xlu0 5
  %287 = vperm.xlu0 %286, %v17
  %v288 = vpop.permute.xlu0 %287
  %v290 = vmul.f32 %v288, %v35
  %v291 = vmul.f32 %v288, %v39
  %v292 = vmul.f32 %v288, %v43
  %v293 = vmul.f32 %v288, %v47
  %v294 = vmul.f32 %v288, %v51
  %v295 = vmul.f32 %v288, %v55
  %v296 = vmul.f32 %v288, %v59
  %304 = vrot.lane.b32.xlu0 %v290, 96
  %v305 = vpop.permute.xlu0 %304
  %306 = vrot.lane.b32.xlu0 %v291, 96
  %v307 = vpop.permute.xlu0 %306
  %308 = vrot.lane.b32.xlu0 %v292, 96
  %v309 = vpop.permute.xlu0 %308
  %310 = vrot.lane.b32.xlu0 %v293, 96
  %v311 = vpop.permute.xlu0 %310
  %312 = vrot.lane.b32.xlu0 %v294, 96
  %v313 = vpop.permute.xlu0 %312
  %314 = vrot.lane.b32.xlu0 %v295, 96
  %v315 = vpop.permute.xlu0 %314
  %316 = vrot.lane.b32.xlu0 %v296, 96
  %v317 = vpop.permute.xlu0 %316
  %vm318 = vcmask 785408
  %v319 = vsel %vm318, %v305, %v307
  %v320 = vsel %vm318, %v307, %v309
  %v321 = vsel %vm318, %v309, %v311
  %v322 = vsel %vm318, %v311, %v313
  %v323 = vsel %vm318, %v313, %v315
  %v324 = vsel %vm318, %v315, %v317
  %v332 = vadd.f32 %v279, %v319
  %v333 = vadd.f32 %v280, %v320
  %v334 = vadd.f32 %v281, %v321
  %v335 = vadd.f32 %v282, %v322
  %v336 = vadd.f32 %v283, %v323
  %v337 = vadd.f32 %v284, %v324
  %v338 = vadd.f32 %v285, %v317
  %v339 = vld [vmem:[%s0] sm:$0xff]
  %340 = vset.pattern.permute.xlu0 6
  %341 = vperm.xlu0 %340, %v17
  %v342 = vpop.permute.xlu0 %341
  %v345 = vlaneseq
  %v346 = vshrl.u32 %v345, 7
  %v347 = vsub.s32 0, %v346
  %v348 = vrot.slane %v339, %v347
  %v349 = vlaneseq
  %v350 = vshrl.u32 %v349, 7
  %v351 = vsub.s32 1, %v350
  %v352 = vrot.slane %v339, %v351
  %v353 = vlaneseq
  %v354 = vshrl.u32 %v353, 7
  %v355 = vsub.s32 2, %v354
  %v356 = vrot.slane %v339, %v355
  %v357 = vlaneseq
  %v358 = vshrl.u32 %v357, 7
  %v359 = vsub.s32 3, %v358
  %v360 = vrot.slane %v339, %v359
  %v361 = vlaneseq
  %v362 = vshrl.u32 %v361, 7
  %v363 = vsub.s32 4, %v362
  %v364 = vrot.slane %v339, %v363
  %v365 = vlaneseq
  %v366 = vshrl.u32 %v365, 7
  %v367 = vsub.s32 5, %v366
  %v368 = vrot.slane %v339, %v367
  %v369 = vlaneseq
  %v370 = vshrl.u32 %v369, 7
  %v371 = vsub.s32 6, %v370
  %v372 = vrot.slane %v339, %v371
  %v373 = vlaneseq
  %v374 = vshrl.u32 %v373, 7
  %v375 = vsub.s32 7, %v374
  %v376 = vrot.slane %v339, %v375
  %v385 = vmul.f32 %v342, %v348
  %v386 = vmul.f32 %v342, %v352
  %v387 = vmul.f32 %v342, %v356
  %v388 = vmul.f32 %v342, %v360
  %v389 = vmul.f32 %v342, %v364
  %v390 = vmul.f32 %v342, %v368
  %v391 = vmul.f32 %v342, %v372
  %v392 = vmul.f32 %v342, %v376
  %401 = vrot.lane.b32.xlu0 %v385, 68
  %v402 = vpop.permute.xlu0 %401
  %403 = vrot.lane.b32.xlu0 %v386, 68
  %v404 = vpop.permute.xlu0 %403
  %405 = vrot.lane.b32.xlu0 %v387, 68
  %v406 = vpop.permute.xlu0 %405
  %407 = vrot.lane.b32.xlu0 %v388, 68
  %v408 = vpop.permute.xlu0 %407
  %409 = vrot.lane.b32.xlu0 %v389, 68
  %v410 = vpop.permute.xlu0 %409
  %411 = vrot.lane.b32.xlu0 %v390, 68
  %v412 = vpop.permute.xlu0 %411
  %413 = vrot.lane.b32.xlu0 %v391, 68
  %v414 = vpop.permute.xlu0 %413
  %415 = vrot.lane.b32.xlu0 %v392, 68
  %v416 = vpop.permute.xlu0 %415
  %vm417 = vcmask 556032
  %v418 = vsel %vm417, %v402, %v404
  %v419 = vsel %vm417, %v404, %v406
  %v420 = vsel %vm417, %v406, %v408
  %v421 = vsel %vm417, %v408, %v410
  %v422 = vsel %vm417, %v410, %v412
  %v423 = vsel %vm417, %v412, %v414
  %v424 = vsel %vm417, %v414, %v416
  %v432 = vadd.f32 %v332, %v418
  %v433 = vadd.f32 %v333, %v419
  %v434 = vadd.f32 %v334, %v420
  %v435 = vadd.f32 %v335, %v421
  %v436 = vadd.f32 %v336, %v422
  %v437 = vadd.f32 %v337, %v423
  %v438 = vadd.f32 %v338, %v424
  %439 = vset.pattern.permute.xlu0 7
  %440 = vperm.xlu0 %439, %v17
  %v441 = vpop.permute.xlu0 %440
  %v443 = vmul.f32 %v441, %v348
  %v444 = vmul.f32 %v441, %v352
  %v445 = vmul.f32 %v441, %v356
  %v446 = vmul.f32 %v441, %v360
  %v447 = vmul.f32 %v441, %v364
  %v448 = vmul.f32 %v441, %v368
  %v449 = vmul.f32 %v441, %v372
  %v450 = vmul.f32 %v441, %v376
  %459 = vrot.lane.b32.xlu0 %v443, 67
  %v460 = vpop.permute.xlu0 %459
  %461 = vrot.lane.b32.xlu0 %v444, 67
  %v462 = vpop.permute.xlu0 %461
  %463 = vrot.lane.b32.xlu0 %v445, 67
  %v464 = vpop.permute.xlu0 %463
  %465 = vrot.lane.b32.xlu0 %v446, 67
  %v466 = vpop.permute.xlu0 %465
  %467 = vrot.lane.b32.xlu0 %v447, 67
  %v468 = vpop.permute.xlu0 %467
  %469 = vrot.lane.b32.xlu0 %v448, 67
  %v470 = vpop.permute.xlu0 %469
  %471 = vrot.lane.b32.xlu0 %v449, 67
  %v472 = vpop.permute.xlu0 %471
  %473 = vrot.lane.b32.xlu0 %v450, 67
  %v474 = vpop.permute.xlu0 %473
  %vm475 = vcmask 547840
  %v476 = vsel %vm475, %v460, %v462
  %v477 = vsel %vm475, %v462, %v464
  %v478 = vsel %vm475, %v464, %v466
  %v479 = vsel %vm475, %v466, %v468
  %v480 = vsel %vm475, %v468, %v470
  %v481 = vsel %vm475, %v470, %v472
  %v482 = vsel %vm475, %v472, %v474
  %v490 = vadd.f32 %v432, %v476
  %v491 = vadd.f32 %v433, %v477
  %v492 = vadd.f32 %v434, %v478
  %v493 = vadd.f32 %v435, %v479
  %v494 = vadd.f32 %v436, %v480
  %v495 = vadd.f32 %v437, %v481
  %v496 = vadd.f32 %v438, %v482
  %497 = vset.pattern.permute.xlu0 8
  %498 = vperm.xlu0 %497, %v17
  %v499 = vpop.permute.xlu0 %498
  %v501 = vmul.f32 %v499, %v348
  %v502 = vmul.f32 %v499, %v352
  %v503 = vmul.f32 %v499, %v356
  %v504 = vmul.f32 %v499, %v360
  %v505 = vmul.f32 %v499, %v364
  %v506 = vmul.f32 %v499, %v368
  %v507 = vmul.f32 %v499, %v372
  %v508 = vmul.f32 %v499, %v376
  %517 = vrot.lane.b32.xlu0 %v501, 66
  %v518 = vpop.permute.xlu0 %517
  %519 = vrot.lane.b32.xlu0 %v502, 66
  %v520 = vpop.permute.xlu0 %519
  %521 = vrot.lane.b32.xlu0 %v503, 66
  %v522 = vpop.permute.xlu0 %521
  %523 = vrot.lane.b32.xlu0 %v504, 66
  %v524 = vpop.permute.xlu0 %523
  %525 = vrot.lane.b32.xlu0 %v505, 66
  %v526 = vpop.permute.xlu0 %525
  %527 = vrot.lane.b32.xlu0 %v506, 66
  %v528 = vpop.permute.xlu0 %527
  %529 = vrot.lane.b32.xlu0 %v507, 66
  %v530 = vpop.permute.xlu0 %529
  %531 = vrot.lane.b32.xlu0 %v508, 66
  %v532 = vpop.permute.xlu0 %531
  %vm533 = vcmask 539648
  %v534 = vsel %vm533, %v518, %v520
  %v535 = vsel %vm533, %v520, %v522
  %v536 = vsel %vm533, %v522, %v524
  %v537 = vsel %vm533, %v524, %v526
  %v538 = vsel %vm533, %v526, %v528
  %v539 = vsel %vm533, %v528, %v530
  %v540 = vsel %vm533, %v530, %v532
  %v548 = vadd.f32 %v490, %v534
  %v549 = vadd.f32 %v491, %v535
  %v550 = vadd.f32 %v492, %v536
  %v551 = vadd.f32 %v493, %v537
  %v552 = vadd.f32 %v494, %v538
  %v553 = vadd.f32 %v495, %v539
  %v554 = vadd.f32 %v496, %v540
  %555 = vst [vmem:[%s3] sm:$0xff] %v548
  %556 = vst [vmem:[%s3 + $0x8] sm:$0xff] %v549
  %557 = vst [vmem:[%s3 + $0x10] sm:$0xff] %v550
  %558 = vst [vmem:[%s3 + $0x18] sm:$0xff] %v551
  %559 = vst [vmem:[%s3 + $0x20] sm:$0xff] %v552
  %560 = vst [vmem:[%s3 + $0x28] sm:$0xff] %v553
  %vm561 = vcmask 588800
  %562 = vst.msk [vmem:[%s3 + $0x30] sm:$0xff] %vm561, %v554
  %v563 = vmul.f32 %v548, %v18
  %v564 = vmul.f32 %v549, %v19
  %v565 = vmul.f32 %v550, %v20
  %v566 = vmul.f32 %v551, %v21
  %v567 = vmul.f32 %v552, %v22
  %v568 = vmul.f32 %v553, %v23
  %v569 = vmul.f32 %v554, %v24
  %v570 = vadd.f32 %v563, %v564
  %v571 = vadd.f32 %v570, %v565
  %v572 = vadd.f32 %v571, %v566
  %v573 = vadd.f32 %v572, %v567
  %v574 = vadd.f32 %v573, %v568
  %v575 = vsel %vm561, %v569, 0.0
  %v576 = vadd.f32 %v574, %v575
  %577 = vadd.xlane.f32.xlu0 %v576
  %v578 = vpop.xlane.xlu0 %577
  %v579 = vadd.f32 %v578, 0.0
  %v580 = vmul.f32 %v563, %v548
  %v581 = vmul.f32 %v564, %v549
  %v582 = vmul.f32 %v565, %v550
  %v583 = vmul.f32 %v566, %v551
  %v584 = vmul.f32 %v567, %v552
  %v585 = vmul.f32 %v568, %v553
  %v586 = vmul.f32 %v569, %v554
  %v587 = vadd.f32 %v580, %v581
  %v588 = vadd.f32 %v587, %v582
  %v589 = vadd.f32 %v588, %v583
  %v590 = vadd.f32 %v589, %v584
  %v591 = vadd.f32 %v590, %v585
  %v592 = vsel %vm561, %v586, 0.0
  %v593 = vadd.f32 %v591, %v592
  %594 = vadd.xlane.f32.xlu0 %v593
  %v595 = vpop.xlane.xlu0 %594
  %v596 = vadd.f32 %v595, 0.0
  %s597 = scalar_lea.vmem %s0, 8
  %v598 = vld [vmem:[%s597] sm:$0x7f]
  %v600 = vlaneseq
  %v601 = vshrl.u32 %v600, 7
  %v602 = vsub.s32 0, %v601
  %v603 = vrot.slane %v598, %v602
  %v604 = vlaneseq
  %v605 = vshrl.u32 %v604, 7
  %v606 = vsub.s32 1, %v605
  %v607 = vrot.slane %v598, %v606
  %v608 = vlaneseq
  %v609 = vshrl.u32 %v608, 7
  %v610 = vsub.s32 2, %v609
  %v611 = vrot.slane %v598, %v610
  %v612 = vlaneseq
  %v613 = vshrl.u32 %v612, 7
  %v614 = vsub.s32 3, %v613
  %v615 = vrot.slane %v598, %v614
  %v616 = vlaneseq
  %v617 = vshrl.u32 %v616, 7
  %v618 = vsub.s32 4, %v617
  %v619 = vrot.slane %v598, %v618
  %v620 = vlaneseq
  %v621 = vshrl.u32 %v620, 7
  %v622 = vsub.s32 5, %v621
  %v623 = vrot.slane %v598, %v622
  %v624 = vlaneseq
  %v625 = vshrl.u32 %v624, 7
  %v626 = vsub.s32 6, %v625
  %v627 = vrot.slane %v598, %v626
  %v635 = vmul.f32 %v29, %v603
  %v636 = vmul.f32 %v29, %v607
  %v637 = vmul.f32 %v29, %v611
  %v638 = vmul.f32 %v29, %v615
  %v639 = vmul.f32 %v29, %v619
  %v640 = vmul.f32 %v29, %v623
  %v641 = vmul.f32 %v29, %v627
  %v642 = vmul.f32 %v76, %v603
  %v643 = vmul.f32 %v76, %v607
  %v644 = vmul.f32 %v76, %v611
  %v645 = vmul.f32 %v76, %v615
  %v646 = vmul.f32 %v76, %v619
  %v647 = vmul.f32 %v76, %v623
  %v648 = vmul.f32 %v76, %v627
  %656 = vrot.lane.b32.xlu0 %v642, 127
  %v657 = vpop.permute.xlu0 %656
  %658 = vrot.lane.b32.xlu0 %v643, 127
  %v659 = vpop.permute.xlu0 %658
  %660 = vrot.lane.b32.xlu0 %v644, 127
  %v661 = vpop.permute.xlu0 %660
  %662 = vrot.lane.b32.xlu0 %v645, 127
  %v663 = vpop.permute.xlu0 %662
  %664 = vrot.lane.b32.xlu0 %v646, 127
  %v665 = vpop.permute.xlu0 %664
  %666 = vrot.lane.b32.xlu0 %v647, 127
  %v667 = vpop.permute.xlu0 %666
  %668 = vrot.lane.b32.xlu0 %v648, 127
  %v669 = vpop.permute.xlu0 %668
  %v670 = vsel %vm106, %v657, %v659
  %v671 = vsel %vm106, %v659, %v661
  %v672 = vsel %vm106, %v661, %v663
  %v673 = vsel %vm106, %v663, %v665
  %v674 = vsel %vm106, %v665, %v667
  %v675 = vsel %vm106, %v667, %v669
  %v683 = vadd.f32 %v635, %v670
  %v684 = vadd.f32 %v636, %v671
  %v685 = vadd.f32 %v637, %v672
  %v686 = vadd.f32 %v638, %v673
  %v687 = vadd.f32 %v639, %v674
  %v688 = vadd.f32 %v640, %v675
  %v689 = vadd.f32 %v641, %v669
  %v690 = vmul.f32 %v129, %v603
  %v691 = vmul.f32 %v129, %v607
  %v692 = vmul.f32 %v129, %v611
  %v693 = vmul.f32 %v129, %v615
  %v694 = vmul.f32 %v129, %v619
  %v695 = vmul.f32 %v129, %v623
  %v696 = vmul.f32 %v129, %v627
  %704 = vrot.lane.b32.xlu0 %v690, 126
  %v705 = vpop.permute.xlu0 %704
  %706 = vrot.lane.b32.xlu0 %v691, 126
  %v707 = vpop.permute.xlu0 %706
  %708 = vrot.lane.b32.xlu0 %v692, 126
  %v709 = vpop.permute.xlu0 %708
  %710 = vrot.lane.b32.xlu0 %v693, 126
  %v711 = vpop.permute.xlu0 %710
  %712 = vrot.lane.b32.xlu0 %v694, 126
  %v713 = vpop.permute.xlu0 %712
  %714 = vrot.lane.b32.xlu0 %v695, 126
  %v715 = vpop.permute.xlu0 %714
  %716 = vrot.lane.b32.xlu0 %v696, 126
  %v717 = vpop.permute.xlu0 %716
  %v718 = vsel %vm159, %v705, %v707
  %v719 = vsel %vm159, %v707, %v709
  %v720 = vsel %vm159, %v709, %v711
  %v721 = vsel %vm159, %v711, %v713
  %v722 = vsel %vm159, %v713, %v715
  %v723 = vsel %vm159, %v715, %v717
  %v731 = vadd.f32 %v683, %v718
  %v732 = vadd.f32 %v684, %v719
  %v733 = vadd.f32 %v685, %v720
  %v734 = vadd.f32 %v686, %v721
  %v735 = vadd.f32 %v687, %v722
  %v736 = vadd.f32 %v688, %v723
  %v737 = vadd.f32 %v689, %v717
  %v738 = vmul.f32 %v182, %v603
  %v739 = vmul.f32 %v182, %v607
  %v740 = vmul.f32 %v182, %v611
  %v741 = vmul.f32 %v182, %v615
  %v742 = vmul.f32 %v182, %v619
  %v743 = vmul.f32 %v182, %v623
  %v744 = vmul.f32 %v182, %v627
  %752 = vrot.lane.b32.xlu0 %v738, 98
  %v753 = vpop.permute.xlu0 %752
  %754 = vrot.lane.b32.xlu0 %v739, 98
  %v755 = vpop.permute.xlu0 %754
  %756 = vrot.lane.b32.xlu0 %v740, 98
  %v757 = vpop.permute.xlu0 %756
  %758 = vrot.lane.b32.xlu0 %v741, 98
  %v759 = vpop.permute.xlu0 %758
  %760 = vrot.lane.b32.xlu0 %v742, 98
  %v761 = vpop.permute.xlu0 %760
  %762 = vrot.lane.b32.xlu0 %v743, 98
  %v763 = vpop.permute.xlu0 %762
  %764 = vrot.lane.b32.xlu0 %v744, 98
  %v765 = vpop.permute.xlu0 %764
  %v766 = vsel %vm212, %v753, %v755
  %v767 = vsel %vm212, %v755, %v757
  %v768 = vsel %vm212, %v757, %v759
  %v769 = vsel %vm212, %v759, %v761
  %v770 = vsel %vm212, %v761, %v763
  %v771 = vsel %vm212, %v763, %v765
  %v779 = vadd.f32 %v731, %v766
  %v780 = vadd.f32 %v732, %v767
  %v781 = vadd.f32 %v733, %v768
  %v782 = vadd.f32 %v734, %v769
  %v783 = vadd.f32 %v735, %v770
  %v784 = vadd.f32 %v736, %v771
  %v785 = vadd.f32 %v737, %v765
  %v786 = vmul.f32 %v235, %v603
  %v787 = vmul.f32 %v235, %v607
  %v788 = vmul.f32 %v235, %v611
  %v789 = vmul.f32 %v235, %v615
  %v790 = vmul.f32 %v235, %v619
  %v791 = vmul.f32 %v235, %v623
  %v792 = vmul.f32 %v235, %v627
  %800 = vrot.lane.b32.xlu0 %v786, 97
  %v801 = vpop.permute.xlu0 %800
  %802 = vrot.lane.b32.xlu0 %v787, 97
  %v803 = vpop.permute.xlu0 %802
  %804 = vrot.lane.b32.xlu0 %v788, 97
  %v805 = vpop.permute.xlu0 %804
  %806 = vrot.lane.b32.xlu0 %v789, 97
  %v807 = vpop.permute.xlu0 %806
  %808 = vrot.lane.b32.xlu0 %v790, 97
  %v809 = vpop.permute.xlu0 %808
  %810 = vrot.lane.b32.xlu0 %v791, 97
  %v811 = vpop.permute.xlu0 %810
  %812 = vrot.lane.b32.xlu0 %v792, 97
  %v813 = vpop.permute.xlu0 %812
  %v814 = vsel %vm265, %v801, %v803
  %v815 = vsel %vm265, %v803, %v805
  %v816 = vsel %vm265, %v805, %v807
  %v817 = vsel %vm265, %v807, %v809
  %v818 = vsel %vm265, %v809, %v811
  %v819 = vsel %vm265, %v811, %v813
  %v827 = vadd.f32 %v779, %v814
  %v828 = vadd.f32 %v780, %v815
  %v829 = vadd.f32 %v781, %v816
  %v830 = vadd.f32 %v782, %v817
  %v831 = vadd.f32 %v783, %v818
  %v832 = vadd.f32 %v784, %v819
  %v833 = vadd.f32 %v785, %v813
  %v834 = vmul.f32 %v288, %v603
  %v835 = vmul.f32 %v288, %v607
  %v836 = vmul.f32 %v288, %v611
  %v837 = vmul.f32 %v288, %v615
  %v838 = vmul.f32 %v288, %v619
  %v839 = vmul.f32 %v288, %v623
  %v840 = vmul.f32 %v288, %v627
  %848 = vrot.lane.b32.xlu0 %v834, 96
  %v849 = vpop.permute.xlu0 %848
  %850 = vrot.lane.b32.xlu0 %v835, 96
  %v851 = vpop.permute.xlu0 %850
  %852 = vrot.lane.b32.xlu0 %v836, 96
  %v853 = vpop.permute.xlu0 %852
  %854 = vrot.lane.b32.xlu0 %v837, 96
  %v855 = vpop.permute.xlu0 %854
  %856 = vrot.lane.b32.xlu0 %v838, 96
  %v857 = vpop.permute.xlu0 %856
  %858 = vrot.lane.b32.xlu0 %v839, 96
  %v859 = vpop.permute.xlu0 %858
  %860 = vrot.lane.b32.xlu0 %v840, 96
  %v861 = vpop.permute.xlu0 %860
  %v862 = vsel %vm318, %v849, %v851
  %v863 = vsel %vm318, %v851, %v853
  %v864 = vsel %vm318, %v853, %v855
  %v865 = vsel %vm318, %v855, %v857
  %v866 = vsel %vm318, %v857, %v859
  %v867 = vsel %vm318, %v859, %v861
  %v875 = vadd.f32 %v827, %v862
  %v876 = vadd.f32 %v828, %v863
  %v877 = vadd.f32 %v829, %v864
  %v878 = vadd.f32 %v830, %v865
  %v879 = vadd.f32 %v831, %v866
  %v880 = vadd.f32 %v832, %v867
  %v881 = vadd.f32 %v833, %v861
  %v882 = vld [vmem:[%s597] sm:$0xff]
  %v884 = vlaneseq
  %v885 = vshrl.u32 %v884, 7
  %v886 = vsub.s32 0, %v885
  %v887 = vrot.slane %v882, %v886
  %v888 = vlaneseq
  %v889 = vshrl.u32 %v888, 7
  %v890 = vsub.s32 1, %v889
  %v891 = vrot.slane %v882, %v890
  %v892 = vlaneseq
  %v893 = vshrl.u32 %v892, 7
  %v894 = vsub.s32 2, %v893
  %v895 = vrot.slane %v882, %v894
  %v896 = vlaneseq
  %v897 = vshrl.u32 %v896, 7
  %v898 = vsub.s32 3, %v897
  %v899 = vrot.slane %v882, %v898
  %v900 = vlaneseq
  %v901 = vshrl.u32 %v900, 7
  %v902 = vsub.s32 4, %v901
  %v903 = vrot.slane %v882, %v902
  %v904 = vlaneseq
  %v905 = vshrl.u32 %v904, 7
  %v906 = vsub.s32 5, %v905
  %v907 = vrot.slane %v882, %v906
  %v908 = vlaneseq
  %v909 = vshrl.u32 %v908, 7
  %v910 = vsub.s32 6, %v909
  %v911 = vrot.slane %v882, %v910
  %v912 = vlaneseq
  %v913 = vshrl.u32 %v912, 7
  %v914 = vsub.s32 7, %v913
  %v915 = vrot.slane %v882, %v914
  %v924 = vmul.f32 %v342, %v887
  %v925 = vmul.f32 %v342, %v891
  %v926 = vmul.f32 %v342, %v895
  %v927 = vmul.f32 %v342, %v899
  %v928 = vmul.f32 %v342, %v903
  %v929 = vmul.f32 %v342, %v907
  %v930 = vmul.f32 %v342, %v911
  %v931 = vmul.f32 %v342, %v915
  %940 = vrot.lane.b32.xlu0 %v924, 68
  %v941 = vpop.permute.xlu0 %940
  %942 = vrot.lane.b32.xlu0 %v925, 68
  %v943 = vpop.permute.xlu0 %942
  %944 = vrot.lane.b32.xlu0 %v926, 68
  %v945 = vpop.permute.xlu0 %944
  %946 = vrot.lane.b32.xlu0 %v927, 68
  %v947 = vpop.permute.xlu0 %946
  %948 = vrot.lane.b32.xlu0 %v928, 68
  %v949 = vpop.permute.xlu0 %948
  %950 = vrot.lane.b32.xlu0 %v929, 68
  %v951 = vpop.permute.xlu0 %950
  %952 = vrot.lane.b32.xlu0 %v930, 68
  %v953 = vpop.permute.xlu0 %952
  %954 = vrot.lane.b32.xlu0 %v931, 68
  %v955 = vpop.permute.xlu0 %954
  %v956 = vsel %vm417, %v941, %v943
  %v957 = vsel %vm417, %v943, %v945
  %v958 = vsel %vm417, %v945, %v947
  %v959 = vsel %vm417, %v947, %v949
  %v960 = vsel %vm417, %v949, %v951
  %v961 = vsel %vm417, %v951, %v953
  %v962 = vsel %vm417, %v953, %v955
  %v970 = vadd.f32 %v875, %v956
  %v971 = vadd.f32 %v876, %v957
  %v972 = vadd.f32 %v877, %v958
  %v973 = vadd.f32 %v878, %v959
  %v974 = vadd.f32 %v879, %v960
  %v975 = vadd.f32 %v880, %v961
  %v976 = vadd.f32 %v881, %v962
  %v977 = vmul.f32 %v441, %v887
  %v978 = vmul.f32 %v441, %v891
  %v979 = vmul.f32 %v441, %v895
  %v980 = vmul.f32 %v441, %v899
  %v981 = vmul.f32 %v441, %v903
  %v982 = vmul.f32 %v441, %v907
  %v983 = vmul.f32 %v441, %v911
  %v984 = vmul.f32 %v441, %v915
  %993 = vrot.lane.b32.xlu0 %v977, 67
  %v994 = vpop.permute.xlu0 %993
  %995 = vrot.lane.b32.xlu0 %v978, 67
  %v996 = vpop.permute.xlu0 %995
  %997 = vrot.lane.b32.xlu0 %v979, 67
  %v998 = vpop.permute.xlu0 %997
  %999 = vrot.lane.b32.xlu0 %v980, 67
  %v1000 = vpop.permute.xlu0 %999
  %1001 = vrot.lane.b32.xlu0 %v981, 67
  %v1002 = vpop.permute.xlu0 %1001
  %1003 = vrot.lane.b32.xlu0 %v982, 67
  %v1004 = vpop.permute.xlu0 %1003
  %1005 = vrot.lane.b32.xlu0 %v983, 67
  %v1006 = vpop.permute.xlu0 %1005
  %1007 = vrot.lane.b32.xlu0 %v984, 67
  %v1008 = vpop.permute.xlu0 %1007
  %v1009 = vsel %vm475, %v994, %v996
  %v1010 = vsel %vm475, %v996, %v998
  %v1011 = vsel %vm475, %v998, %v1000
  %v1012 = vsel %vm475, %v1000, %v1002
  %v1013 = vsel %vm475, %v1002, %v1004
  %v1014 = vsel %vm475, %v1004, %v1006
  %v1015 = vsel %vm475, %v1006, %v1008
  %v1023 = vadd.f32 %v970, %v1009
  %v1024 = vadd.f32 %v971, %v1010
  %v1025 = vadd.f32 %v972, %v1011
  %v1026 = vadd.f32 %v973, %v1012
  %v1027 = vadd.f32 %v974, %v1013
  %v1028 = vadd.f32 %v975, %v1014
  %v1029 = vadd.f32 %v976, %v1015
  %v1030 = vmul.f32 %v499, %v887
  %v1031 = vmul.f32 %v499, %v891
  %v1032 = vmul.f32 %v499, %v895
  %v1033 = vmul.f32 %v499, %v899
  %v1034 = vmul.f32 %v499, %v903
  %v1035 = vmul.f32 %v499, %v907
  %v1036 = vmul.f32 %v499, %v911
  %v1037 = vmul.f32 %v499, %v915
  %1046 = vrot.lane.b32.xlu0 %v1030, 66
  %v1047 = vpop.permute.xlu0 %1046
  %1048 = vrot.lane.b32.xlu0 %v1031, 66
  %v1049 = vpop.permute.xlu0 %1048
  %1050 = vrot.lane.b32.xlu0 %v1032, 66
  %v1051 = vpop.permute.xlu0 %1050
  %1052 = vrot.lane.b32.xlu0 %v1033, 66
  %v1053 = vpop.permute.xlu0 %1052
  %1054 = vrot.lane.b32.xlu0 %v1034, 66
  %v1055 = vpop.permute.xlu0 %1054
  %1056 = vrot.lane.b32.xlu0 %v1035, 66
  %v1057 = vpop.permute.xlu0 %1056
  %1058 = vrot.lane.b32.xlu0 %v1036, 66
  %v1059 = vpop.permute.xlu0 %1058
  %1060 = vrot.lane.b32.xlu0 %v1037, 66
  %v1061 = vpop.permute.xlu0 %1060
  %v1062 = vsel %vm533, %v1047, %v1049
  %v1063 = vsel %vm533, %v1049, %v1051
  %v1064 = vsel %vm533, %v1051, %v1053
  %v1065 = vsel %vm533, %v1053, %v1055
  %v1066 = vsel %vm533, %v1055, %v1057
  %v1067 = vsel %vm533, %v1057, %v1059
  %v1068 = vsel %vm533, %v1059, %v1061
  %v1076 = vadd.f32 %v1023, %v1062
  %v1077 = vadd.f32 %v1024, %v1063
  %v1078 = vadd.f32 %v1025, %v1064
  %v1079 = vadd.f32 %v1026, %v1065
  %v1080 = vadd.f32 %v1027, %v1066
  %v1081 = vadd.f32 %v1028, %v1067
  %v1082 = vadd.f32 %v1029, %v1068
  %s1083 = scalar_lea.vmem %s3, 56
  %1084 = vst [vmem:[%s1083] sm:$0xff] %v1076
  %1085 = vst [vmem:[%s1083 + $0x8] sm:$0xff] %v1077
  %1086 = vst [vmem:[%s1083 + $0x10] sm:$0xff] %v1078
  %1087 = vst [vmem:[%s1083 + $0x18] sm:$0xff] %v1079
  %1088 = vst [vmem:[%s1083 + $0x20] sm:$0xff] %v1080
  %1089 = vst [vmem:[%s1083 + $0x28] sm:$0xff] %v1081
  %1090 = vst.msk [vmem:[%s1083 + $0x30] sm:$0xff] %vm561, %v1082
  %v1091 = vmul.f32 %v1076, %v18
  %v1092 = vmul.f32 %v1077, %v19
  %v1093 = vmul.f32 %v1078, %v20
  %v1094 = vmul.f32 %v1079, %v21
  %v1095 = vmul.f32 %v1080, %v22
  %v1096 = vmul.f32 %v1081, %v23
  %v1097 = vmul.f32 %v1082, %v24
  %v1098 = vadd.f32 %v1091, %v1092
  %v1099 = vadd.f32 %v1098, %v1093
  %v1100 = vadd.f32 %v1099, %v1094
  %v1101 = vadd.f32 %v1100, %v1095
  %v1102 = vadd.f32 %v1101, %v1096
  %v1103 = vsel %vm561, %v1097, 0.0
  %v1104 = vadd.f32 %v1102, %v1103
  %1105 = vadd.xlane.f32.xlu0 %v1104
  %v1106 = vpop.xlane.xlu0 %1105
  %v1107 = vadd.f32 %v579, %v1106
  %v1108 = vmul.f32 %v1091, %v1076
  %v1109 = vmul.f32 %v1092, %v1077
  %v1110 = vmul.f32 %v1093, %v1078
  %v1111 = vmul.f32 %v1094, %v1079
  %v1112 = vmul.f32 %v1095, %v1080
  %v1113 = vmul.f32 %v1096, %v1081
  %v1114 = vmul.f32 %v1097, %v1082
  %v1115 = vadd.f32 %v1108, %v1109
  %v1116 = vadd.f32 %v1115, %v1110
  %v1117 = vadd.f32 %v1116, %v1111
  %v1118 = vadd.f32 %v1117, %v1112
  %v1119 = vadd.f32 %v1118, %v1113
  %v1120 = vsel %vm561, %v1114, 0.0
  %v1121 = vadd.f32 %v1119, %v1120
  %1122 = vadd.xlane.f32.xlu0 %v1121
  %v1123 = vpop.xlane.xlu0 %1122
  %v1124 = vadd.f32 %v596, %v1123
  %vm1125 = vcmask 7168
  %1126 = vst.msk [vmem:[%s4] sm:$0xff] %vm1125, %v1107
  %1127 = vst.msk [vmem:[%s5] sm:$0xff] %vm1125, %v1124
  // Predicated region
  $region14: #{torus_conv_ae_forward.9} parent=0 // pred_check
    _
  $region15: #{torus_conv_ae_forward.9} parent=0 // pred_check_branch
    %1129 = sbr.rel (0) target = $region17
  $region16: #{torus_conv_ae_forward.9} parent=0 // pred_region
    _
  $region17: #{torus_conv_ae_forward.9} parent=0 // pred_fallthru
    _
  // Predicated region
  $region18: #{torus_conv_ae_forward.9} parent=0 // pred_check
    _
  $region19: #{torus_conv_ae_forward.9} parent=0 // pred_check_branch
    %1131 = sbr.rel (0) target = $region21
  $region20: #{torus_conv_ae_forward.9} parent=0 // pred_region
    _
  $region21: #{torus_conv_ae_forward.9} parent=0 // pred_fallthru
    _
  // Predicated region
  $region22: #{torus_conv_ae_forward.9} parent=0 // pred_check
    _
  $region23: #{torus_conv_ae_forward.9} parent=0 // pred_check_branch
    %1133 = sbr.rel (0) target = $region25
  $region24: #{torus_conv_ae_forward.9} parent=0 // pred_region
    _
  $region25: #{torus_conv_ae_forward.9} parent=0 // pred_fallthru
    _
  // Predicated region
  $region26: #{torus_conv_ae_forward.9} parent=0 // pred_check
    _
  $region27: #{torus_conv_ae_forward.9} parent=0 // pred_check_branch
    %1135 = sbr.rel (0) target = $region29
  $region28: #{torus_conv_ae_forward.9} parent=0 // pred_region
    _
  $region29: #{torus_conv_ae_forward.9} parent=0 // pred_fallthru
    _
  // Predicated region
  $region30: #{torus_conv_ae_forward.9} parent=0 // pred_check
    _
  $region31: #{torus_conv_ae_forward.9} parent=0 // pred_check_branch
    %1137 = sbr.rel (0) target = $region33
  $region32: #{torus_conv_ae_forward.9} parent=0 // pred_region
    _
  $region33: #{torus_conv_ae_forward.9} parent=0 // pred_fallthru
    _
  // Predicated region
  $region34: #{torus_conv_ae_forward.9} parent=0 // pred_check
    _
  $region35: #{torus_conv_ae_forward.9} parent=0 // pred_check_branch
    %1139 = sbr.rel (0) target = $region37
  $region36: #{torus_conv_ae_forward.9} parent=0 // pred_region
    _
  $region37: #{torus_conv_ae_forward.9} parent=0 // pred_fallthru
    _

// kernel: torus_conv_ae_forward.10
$region0: #{torus_conv_ae_forward.10}
  #allocation0 [shape = 'u32[]', space=smem, size = 0x4, offset = 0x4, fixed_abs, tag = 'smem constant byte address 0x4 - core index']
  #allocation1 [shape = 'u32[144,128]{1,0:T(1,128)}', space=vmem, size = 0x12000, scoped, tag = 'internal scratch']
  #allocation2 [shape = 'f32[72,840]{1,0:T(8,128)}', space=vmem, size = 0x3f000, scoped, tag = 'scratch operand']
  %s0 = inlined_call_operand.vmem [shape: f32[2,8,902], index: 0, kind: input, shape index: {}]
  %s1 = inlined_call_operand.vmem [shape: f32[8,72], index: 1, kind: input, shape index: {}]
  %s2 = inlined_call_operand.vmem [shape: f32[8,840], index: 2, kind: input, shape index: {}]
  %s3 = inlined_call_operand.vmem [shape: f32[2,8,840], index: 3, kind: output, shape index: {0}]
  %s4 = inlined_call_operand.vmem [shape: f32[1,8,1], index: 4, kind: output, shape index: {1}]
  %s5 = inlined_call_operand.vmem [shape: f32[1,8,1], index: 5, kind: output, shape index: {2}]
  %6 = xla_tuple %s3, %s4, %s5
  %s7 = sld [smem:[#allocation0]]
  $region38: #{torus_conv_ae_forward.10} parent=0
    _
  %s9 = ssub.s32 1, %s7
  %s10 = scalar_select 0, %s9, %s7
  // Predicated region
  $region2: #{torus_conv_ae_forward.10} parent=0 // pred_check
    _
  $region3: #{torus_conv_ae_forward.10} parent=0 // pred_check_branch
    %12 = sbr.rel (0) target = $region5
  $region4: #{torus_conv_ae_forward.10} parent=0 // pred_region
    _
  $region5: #{torus_conv_ae_forward.10} parent=0 // pred_fallthru
    _
  // Predicated region
  $region6: #{torus_conv_ae_forward.10} parent=0 // pred_check
    _
  $region7: #{torus_conv_ae_forward.10} parent=0 // pred_check_branch
    %14 = sbr.rel (0) target = $region9
  $region8: #{torus_conv_ae_forward.10} parent=0 // pred_region
    _
  $region9: #{torus_conv_ae_forward.10} parent=0 // pred_fallthru
    _
  // Predicated region
  $region10: #{torus_conv_ae_forward.10} parent=0 // pred_check
    _
  $region11: #{torus_conv_ae_forward.10} parent=0 // pred_check_branch
    %16 = sbr.rel (0) target = $region13
  $region12: #{torus_conv_ae_forward.10} parent=0 // pred_region
    _
  $region13: #{torus_conv_ae_forward.10} parent=0 // pred_fallthru
    _
  %v17 = vld [vmem:[%s1] sm:$0xff]
  %v18 = vld [vmem:[%s2] sm:$0xff]
  %v19 = vld [vmem:[%s2 + $0x8] sm:$0xff]
  %v20 = vld [vmem:[%s2 + $0x10] sm:$0xff]
  %v21 = vld [vmem:[%s2 + $0x18] sm:$0xff]
  %v22 = vld [vmem:[%s2 + $0x20] sm:$0xff]
  %v23 = vld [vmem:[%s2 + $0x28] sm:$0xff]
  %v24 = vld [vmem:[%s2 + $0x30] sm:$0xff]
  %v25 = vld [vmem:[%s0] sm:$0xff]
  %v26 = vld [vmem:[%s0 + $0x8] sm:$0xff]
  %v27 = vld [vmem:[%s0 + $0x10] sm:$0xff]
  %v28 = vld [vmem:[%s0 + $0x18] sm:$0xff]
  %v29 = vld [vmem:[%s0 + $0x20] sm:$0xff]
  %v30 = vld [vmem:[%s0 + $0x28] sm:$0xff]
  %v31 = vld [vmem:[%s0 + $0x30] sm:$0xff]
  %32 = vst [vmem:[#allocation2] sm:$0xff] %v25
  %33 = vst [vmem:[#allocation2 + $0x8] sm:$0xff] %v26
  %34 = vst [vmem:[#allocation2 + $0x10] sm:$0xff] %v27
  %35 = vst [vmem:[#allocation2 + $0x18] sm:$0xff] %v28
  %36 = vst [vmem:[#allocation2 + $0x20] sm:$0xff] %v29
  %37 = vst [vmem:[#allocation2 + $0x28] sm:$0xff] %v30
  %vm38 = vcmask 588800
  %39 = vst.msk [vmem:[#allocation2 + $0x30] sm:$0xff] %vm38, %v31
  %v40 = vld [vmem:[%s0] sm:$0xff]
  %v41 = vld [vmem:[%s0 + $0x8] sm:$0xff]
  %v42 = vld [vmem:[%s0 + $0x10] sm:$0xff]
  %v43 = vld [vmem:[%s0 + $0x18] sm:$0xff]
  %v44 = vld [vmem:[%s0 + $0x20] sm:$0xff]
  %v45 = vld [vmem:[%s0 + $0x28] sm:$0xff]
  %v46 = vld [vmem:[%s0 + $0x30] sm:$0xff]
  %54 = vrot.lane.b32.xlu0 %v40, 127
  %v55 = vpop.permute.xlu0 %54
  %56 = vrot.lane.b32.xlu0 %v41, 127
  %v57 = vpop.permute.xlu0 %56
  %58 = vrot.lane.b32.xlu0 %v42, 127
  %v59 = vpop.permute.xlu0 %58
  %60 = vrot.lane.b32.xlu0 %v43, 127
  %v61 = vpop.permute.xlu0 %60
  %62 = vrot.lane.b32.xlu0 %v44, 127
  %v63 = vpop.permute.xlu0 %62
  %64 = vrot.lane.b32.xlu0 %v45, 127
  %v65 = vpop.permute.xlu0 %64
  %66 = vrot.lane.b32.xlu0 %v46, 127
  %v67 = vpop.permute.xlu0 %66
  %vm68 = vcmask 1039360
  %v69 = vsel %vm68, %v55, %v57
  %v70 = vsel %vm68, %v57, %v59
  %v71 = vsel %vm68, %v59, %v61
  %v72 = vsel %vm68, %v61, %v63
  %v73 = vsel %vm68, %v63, %v65
  %v74 = vsel %vm68, %v65, %v67
  %82 = vst [vmem:[#allocation2 + $0x38] sm:$0xff] %v69
  %83 = vst [vmem:[#allocation2 + $0x40] sm:$0xff] %v70
  %84 = vst [vmem:[#allocation2 + $0x48] sm:$0xff] %v71
  %85 = vst [vmem:[#allocation2 + $0x50] sm:$0xff] %v72
  %86 = vst [vmem:[#allocation2 + $0x58] sm:$0xff] %v73
  %87 = vst [vmem:[#allocation2 + $0x60] sm:$0xff] %v74
  %88 = vst.msk [vmem:[#allocation2 + $0x68] sm:$0xff] %vm38, %v67
  %v89 = vld [vmem:[%s0] sm:$0xff]
  %v90 = vld [vmem:[%s0 + $0x8] sm:$0xff]
  %v91 = vld [vmem:[%s0 + $0x10] sm:$0xff]
  %v92 = vld [vmem:[%s0 + $0x18] sm:$0xff]
  %v93 = vld [vmem:[%s0 + $0x20] sm:$0xff]
  %v94 = vld [vmem:[%s0 + $0x28] sm:$0xff]
  %v95 = vld [vmem:[%s0 + $0x30] sm:$0xff]
  %103 = vrot.lane.b32.xlu0 %v89, 126
  %v104 = vpop.permute.xlu0 %103
  %105 = vrot.lane.b32.xlu0 %v90, 126
  %v106 = vpop.permute.xlu0 %105
  %107 = vrot.lane.b32.xlu0 %v91, 126
  %v108 = vpop.permute.xlu0 %107
  %109 = vrot.lane.b32.xlu0 %v92, 126
  %v110 = vpop.permute.xlu0 %109
  %111 = vrot.lane.b32.xlu0 %v93, 126
  %v112 = vpop.permute.xlu0 %111
  %113 = vrot.lane.b32.xlu0 %v94, 126
  %v114 = vpop.permute.xlu0 %113
  %115 = vrot.lane.b32.xlu0 %v95, 126
  %v116 = vpop.permute.xlu0 %115
  %vm117 = vcmask 1031168
  %v118 = vsel %vm117, %v104, %v106
  %v119 = vsel %vm117, %v106, %v108
  %v120 = vsel %vm117, %v108, %v110
  %v121 = vsel %vm117, %v110, %v112
  %v122 = vsel %vm117, %v112, %v114
  %v123 = vsel %vm117, %v114, %v116
  %131 = vst [vmem:[#allocation2 + $0x70] sm:$0xff] %v118
  %132 = vst [vmem:[#allocation2 + $0x78] sm:$0xff] %v119
  %133 = vst [vmem:[#allocation2 + $0x80] sm:$0xff] %v120
  %134 = vst [vmem:[#allocation2 + $0x88] sm:$0xff] %v121
  %135 = vst [vmem:[#allocation2 + $0x90] sm:$0xff] %v122
  %136 = vst [vmem:[#allocation2 + $0x98] sm:$0xff] %v123
  %137 = vst.msk [vmem:[#allocation2 + $0xa0] sm:$0xff] %vm38, %v116
  %v138 = vld [vmem:[%s0] sm:$0xff]
  %v139 = vld [vmem:[%s0 + $0x8] sm:$0xff]
  %v140 = vld [vmem:[%s0 + $0x10] sm:$0xff]
  %v141 = vld [vmem:[%s0 + $0x18] sm:$0xff]
  %v142 = vld [vmem:[%s0 + $0x20] sm:$0xff]
  %v143 = vld [vmem:[%s0 + $0x28] sm:$0xff]
  %v144 = vld [vmem:[%s0 + $0x30] sm:$0xff]
  %152 = vrot.lane.b32.xlu0 %v138, 98
  %v153 = vpop.permute.xlu0 %152
  %154 = vrot.lane.b32.xlu0 %v139, 98
  %v155 = vpop.permute.xlu0 %154
  %156 = vrot.lane.b32.xlu0 %v140, 98
  %v157 = vpop.permute.xlu0 %156
  %158 = vrot.lane.b32.xlu0 %v141, 98
  %v159 = vpop.permute.xlu0 %158
  %160 = vrot.lane.b32.xlu0 %v142, 98
  %v161 = vpop.permute.xlu0 %160
  %162 = vrot.lane.b32.xlu0 %v143, 98
  %v163 = vpop.permute.xlu0 %162
  %164 = vrot.lane.b32.xlu0 %v144, 98
  %v165 = vpop.permute.xlu0 %164
  %vm166 = vcmask 801792
  %v167 = vsel %vm166, %v153, %v155
  %v168 = vsel %vm166, %v155, %v157
  %v169 = vsel %vm166, %v157, %v159
  %v170 = vsel %vm166, %v159, %v161
  %v171 = vsel %vm166, %v161, %v163
  %v172 = vsel %vm166, %v163, %v165
  %180 = vst [vmem:[#allocation2 + $0xa8] sm:$0xff] %v167
  %181 = vst [vmem:[#allocation2 + $0xb0] sm:$0xff] %v168
  %182 = vst [vmem:[#allocation2 + $0xb8] sm:$0xff] %v169
  %183 = vst [vmem:[#allocation2 + $0xc0] sm:$0xff] %v170
  %184 = vst [vmem:[#allocation2 + $0xc8] sm:$0xff] %v171
  %185 = vst [vmem:[#allocation2 + $0xd0] sm:$0xff] %v172
  %186 = vst.msk [vmem:[#allocation2 + $0xd8] sm:$0xff] %vm38, %v165
  %v187 = vld [vmem:[%s0] sm:$0xff]
  %v188 = vld [vmem:[%s0 + $0x8] sm:$0xff]
  %v189 = vld [vmem:[%s0 + $0x10] sm:$0xff]
  %v190 = vld [vmem:[%s0 + $0x18] sm:$0xff]
  %v191 = vld [vmem:[%s0 + $0x20] sm:$0xff]
  %v192 = vld [vmem:[%s0 + $0x28] sm:$0xff]
  %v193 = vld [vmem:[%s0 + $0x30] sm:$0xff]
  %201 = vrot.lane.b32.xlu0 %v187, 97
  %v202 = vpop.permute.xlu0 %201
  %203 = vrot.lane.b32.xlu0 %v188, 97
  %v204 = vpop.permute.xlu0 %203
  %205 = vrot.lane.b32.xlu0 %v189, 97
  %v206 = vpop.permute.xlu0 %205
  %207 = vrot.lane.b32.xlu0 %v190, 97
  %v208 = vpop.permute.xlu0 %207
  %209 = vrot.lane.b32.xlu0 %v191, 97
  %v210 = vpop.permute.xlu0 %209
  %211 = vrot.lane.b32.xlu0 %v192, 97
  %v212 = vpop.permute.xlu0 %211
  %213 = vrot.lane.b32.xlu0 %v193, 97
  %v214 = vpop.permute.xlu0 %213
  %vm215 = vcmask 793600
  %v216 = vsel %vm215, %v202, %v204
  %v217 = vsel %vm215, %v204, %v206
  %v218 = vsel %vm215, %v206, %v208
  %v219 = vsel %vm215, %v208, %v210
  %v220 = vsel %vm215, %v210, %v212
  %v221 = vsel %vm215, %v212, %v214
  %229 = vst [vmem:[#allocation2 + $0xe0] sm:$0xff] %v216
  %230 = vst [vmem:[#allocation2 + $0xe8] sm:$0xff] %v217
  %231 = vst [vmem:[#allocation2 + $0xf0] sm:$0xff] %v218
  %232 = vst [vmem:[#allocation2 + $0xf8] sm:$0xff] %v219
  %233 = vst [vmem:[#allocation2 + $0x100] sm:$0xff] %v220
  %234 = vst [vmem:[#allocation2 + $0x108] sm:$0xff] %v221
  %235 = vst.msk [vmem:[#allocation2 + $0x110] sm:$0xff] %vm38, %v214
  %v236 = vld [vmem:[%s0] sm:$0xff]
  %v237 = vld [vmem:[%s0 + $0x8] sm:$0xff]
  %v238 = vld [vmem:[%s0 + $0x10] sm:$0xff]
  %v239 = vld [vmem:[%s0 + $0x18] sm:$0xff]
  %v240 = vld [vmem:[%s0 + $0x20] sm:$0xff]
  %v241 = vld [vmem:[%s0 + $0x28] sm:$0xff]
  %v242 = vld [vmem:[%s0 + $0x30] sm:$0xff]
  %250 = vrot.lane.b32.xlu0 %v236, 96
  %v251 = vpop.permute.xlu0 %250
  %252 = vrot.lane.b32.xlu0 %v237, 96
  %v253 = vpop.permute.xlu0 %252
  %254 = vrot.lane.b32.xlu0 %v238, 96
  %v255 = vpop.permute.xlu0 %254
  %256 = vrot.lane.b32.xlu0 %v239, 96
  %v257 = vpop.permute.xlu0 %256
  %258 = vrot.lane.b32.xlu0 %v240, 96
  %v259 = vpop.permute.xlu0 %258
  %260 = vrot.lane.b32.xlu0 %v241, 96
  %v261 = vpop.permute.xlu0 %260
  %262 = vrot.lane.b32.xlu0 %v242, 96
  %v263 = vpop.permute.xlu0 %262
  %vm264 = vcmask 785408
  %v265 = vsel %vm264, %v251, %v253
  %v266 = vsel %vm264, %v253, %v255
  %v267 = vsel %vm264, %v255, %v257
  %v268 = vsel %vm264, %v257, %v259
  %v269 = vsel %vm264, %v259, %v261
  %v270 = vsel %vm264, %v261, %v263
  %278 = vst [vmem:[#allocation2 + $0x118] sm:$0xff] %v265
  %279 = vst [vmem:[#allocation2 + $0x120] sm:$0xff] %v266
  %280 = vst [vmem:[#allocation2 + $0x128] sm:$0xff] %v267
  %281 = vst [vmem:[#allocation2 + $0x130] sm:$0xff] %v268
  %282 = vst [vmem:[#allocation2 + $0x138] sm:$0xff] %v269
  %283 = vst [vmem:[#allocation2 + $0x140] sm:$0xff] %v270
  %284 = vst.msk [vmem:[#allocation2 + $0x148] sm:$0xff] %vm38, %v263
  %v285 = vld [vmem:[%s0] sm:$0xff]
  %v286 = vld [vmem:[%s0 + $0x8] sm:$0xff]
  %v287 = vld [vmem:[%s0 + $0x10] sm:$0xff]
  %v288 = vld [vmem:[%s0 + $0x18] sm:$0xff]
  %v289 = vld [vmem:[%s0 + $0x20] sm:$0xff]
  %v290 = vld [vmem:[%s0 + $0x28] sm:$0xff]
  %v291 = vld [vmem:[%s0 + $0x30] sm:$0xff]
  %v292 = vld [vmem:[%s0 + $0x38] sm:$0xff]
  %301 = vrot.lane.b32.xlu0 %v285, 68
  %v302 = vpop.permute.xlu0 %301
  %303 = vrot.lane.b32.xlu0 %v286, 68
  %v304 = vpop.permute.xlu0 %303
  %305 = vrot.lane.b32.xlu0 %v287, 68
  %v306 = vpop.permute.xlu0 %305
  %307 = vrot.lane.b32.xlu0 %v288, 68
  %v308 = vpop.permute.xlu0 %307
  %309 = vrot.lane.b32.xlu0 %v289, 68
  %v310 = vpop.permute.xlu0 %309
  %311 = vrot.lane.b32.xlu0 %v290, 68
  %v312 = vpop.permute.xlu0 %311
  %313 = vrot.lane.b32.xlu0 %v291, 68
  %v314 = vpop.permute.xlu0 %313
  %315 = vrot.lane.b32.xlu0 %v292, 68
  %v316 = vpop.permute.xlu0 %315
  %vm317 = vcmask 556032
  %v318 = vsel %vm317, %v302, %v304
  %v319 = vsel %vm317, %v304, %v306
  %v320 = vsel %vm317, %v306, %v308
  %v321 = vsel %vm317, %v308, %v310
  %v322 = vsel %vm317, %v310, %v312
  %v323 = vsel %vm317, %v312, %v314
  %v324 = vsel %vm317, %v314, %v316
  %332 = vst [vmem:[#allocation2 + $0x150] sm:$0xff] %v318
  %333 = vst [vmem:[#allocation2 + $0x158] sm:$0xff] %v319
  %334 = vst [vmem:[#allocation2 + $0x160] sm:$0xff] %v320
  %335 = vst [vmem:[#allocation2 + $0x168] sm:$0xff] %v321
  %336 = vst [vmem:[#allocation2 + $0x170] sm:$0xff] %v322
  %337 = vst [vmem:[#allocation2 + $0x178] sm:$0xff] %v323
  %338 = vst.msk [vmem:[#allocation2 + $0x180] sm:$0xff] %vm38, %v324
  %v339 = vld [vmem:[%s0] sm:$0xff]
  %v340 = vld [vmem:[%s0 + $0x8] sm:$0xff]
  %v341 = vld [vmem:[%s0 + $0x10] sm:$0xff]
  %v342 = vld [vmem:[%s0 + $0x18] sm:$0xff]
  %v343 = vld [vmem:[%s0 + $0x20] sm:$0xff]
  %v344 = vld [vmem:[%s0 + $0x28] sm:$0xff]
  %v345 = vld [vmem:[%s0 + $0x30] sm:$0xff]
  %v346 = vld [vmem:[%s0 + $0x38] sm:$0xff]
  %355 = vrot.lane.b32.xlu0 %v339, 67
  %v356 = vpop.permute.xlu0 %355
  %357 = vrot.lane.b32.xlu0 %v340, 67
  %v358 = vpop.permute.xlu0 %357
  %359 = vrot.lane.b32.xlu0 %v341, 67
  %v360 = vpop.permute.xlu0 %359
  %361 = vrot.lane.b32.xlu0 %v342, 67
  %v362 = vpop.permute.xlu0 %361
  %363 = vrot.lane.b32.xlu0 %v343, 67
  %v364 = vpop.permute.xlu0 %363
  %365 = vrot.lane.b32.xlu0 %v344, 67
  %v366 = vpop.permute.xlu0 %365
  %367 = vrot.lane.b32.xlu0 %v345, 67
  %v368 = vpop.permute.xlu0 %367
  %369 = vrot.lane.b32.xlu0 %v346, 67
  %v370 = vpop.permute.xlu0 %369
  %vm371 = vcmask 547840
  %v372 = vsel %vm371, %v356, %v358
  %v373 = vsel %vm371, %v358, %v360
  %v374 = vsel %vm371, %v360, %v362
  %v375 = vsel %vm371, %v362, %v364
  %v376 = vsel %vm371, %v364, %v366
  %v377 = vsel %vm371, %v366, %v368
  %v378 = vsel %vm371, %v368, %v370
  %386 = vst [vmem:[#allocation2 + $0x188] sm:$0xff] %v372
  %387 = vst [vmem:[#allocation2 + $0x190] sm:$0xff] %v373
  %388 = vst [vmem:[#allocation2 + $0x198] sm:$0xff] %v374
  %389 = vst [vmem:[#allocation2 + $0x1a0] sm:$0xff] %v375
  %390 = vst [vmem:[#allocation2 + $0x1a8] sm:$0xff] %v376
  %391 = vst [vmem:[#allocation2 + $0x1b0] sm:$0xff] %v377
  %392 = vst.msk [vmem:[#allocation2 + $0x1b8] sm:$0xff] %vm38, %v378
  %v393 = vld [vmem:[%s0] sm:$0xff]
  %v394 = vld [vmem:[%s0 + $0x8] sm:$0xff]
  %v395 = vld [vmem:[%s0 + $0x10] sm:$0xff]
  %v396 = vld [vmem:[%s0 + $0x18] sm:$0xff]
  %v397 = vld [vmem:[%s0 + $0x20] sm:$0xff]
  %v398 = vld [vmem:[%s0 + $0x28] sm:$0xff]
  %v399 = vld [vmem:[%s0 + $0x30] sm:$0xff]
  %v400 = vld [vmem:[%s0 + $0x38] sm:$0xff]
  %409 = vrot.lane.b32.xlu0 %v393, 66
  %v410 = vpop.permute.xlu0 %409
  %411 = vrot.lane.b32.xlu0 %v394, 66
  %v412 = vpop.permute.xlu0 %411
  %413 = vrot.lane.b32.xlu0 %v395, 66
  %v414 = vpop.permute.xlu0 %413
  %415 = vrot.lane.b32.xlu0 %v396, 66
  %v416 = vpop.permute.xlu0 %415
  %417 = vrot.lane.b32.xlu0 %v397, 66
  %v418 = vpop.permute.xlu0 %417
  %419 = vrot.lane.b32.xlu0 %v398, 66
  %v420 = vpop.permute.xlu0 %419
  %421 = vrot.lane.b32.xlu0 %v399, 66
  %v422 = vpop.permute.xlu0 %421
  %423 = vrot.lane.b32.xlu0 %v400, 66
  %v424 = vpop.permute.xlu0 %423
  %vm425 = vcmask 539648
  %v426 = vsel %vm425, %v410, %v412
  %v427 = vsel %vm425, %v412, %v414
  %v428 = vsel %vm425, %v414, %v416
  %v429 = vsel %vm425, %v416, %v418
  %v430 = vsel %vm425, %v418, %v420
  %v431 = vsel %vm425, %v420, %v422
  %v432 = vsel %vm425, %v422, %v424
  %440 = vst [vmem:[#allocation2 + $0x1c0] sm:$0xff] %v426
  %441 = vst [vmem:[#allocation2 + $0x1c8] sm:$0xff] %v427
  %442 = vst [vmem:[#allocation2 + $0x1d0] sm:$0xff] %v428
  %443 = vst [vmem:[#allocation2 + $0x1d8] sm:$0xff] %v429
  %444 = vst [vmem:[#allocation2 + $0x1e0] sm:$0xff] %v430
  %445 = vst [vmem:[#allocation2 + $0x1e8] sm:$0xff] %v431
  %446 = vst.msk [vmem:[#allocation2 + $0x1f0] sm:$0xff] %vm38, %v432
  %v447 = vld [vmem:[#allocation2] sm:$0xff]
  %v448 = vld [vmem:[#allocation2 + $0x8] sm:$0xff]
  %v449 = vld [vmem:[#allocation2 + $0x10] sm:$0xff]
  %v450 = vld [vmem:[#allocation2 + $0x18] sm:$0xff]
  %v451 = vld [vmem:[#allocation2 + $0x20] sm:$0xff]
  %v452 = vld [vmem:[#allocation2 + $0x28] sm:$0xff]
  %v453 = vld [vmem:[#allocation2 + $0x30] sm:$0xff]
  %v454 = vld [vmem:[#allocation2 + $0x38] sm:$0xff]
  %v455 = vld [vmem:[#allocation2 + $0x40] sm:$0xff]
  %v456 = vld [vmem:[#allocation2 + $0x48] sm:$0xff]
  %v457 = vld [vmem:[#allocation2 + $0x50] sm:$0xff]
  %v458 = vld [vmem:[#allocation2 + $0x58] sm:$0xff]
  %v459 = vld [vmem:[#allocation2 + $0x60] sm:$0xff]
  %v460 = vld [vmem:[#allocation2 + $0x68] sm:$0xff]
  %v461 = vld [vmem:[#allocation2 + $0x70] sm:$0xff]
  %v462 = vld [vmem:[#allocation2 + $0x78] sm:$0xff]
  %v463 = vld [vmem:[#allocation2 + $0x80] sm:$0xff]
  %v464 = vld [vmem:[#allocation2 + $0x88] sm:$0xff]
  %v465 = vld [vmem:[#allocation2 + $0x90] sm:$0xff]
  %v466 = vld [vmem:[#allocation2 + $0x98] sm:$0xff]
  %v467 = vld [vmem:[#allocation2 + $0xa0] sm:$0xff]
  %v468 = vld [vmem:[#allocation2 + $0xa8] sm:$0xff]
  %v469 = vld [vmem:[#allocation2 + $0xb0] sm:$0xff]
  %v470 = vld [vmem:[#allocation2 + $0xb8] sm:$0xff]
  %v471 = vld [vmem:[#allocation2 + $0xc0] sm:$0xff]
  %v472 = vld [vmem:[#allocation2 + $0xc8] sm:$0xff]
  %v473 = vld [vmem:[#allocation2 + $0xd0] sm:$0xff]
  %v474 = vld [vmem:[#allocation2 + $0xd8] sm:$0xff]
  %v475 = vld [vmem:[#allocation2 + $0xe0] sm:$0xff]
  %v476 = vld [vmem:[#allocation2 + $0xe8] sm:$0xff]
  %v477 = vld [vmem:[#allocation2 + $0xf0] sm:$0xff]
  %v478 = vld [vmem:[#allocation2 + $0xf8] sm:$0xff]
  %v479 = vld [vmem:[#allocation2 + $0x100] sm:$0xff]
  %v480 = vld [vmem:[#allocation2 + $0x108] sm:$0xff]
  %v481 = vld [vmem:[#allocation2 + $0x110] sm:$0xff]
  %v482 = vld [vmem:[#allocation2 + $0x118] sm:$0xff]
  %v483 = vld [vmem:[#allocation2 + $0x120] sm:$0xff]
  %v484 = vld [vmem:[#allocation2 + $0x128] sm:$0xff]
  %v485 = vld [vmem:[#allocation2 + $0x130] sm:$0xff]
  %v486 = vld [vmem:[#allocation2 + $0x138] sm:$0xff]
  %v487 = vld [vmem:[#allocation2 + $0x140] sm:$0xff]
  %v488 = vld [vmem:[#allocation2 + $0x148] sm:$0xff]
  %v489 = vld [vmem:[#allocation2 + $0x150] sm:$0xff]
  %v490 = vld [vmem:[#allocation2 + $0x158] sm:$0xff]
  %v491 = vld [vmem:[#allocation2 + $0x160] sm:$0xff]
  %v492 = vld [vmem:[#allocation2 + $0x168] sm:$0xff]
  %v493 = vld [vmem:[#allocation2 + $0x170] sm:$0xff]
  %v494 = vld [vmem:[#allocation2 + $0x178] sm:$0xff]
  %v495 = vld [vmem:[#allocation2 + $0x180] sm:$0xff]
  %v496 = vld [vmem:[#allocation2 + $0x188] sm:$0xff]
  %v497 = vld [vmem:[#allocation2 + $0x190] sm:$0xff]
  %v498 = vld [vmem:[#allocation2 + $0x198] sm:$0xff]
  %v499 = vld [vmem:[#allocation2 + $0x1a0] sm:$0xff]
  %v500 = vld [vmem:[#allocation2 + $0x1a8] sm:$0xff]
  %v501 = vld [vmem:[#allocation2 + $0x1b0] sm:$0xff]
  %v502 = vld [vmem:[#allocation2 + $0x1b8] sm:$0xff]
  %v503 = vld [vmem:[#allocation2 + $0x1c0] sm:$0xff]
  %v504 = vld [vmem:[#allocation2 + $0x1c8] sm:$0xff]
  %v505 = vld [vmem:[#allocation2 + $0x1d0] sm:$0xff]
  %v506 = vld [vmem:[#allocation2 + $0x1d8] sm:$0xff]
  %v507 = vld [vmem:[#allocation2 + $0x1e0] sm:$0xff]
  %v508 = vld [vmem:[#allocation2 + $0x1e8] sm:$0xff]
  %v509 = vld [vmem:[#allocation2 + $0x1f0] sm:$0xff]
  %v511 = vsel %vm38, %v17, 0
  %513 = vmatprep.subr.mxu0 %v448
  %514 = vmatpush1.msra.mxu0 %v447
  %515 = vmatprep.subr.mxu0 %v455
  %516 = vmatpush1.msra.mxu0 %v454
  %517 = vmatprep.subr.mxu0 %v462
  %518 = vmatpush1.msra.mxu0 %v461
  %519 = vmatprep.subr.mxu0 %v469
  %520 = vmatpush1.msra.mxu0 %v468
  %521 = vmatprep.subr.mxu0 %v476
  %522 = vmatpush1.msra.mxu0 %v475
  %523 = vmatprep.subr.mxu0 %v483
  %524 = vmatpush1.msra.mxu0 %v482
  %525 = vmatprep.subr.mxu0 %v490
  %526 = vmatpush1.msra.mxu0 %v489
  %527 = vmatprep.subr.mxu0 %v497
  %528 = vmatpush1.msra.mxu0 %v496
  %529 = vmatprep.subr.mxu0 %v504
  %530 = vmatpush1.msra.mxu0 %v503
  %531 = vmatprep.subr.mxu0 0.0
  %532 = vmatpush1.msra.mxu0 0.0
  %533 = vmatprep.subr.mxu0 0.0
  %534 = vmatpush1.msra.mxu0 0.0
  %535 = vmatprep.subr.mxu0 0.0
  %536 = vmatpush1.msra.mxu0 0.0
  %537 = vmatprep.subr.mxu0 0.0
  %538 = vmatpush1.msra.mxu0 0.0
  %539 = vmatprep.subr.mxu0 0.0
  %540 = vmatpush1.msra.mxu0 0.0
  %541 = vmatprep.subr.mxu0 0.0
  %542 = vmatpush1.msra.mxu0 0.0
  %543 = vmatprep.subr.mxu0 0.0
  %544 = vmatpush1.msra.mxu0 0.0
  %545 = vmatprep.subr.mxu0 0.0
  %546 = vmatpush1.msra.mxu0 0.0
  %547 = vmatprep.subr.mxu0 0.0
  %548 = vmatpush1.msra.mxu0 0.0
  %549 = vmatprep.subr.mxu0 0.0
  %550 = vmatpush1.msra.mxu0 0.0
  %551 = vmatprep.subr.mxu0 0.0
  %552 = vmatpush1.msra.mxu0 0.0
  %553 = vmatprep.subr.mxu0 0.0
  %554 = vmatpush1.msra.mxu0 0.0
  %555 = vmatprep.subr.mxu0 0.0
  %556 = vmatpush1.msra.mxu0 0.0
  %557 = vmatprep.subr.mxu0 0.0
  %558 = vmatpush1.msra.mxu0 0.0
  %559 = vmatprep.subr.mxu0 0.0
  %560 = vmatpush1.msra.mxu0 0.0
  %561 = vmatprep.subr.mxu0 0.0
  %562 = vmatpush1.msra.mxu0 0.0
  %563 = vmatprep.subr.mxu0 0.0
  %564 = vmatpush1.msra.mxu0 0.0
  %565 = vmatprep.subr.mxu0 0.0
  %566 = vmatpush1.msra.mxu0 0.0
  %567 = vmatprep.subr.mxu0 0.0
  %568 = vmatpush1.msra.mxu0 0.0
  %569 = vmatprep.subr.mxu0 0.0
  %570 = vmatpush1.msra.mxu0 0.0
  %571 = vmatprep.subr.mxu0 0.0
  %572 = vmatpush1.msra.mxu0 0.0
  %573 = vmatprep.subr.mxu0 0.0
  %574 = vmatpush1.msra.mxu0 0.0
  %575 = vmatprep.subr.mxu0 0.0
  %576 = vmatpush1.msra.mxu0 0.0
  %577 = vmatprep.mubr.f32.mxu0 0.0
  %578 = vmatmul.mubr.f32.gmra.mrb[0].mxu0 %v511
  %v579 = vpop.f32.mrb[0].mxu0
  %v580 = vadd.f32 0.0, %v579
  %v581 = vpop.f32.mrb[0].mxu0
  %v582 = vadd.f32 0.0, %v581
  %583 = vdwg.mxu0
  %584 = vmatprep.subr.mxu0 %v450
  %585 = vmatpush1.msra.mxu0 %v449
  %586 = vmatprep.subr.mxu0 %v457
  %587 = vmatpush1.msra.mxu0 %v456
  %588 = vmatprep.subr.mxu0 %v464
  %589 = vmatpush1.msra.mxu0 %v463
  %590 = vmatprep.subr.mxu0 %v471
  %591 = vmatpush1.msra.mxu0 %v470
  %592 = vmatprep.subr.mxu0 %v478
  %593 = vmatpush1.msra.mxu0 %v477
  %594 = vmatprep.subr.mxu0 %v485
  %595 = vmatpush1.msra.mxu0 %v484
  %596 = vmatprep.subr.mxu0 %v492
  %597 = vmatpush1.msra.mxu0 %v491
  %598 = vmatprep.subr.mxu0 %v499
  %599 = vmatpush1.msra.mxu0 %v498
  %600 = vmatprep.subr.mxu0 %v506
  %601 = vmatpush1.msra.mxu0 %v505
  %602 = vmatprep.subr.mxu0 0.0
  %603 = vmatpush1.msra.mxu0 0.0
  %604 = vmatprep.subr.mxu0 0.0
  %605 = vmatpush1.msra.mxu0 0.0
  %606 = vmatprep.subr.mxu0 0.0
  %607 = vmatpush1.msra.mxu0 0.0
  %608 = vmatprep.subr.mxu0 0.0
  %609 = vmatpush1.msra.mxu0 0.0
  %610 = vmatprep.subr.mxu0 0.0
  %611 = vmatpush1.msra.mxu0 0.0
  %612 = vmatprep.subr.mxu0 0.0
  %613 = vmatpush1.msra.mxu0 0.0
  %614 = vmatprep.subr.mxu0 0.0
  %615 = vmatpush1.msra.mxu0 0.0
  %616 = vmatprep.subr.mxu0 0.0
  %617 = vmatpush1.msra.mxu0 0.0
  %618 = vmatprep.subr.mxu0 0.0
  %619 = vmatpush1.msra.mxu0 0.0
  %620 = vmatprep.subr.mxu0 0.0
  %621 = vmatpush1.msra.mxu0 0.0
  %622 = vmatprep.subr.mxu0 0.0
  %623 = vmatpush1.msra.mxu0 0.0
  %624 = vmatprep.subr.mxu0 0.0
  %625 = vmatpush1.msra.mxu0 0.0
  %626 = vmatprep.subr.mxu0 0.0
  %627 = vmatpush1.msra.mxu0 0.0
  %628 = vmatprep.subr.mxu0 0.0
  %629 = vmatpush1.msra.mxu0 0.0
  %630 = vmatprep.subr.mxu0 0.0
  %631 = vmatpush1.msra.mxu0 0.0
  %632 = vmatprep.subr.mxu0 0.0
  %633 = vmatpush1.msra.mxu0 0.0
  %634 = vmatprep.subr.mxu0 0.0
  %635 = vmatpush1.msra.mxu0 0.0
  %636 = vmatprep.subr.mxu0 0.0
  %637 = vmatpush1.msra.mxu0 0.0
  %638 = vmatprep.subr.mxu0 0.0
  %639 = vmatpush1.msra.mxu0 0.0
  %640 = vmatprep.subr.mxu0 0.0
  %641 = vmatpush1.msra.mxu0 0.0
  %642 = vmatprep.subr.mxu0 0.0
  %643 = vmatpush1.msra.mxu0 0.0
  %644 = vmatprep.subr.mxu0 0.0
  %645 = vmatpush1.msra.mxu0 0.0
  %646 = vmatprep.subr.mxu0 0.0
  %647 = vmatpush1.msra.mxu0 0.0
  %648 = vmatprep.mubr.f32.mxu0 0.0
  %649 = vmatmul.mubr.f32.gmra.mrb[0].mxu0 %v511
  %v650 = vpop.f32.mrb[0].mxu0
  %v651 = vadd.f32 0.0, %v650
  %v652 = vpop.f32.mrb[0].mxu0
  %v653 = vadd.f32 0.0, %v652
  %654 = vdwg.mxu0
  %655 = vmatprep.subr.mxu0 %v452
  %656 = vmatpush1.msra.mxu0 %v451
  %657 = vmatprep.subr.mxu0 %v459
  %658 = vmatpush1.msra.mxu0 %v458
  %659 = vmatprep.subr.mxu0 %v466
  %660 = vmatpush1.msra.mxu0 %v465
  %661 = vmatprep.subr.mxu0 %v473
  %662 = vmatpush1.msra.mxu0 %v472
  %663 = vmatprep.subr.mxu0 %v480
  %664 = vmatpush1.msra.mxu0 %v479
  %665 = vmatprep.subr.mxu0 %v487
  %666 = vmatpush1.msra.mxu0 %v486
  %667 = vmatprep.subr.mxu0 %v494
  %668 = vmatpush1.msra.mxu0 %v493
  %669 = vmatprep.subr.mxu0 %v501
  %670 = vmatpush1.msra.mxu0 %v500
  %671 = vmatprep.subr.mxu0 %v508
  %672 = vmatpush1.msra.mxu0 %v507
  %673 = vmatprep.subr.mxu0 0.0
  %674 = vmatpush1.msra.mxu0 0.0
  %675 = vmatprep.subr.mxu0 0.0
  %676 = vmatpush1.msra.mxu0 0.0
  %677 = vmatprep.subr.mxu0 0.0
  %678 = vmatpush1.msra.mxu0 0.0
  %679 = vmatprep.subr.mxu0 0.0
  %680 = vmatpush1.msra.mxu0 0.0
  %681 = vmatprep.subr.mxu0 0.0
  %682 = vmatpush1.msra.mxu0 0.0
  %683 = vmatprep.subr.mxu0 0.0
  %684 = vmatpush1.msra.mxu0 0.0
  %685 = vmatprep.subr.mxu0 0.0
  %686 = vmatpush1.msra.mxu0 0.0
  %687 = vmatprep.subr.mxu0 0.0
  %688 = vmatpush1.msra.mxu0 0.0
  %689 = vmatprep.subr.mxu0 0.0
  %690 = vmatpush1.msra.mxu0 0.0
  %691 = vmatprep.subr.mxu0 0.0
  %692 = vmatpush1.msra.mxu0 0.0
  %693 = vmatprep.subr.mxu0 0.0
  %694 = vmatpush1.msra.mxu0 0.0
  %695 = vmatprep.subr.mxu0 0.0
  %696 = vmatpush1.msra.mxu0 0.0
  %697 = vmatprep.subr.mxu0 0.0
  %698 = vmatpush1.msra.mxu0 0.0
  %699 = vmatprep.subr.mxu0 0.0
  %700 = vmatpush1.msra.mxu0 0.0
  %701 = vmatprep.subr.mxu0 0.0
  %702 = vmatpush1.msra.mxu0 0.0
  %703 = vmatprep.subr.mxu0 0.0
  %704 = vmatpush1.msra.mxu0 0.0
  %705 = vmatprep.subr.mxu0 0.0
  %706 = vmatpush1.msra.mxu0 0.0
  %707 = vmatprep.subr.mxu0 0.0
  %708 = vmatpush1.msra.mxu0 0.0
  %709 = vmatprep.subr.mxu0 0.0
  %710 = vmatpush1.msra.mxu0 0.0
  %711 = vmatprep.subr.mxu0 0.0
  %712 = vmatpush1.msra.mxu0 0.0
  %713 = vmatprep.subr.mxu0 0.0
  %714 = vmatpush1.msra.mxu0 0.0
  %715 = vmatprep.subr.mxu0 0.0
  %716 = vmatpush1.msra.mxu0 0.0
  %717 = vmatprep.subr.mxu0 0.0
  %718 = vmatpush1.msra.mxu0 0.0
  %719 = vmatprep.mubr.f32.mxu0 0.0
  %720 = vmatmul.mubr.f32.gmra.mrb[0].mxu0 %v511
  %v721 = vpop.f32.mrb[0].mxu0
  %v722 = vadd.f32 0.0, %v721
  %v723 = vpop.f32.mrb[0].mxu0
  %v724 = vadd.f32 0.0, %v723
  %725 = vdwg.mxu0
  %726 = vmatprep.subr.mxu0 0.0
  %727 = vmatpush1.msra.mxu0 %v453
  %728 = vmatprep.subr.mxu0 0.0
  %729 = vmatpush1.msra.mxu0 %v460
  %730 = vmatprep.subr.mxu0 0.0
  %731 = vmatpush1.msra.mxu0 %v467
  %732 = vmatprep.subr.mxu0 0.0
  %733 = vmatpush1.msra.mxu0 %v474
  %734 = vmatprep.subr.mxu0 0.0
  %735 = vmatpush1.msra.mxu0 %v481
  %736 = vmatprep.subr.mxu0 0.0
  %737 = vmatpush1.msra.mxu0 %v488
  %738 = vmatprep.subr.mxu0 0.0
  %739 = vmatpush1.msra.mxu0 %v495
  %740 = vmatprep.subr.mxu0 0.0
  %741 = vmatpush1.msra.mxu0 %v502
  %742 = vmatprep.subr.mxu0 0.0
  %743 = vmatpush1.msra.mxu0 %v509
  %744 = vmatprep.subr.mxu0 0.0
  %745 = vmatpush1.msra.mxu0 0.0
  %746 = vmatprep.subr.mxu0 0.0
  %747 = vmatpush1.msra.mxu0 0.0
  %748 = vmatprep.subr.mxu0 0.0
  %749 = vmatpush1.msra.mxu0 0.0
  %750 = vmatprep.subr.mxu0 0.0
  %751 = vmatpush1.msra.mxu0 0.0
  %752 = vmatprep.subr.mxu0 0.0
  %753 = vmatpush1.msra.mxu0 0.0
  %754 = vmatprep.subr.mxu0 0.0
  %755 = vmatpush1.msra.mxu0 0.0
  %756 = vmatprep.subr.mxu0 0.0
  %757 = vmatpush1.msra.mxu0 0.0
  %758 = vmatprep.subr.mxu0 0.0
  %759 = vmatpush1.msra.mxu0 0.0
  %760 = vmatprep.subr.mxu0 0.0
  %761 = vmatpush1.msra.mxu0 0.0
  %762 = vmatprep.subr.mxu0 0.0
  %763 = vmatpush1.msra.mxu0 0.0
  %764 = vmatprep.subr.mxu0 0.0
  %765 = vmatpush1.msra.mxu0 0.0
  %766 = vmatprep.subr.mxu0 0.0
  %767 = vmatpush1.msra.mxu0 0.0
  %768 = vmatprep.subr.mxu0 0.0
  %769 = vmatpush1.msra.mxu0 0.0
  %770 = vmatprep.subr.mxu0 0.0
  %771 = vmatpush1.msra.mxu0 0.0
  %772 = vmatprep.subr.mxu0 0.0
  %773 = vmatpush1.msra.mxu0 0.0
  %774 = vmatprep.subr.mxu0 0.0
  %775 = vmatpush1.msra.mxu0 0.0
  %776 = vmatprep.subr.mxu0 0.0
  %777 = vmatpush1.msra.mxu0 0.0
  %778 = vmatprep.subr.mxu0 0.0
  %779 = vmatpush1.msra.mxu0 0.0
  %780 = vmatprep.subr.mxu0 0.0
  %781 = vmatpush1.msra.mxu0 0.0
  %782 = vmatprep.subr.mxu0 0.0
  %783 = vmatpush1.msra.mxu0 0.0
  %784 = vmatprep.subr.mxu0 0.0
  %785 = vmatpush1.msra.mxu0 0.0
  %786 = vmatprep.subr.mxu0 0.0
  %787 = vmatpush1.msra.mxu0 0.0
  %788 = vmatprep.subr.mxu0 0.0
  %789 = vmatpush1.msra.mxu0 0.0
  %790 = vmatprep.mubr.f32.mxu0 0.0
  %791 = vmatmul.mubr.f32.gmra.mrb[0].mxu0 %v511
  %v792 = vpop.f32.mrb[0].mxu0
  %v793 = vadd.f32 0.0, %v792
  %v794 = vpop.f32.mrb[0].mxu0
  %795 = vdwg.mxu0
  %796 = vst [vmem:[%s3] sm:$0xff] %v580
  %797 = vst [vmem:[%s3 + $0x8] sm:$0xff] %v582
  %798 = vst [vmem:[%s3 + $0x10] sm:$0xff] %v651
  %799 = vst [vmem:[%s3 + $0x18] sm:$0xff] %v653
  %800 = vst [vmem:[%s3 + $0x20] sm:$0xff] %v722
  %801 = vst [vmem:[%s3 + $0x28] sm:$0xff] %v724
  %802 = vst.msk [vmem:[%s3 + $0x30] sm:$0xff] %vm38, %v793
  %v803 = vmul.f32 %v580, %v18
  %v804 = vmul.f32 %v582, %v19
  %v805 = vmul.f32 %v651, %v20
  %v806 = vmul.f32 %v653, %v21
  %v807 = vmul.f32 %v722, %v22
  %v808 = vmul.f32 %v724, %v23
  %v809 = vmul.f32 %v793, %v24
  %v810 = vadd.f32 %v803, %v804
  %v811 = vadd.f32 %v810, %v805
  %v812 = vadd.f32 %v811, %v806
  %v813 = vadd.f32 %v812, %v807
  %v814 = vadd.f32 %v813, %v808
  %v815 = vsel %vm38, %v809, 0.0
  %v816 = vadd.f32 %v814, %v815
  %817 = vadd.xlane.f32.xlu0 %v816
  %v818 = vpop.xlane.xlu0 %817
  %v819 = vadd.f32 %v818, 0.0
  %v820 = vmul.f32 %v803, %v580
  %v821 = vmul.f32 %v804, %v582
  %v822 = vmul.f32 %v805, %v651
  %v823 = vmul.f32 %v806, %v653
  %v824 = vmul.f32 %v807, %v722
  %v825 = vmul.f32 %v808, %v724
  %v826 = vmul.f32 %v809, %v793
  %v827 = vadd.f32 %v820, %v821
  %v828 = vadd.f32 %v827, %v822
  %v829 = vadd.f32 %v828, %v823
  %v830 = vadd.f32 %v829, %v824
  %v831 = vadd.f32 %v830, %v825
  %v832 = vsel %vm38, %v826, 0.0
  %v833 = vadd.f32 %v831, %v832
  %834 = vadd.xlane.f32.xlu0 %v833
  %v835 = vpop.xlane.xlu0 %834
  %v836 = vadd.f32 %v835, 0.0
  %s837 = scalar_lea.vmem %s0, 64
  %v838 = vld [vmem:[%s837] sm:$0xff]
  %v839 = vld [vmem:[%s837 + $0x8] sm:$0xff]
  %v840 = vld [vmem:[%s837 + $0x10] sm:$0xff]
  %v841 = vld [vmem:[%s837 + $0x18] sm:$0xff]
  %v842 = vld [vmem:[%s837 + $0x20] sm:$0xff]
  %v843 = vld [vmem:[%s837 + $0x28] sm:$0xff]
  %v844 = vld [vmem:[%s837 + $0x30] sm:$0xff]
  %845 = vst [vmem:[#allocation2] sm:$0xff] %v838
  %846 = vst [vmem:[#allocation2 + $0x8] sm:$0xff] %v839
  %847 = vst [vmem:[#allocation2 + $0x10] sm:$0xff] %v840
  %848 = vst [vmem:[#allocation2 + $0x18] sm:$0xff] %v841
  %849 = vst [vmem:[#allocation2 + $0x20] sm:$0xff] %v842
  %850 = vst [vmem:[#allocation2 + $0x28] sm:$0xff] %v843
  %851 = vst.msk [vmem:[#allocation2 + $0x30] sm:$0xff] %vm38, %v844
  %v852 = vld [vmem:[%s837] sm:$0xff]
  %v853 = vld [vmem:[%s837 + $0x8] sm:$0xff]
  %v854 = vld [vmem:[%s837 + $0x10] sm:$0xff]
  %v855 = vld [vmem:[%s837 + $0x18] sm:$0xff]
  %v856 = vld [vmem:[%s837 + $0x20] sm:$0xff]
  %v857 = vld [vmem:[%s837 + $0x28] sm:$0xff]
  %v858 = vld [vmem:[%s837 + $0x30] sm:$0xff]
  %866 = vrot.lane.b32.xlu0 %v852, 127
  %v867 = vpop.permute.xlu0 %866
  %868 = vrot.lane.b32.xlu0 %v853, 127
  %v869 = vpop.permute.xlu0 %868
  %870 = vrot.lane.b32.xlu0 %v854, 127
  %v871 = vpop.permute.xlu0 %870
  %872 = vrot.lane.b32.xlu0 %v855, 127
  %v873 = vpop.permute.xlu0 %872
  %874 = vrot.lane.b32.xlu0 %v856, 127
  %v875 = vpop.permute.xlu0 %874
  %876 = vrot.lane.b32.xlu0 %v857, 127
  %v877 = vpop.permute.xlu0 %876
  %878 = vrot.lane.b32.xlu0 %v858, 127
  %v879 = vpop.permute.xlu0 %878
  %v880 = vsel %vm68, %v867, %v869
  %v881 = vsel %vm68, %v869, %v871
  %v882 = vsel %vm68, %v871, %v873
  %v883 = vsel %vm68, %v873, %v875
  %v884 = vsel %vm68, %v875, %v877
  %v885 = vsel %vm68, %v877, %v879
  %893 = vst [vmem:[#allocation2 + $0x38] sm:$0xff] %v880
  %894 = vst [vmem:[#allocation2 + $0x40] sm:$0xff] %v881
  %895 = vst [vmem:[#allocation2 + $0x48] sm:$0xff] %v882
  %896 = vst [vmem:[#allocation2 + $0x50] sm:$0xff] %v883
  %897 = vst [vmem:[#allocation2 + $0x58] sm:$0xff] %v884
  %898 = vst [vmem:[#allocation2 + $0x60] sm:$0xff] %v885
  %899 = vst.msk [vmem:[#allocation2 + $0x68] sm:$0xff] %vm38, %v879
  %v900 = vld [vmem:[%s837] sm:$0xff]
  %v901 = vld [vmem:[%s837 + $0x8] sm:$0xff]
  %v902 = vld [vmem:[%s837 + $0x10] sm:$0xff]
  %v903 = vld [vmem:[%s837 + $0x18] sm:$0xff]
  %v904 = vld [vmem:[%s837 + $0x20] sm:$0xff]
  %v905 = vld [vmem:[%s837 + $0x28] sm:$0xff]
  %v906 = vld [vmem:[%s837 + $0x30] sm:$0xff]
  %914 = vrot.lane.b32.xlu0 %v900, 126
  %v915 = vpop.permute.xlu0 %914
  %916 = vrot.lane.b32.xlu0 %v901, 126
  %v917 = vpop.permute.xlu0 %916
  %918 = vrot.lane.b32.xlu0 %v902, 126
  %v919 = vpop.permute.xlu0 %918
  %920 = vrot.lane.b32.xlu0 %v903, 126
  %v921 = vpop.permute.xlu0 %920
  %922 = vrot.lane.b32.xlu0 %v904, 126
  %v923 = vpop.permute.xlu0 %922
  %924 = vrot.lane.b32.xlu0 %v905, 126
  %v925 = vpop.permute.xlu0 %924
  %926 = vrot.lane.b32.xlu0 %v906, 126
  %v927 = vpop.permute.xlu0 %926
  %v928 = vsel %vm117, %v915, %v917
  %v929 = vsel %vm117, %v917, %v919
  %v930 = vsel %vm117, %v919, %v921
  %v931 = vsel %vm117, %v921, %v923
  %v932 = vsel %vm117, %v923, %v925
  %v933 = vsel %vm117, %v925, %v927
  %941 = vst [vmem:[#allocation2 + $0x70] sm:$0xff] %v928
  %942 = vst [vmem:[#allocation2 + $0x78] sm:$0xff] %v929
  %943 = vst [vmem:[#allocation2 + $0x80] sm:$0xff] %v930
  %944 = vst [vmem:[#allocation2 + $0x88] sm:$0xff] %v931
  %945 = vst [vmem:[#allocation2 + $0x90] sm:$0xff] %v932
  %946 = vst [vmem:[#allocation2 + $0x98] sm:$0xff] %v933
  %947 = vst.msk [vmem:[#allocation2 + $0xa0] sm:$0xff] %vm38, %v927
  %v948 = vld [vmem:[%s837] sm:$0xff]
  %v949 = vld [vmem:[%s837 + $0x8] sm:$0xff]
  %v950 = vld [vmem:[%s837 + $0x10] sm:$0xff]
  %v951 = vld [vmem:[%s837 + $0x18] sm:$0xff]
  %v952 = vld [vmem:[%s837 + $0x20] sm:$0xff]
  %v953 = vld [vmem:[%s837 + $0x28] sm:$0xff]
  %v954 = vld [vmem:[%s837 + $0x30] sm:$0xff]
  %962 = vrot.lane.b32.xlu0 %v948, 98
  %v963 = vpop.permute.xlu0 %962
  %964 = vrot.lane.b32.xlu0 %v949, 98
  %v965 = vpop.permute.xlu0 %964
  %966 = vrot.lane.b32.xlu0 %v950, 98
  %v967 = vpop.permute.xlu0 %966
  %968 = vrot.lane.b32.xlu0 %v951, 98
  %v969 = vpop.permute.xlu0 %968
  %970 = vrot.lane.b32.xlu0 %v952, 98
  %v971 = vpop.permute.xlu0 %970
  %972 = vrot.lane.b32.xlu0 %v953, 98
  %v973 = vpop.permute.xlu0 %972
  %974 = vrot.lane.b32.xlu0 %v954, 98
  %v975 = vpop.permute.xlu0 %974
  %v976 = vsel %vm166, %v963, %v965
  %v977 = vsel %vm166, %v965, %v967
  %v978 = vsel %vm166, %v967, %v969
  %v979 = vsel %vm166, %v969, %v971
  %v980 = vsel %vm166, %v971, %v973
  %v981 = vsel %vm166, %v973, %v975
  %989 = vst [vmem:[#allocation2 + $0xa8] sm:$0xff] %v976
  %990 = vst [vmem:[#allocation2 + $0xb0] sm:$0xff] %v977
  %991 = vst [vmem:[#allocation2 + $0xb8] sm:$0xff] %v978
  %992 = vst [vmem:[#allocation2 + $0xc0] sm:$0xff] %v979
  %993 = vst [vmem:[#allocation2 + $0xc8] sm:$0xff] %v980
  %994 = vst [vmem:[#allocation2 + $0xd0] sm:$0xff] %v981
  %995 = vst.msk [vmem:[#allocation2 + $0xd8] sm:$0xff] %vm38, %v975
  %v996 = vld [vmem:[%s837] sm:$0xff]
  %v997 = vld [vmem:[%s837 + $0x8] sm:$0xff]
  %v998 = vld [vmem:[%s837 + $0x10] sm:$0xff]
  %v999 = vld [vmem:[%s837 + $0x18] sm:$0xff]
  %v1000 = vld [vmem:[%s837 + $0x20] sm:$0xff]
  %v1001 = vld [vmem:[%s837 + $0x28] sm:$0xff]
  %v1002 = vld [vmem:[%s837 + $0x30] sm:$0xff]
  %1010 = vrot.lane.b32.xlu0 %v996, 97
  %v1011 = vpop.permute.xlu0 %1010
  %1012 = vrot.lane.b32.xlu0 %v997, 97
  %v1013 = vpop.permute.xlu0 %1012
  %1014 = vrot.lane.b32.xlu0 %v998, 97
  %v1015 = vpop.permute.xlu0 %1014
  %1016 = vrot.lane.b32.xlu0 %v999, 97
  %v1017 = vpop.permute.xlu0 %1016
  %1018 = vrot.lane.b32.xlu0 %v1000, 97
  %v1019 = vpop.permute.xlu0 %1018
  %1020 = vrot.lane.b32.xlu0 %v1001, 97
  %v1021 = vpop.permute.xlu0 %1020
  %1022 = vrot.lane.b32.xlu0 %v1002, 97
  %v1023 = vpop.permute.xlu0 %1022
  %v1024 = vsel %vm215, %v1011, %v1013
  %v1025 = vsel %vm215, %v1013, %v1015
  %v1026 = vsel %vm215, %v1015, %v1017
  %v1027 = vsel %vm215, %v1017, %v1019
  %v1028 = vsel %vm215, %v1019, %v1021
  %v1029 = vsel %vm215, %v1021, %v1023
  %1037 = vst [vmem:[#allocation2 + $0xe0] sm:$0xff] %v1024
  %1038 = vst [vmem:[#allocation2 + $0xe8] sm:$0xff] %v1025
  %1039 = vst [vmem:[#allocation2 + $0xf0] sm:$0xff] %v1026
  %1040 = vst [vmem:[#allocation2 + $0xf8] sm:$0xff] %v1027
  %1041 = vst [vmem:[#allocation2 + $0x100] sm:$0xff] %v1028
  %1042 = vst [vmem:[#allocation2 + $0x108] sm:$0xff] %v1029
  %1043 = vst.msk [vmem:[#allocation2 + $0x110] sm:$0xff] %vm38, %v1023
  %v1044 = vld [vmem:[%s837] sm:$0xff]
  %v1045 = vld [vmem:[%s837 + $0x8] sm:$0xff]
  %v1046 = vld [vmem:[%s837 + $0x10] sm:$0xff]
  %v1047 = vld [vmem:[%s837 + $0x18] sm:$0xff]
  %v1048 = vld [vmem:[%s837 + $0x20] sm:$0xff]
  %v1049 = vld [vmem:[%s837 + $0x28] sm:$0xff]
  %v1050 = vld [vmem:[%s837 + $0x30] sm:$0xff]
  %1058 = vrot.lane.b32.xlu0 %v1044, 96
  %v1059 = vpop.permute.xlu0 %1058
  %1060 = vrot.lane.b32.xlu0 %v1045, 96
  %v1061 = vpop.permute.xlu0 %1060
  %1062 = vrot.lane.b32.xlu0 %v1046, 96
  %v1063 = vpop.permute.xlu0 %1062
  %1064 = vrot.lane.b32.xlu0 %v1047, 96
  %v1065 = vpop.permute.xlu0 %1064
  %1066 = vrot.lane.b32.xlu0 %v1048, 96
  %v1067 = vpop.permute.xlu0 %1066
  %1068 = vrot.lane.b32.xlu0 %v1049, 96
  %v1069 = vpop.permute.xlu0 %1068
  %1070 = vrot.lane.b32.xlu0 %v1050, 96
  %v1071 = vpop.permute.xlu0 %1070
  %v1072 = vsel %vm264, %v1059, %v1061
  %v1073 = vsel %vm264, %v1061, %v1063
  %v1074 = vsel %vm264, %v1063, %v1065
  %v1075 = vsel %vm264, %v1065, %v1067
  %v1076 = vsel %vm264, %v1067, %v1069
  %v1077 = vsel %vm264, %v1069, %v1071
  %1085 = vst [vmem:[#allocation2 + $0x118] sm:$0xff] %v1072
  %1086 = vst [vmem:[#allocation2 + $0x120] sm:$0xff] %v1073
  %1087 = vst [vmem:[#allocation2 + $0x128] sm:$0xff] %v1074
  %1088 = vst [vmem:[#allocation2 + $0x130] sm:$0xff] %v1075
  %1089 = vst [vmem:[#allocation2 + $0x138] sm:$0xff] %v1076
  %1090 = vst [vmem:[#allocation2 + $0x140] sm:$0xff] %v1077
  %1091 = vst.msk [vmem:[#allocation2 + $0x148] sm:$0xff] %vm38, %v1071
  %v1092 = vld [vmem:[%s837] sm:$0xff]
  %v1093 = vld [vmem:[%s837 + $0x8] sm:$0xff]
  %v1094 = vld [vmem:[%s837 + $0x10] sm:$0xff]
  %v1095 = vld [vmem:[%s837 + $0x18] sm:$0xff]
  %v1096 = vld [vmem:[%s837 + $0x20] sm:$0xff]
  %v1097 = vld [vmem:[%s837 + $0x28] sm:$0xff]
  %v1098 = vld [vmem:[%s837 + $0x30] sm:$0xff]
  %v1099 = vld [vmem:[%s837 + $0x38] sm:$0xff]
  %1108 = vrot.lane.b32.xlu0 %v1092, 68
  %v1109 = vpop.permute.xlu0 %1108
  %1110 = vrot.lane.b32.xlu0 %v1093, 68
  %v1111 = vpop.permute.xlu0 %1110
  %1112 = vrot.lane.b32.xlu0 %v1094, 68
  %v1113 = vpop.permute.xlu0 %1112
  %1114 = vrot.lane.b32.xlu0 %v1095, 68
  %v1115 = vpop.permute.xlu0 %1114
  %1116 = vrot.lane.b32.xlu0 %v1096, 68
  %v1117 = vpop.permute.xlu0 %1116
  %1118 = vrot.lane.b32.xlu0 %v1097, 68
  %v1119 = vpop.permute.xlu0 %1118
  %1120 = vrot.lane.b32.xlu0 %v1098, 68
  %v1121 = vpop.permute.xlu0 %1120
  %1122 = vrot.lane.b32.xlu0 %v1099, 68
  %v1123 = vpop.permute.xlu0 %1122
  %v1124 = vsel %vm317, %v1109, %v1111
  %v1125 = vsel %vm317, %v1111, %v1113
  %v1126 = vsel %vm317, %v1113, %v1115
  %v1127 = vsel %vm317, %v1115, %v1117
  %v1128 = vsel %vm317, %v1117, %v1119
  %v1129 = vsel %vm317, %v1119, %v1121
  %v1130 = vsel %vm317, %v1121, %v1123
  %1138 = vst [vmem:[#allocation2 + $0x150] sm:$0xff] %v1124
  %1139 = vst [vmem:[#allocation2 + $0x158] sm:$0xff] %v1125
  %1140 = vst [vmem:[#allocation2 + $0x160] sm:$0xff] %v1126
  %1141 = vst [vmem:[#allocation2 + $0x168] sm:$0xff] %v1127
  %1142 = vst [vmem:[#allocation2 + $0x170] sm:$0xff] %v1128
  %1143 = vst [vmem:[#allocation2 + $0x178] sm:$0xff] %v1129
  %1144 = vst.msk [vmem:[#allocation2 + $0x180] sm:$0xff] %vm38, %v1130
  %v1145 = vld [vmem:[%s837] sm:$0xff]
  %v1146 = vld [vmem:[%s837 + $0x8] sm:$0xff]
  %v1147 = vld [vmem:[%s837 + $0x10] sm:$0xff]
  %v1148 = vld [vmem:[%s837 + $0x18] sm:$0xff]
  %v1149 = vld [vmem:[%s837 + $0x20] sm:$0xff]
  %v1150 = vld [vmem:[%s837 + $0x28] sm:$0xff]
  %v1151 = vld [vmem:[%s837 + $0x30] sm:$0xff]
  %v1152 = vld [vmem:[%s837 + $0x38] sm:$0xff]
  %1161 = vrot.lane.b32.xlu0 %v1145, 67
  %v1162 = vpop.permute.xlu0 %1161
  %1163 = vrot.lane.b32.xlu0 %v1146, 67
  %v1164 = vpop.permute.xlu0 %1163
  %1165 = vrot.lane.b32.xlu0 %v1147, 67
  %v1166 = vpop.permute.xlu0 %1165
  %1167 = vrot.lane.b32.xlu0 %v1148, 67
  %v1168 = vpop.permute.xlu0 %1167
  %1169 = vrot.lane.b32.xlu0 %v1149, 67
  %v1170 = vpop.permute.xlu0 %1169
  %1171 = vrot.lane.b32.xlu0 %v1150, 67
  %v1172 = vpop.permute.xlu0 %1171
  %1173 = vrot.lane.b32.xlu0 %v1151, 67
  %v1174 = vpop.permute.xlu0 %1173
  %1175 = vrot.lane.b32.xlu0 %v1152, 67
  %v1176 = vpop.permute.xlu0 %1175
  %v1177 = vsel %vm371, %v1162, %v1164
  %v1178 = vsel %vm371, %v1164, %v1166
  %v1179 = vsel %vm371, %v1166, %v1168
  %v1180 = vsel %vm371, %v1168, %v1170
  %v1181 = vsel %vm371, %v1170, %v1172
  %v1182 = vsel %vm371, %v1172, %v1174
  %v1183 = vsel %vm371, %v1174, %v1176
  %1191 = vst [vmem:[#allocation2 + $0x188] sm:$0xff] %v1177
  %1192 = vst [vmem:[#allocation2 + $0x190] sm:$0xff] %v1178
  %1193 = vst [vmem:[#allocation2 + $0x198] sm:$0xff] %v1179
  %1194 = vst [vmem:[#allocation2 + $0x1a0] sm:$0xff] %v1180
  %1195 = vst [vmem:[#allocation2 + $0x1a8] sm:$0xff] %v1181
  %1196 = vst [vmem:[#allocation2 + $0x1b0] sm:$0xff] %v1182
  %1197 = vst.msk [vmem:[#allocation2 + $0x1b8] sm:$0xff] %vm38, %v1183
  %v1198 = vld [vmem:[%s837] sm:$0xff]
  %v1199 = vld [vmem:[%s837 + $0x8] sm:$0xff]
  %v1200 = vld [vmem:[%s837 + $0x10] sm:$0xff]
  %v1201 = vld [vmem:[%s837 + $0x18] sm:$0xff]
  %v1202 = vld [vmem:[%s837 + $0x20] sm:$0xff]
  %v1203 = vld [vmem:[%s837 + $0x28] sm:$0xff]
  %v1204 = vld [vmem:[%s837 + $0x30] sm:$0xff]
  %v1205 = vld [vmem:[%s837 + $0x38] sm:$0xff]
  %1214 = vrot.lane.b32.xlu0 %v1198, 66
  %v1215 = vpop.permute.xlu0 %1214
  %1216 = vrot.lane.b32.xlu0 %v1199, 66
  %v1217 = vpop.permute.xlu0 %1216
  %1218 = vrot.lane.b32.xlu0 %v1200, 66
  %v1219 = vpop.permute.xlu0 %1218
  %1220 = vrot.lane.b32.xlu0 %v1201, 66
  %v1221 = vpop.permute.xlu0 %1220
  %1222 = vrot.lane.b32.xlu0 %v1202, 66
  %v1223 = vpop.permute.xlu0 %1222
  %1224 = vrot.lane.b32.xlu0 %v1203, 66
  %v1225 = vpop.permute.xlu0 %1224
  %1226 = vrot.lane.b32.xlu0 %v1204, 66
  %v1227 = vpop.permute.xlu0 %1226
  %1228 = vrot.lane.b32.xlu0 %v1205, 66
  %v1229 = vpop.permute.xlu0 %1228
  %v1230 = vsel %vm425, %v1215, %v1217
  %v1231 = vsel %vm425, %v1217, %v1219
  %v1232 = vsel %vm425, %v1219, %v1221
  %v1233 = vsel %vm425, %v1221, %v1223
  %v1234 = vsel %vm425, %v1223, %v1225
  %v1235 = vsel %vm425, %v1225, %v1227
  %v1236 = vsel %vm425, %v1227, %v1229
  %1244 = vst [vmem:[#allocation2 + $0x1c0] sm:$0xff] %v1230
  %1245 = vst [vmem:[#allocation2 + $0x1c8] sm:$0xff] %v1231
  %1246 = vst [vmem:[#allocation2 + $0x1d0] sm:$0xff] %v1232
  %1247 = vst [vmem:[#allocation2 + $0x1d8] sm:$0xff] %v1233
  %1248 = vst [vmem:[#allocation2 + $0x1e0] sm:$0xff] %v1234
  %1249 = vst [vmem:[#allocation2 + $0x1e8] sm:$0xff] %v1235
  %1250 = vst.msk [vmem:[#allocation2 + $0x1f0] sm:$0xff] %vm38, %v1236
  %v1251 = vld [vmem:[#allocation2] sm:$0xff]
  %v1252 = vld [vmem:[#allocation2 + $0x8] sm:$0xff]
  %v1253 = vld [vmem:[#allocation2 + $0x10] sm:$0xff]
  %v1254 = vld [vmem:[#allocation2 + $0x18] sm:$0xff]
  %v1255 = vld [vmem:[#allocation2 + $0x20] sm:$0xff]
  %v1256 = vld [vmem:[#allocation2 + $0x28] sm:$0xff]
  %v1257 = vld [vmem:[#allocation2 + $0x30] sm:$0xff]
  %v1258 = vld [vmem:[#allocation2 + $0x38] sm:$0xff]
  %v1259 = vld [vmem:[#allocation2 + $0x40] sm:$0xff]
  %v1260 = vld [vmem:[#allocation2 + $0x48] sm:$0xff]
  %v1261 = vld [vmem:[#allocation2 + $0x50] sm:$0xff]
  %v1262 = vld [vmem:[#allocation2 + $0x58] sm:$0xff]
  %v1263 = vld [vmem:[#allocation2 + $0x60] sm:$0xff]
  %v1264 = vld [vmem:[#allocation2 + $0x68] sm:$0xff]
  %v1265 = vld [vmem:[#allocation2 + $0x70] sm:$0xff]
  %v1266 = vld [vmem:[#allocation2 + $0x78] sm:$0xff]
  %v1267 = vld [vmem:[#allocation2 + $0x80] sm:$0xff]
  %v1268 = vld [vmem:[#allocation2 + $0x88] sm:$0xff]
  %v1269 = vld [vmem:[#allocation2 + $0x90] sm:$0xff]
  %v1270 = vld [vmem:[#allocation2 + $0x98] sm:$0xff]
  %v1271 = vld [vmem:[#allocation2 + $0xa0] sm:$0xff]
  %v1272 = vld [vmem:[#allocation2 + $0xa8] sm:$0xff]
  %v1273 = vld [vmem:[#allocation2 + $0xb0] sm:$0xff]
  %v1274 = vld [vmem:[#allocation2 + $0xb8] sm:$0xff]
  %v1275 = vld [vmem:[#allocation2 + $0xc0] sm:$0xff]
  %v1276 = vld [vmem:[#allocation2 + $0xc8] sm:$0xff]
  %v1277 = vld [vmem:[#allocation2 + $0xd0] sm:$0xff]
  %v1278 = vld [vmem:[#allocation2 + $0xd8] sm:$0xff]
  %v1279 = vld [vmem:[#allocation2 + $0xe0] sm:$0xff]
  %v1280 = vld [vmem:[#allocation2 + $0xe8] sm:$0xff]
  %v1281 = vld [vmem:[#allocation2 + $0xf0] sm:$0xff]
  %v1282 = vld [vmem:[#allocation2 + $0xf8] sm:$0xff]
  %v1283 = vld [vmem:[#allocation2 + $0x100] sm:$0xff]
  %v1284 = vld [vmem:[#allocation2 + $0x108] sm:$0xff]
  %v1285 = vld [vmem:[#allocation2 + $0x110] sm:$0xff]
  %v1286 = vld [vmem:[#allocation2 + $0x118] sm:$0xff]
  %v1287 = vld [vmem:[#allocation2 + $0x120] sm:$0xff]
  %v1288 = vld [vmem:[#allocation2 + $0x128] sm:$0xff]
  %v1289 = vld [vmem:[#allocation2 + $0x130] sm:$0xff]
  %v1290 = vld [vmem:[#allocation2 + $0x138] sm:$0xff]
  %v1291 = vld [vmem:[#allocation2 + $0x140] sm:$0xff]
  %v1292 = vld [vmem:[#allocation2 + $0x148] sm:$0xff]
  %v1293 = vld [vmem:[#allocation2 + $0x150] sm:$0xff]
  %v1294 = vld [vmem:[#allocation2 + $0x158] sm:$0xff]
  %v1295 = vld [vmem:[#allocation2 + $0x160] sm:$0xff]
  %v1296 = vld [vmem:[#allocation2 + $0x168] sm:$0xff]
  %v1297 = vld [vmem:[#allocation2 + $0x170] sm:$0xff]
  %v1298 = vld [vmem:[#allocation2 + $0x178] sm:$0xff]
  %v1299 = vld [vmem:[#allocation2 + $0x180] sm:$0xff]
  %v1300 = vld [vmem:[#allocation2 + $0x188] sm:$0xff]
  %v1301 = vld [vmem:[#allocation2 + $0x190] sm:$0xff]
  %v1302 = vld [vmem:[#allocation2 + $0x198] sm:$0xff]
  %v1303 = vld [vmem:[#allocation2 + $0x1a0] sm:$0xff]
  %v1304 = vld [vmem:[#allocation2 + $0x1a8] sm:$0xff]
  %v1305 = vld [vmem:[#allocation2 + $0x1b0] sm:$0xff]
  %v1306 = vld [vmem:[#allocation2 + $0x1b8] sm:$0xff]
  %v1307 = vld [vmem:[#allocation2 + $0x1c0] sm:$0xff]
  %v1308 = vld [vmem:[#allocation2 + $0x1c8] sm:$0xff]
  %v1309 = vld [vmem:[#allocation2 + $0x1d0] sm:$0xff]
  %v1310 = vld [vmem:[#allocation2 + $0x1d8] sm:$0xff]
  %v1311 = vld [vmem:[#allocation2 + $0x1e0] sm:$0xff]
  %v1312 = vld [vmem:[#allocation2 + $0x1e8] sm:$0xff]
  %v1313 = vld [vmem:[#allocation2 + $0x1f0] sm:$0xff]
  %1314 = vmatprep.subr.mxu0 %v1252
  %1315 = vmatpush1.msra.mxu0 %v1251
  %1316 = vmatprep.subr.mxu0 %v1259
  %1317 = vmatpush1.msra.mxu0 %v1258
  %1318 = vmatprep.subr.mxu0 %v1266
  %1319 = vmatpush1.msra.mxu0 %v1265
  %1320 = vmatprep.subr.mxu0 %v1273
  %1321 = vmatpush1.msra.mxu0 %v1272
  %1322 = vmatprep.subr.mxu0 %v1280
  %1323 = vmatpush1.msra.mxu0 %v1279
  %1324 = vmatprep.subr.mxu0 %v1287
  %1325 = vmatpush1.msra.mxu0 %v1286
  %1326 = vmatprep.subr.mxu0 %v1294
  %1327 = vmatpush1.msra.mxu0 %v1293
  %1328 = vmatprep.subr.mxu0 %v1301
  %1329 = vmatpush1.msra.mxu0 %v1300
  %1330 = vmatprep.subr.mxu0 %v1308
  %1331 = vmatpush1.msra.mxu0 %v1307
  %1332 = vmatprep.subr.mxu0 0.0
  %1333 = vmatpush1.msra.mxu0 0.0
  %1334 = vmatprep.subr.mxu0 0.0
  %1335 = vmatpush1.msra.mxu0 0.0
  %1336 = vmatprep.subr.mxu0 0.0
  %1337 = vmatpush1.msra.mxu0 0.0
  %1338 = vmatprep.subr.mxu0 0.0
  %1339 = vmatpush1.msra.mxu0 0.0
  %1340 = vmatprep.subr.mxu0 0.0
  %1341 = vmatpush1.msra.mxu0 0.0
  %1342 = vmatprep.subr.mxu0 0.0
  %1343 = vmatpush1.msra.mxu0 0.0
  %1344 = vmatprep.subr.mxu0 0.0
  %1345 = vmatpush1.msra.mxu0 0.0
  %1346 = vmatprep.subr.mxu0 0.0
  %1347 = vmatpush1.msra.mxu0 0.0
  %1348 = vmatprep.subr.mxu0 0.0
  %1349 = vmatpush1.msra.mxu0 0.0
  %1350 = vmatprep.subr.mxu0 0.0
  %1351 = vmatpush1.msra.mxu0 0.0
  %1352 = vmatprep.subr.mxu0 0.0
  %1353 = vmatpush1.msra.mxu0 0.0
  %1354 = vmatprep.subr.mxu0 0.0
  %1355 = vmatpush1.msra.mxu0 0.0
  %1356 = vmatprep.subr.mxu0 0.0
  %1357 = vmatpush1.msra.mxu0 0.0
  %1358 = vmatprep.subr.mxu0 0.0
  %1359 = vmatpush1.msra.mxu0 0.0
  %1360 = vmatprep.subr.mxu0 0.0
  %1361 = vmatpush1.msra.mxu0 0.0
  %1362 = vmatprep.subr.mxu0 0.0
  %1363 = vmatpush1.msra.mxu0 0.0
  %1364 = vmatprep.subr.mxu0 0.0
  %1365 = vmatpush1.msra.mxu0 0.0
  %1366 = vmatprep.subr.mxu0 0.0
  %1367 = vmatpush1.msra.mxu0 0.0
  %1368 = vmatprep.subr.mxu0 0.0
  %1369 = vmatpush1.msra.mxu0 0.0
  %1370 = vmatprep.subr.mxu0 0.0
  %1371 = vmatpush1.msra.mxu0 0.0
  %1372 = vmatprep.subr.mxu0 0.0
  %1373 = vmatpush1.msra.mxu0 0.0
  %1374 = vmatprep.subr.mxu0 0.0
  %1375 = vmatpush1.msra.mxu0 0.0
  %1376 = vmatprep.subr.mxu0 0.0
  %1377 = vmatpush1.msra.mxu0 0.0
  %1378 = vmatprep.mubr.f32.mxu0 0.0
  %1379 = vmatmul.mubr.f32.gmra.mrb[0].mxu0 %v511
  %v1380 = vpop.f32.mrb[0].mxu0
  %v1381 = vadd.f32 0.0, %v1380
  %v1382 = vpop.f32.mrb[0].mxu0
  %v1383 = vadd.f32 0.0, %v1382
  %1384 = vdwg.mxu0
  %1385 = vmatprep.subr.mxu0 %v1254
  %1386 = vmatpush1.msra.mxu0 %v1253
  %1387 = vmatprep.subr.mxu0 %v1261
  %1388 = vmatpush1.msra.mxu0 %v1260
  %1389 = vmatprep.subr.mxu0 %v1268
  %1390 = vmatpush1.msra.mxu0 %v1267
  %1391 = vmatprep.subr.mxu0 %v1275
  %1392 = vmatpush1.msra.mxu0 %v1274
  %1393 = vmatprep.subr.mxu0 %v1282
  %1394 = vmatpush1.msra.mxu0 %v1281
  %1395 = vmatprep.subr.mxu0 %v1289
  %1396 = vmatpush1.msra.mxu0 %v1288
  %1397 = vmatprep.subr.mxu0 %v1296
  %1398 = vmatpush1.msra.mxu0 %v1295
  %1399 = vmatprep.subr.mxu0 %v1303
  %1400 = vmatpush1.msra.mxu0 %v1302
  %1401 = vmatprep.subr.mxu0 %v1310
  %1402 = vmatpush1.msra.mxu0 %v1309
  %1403 = vmatprep.subr.mxu0 0.0
  %1404 = vmatpush1.msra.mxu0 0.0
  %1405 = vmatprep.subr.mxu0 0.0
  %1406 = vmatpush1.msra.mxu0 0.0
  %1407 = vmatprep.subr.mxu0 0.0
  %1408 = vmatpush1.msra.mxu0 0.0
  %1409 = vmatprep.subr.mxu0 0.0
  %1410 = vmatpush1.msra.mxu0 0.0
  %1411 = vmatprep.subr.mxu0 0.0
  %1412 = vmatpush1.msra.mxu0 0.0
  %1413 = vmatprep.subr.mxu0 0.0
  %1414 = vmatpush1.msra.mxu0 0.0
  %1415 = vmatprep.subr.mxu0 0.0
  %1416 = vmatpush1.msra.mxu0 0.0
  %1417 = vmatprep.subr.mxu0 0.0
  %1418 = vmatpush1.msra.mxu0 0.0
  %1419 = vmatprep.subr.mxu0 0.0
  %1420 = vmatpush1.msra.mxu0 0.0
  %1421 = vmatprep.subr.mxu0 0.0
  %1422 = vmatpush1.msra.mxu0 0.0
  %1423 = vmatprep.subr.mxu0 0.0
  %1424 = vmatpush1.msra.mxu0 0.0
  %1425 = vmatprep.subr.mxu0 0.0
  %1426 = vmatpush1.msra.mxu0 0.0
  %1427 = vmatprep.subr.mxu0 0.0
  %1428 = vmatpush1.msra.mxu0 0.0
  %1429 = vmatprep.subr.mxu0 0.0
  %1430 = vmatpush1.msra.mxu0 0.0
  %1431 = vmatprep.subr.mxu0 0.0
  %1432 = vmatpush1.msra.mxu0 0.0
  %1433 = vmatprep.subr.mxu0 0.0
  %1434 = vmatpush1.msra.mxu0 0.0
  %1435 = vmatprep.subr.mxu0 0.0
  %1436 = vmatpush1.msra.mxu0 0.0
  %1437 = vmatprep.subr.mxu0 0.0
  %1438 = vmatpush1.msra.mxu0 0.0
  %1439 = vmatprep.subr.mxu0 0.0
  %1440 = vmatpush1.msra.mxu0 0.0
  %1441 = vmatprep.subr.mxu0 0.0
  %1442 = vmatpush1.msra.mxu0 0.0
  %1443 = vmatprep.subr.mxu0 0.0
  %1444 = vmatpush1.msra.mxu0 0.0
  %1445 = vmatprep.subr.mxu0 0.0
  %1446 = vmatpush1.msra.mxu0 0.0
  %1447 = vmatprep.subr.mxu0 0.0
  %1448 = vmatpush1.msra.mxu0 0.0
  %1449 = vmatprep.mubr.f32.mxu0 0.0
  %1450 = vmatmul.mubr.f32.gmra.mrb[0].mxu0 %v511
  %v1451 = vpop.f32.mrb[0].mxu0
  %v1452 = vadd.f32 0.0, %v1451
  %v1453 = vpop.f32.mrb[0].mxu0
  %v1454 = vadd.f32 0.0, %v1453
  %1455 = vdwg.mxu0
  %1456 = vmatprep.subr.mxu0 %v1256
  %1457 = vmatpush1.msra.mxu0 %v1255
  %1458 = vmatprep.subr.mxu0 %v1263
  %1459 = vmatpush1.msra.mxu0 %v1262
  %1460 = vmatprep.subr.mxu0 %v1270
  %1461 = vmatpush1.msra.mxu0 %v1269
  %1462 = vmatprep.subr.mxu0 %v1277
  %1463 = vmatpush1.msra.mxu0 %v1276
  %1464 = vmatprep.subr.mxu0 %v1284
  %1465 = vmatpush1.msra.mxu0 %v1283
  %1466 = vmatprep.subr.mxu0 %v1291
  %1467 = vmatpush1.msra.mxu0 %v1290
  %1468 = vmatprep.subr.mxu0 %v1298
  %1469 = vmatpush1.msra.mxu0 %v1297
  %1470 = vmatprep.subr.mxu0 %v1305
  %1471 = vmatpush1.msra.mxu0 %v1304
  %1472 = vmatprep.subr.mxu0 %v1312
  %1473 = vmatpush1.msra.mxu0 %v1311
  %1474 = vmatprep.subr.mxu0 0.0
  %1475 = vmatpush1.msra.mxu0 0.0
  %1476 = vmatprep.subr.mxu0 0.0
  %1477 = vmatpush1.msra.mxu0 0.0
  %1478 = vmatprep.subr.mxu0 0.0
  %1479 = vmatpush1.msra.mxu0 0.0
  %1480 = vmatprep.subr.mxu0 0.0
  %1481 = vmatpush1.msra.mxu0 0.0
  %1482 = vmatprep.subr.mxu0 0.0
  %1483 = vmatpush1.msra.mxu0 0.0
  %1484 = vmatprep.subr.mxu0 0.0
  %1485 = vmatpush1.msra.mxu0 0.0
  %1486 = vmatprep.subr.mxu0 0.0
  %1487 = vmatpush1.msra.mxu0 0.0
  %1488 = vmatprep.subr.mxu0 0.0
  %1489 = vmatpush1.msra.mxu0 0.0
  %1490 = vmatprep.subr.mxu0 0.0
  %1491 = vmatpush1.msra.mxu0 0.0
  %1492 = vmatprep.subr.mxu0 0.0
  %1493 = vmatpush1.msra.mxu0 0.0
  %1494 = vmatprep.subr.mxu0 0.0
  %1495 = vmatpush1.msra.mxu0 0.0
  %1496 = vmatprep.subr.mxu0 0.0
  %1497 = vmatpush1.msra.mxu0 0.0
  %1498 = vmatprep.subr.mxu0 0.0
  %1499 = vmatpush1.msra.mxu0 0.0
  %1500 = vmatprep.subr.mxu0 0.0
  %1501 = vmatpush1.msra.mxu0 0.0
  %1502 = vmatprep.subr.mxu0 0.0
  %1503 = vmatpush1.msra.mxu0 0.0
  %1504 = vmatprep.subr.mxu0 0.0
  %1505 = vmatpush1.msra.mxu0 0.0
  %1506 = vmatprep.subr.mxu0 0.0
  %1507 = vmatpush1.msra.mxu0 0.0
  %1508 = vmatprep.subr.mxu0 0.0
  %1509 = vmatpush1.msra.mxu0 0.0
  %1510 = vmatprep.subr.mxu0 0.0
  %1511 = vmatpush1.msra.mxu0 0.0
  %1512 = vmatprep.subr.mxu0 0.0
  %1513 = vmatpush1.msra.mxu0 0.0
  %1514 = vmatprep.subr.mxu0 0.0
  %1515 = vmatpush1.msra.mxu0 0.0
  %1516 = vmatprep.subr.mxu0 0.0
  %1517 = vmatpush1.msra.mxu0 0.0
  %1518 = vmatprep.subr.mxu0 0.0
  %1519 = vmatpush1.msra.mxu0 0.0
  %1520 = vmatprep.mubr.f32.mxu0 0.0
  %1521 = vmatmul.mubr.f32.gmra.mrb[0].mxu0 %v511
  %v1522 = vpop.f32.mrb[0].mxu0
  %v1523 = vadd.f32 0.0, %v1522
  %v1524 = vpop.f32.mrb[0].mxu0
  %v1525 = vadd.f32 0.0, %v1524
  %1526 = vdwg.mxu0
  %1527 = vmatprep.subr.mxu0 0.0
  %1528 = vmatpush1.msra.mxu0 %v1257
  %1529 = vmatprep.subr.mxu0 0.0
  %1530 = vmatpush1.msra.mxu0 %v1264
  %1531 = vmatprep.subr.mxu0 0.0
  %1532 = vmatpush1.msra.mxu0 %v1271
  %1533 = vmatprep.subr.mxu0 0.0
  %1534 = vmatpush1.msra.mxu0 %v1278
  %1535 = vmatprep.subr.mxu0 0.0
  %1536 = vmatpush1.msra.mxu0 %v1285
  %1537 = vmatprep.subr.mxu0 0.0
  %1538 = vmatpush1.msra.mxu0 %v1292
  %1539 = vmatprep.subr.mxu0 0.0
  %1540 = vmatpush1.msra.mxu0 %v1299
  %1541 = vmatprep.subr.mxu0 0.0
  %1542 = vmatpush1.msra.mxu0 %v1306
  %1543 = vmatprep.subr.mxu0 0.0
  %1544 = vmatpush1.msra.mxu0 %v1313
  %1545 = vmatprep.subr.mxu0 0.0
  %1546 = vmatpush1.msra.mxu0 0.0
  %1547 = vmatprep.subr.mxu0 0.0
  %1548 = vmatpush1.msra.mxu0 0.0
  %1549 = vmatprep.subr.mxu0 0.0
  %1550 = vmatpush1.msra.mxu0 0.0
  %1551 = vmatprep.subr.mxu0 0.0
  %1552 = vmatpush1.msra.mxu0 0.0
  %1553 = vmatprep.subr.mxu0 0.0
  %1554 = vmatpush1.msra.mxu0 0.0
  %1555 = vmatprep.subr.mxu0 0.0
  %1556 = vmatpush1.msra.mxu0 0.0
  %1557 = vmatprep.subr.mxu0 0.0
  %1558 = vmatpush1.msra.mxu0 0.0
  %1559 = vmatprep.subr.mxu0 0.0
  %1560 = vmatpush1.msra.mxu0 0.0
  %1561 = vmatprep.subr.mxu0 0.0
  %1562 = vmatpush1.msra.mxu0 0.0
  %1563 = vmatprep.subr.mxu0 0.0
  %1564 = vmatpush1.msra.mxu0 0.0
  %1565 = vmatprep.subr.mxu0 0.0
  %1566 = vmatpush1.msra.mxu0 0.0
  %1567 = vmatprep.subr.mxu0 0.0
  %1568 = vmatpush1.msra.mxu0 0.0
  %1569 = vmatprep.subr.mxu0 0.0
  %1570 = vmatpush1.msra.mxu0 0.0
  %1571 = vmatprep.subr.mxu0 0.0
  %1572 = vmatpush1.msra.mxu0 0.0
  %1573 = vmatprep.subr.mxu0 0.0
  %1574 = vmatpush1.msra.mxu0 0.0
  %1575 = vmatprep.subr.mxu0 0.0
  %1576 = vmatpush1.msra.mxu0 0.0
  %1577 = vmatprep.subr.mxu0 0.0
  %1578 = vmatpush1.msra.mxu0 0.0
  %1579 = vmatprep.subr.mxu0 0.0
  %1580 = vmatpush1.msra.mxu0 0.0
  %1581 = vmatprep.subr.mxu0 0.0
  %1582 = vmatpush1.msra.mxu0 0.0
  %1583 = vmatprep.subr.mxu0 0.0
  %1584 = vmatpush1.msra.mxu0 0.0
  %1585 = vmatprep.subr.mxu0 0.0
  %1586 = vmatpush1.msra.mxu0 0.0
  %1587 = vmatprep.subr.mxu0 0.0
  %1588 = vmatpush1.msra.mxu0 0.0
  %1589 = vmatprep.subr.mxu0 0.0
  %1590 = vmatpush1.msra.mxu0 0.0
  %1591 = vmatprep.mubr.f32.mxu0 0.0
  %1592 = vmatmul.mubr.f32.gmra.mrb[0].mxu0 %v511
  %v1593 = vpop.f32.mrb[0].mxu0
  %v1594 = vadd.f32 0.0, %v1593
  %v1595 = vpop.f32.mrb[0].mxu0
  %1596 = vdwg.mxu0
  %s1597 = scalar_lea.vmem %s3, 56
  %1598 = vst [vmem:[%s1597] sm:$0xff] %v1381
  %1599 = vst [vmem:[%s1597 + $0x8] sm:$0xff] %v1383
  %1600 = vst [vmem:[%s1597 + $0x10] sm:$0xff] %v1452
  %1601 = vst [vmem:[%s1597 + $0x18] sm:$0xff] %v1454
  %1602 = vst [vmem:[%s1597 + $0x20] sm:$0xff] %v1523
  %1603 = vst [vmem:[%s1597 + $0x28] sm:$0xff] %v1525
  %1604 = vst.msk [vmem:[%s1597 + $0x30] sm:$0xff] %vm38, %v1594
  %v1605 = vmul.f32 %v1381, %v18
  %v1606 = vmul.f32 %v1383, %v19
  %v1607 = vmul.f32 %v1452, %v20
  %v1608 = vmul.f32 %v1454, %v21
  %v1609 = vmul.f32 %v1523, %v22
  %v1610 = vmul.f32 %v1525, %v23
  %v1611 = vmul.f32 %v1594, %v24
  %v1612 = vadd.f32 %v1605, %v1606
  %v1613 = vadd.f32 %v1612, %v1607
  %v1614 = vadd.f32 %v1613, %v1608
  %v1615 = vadd.f32 %v1614, %v1609
  %v1616 = vadd.f32 %v1615, %v1610
  %v1617 = vsel %vm38, %v1611, 0.0
  %v1618 = vadd.f32 %v1616, %v1617
  %1619 = vadd.xlane.f32.xlu0 %v1618
  %v1620 = vpop.xlane.xlu0 %1619
  %v1621 = vadd.f32 %v819, %v1620
  %v1622 = vmul.f32 %v1605, %v1381
  %v1623 = vmul.f32 %v1606, %v1383
  %v1624 = vmul.f32 %v1607, %v1452
  %v1625 = vmul.f32 %v1608, %v1454
  %v1626 = vmul.f32 %v1609, %v1523
  %v1627 = vmul.f32 %v1610, %v1525
  %v1628 = vmul.f32 %v1611, %v1594
  %v1629 = vadd.f32 %v1622, %v1623
  %v1630 = vadd.f32 %v1629, %v1624
  %v1631 = vadd.f32 %v1630, %v1625
  %v1632 = vadd.f32 %v1631, %v1626
  %v1633 = vadd.f32 %v1632, %v1627
  %v1634 = vsel %vm38, %v1628, 0.0
  %v1635 = vadd.f32 %v1633, %v1634
  %1636 = vadd.xlane.f32.xlu0 %v1635
  %v1637 = vpop.xlane.xlu0 %1636
  %v1638 = vadd.f32 %v836, %v1637
  %vm1639 = vcmask 7168
  %1640 = vst.msk [vmem:[%s4] sm:$0xff] %vm1639, %v1621
  %1641 = vst.msk [vmem:[%s5] sm:$0xff] %vm1639, %v1638
  // Predicated region
  $region14: #{torus_conv_ae_forward.10} parent=0 // pred_check
    _
  $region15: #{torus_conv_ae_forward.10} parent=0 // pred_check_branch
    %1643 = sbr.rel (0) target = $region17
  $region16: #{torus_conv_ae_forward.10} parent=0 // pred_region
    _
  $region17: #{torus_conv_ae_forward.10} parent=0 // pred_fallthru
    _
  // Predicated region
  $region18: #{torus_conv_ae_forward.10} parent=0 // pred_check
    _
  $region19: #{torus_conv_ae_forward.10} parent=0 // pred_check_branch
    %1645 = sbr.rel (0) target = $region21
  $region20: #{torus_conv_ae_forward.10} parent=0 // pred_region
    _
  $region21: #{torus_conv_ae_forward.10} parent=0 // pred_fallthru
    _
  // Predicated region
  $region22: #{torus_conv_ae_forward.10} parent=0 // pred_check
    _
  $region23: #{torus_conv_ae_forward.10} parent=0 // pred_check_branch
    %1647 = sbr.rel (0) target = $region25
  $region24: #{torus_conv_ae_forward.10} parent=0 // pred_region
    _
  $region25: #{torus_conv_ae_forward.10} parent=0 // pred_fallthru
    _
  // Predicated region
  $region26: #{torus_conv_ae_forward.10} parent=0 // pred_check
    _
  $region27: #{torus_conv_ae_forward.10} parent=0 // pred_check_branch
    %1649 = sbr.rel (0) target = $region29
  $region28: #{torus_conv_ae_forward.10} parent=0 // pred_region
    _
  $region29: #{torus_conv_ae_forward.10} parent=0 // pred_fallthru
    _
  // Predicated region
  $region30: #{torus_conv_ae_forward.10} parent=0 // pred_check
    _
  $region31: #{torus_conv_ae_forward.10} parent=0 // pred_check_branch
    %1651 = sbr.rel (0) target = $region33
  $region32: #{torus_conv_ae_forward.10} parent=0 // pred_region
    _
  $region33: #{torus_conv_ae_forward.10} parent=0 // pred_fallthru
    _
  // Predicated region
  $region34: #{torus_conv_ae_forward.10} parent=0 // pred_check
    _
  $region35: #{torus_conv_ae_forward.10} parent=0 // pred_check_branch
    %1653 = sbr.rel (0) target = $region37
  $region36: #{torus_conv_ae_forward.10} parent=0 // pred_region
    _
  $region37: #{torus_conv_ae_forward.10} parent=0 // pred_fallthru
    _

// kernel: torus_conv_ae_forward.11
$region0: #{torus_conv_ae_forward.11}
  #allocation0 [shape = 'u32[]', space=smem, size = 0x4, offset = 0x4, fixed_abs, tag = 'smem constant byte address 0x4 - core index']
  #allocation1 [shape = 'u32[144,128]{1,0:T(1,128)}', space=vmem, size = 0x12000, scoped, tag = 'internal scratch']
  #allocation2 [shape = 'f32[128,210]{1,0:T(8,128)}', space=vmem, size = 0x20000, scoped, tag = 'scratch operand']
  %s0 = inlined_call_operand.vmem [shape: f32[2,32,226], index: 0, kind: input, shape index: {}]
  %s1 = inlined_call_operand.vmem [shape: f32[8,128], index: 1, kind: input, shape index: {}]
  %s2 = inlined_call_operand.vmem [shape: f32[8,1], index: 2, kind: input, shape index: {}]
  %s3 = inlined_call_operand.vmem [shape: f32[2,8,210], index: 3, kind: output, shape index: {}]
  %s4 = sld [smem:[#allocation0]]
  $region22: #{torus_conv_ae_forward.11} parent=0
    _
  %s6 = ssub.s32 1, %s4
  %s7 = scalar_select 0, %s6, %s4
  // Predicated region
  $region2: #{torus_conv_ae_forward.11} parent=0 // pred_check
    _
  $region3: #{torus_conv_ae_forward.11} parent=0 // pred_check_branch
    %9 = sbr.rel (0) target = $region5
  $region4: #{torus_conv_ae_forward.11} parent=0 // pred_region
    _
  $region5: #{torus_conv_ae_forward.11} parent=0 // pred_fallthru
    _
  // Predicated region
  $region6: #{torus_conv_ae_forward.11} parent=0 // pred_check
    _
  $region7: #{torus_conv_ae_forward.11} parent=0 // pred_check_branch
    %11 = sbr.rel (0) target = $region9
  $region8: #{torus_conv_ae_forward.11} parent=0 // pred_region
    _
  $region9: #{torus_conv_ae_forward.11} parent=0 // pred_fallthru
    _
  // Predicated region
  $region10: #{torus_conv_ae_forward.11} parent=0 // pred_check
    _
  $region11: #{torus_conv_ae_forward.11} parent=0 // pred_check_branch
    %13 = sbr.rel (0) target = $region13
  $region12: #{torus_conv_ae_forward.11} parent=0 // pred_region
    _
  $region13: #{torus_conv_ae_forward.11} parent=0 // pred_fallthru
    _
  %v14 = vld [vmem:[%s1] sm:$0xff]
  %v15 = vld [vmem:[%s2] sm:$0xff]
  %v16 = vld [vmem:[%s0] sm:$0xff]
  %v17 = vld [vmem:[%s0 + $0x8] sm:$0xff]
  %v18 = vld [vmem:[%s0 + $0x10] sm:$0xff]
  %v19 = vld [vmem:[%s0 + $0x18] sm:$0xff]
  %v20 = vld [vmem:[%s0 + $0x20] sm:$0xff]
  %v21 = vld [vmem:[%s0 + $0x28] sm:$0xff]
  %v22 = vld [vmem:[%s0 + $0x30] sm:$0xff]
  %v23 = vld [vmem:[%s0 + $0x38] sm:$0xff]
  %24 = vst [vmem:[#allocation2] sm:$0xff] %v16
  %vm25 = vcmask 670720
  %26 = vst.msk [vmem:[#allocation2 + $0x8] sm:$0xff] %vm25, %v17
  %27 = vst [vmem:[#allocation2 + $0x10] sm:$0xff] %v18
  %28 = vst.msk [vmem:[#allocation2 + $0x18] sm:$0xff] %vm25, %v19
  %29 = vst [vmem:[#allocation2 + $0x20] sm:$0xff] %v20
  %30 = vst.msk [vmem:[#allocation2 + $0x28] sm:$0xff] %vm25, %v21
  %31 = vst [vmem:[#allocation2 + $0x30] sm:$0xff] %v22
  %32 = vst.msk [vmem:[#allocation2 + $0x38] sm:$0xff] %vm25, %v23
  %v33 = vld [vmem:[%s0] sm:$0xff]
  %v34 = vld [vmem:[%s0 + $0x8] sm:$0xff]
  %v35 = vld [vmem:[%s0 + $0x10] sm:$0xff]
  %v36 = vld [vmem:[%s0 + $0x18] sm:$0xff]
  %v37 = vld [vmem:[%s0 + $0x20] sm:$0xff]
  %v38 = vld [vmem:[%s0 + $0x28] sm:$0xff]
  %v39 = vld [vmem:[%s0 + $0x30] sm:$0xff]
  %v40 = vld [vmem:[%s0 + $0x38] sm:$0xff]
  %49 = vrot.lane.b32.xlu0 %v33, 127
  %v50 = vpop.permute.xlu0 %49
  %51 = vrot.lane.b32.xlu0 %v34, 127
  %v52 = vpop.permute.xlu0 %51
  %53 = vrot.lane.b32.xlu0 %v35, 127
  %v54 = vpop.permute.xlu0 %53
  %55 = vrot.lane.b32.xlu0 %v36, 127
  %v56 = vpop.permute.xlu0 %55
  %57 = vrot.lane.b32.xlu0 %v37, 127
  %v58 = vpop.permute.xlu0 %57
  %59 = vrot.lane.b32.xlu0 %v38, 127
  %v60 = vpop.permute.xlu0 %59
  %61 = vrot.lane.b32.xlu0 %v39, 127
  %v62 = vpop.permute.xlu0 %61
  %63 = vrot.lane.b32.xlu0 %v40, 127
  %v64 = vpop.permute.xlu0 %63
  %vm65 = vcmask 1039360
  %v66 = vsel %vm65, %v50, %v52
  %v67 = vsel %vm65, %v54, %v56
  %v68 = vsel %vm65, %v58, %v60
  %v69 = vsel %vm65, %v62, %v64
  %78 = vst [vmem:[#allocation2 + $0x40] sm:$0xff] %v66
  %79 = vst.msk [vmem:[#allocation2 + $0x48] sm:$0xff] %vm25, %v52
  %80 = vst [vmem:[#allocation2 + $0x50] sm:$0xff] %v67
  %81 = vst.msk [vmem:[#allocation2 + $0x58] sm:$0xff] %vm25, %v56
  %82 = vst [vmem:[#allocation2 + $0x60] sm:$0xff] %v68
  %83 = vst.msk [vmem:[#allocation2 + $0x68] sm:$0xff] %vm25, %v60
  %84 = vst [vmem:[#allocation2 + $0x70] sm:$0xff] %v69
  %85 = vst.msk [vmem:[#allocation2 + $0x78] sm:$0xff] %vm25, %v64
  %v86 = vld [vmem:[%s0] sm:$0xff]
  %v87 = vld [vmem:[%s0 + $0x8] sm:$0xff]
  %v88 = vld [vmem:[%s0 + $0x10] sm:$0xff]
  %v89 = vld [vmem:[%s0 + $0x18] sm:$0xff]
  %v90 = vld [vmem:[%s0 + $0x20] sm:$0xff]
  %v91 = vld [vmem:[%s0 + $0x28] sm:$0xff]
  %v92 = vld [vmem:[%s0 + $0x30] sm:$0xff]
  %v93 = vld [vmem:[%s0 + $0x38] sm:$0xff]
  %102 = vrot.lane.b32.xlu0 %v86, 113
  %v103 = vpop.permute.xlu0 %102
  %104 = vrot.lane.b32.xlu0 %v87, 113
  %v105 = vpop.permute.xlu0 %104
  %106 = vrot.lane.b32.xlu0 %v88, 113
  %v107 = vpop.permute.xlu0 %106
  %108 = vrot.lane.b32.xlu0 %v89, 113
  %v109 = vpop.permute.xlu0 %108
  %110 = vrot.lane.b32.xlu0 %v90, 113
  %v111 = vpop.permute.xlu0 %110
  %112 = vrot.lane.b32.xlu0 %v91, 113
  %v113 = vpop.permute.xlu0 %112
  %114 = vrot.lane.b32.xlu0 %v92, 113
  %v115 = vpop.permute.xlu0 %114
  %116 = vrot.lane.b32.xlu0 %v93, 113
  %v117 = vpop.permute.xlu0 %116
  %vm118 = vcmask 924672
  %v119 = vsel %vm118, %v103, %v105
  %v120 = vsel %vm118, %v107, %v109
  %v121 = vsel %vm118, %v111, %v113
  %v122 = vsel %vm118, %v115, %v117
  %131 = vst [vmem:[#allocation2 + $0x80] sm:$0xff] %v119
  %132 = vst.msk [vmem:[#allocation2 + $0x88] sm:$0xff] %vm25, %v105
  %133 = vst [vmem:[#allocation2 + $0x90] sm:$0xff] %v120
  %134 = vst.msk [vmem:[#allocation2 + $0x98] sm:$0xff] %vm25, %v109
  %135 = vst [vmem:[#allocation2 + $0xa0] sm:$0xff] %v121
  %136 = vst.msk [vmem:[#allocation2 + $0xa8] sm:$0xff] %vm25, %v113
  %137 = vst [vmem:[#allocation2 + $0xb0] sm:$0xff] %v122
  %138 = vst.msk [vmem:[#allocation2 + $0xb8] sm:$0xff] %vm25, %v117
  %v139 = vld [vmem:[%s0] sm:$0xff]
  %v140 = vld [vmem:[%s0 + $0x8] sm:$0xff]
  %v141 = vld [vmem:[%s0 + $0x10] sm:$0xff]
  %v142 = vld [vmem:[%s0 + $0x18] sm:$0xff]
  %v143 = vld [vmem:[%s0 + $0x20] sm:$0xff]
  %v144 = vld [vmem:[%s0 + $0x28] sm:$0xff]
  %v145 = vld [vmem:[%s0 + $0x30] sm:$0xff]
  %v146 = vld [vmem:[%s0 + $0x38] sm:$0xff]
  %155 = vrot.lane.b32.xlu0 %v139, 112
  %v156 = vpop.permute.xlu0 %155
  %157 = vrot.lane.b32.xlu0 %v140, 112
  %v158 = vpop.permute.xlu0 %157
  %159 = vrot.lane.b32.xlu0 %v141, 112
  %v160 = vpop.permute.xlu0 %159
  %161 = vrot.lane.b32.xlu0 %v142, 112
  %v162 = vpop.permute.xlu0 %161
  %163 = vrot.lane.b32.xlu0 %v143, 112
  %v164 = vpop.permute.xlu0 %163
  %165 = vrot.lane.b32.xlu0 %v144, 112
  %v166 = vpop.permute.xlu0 %165
  %167 = vrot.lane.b32.xlu0 %v145, 112
  %v168 = vpop.permute.xlu0 %167
  %169 = vrot.lane.b32.xlu0 %v146, 112
  %v170 = vpop.permute.xlu0 %169
  %vm171 = vcmask 916480
  %v172 = vsel %vm171, %v156, %v158
  %v173 = vsel %vm171, %v160, %v162
  %v174 = vsel %vm171, %v164, %v166
  %v175 = vsel %vm171, %v168, %v170
  %184 = vst [vmem:[#allocation2 + $0xc0] sm:$0xff] %v172
  %185 = vst.msk [vmem:[#allocation2 + $0xc8] sm:$0xff] %vm25, %v158
  %186 = vst [vmem:[#allocation2 + $0xd0] sm:$0xff] %v173
  %187 = vst.msk [vmem:[#allocation2 + $0xd8] sm:$0xff] %vm25, %v162
  %188 = vst [vmem:[#allocation2 + $0xe0] sm:$0xff] %v174
  %189 = vst.msk [vmem:[#allocation2 + $0xe8] sm:$0xff] %vm25, %v166
  %190 = vst [vmem:[#allocation2 + $0xf0] sm:$0xff] %v175
  %191 = vst.msk [vmem:[#allocation2 + $0xf8] sm:$0xff] %vm25, %v170
  %v192 = vld [vmem:[#allocation2] sm:$0xff]
  %v193 = vld [vmem:[#allocation2 + $0x8] sm:$0xff]
  %v194 = vld [vmem:[#allocation2 + $0x10] sm:$0xff]
  %v195 = vld [vmem:[#allocation2 + $0x18] sm:$0xff]
  %v196 = vld [vmem:[#allocation2 + $0x20] sm:$0xff]
  %v197 = vld [vmem:[#allocation2 + $0x28] sm:$0xff]
  %v198 = vld [vmem:[#allocation2 + $0x30] sm:$0xff]
  %v199 = vld [vmem:[#allocation2 + $0x38] sm:$0xff]
  %v200 = vld [vmem:[#allocation2 + $0x40] sm:$0xff]
  %v201 = vld [vmem:[#allocation2 + $0x48] sm:$0xff]
  %v202 = vld [vmem:[#allocation2 + $0x50] sm:$0xff]
  %v203 = vld [vmem:[#allocation2 + $0x58] sm:$0xff]
  %v204 = vld [vmem:[#allocation2 + $0x60] sm:$0xff]
  %v205 = vld [vmem:[#allocation2 + $0x68] sm:$0xff]
  %v206 = vld [vmem:[#allocation2 + $0x70] sm:$0xff]
  %v207 = vld [vmem:[#allocation2 + $0x78] sm:$0xff]
  %v208 = vld [vmem:[#allocation2 + $0x80] sm:$0xff]
  %v209 = vld [vmem:[#allocation2 + $0x88] sm:$0xff]
  %v210 = vld [vmem:[#allocation2 + $0x90] sm:$0xff]
  %v211 = vld [vmem:[#allocation2 + $0x98] sm:$0xff]
  %v212 = vld [vmem:[#allocation2 + $0xa0] sm:$0xff]
  %v213 = vld [vmem:[#allocation2 + $0xa8] sm:$0xff]
  %v214 = vld [vmem:[#allocation2 + $0xb0] sm:$0xff]
  %v215 = vld [vmem:[#allocation2 + $0xb8] sm:$0xff]
  %v216 = vld [vmem:[#allocation2 + $0xc0] sm:$0xff]
  %v217 = vld [vmem:[#allocation2 + $0xc8] sm:$0xff]
  %v218 = vld [vmem:[#allocation2 + $0xd0] sm:$0xff]
  %v219 = vld [vmem:[#allocation2 + $0xd8] sm:$0xff]
  %v220 = vld [vmem:[#allocation2 + $0xe0] sm:$0xff]
  %v221 = vld [vmem:[#allocation2 + $0xe8] sm:$0xff]
  %v222 = vld [vmem:[#allocation2 + $0xf0] sm:$0xff]
  %v223 = vld [vmem:[#allocation2 + $0xf8] sm:$0xff]
  %225 = vset.pattern.permute.xlu0 0
  %226 = vperm.xlu0 %225, %v15
  %v227 = vpop.permute.xlu0 %226
  %229 = vmatprep.subr.mxu0 %v193
  %230 = vmatpush1.msra.mxu0 %v192
  %231 = vmatprep.subr.mxu0 %v195
  %232 = vmatpush1.msra.mxu0 %v194
  %233 = vmatprep.subr.mxu0 %v197
  %234 = vmatpush1.msra.mxu0 %v196
  %235 = vmatprep.subr.mxu0 %v199
  %236 = vmatpush1.msra.mxu0 %v198
  %237 = vmatprep.subr.mxu0 %v201
  %238 = vmatpush1.msra.mxu0 %v200
  %239 = vmatprep.subr.mxu0 %v203
  %240 = vmatpush1.msra.mxu0 %v202
  %241 = vmatprep.subr.mxu0 %v205
  %242 = vmatpush1.msra.mxu0 %v204
  %243 = vmatprep.subr.mxu0 %v207
  %244 = vmatpush1.msra.mxu0 %v206
  %245 = vmatprep.subr.mxu0 %v209
  %246 = vmatpush1.msra.mxu0 %v208
  %247 = vmatprep.subr.mxu0 %v211
  %248 = vmatpush1.msra.mxu0 %v210
  %249 = vmatprep.subr.mxu0 %v213
  %250 = vmatpush1.msra.mxu0 %v212
  %251 = vmatprep.subr.mxu0 %v215
  %252 = vmatpush1.msra.mxu0 %v214
  %253 = vmatprep.subr.mxu0 %v217
  %254 = vmatpush1.msra.mxu0 %v216
  %255 = vmatprep.subr.mxu0 %v219
  %256 = vmatpush1.msra.mxu0 %v218
  %257 = vmatprep.subr.mxu0 %v221
  %258 = vmatpush1.msra.mxu0 %v220
  %259 = vmatprep.subr.mxu0 %v223
  %260 = vmatpush1.msra.mxu0 %v222
  %261 = vmatprep.subr.mxu0 0.0
  %262 = vmatpush1.msra.mxu0 0.0
  %263 = vmatprep.subr.mxu0 0.0
  %264 = vmatpush1.msra.mxu0 0.0
  %265 = vmatprep.subr.mxu0 0.0
  %266 = vmatpush1.msra.mxu0 0.0
  %267 = vmatprep.subr.mxu0 0.0
  %268 = vmatpush1.msra.mxu0 0.0
  %269 = vmatprep.subr.mxu0 0.0
  %270 = vmatpush1.msra.mxu0 0.0
  %271 = vmatprep.subr.mxu0 0.0
  %272 = vmatpush1.msra.mxu0 0.0
  %273 = vmatprep.subr.mxu0 0.0
  %274 = vmatpush1.msra.mxu0 0.0
  %275 = vmatprep.subr.mxu0 0.0
  %276 = vmatpush1.msra.mxu0 0.0
  %277 = vmatprep.subr.mxu0 0.0
  %278 = vmatpush1.msra.mxu0 0.0
  %279 = vmatprep.subr.mxu0 0.0
  %280 = vmatpush1.msra.mxu0 0.0
  %281 = vmatprep.subr.mxu0 0.0
  %282 = vmatpush1.msra.mxu0 0.0
  %283 = vmatprep.subr.mxu0 0.0
  %284 = vmatpush1.msra.mxu0 0.0
  %285 = vmatprep.subr.mxu0 0.0
  %286 = vmatpush1.msra.mxu0 0.0
  %287 = vmatprep.subr.mxu0 0.0
  %288 = vmatpush1.msra.mxu0 0.0
  %289 = vmatprep.subr.mxu0 0.0
  %290 = vmatpush1.msra.mxu0 0.0
  %291 = vmatprep.subr.mxu0 0.0
  %292 = vmatpush1.msra.mxu0 0.0
  %293 = vmatprep.mubr.f32.mxu0 0.0
  %294 = vmatmul.mubr.f32.gmra.mrb[0].mxu0 %v14
  %v295 = vpop.f32.mrb[0].mxu0
  %v296 = vadd.f32 %v227, %v295
  %v297 = vpop.f32.mrb[0].mxu0
  %v298 = vadd.f32 %v227, %v297
  %299 = vdwg.mxu0
  %v300 = vmax.f32 %v296, 0.0
  %v301 = vmax.f32 %v298, 0.0
  %302 = vst [vmem:[%s3] sm:$0xff] %v300
  %303 = vst.msk [vmem:[%s3 + $0x8] sm:$0xff] %vm25, %v301
  %s304 = scalar_lea.vmem %s0, 64
  %v305 = vld [vmem:[%s304] sm:$0xff]
  %v306 = vld [vmem:[%s304 + $0x8] sm:$0xff]
  %v307 = vld [vmem:[%s304 + $0x10] sm:$0xff]
  %v308 = vld [vmem:[%s304 + $0x18] sm:$0xff]
  %v309 = vld [vmem:[%s304 + $0x20] sm:$0xff]
  %v310 = vld [vmem:[%s304 + $0x28] sm:$0xff]
  %v311 = vld [vmem:[%s304 + $0x30] sm:$0xff]
  %v312 = vld [vmem:[%s304 + $0x38] sm:$0xff]
  %313 = vst [vmem:[#allocation2] sm:$0xff] %v305
  %314 = vst.msk [vmem:[#allocation2 + $0x8] sm:$0xff] %vm25, %v306
  %315 = vst [vmem:[#allocation2 + $0x10] sm:$0xff] %v307
  %316 = vst.msk [vmem:[#allocation2 + $0x18] sm:$0xff] %vm25, %v308
  %317 = vst [vmem:[#allocation2 + $0x20] sm:$0xff] %v309
  %318 = vst.msk [vmem:[#allocation2 + $0x28] sm:$0xff] %vm25, %v310
  %319 = vst [vmem:[#allocation2 + $0x30] sm:$0xff] %v311
  %320 = vst.msk [vmem:[#allocation2 + $0x38] sm:$0xff] %vm25, %v312
  %v321 = vld [vmem:[%s304] sm:$0xff]
  %v322 = vld [vmem:[%s304 + $0x8] sm:$0xff]
  %v323 = vld [vmem:[%s304 + $0x10] sm:$0xff]
  %v324 = vld [vmem:[%s304 + $0x18] sm:$0xff]
  %v325 = vld [vmem:[%s304 + $0x20] sm:$0xff]
  %v326 = vld [vmem:[%s304 + $0x28] sm:$0xff]
  %v327 = vld [vmem:[%s304 + $0x30] sm:$0xff]
  %v328 = vld [vmem:[%s304 + $0x38] sm:$0xff]
  %337 = vrot.lane.b32.xlu0 %v321, 127
  %v338 = vpop.permute.xlu0 %337
  %339 = vrot.lane.b32.xlu0 %v322, 127
  %v340 = vpop.permute.xlu0 %339
  %341 = vrot.lane.b32.xlu0 %v323, 127
  %v342 = vpop.permute.xlu0 %341
  %343 = vrot.lane.b32.xlu0 %v324, 127
  %v344 = vpop.permute.xlu0 %343
  %345 = vrot.lane.b32.xlu0 %v325, 127
  %v346 = vpop.permute.xlu0 %345
  %347 = vrot.lane.b32.xlu0 %v326, 127
  %v348 = vpop.permute.xlu0 %347
  %349 = vrot.lane.b32.xlu0 %v327, 127
  %v350 = vpop.permute.xlu0 %349
  %351 = vrot.lane.b32.xlu0 %v328, 127
  %v352 = vpop.permute.xlu0 %351
  %v353 = vsel %vm65, %v338, %v340
  %v354 = vsel %vm65, %v342, %v344
  %v355 = vsel %vm65, %v346, %v348
  %v356 = vsel %vm65, %v350, %v352
  %365 = vst [vmem:[#allocation2 + $0x40] sm:$0xff] %v353
  %366 = vst.msk [vmem:[#allocation2 + $0x48] sm:$0xff] %vm25, %v340
  %367 = vst [vmem:[#allocation2 + $0x50] sm:$0xff] %v354
  %368 = vst.msk [vmem:[#allocation2 + $0x58] sm:$0xff] %vm25, %v344
  %369 = vst [vmem:[#allocation2 + $0x60] sm:$0xff] %v355
  %370 = vst.msk [vmem:[#allocation2 + $0x68] sm:$0xff] %vm25, %v348
  %371 = vst [vmem:[#allocation2 + $0x70] sm:$0xff] %v356
  %372 = vst.msk [vmem:[#allocation2 + $0x78] sm:$0xff] %vm25, %v352
  %v373 = vld [vmem:[%s304] sm:$0xff]
  %v374 = vld [vmem:[%s304 + $0x8] sm:$0xff]
  %v375 = vld [vmem:[%s304 + $0x10] sm:$0xff]
  %v376 = vld [vmem:[%s304 + $0x18] sm:$0xff]
  %v377 = vld [vmem:[%s304 + $0x20] sm:$0xff]
  %v378 = vld [vmem:[%s304 + $0x28] sm:$0xff]
  %v379 = vld [vmem:[%s304 + $0x30] sm:$0xff]
  %v380 = vld [vmem:[%s304 + $0x38] sm:$0xff]
  %389 = vrot.lane.b32.xlu0 %v373, 113
  %v390 = vpop.permute.xlu0 %389
  %391 = vrot.lane.b32.xlu0 %v374, 113
  %v392 = vpop.permute.xlu0 %391
  %393 = vrot.lane.b32.xlu0 %v375, 113
  %v394 = vpop.permute.xlu0 %393
  %395 = vrot.lane.b32.xlu0 %v376, 113
  %v396 = vpop.permute.xlu0 %395
  %397 = vrot.lane.b32.xlu0 %v377, 113
  %v398 = vpop.permute.xlu0 %397
  %399 = vrot.lane.b32.xlu0 %v378, 113
  %v400 = vpop.permute.xlu0 %399
  %401 = vrot.lane.b32.xlu0 %v379, 113
  %v402 = vpop.permute.xlu0 %401
  %403 = vrot.lane.b32.xlu0 %v380, 113
  %v404 = vpop.permute.xlu0 %403
  %v405 = vsel %vm118, %v390, %v392
  %v406 = vsel %vm118, %v394, %v396
  %v407 = vsel %vm118, %v398, %v400
  %v408 = vsel %vm118, %v402, %v404
  %417 = vst [vmem:[#allocation2 + $0x80] sm:$0xff] %v405
  %418 = vst.msk [vmem:[#allocation2 + $0x88] sm:$0xff] %vm25, %v392
  %419 = vst [vmem:[#allocation2 + $0x90] sm:$0xff] %v406
  %420 = vst.msk [vmem:[#allocation2 + $0x98] sm:$0xff] %vm25, %v396
  %421 = vst [vmem:[#allocation2 + $0xa0] sm:$0xff] %v407
  %422 = vst.msk [vmem:[#allocation2 + $0xa8] sm:$0xff] %vm25, %v400
  %423 = vst [vmem:[#allocation2 + $0xb0] sm:$0xff] %v408
  %424 = vst.msk [vmem:[#allocation2 + $0xb8] sm:$0xff] %vm25, %v404
  %v425 = vld [vmem:[%s304] sm:$0xff]
  %v426 = vld [vmem:[%s304 + $0x8] sm:$0xff]
  %v427 = vld [vmem:[%s304 + $0x10] sm:$0xff]
  %v428 = vld [vmem:[%s304 + $0x18] sm:$0xff]
  %v429 = vld [vmem:[%s304 + $0x20] sm:$0xff]
  %v430 = vld [vmem:[%s304 + $0x28] sm:$0xff]
  %v431 = vld [vmem:[%s304 + $0x30] sm:$0xff]
  %v432 = vld [vmem:[%s304 + $0x38] sm:$0xff]
  %441 = vrot.lane.b32.xlu0 %v425, 112
  %v442 = vpop.permute.xlu0 %441
  %443 = vrot.lane.b32.xlu0 %v426, 112
  %v444 = vpop.permute.xlu0 %443
  %445 = vrot.lane.b32.xlu0 %v427, 112
  %v446 = vpop.permute.xlu0 %445
  %447 = vrot.lane.b32.xlu0 %v428, 112
  %v448 = vpop.permute.xlu0 %447
  %449 = vrot.lane.b32.xlu0 %v429, 112
  %v450 = vpop.permute.xlu0 %449
  %451 = vrot.lane.b32.xlu0 %v430, 112
  %v452 = vpop.permute.xlu0 %451
  %453 = vrot.lane.b32.xlu0 %v431, 112
  %v454 = vpop.permute.xlu0 %453
  %455 = vrot.lane.b32.xlu0 %v432, 112
  %v456 = vpop.permute.xlu0 %455
  %v457 = vsel %vm171, %v442, %v444
  %v458 = vsel %vm171, %v446, %v448
  %v459 = vsel %vm171, %v450, %v452
  %v460 = vsel %vm171, %v454, %v456
  %469 = vst [vmem:[#allocation2 + $0xc0] sm:$0xff] %v457
  %470 = vst.msk [vmem:[#allocation2 + $0xc8] sm:$0xff] %vm25, %v444
  %471 = vst [vmem:[#allocation2 + $0xd0] sm:$0xff] %v458
  %472 = vst.msk [vmem:[#allocation2 + $0xd8] sm:$0xff] %vm25, %v448
  %473 = vst [vmem:[#allocation2 + $0xe0] sm:$0xff] %v459
  %474 = vst.msk [vmem:[#allocation2 + $0xe8] sm:$0xff] %vm25, %v452
  %475 = vst [vmem:[#allocation2 + $0xf0] sm:$0xff] %v460
  %476 = vst.msk [vmem:[#allocation2 + $0xf8] sm:$0xff] %vm25, %v456
  %v477 = vld [vmem:[#allocation2] sm:$0xff]
  %v478 = vld [vmem:[#allocation2 + $0x8] sm:$0xff]
  %v479 = vld [vmem:[#allocation2 + $0x10] sm:$0xff]
  %v480 = vld [vmem:[#allocation2 + $0x18] sm:$0xff]
  %v481 = vld [vmem:[#allocation2 + $0x20] sm:$0xff]
  %v482 = vld [vmem:[#allocation2 + $0x28] sm:$0xff]
  %v483 = vld [vmem:[#allocation2 + $0x30] sm:$0xff]
  %v484 = vld [vmem:[#allocation2 + $0x38] sm:$0xff]
  %v485 = vld [vmem:[#allocation2 + $0x40] sm:$0xff]
  %v486 = vld [vmem:[#allocation2 + $0x48] sm:$0xff]
  %v487 = vld [vmem:[#allocation2 + $0x50] sm:$0xff]
  %v488 = vld [vmem:[#allocation2 + $0x58] sm:$0xff]
  %v489 = vld [vmem:[#allocation2 + $0x60] sm:$0xff]
  %v490 = vld [vmem:[#allocation2 + $0x68] sm:$0xff]
  %v491 = vld [vmem:[#allocation2 + $0x70] sm:$0xff]
  %v492 = vld [vmem:[#allocation2 + $0x78] sm:$0xff]
  %v493 = vld [vmem:[#allocation2 + $0x80] sm:$0xff]
  %v494 = vld [vmem:[#allocation2 + $0x88] sm:$0xff]
  %v495 = vld [vmem:[#allocation2 + $0x90] sm:$0xff]
  %v496 = vld [vmem:[#allocation2 + $0x98] sm:$0xff]
  %v497 = vld [vmem:[#allocation2 + $0xa0] sm:$0xff]
  %v498 = vld [vmem:[#allocation2 + $0xa8] sm:$0xff]
  %v499 = vld [vmem:[#allocation2 + $0xb0] sm:$0xff]
  %v500 = vld [vmem:[#allocation2 + $0xb8] sm:$0xff]
  %v501 = vld [vmem:[#allocation2 + $0xc0] sm:$0xff]
  %v502 = vld [vmem:[#allocation2 + $0xc8] sm:$0xff]
  %v503 = vld [vmem:[#allocation2 + $0xd0] sm:$0xff]
  %v504 = vld [vmem:[#allocation2 + $0xd8] sm:$0xff]
  %v505 = vld [vmem:[#allocation2 + $0xe0] sm:$0xff]
  %v506 = vld [vmem:[#allocation2 + $0xe8] sm:$0xff]
  %v507 = vld [vmem:[#allocation2 + $0xf0] sm:$0xff]
  %v508 = vld [vmem:[#allocation2 + $0xf8] sm:$0xff]
  %509 = vmatprep.subr.mxu0 %v478
  %510 = vmatpush1.msra.mxu0 %v477
  %511 = vmatprep.subr.mxu0 %v480
  %512 = vmatpush1.msra.mxu0 %v479
  %513 = vmatprep.subr.mxu0 %v482
  %514 = vmatpush1.msra.mxu0 %v481
  %515 = vmatprep.subr.mxu0 %v484
  %516 = vmatpush1.msra.mxu0 %v483
  %517 = vmatprep.subr.mxu0 %v486
  %518 = vmatpush1.msra.mxu0 %v485
  %519 = vmatprep.subr.mxu0 %v488
  %520 = vmatpush1.msra.mxu0 %v487
  %521 = vmatprep.subr.mxu0 %v490
  %522 = vmatpush1.msra.mxu0 %v489
  %523 = vmatprep.subr.mxu0 %v492
  %524 = vmatpush1.msra.mxu0 %v491
  %525 = vmatprep.subr.mxu0 %v494
  %526 = vmatpush1.msra.mxu0 %v493
  %527 = vmatprep.subr.mxu0 %v496
  %528 = vmatpush1.msra.mxu0 %v495
  %529 = vmatprep.subr.mxu0 %v498
  %530 = vmatpush1.msra.mxu0 %v497
  %531 = vmatprep.subr.mxu0 %v500
  %532 = vmatpush1.msra.mxu0 %v499
  %533 = vmatprep.subr.mxu0 %v502
  %534 = vmatpush1.msra.mxu0 %v501
  %535 = vmatprep.subr.mxu0 %v504
  %536 = vmatpush1.msra.mxu0 %v503
  %537 = vmatprep.subr.mxu0 %v506
  %538 = vmatpush1.msra.mxu0 %v505
  %539 = vmatprep.subr.mxu0 %v508
  %540 = vmatpush1.msra.mxu0 %v507
  %541 = vmatprep.subr.mxu0 0.0
  %542 = vmatpush1.msra.mxu0 0.0
  %543 = vmatprep.subr.mxu0 0.0
  %544 = vmatpush1.msra.mxu0 0.0
  %545 = vmatprep.subr.mxu0 0.0
  %546 = vmatpush1.msra.mxu0 0.0
  %547 = vmatprep.subr.mxu0 0.0
  %548 = vmatpush1.msra.mxu0 0.0
  %549 = vmatprep.subr.mxu0 0.0
  %550 = vmatpush1.msra.mxu0 0.0
  %551 = vmatprep.subr.mxu0 0.0
  %552 = vmatpush1.msra.mxu0 0.0
  %553 = vmatprep.subr.mxu0 0.0
  %554 = vmatpush1.msra.mxu0 0.0
  %555 = vmatprep.subr.mxu0 0.0
  %556 = vmatpush1.msra.mxu0 0.0
  %557 = vmatprep.subr.mxu0 0.0
  %558 = vmatpush1.msra.mxu0 0.0
  %559 = vmatprep.subr.mxu0 0.0
  %560 = vmatpush1.msra.mxu0 0.0
  %561 = vmatprep.subr.mxu0 0.0
  %562 = vmatpush1.msra.mxu0 0.0
  %563 = vmatprep.subr.mxu0 0.0
  %564 = vmatpush1.msra.mxu0 0.0
  %565 = vmatprep.subr.mxu0 0.0
  %566 = vmatpush1.msra.mxu0 0.0
  %567 = vmatprep.subr.mxu0 0.0
  %568 = vmatpush1.msra.mxu0 0.0
  %569 = vmatprep.subr.mxu0 0.0
  %570 = vmatpush1.msra.mxu0 0.0
  %571 = vmatprep.subr.mxu0 0.0
  %572 = vmatpush1.msra.mxu0 0.0
  %573 = vmatprep.mubr.f32.mxu0 0.0
  %574 = vmatmul.mubr.f32.gmra.mrb[0].mxu0 %v14
  %v575 = vpop.f32.mrb[0].mxu0
  %v576 = vadd.f32 %v227, %v575
  %v577 = vpop.f32.mrb[0].mxu0
  %v578 = vadd.f32 %v227, %v577
  %579 = vdwg.mxu0
  %v580 = vmax.f32 %v576, 0.0
  %v581 = vmax.f32 %v578, 0.0
  %s582 = scalar_lea.vmem %s3, 16
  %583 = vst [vmem:[%s582] sm:$0xff] %v580
  %584 = vst.msk [vmem:[%s582 + $0x8] sm:$0xff] %vm25, %v581
  // Predicated region
  $region14: #{torus_conv_ae_forward.11} parent=0 // pred_check
    _
  $region15: #{torus_conv_ae_forward.11} parent=0 // pred_check_branch
    %586 = sbr.rel (0) target = $region17
  $region16: #{torus_conv_ae_forward.11} parent=0 // pred_region
    _
  $region17: #{torus_conv_ae_forward.11} parent=0 // pred_fallthru
    _
  // Predicated region
  $region18: #{torus_conv_ae_forward.11} parent=0 // pred_check
    _
  $region19: #{torus_conv_ae_forward.11} parent=0 // pred_check_branch
    %588 = sbr.rel (0) target = $region21
  $region20: #{torus_conv_ae_forward.11} parent=0 // pred_region
    _
  $region21: #{torus_conv_ae_forward.11} parent=0 // pred_fallthru
    _

// kernel: torus_conv_ae_forward.12
$region0: #{torus_conv_ae_forward.12}
  #allocation0 [shape = 'u32[]', space=smem, size = 0x4, offset = 0x4, fixed_abs, tag = 'smem constant byte address 0x4 - core index']
  #allocation1 [shape = 'u32[144,128]{1,0:T(1,128)}', space=vmem, size = 0x12000, scoped, tag = 'internal scratch']
  #allocation2 [shape = 'f32[128,56]{1,0:T(8,128)}', space=vmem, size = 0x10000, scoped, tag = 'scratch operand']
  %s0 = inlined_call_operand.vmem [shape: f32[2,32,65], index: 0, kind: input, shape index: {}]
  %s1 = inlined_call_operand.vmem [shape: f32[16,128], index: 1, kind: input, shape index: {}]
  %s2 = inlined_call_operand.vmem [shape: f32[16,56], index: 2, kind: input, shape index: {}]
  %s3 = inlined_call_operand.vmem [shape: f32[2,16,56], index: 3, kind: output, shape index: {0}]
  %s4 = inlined_call_operand.vmem [shape: f32[1,16,1], index: 4, kind: output, shape index: {1}]
  %s5 = inlined_call_operand.vmem [shape: f32[1,16,1], index: 5, kind: output, shape index: {2}]
  %6 = xla_tuple %s3, %s4, %s5
  %s7 = sld [smem:[#allocation0]]
  $region38: #{torus_conv_ae_forward.12} parent=0
    _
  %s9 = ssub.s32 1, %s7
  %s10 = scalar_select 0, %s9, %s7
  // Predicated region
  $region2: #{torus_conv_ae_forward.12} parent=0 // pred_check
    _
  $region3: #{torus_conv_ae_forward.12} parent=0 // pred_check_branch
    %12 = sbr.rel (0) target = $region5
  $region4: #{torus_conv_ae_forward.12} parent=0 // pred_region
    _
  $region5: #{torus_conv_ae_forward.12} parent=0 // pred_fallthru
    _
  // Predicated region
  $region6: #{torus_conv_ae_forward.12} parent=0 // pred_check
    _
  $region7: #{torus_conv_ae_forward.12} parent=0 // pred_check_branch
    %14 = sbr.rel (0) target = $region9
  $region8: #{torus_conv_ae_forward.12} parent=0 // pred_region
    _
  $region9: #{torus_conv_ae_forward.12} parent=0 // pred_fallthru
    _
  // Predicated region
  $region10: #{torus_conv_ae_forward.12} parent=0 // pred_check
    _
  $region11: #{torus_conv_ae_forward.12} parent=0 // pred_check_branch
    %16 = sbr.rel (0) target = $region13
  $region12: #{torus_conv_ae_forward.12} parent=0 // pred_region
    _
  $region13: #{torus_conv_ae_forward.12} parent=0 // pred_fallthru
    _
  %v17 = vld [vmem:[%s1] sm:$0xff]
  %v18 = vld [vmem:[%s1 + $0x8] sm:$0xff]
  %v19 = vld [vmem:[%s2] sm:$0xff]
  %v20 = vld [vmem:[%s2 + $0x8] sm:$0xff]
  %v21 = vld [vmem:[%s0] sm:$0xff]
  %v22 = vld [vmem:[%s0 + $0x8] sm:$0xff]
  %v23 = vld [vmem:[%s0 + $0x10] sm:$0xff]
  %v24 = vld [vmem:[%s0 + $0x18] sm:$0xff]
  %vm25 = vcmask 457728
  %26 = vst.msk [vmem:[#allocation2] sm:$0xff] %vm25, %v21
  %27 = vst.msk [vmem:[#allocation2 + $0x8] sm:$0xff] %vm25, %v22
  %28 = vst.msk [vmem:[#allocation2 + $0x10] sm:$0xff] %vm25, %v23
  %29 = vst.msk [vmem:[#allocation2 + $0x18] sm:$0xff] %vm25, %v24
  %v30 = vld [vmem:[%s0] sm:$0xff]
  %v31 = vld [vmem:[%s0 + $0x8] sm:$0xff]
  %v32 = vld [vmem:[%s0 + $0x10] sm:$0xff]
  %v33 = vld [vmem:[%s0 + $0x18] sm:$0xff]
  %38 = vrot.lane.b32.xlu0 %v30, 127
  %v39 = vpop.permute.xlu0 %38
  %40 = vrot.lane.b32.xlu0 %v31, 127
  %v41 = vpop.permute.xlu0 %40
  %42 = vrot.lane.b32.xlu0 %v32, 127
  %v43 = vpop.permute.xlu0 %42
  %44 = vrot.lane.b32.xlu0 %v33, 127
  %v45 = vpop.permute.xlu0 %44
  %50 = vst.msk [vmem:[#allocation2 + $0x20] sm:$0xff] %vm25, %v39
  %51 = vst.msk [vmem:[#allocation2 + $0x28] sm:$0xff] %vm25, %v41
  %52 = vst.msk [vmem:[#allocation2 + $0x30] sm:$0xff] %vm25, %v43
  %53 = vst.msk [vmem:[#allocation2 + $0x38] sm:$0xff] %vm25, %v45
  %v54 = vld [vmem:[%s0] sm:$0xff]
  %v55 = vld [vmem:[%s0 + $0x8] sm:$0xff]
  %v56 = vld [vmem:[%s0 + $0x10] sm:$0xff]
  %v57 = vld [vmem:[%s0 + $0x18] sm:$0xff]
  %62 = vrot.lane.b32.xlu0 %v54, 120
  %v63 = vpop.permute.xlu0 %62
  %64 = vrot.lane.b32.xlu0 %v55, 120
  %v65 = vpop.permute.xlu0 %64
  %66 = vrot.lane.b32.xlu0 %v56, 120
  %v67 = vpop.permute.xlu0 %66
  %68 = vrot.lane.b32.xlu0 %v57, 120
  %v69 = vpop.permute.xlu0 %68
  %74 = vst.msk [vmem:[#allocation2 + $0x40] sm:$0xff] %vm25, %v63
  %75 = vst.msk [vmem:[#allocation2 + $0x48] sm:$0xff] %vm25, %v65
  %76 = vst.msk [vmem:[#allocation2 + $0x50] sm:$0xff] %vm25, %v67
  %77 = vst.msk [vmem:[#allocation2 + $0x58] sm:$0xff] %vm25, %v69
  %v78 = vld [vmem:[%s0] sm:$0xff]
  %v79 = vld [vmem:[%s0 + $0x8] sm:$0xff]
  %v80 = vld [vmem:[%s0 + $0x10] sm:$0xff]
  %v81 = vld [vmem:[%s0 + $0x18] sm:$0xff]
  %86 = vrot.lane.b32.xlu0 %v78, 119
  %v87 = vpop.permute.xlu0 %86
  %88 = vrot.lane.b32.xlu0 %v79, 119
  %v89 = vpop.permute.xlu0 %88
  %90 = vrot.lane.b32.xlu0 %v80, 119
  %v91 = vpop.permute.xlu0 %90
  %92 = vrot.lane.b32.xlu0 %v81, 119
  %v93 = vpop.permute.xlu0 %92
  %98 = vst.msk [vmem:[#allocation2 + $0x60] sm:$0xff] %vm25, %v87
  %99 = vst.msk [vmem:[#allocation2 + $0x68] sm:$0xff] %vm25, %v89
  %100 = vst.msk [vmem:[#allocation2 + $0x70] sm:$0xff] %vm25, %v91
  %101 = vst.msk [vmem:[#allocation2 + $0x78] sm:$0xff] %vm25, %v93
  %v102 = vld [vmem:[#allocation2] sm:$0xff]
  %v103 = vld [vmem:[#allocation2 + $0x8] sm:$0xff]
  %v104 = vld [vmem:[#allocation2 + $0x10] sm:$0xff]
  %v105 = vld [vmem:[#allocation2 + $0x18] sm:$0xff]
  %v106 = vld [vmem:[#allocation2 + $0x20] sm:$0xff]
  %v107 = vld [vmem:[#allocation2 + $0x28] sm:$0xff]
  %v108 = vld [vmem:[#allocation2 + $0x30] sm:$0xff]
  %v109 = vld [vmem:[#allocation2 + $0x38] sm:$0xff]
  %v110 = vld [vmem:[#allocation2 + $0x40] sm:$0xff]
  %v111 = vld [vmem:[#allocation2 + $0x48] sm:$0xff]
  %v112 = vld [vmem:[#allocation2 + $0x50] sm:$0xff]
  %v113 = vld [vmem:[#allocation2 + $0x58] sm:$0xff]
  %v114 = vld [vmem:[#allocation2 + $0x60] sm:$0xff]
  %v115 = vld [vmem:[#allocation2 + $0x68] sm:$0xff]
  %v116 = vld [vmem:[#allocation2 + $0x70] sm:$0xff]
  %v117 = vld [vmem:[#allocation2 + $0x78] sm:$0xff]
  %118 = vmatprep.subr.mxu0 0.0
  %119 = vmatpush1.msra.mxu0 %v102
  %120 = vmatprep.subr.mxu0 0.0
  %121 = vmatpush1.msra.mxu0 %v103
  %122 = vmatprep.subr.mxu0 0.0
  %123 = vmatpush1.msra.mxu0 %v104
  %124 = vmatprep.subr.mxu0 0.0
  %125 = vmatpush1.msra.mxu0 %v105
  %126 = vmatprep.subr.mxu0 0.0
  %127 = vmatpush1.msra.mxu0 %v106
  %128 = vmatprep.subr.mxu0 0.0
  %129 = vmatpush1.msra.mxu0 %v107
  %130 = vmatprep.subr.mxu0 0.0
  %131 = vmatpush1.msra.mxu0 %v108
  %132 = vmatprep.subr.mxu0 0.0
  %133 = vmatpush1.msra.mxu0 %v109
  %134 = vmatprep.subr.mxu0 0.0
  %135 = vmatpush1.msra.mxu0 %v110
  %136 = vmatprep.subr.mxu0 0.0
  %137 = vmatpush1.msra.mxu0 %v111
  %138 = vmatprep.subr.mxu0 0.0
  %139 = vmatpush1.msra.mxu0 %v112
  %140 = vmatprep.subr.mxu0 0.0
  %141 = vmatpush1.msra.mxu0 %v113
  %142 = vmatprep.subr.mxu0 0.0
  %143 = vmatpush1.msra.mxu0 %v114
  %144 = vmatprep.subr.mxu0 0.0
  %145 = vmatpush1.msra.mxu0 %v115
  %146 = vmatprep.subr.mxu0 0.0
  %147 = vmatpush1.msra.mxu0 %v116
  %148 = vmatprep.subr.mxu0 0.0
  %149 = vmatpush1.msra.mxu0 %v117
  %150 = vmatprep.subr.mxu0 0.0
  %151 = vmatpush1.msra.mxu0 0.0
  %152 = vmatprep.subr.mxu0 0.0
  %153 = vmatpush1.msra.mxu0 0.0
  %154 = vmatprep.subr.mxu0 0.0
  %155 = vmatpush1.msra.mxu0 0.0
  %156 = vmatprep.subr.mxu0 0.0
  %157 = vmatpush1.msra.mxu0 0.0
  %158 = vmatprep.subr.mxu0 0.0
  %159 = vmatpush1.msra.mxu0 0.0
  %160 = vmatprep.subr.mxu0 0.0
  %161 = vmatpush1.msra.mxu0 0.0
  %162 = vmatprep.subr.mxu0 0.0
  %163 = vmatpush1.msra.mxu0 0.0
  %164 = vmatprep.subr.mxu0 0.0
  %165 = vmatpush1.msra.mxu0 0.0
  %166 = vmatprep.subr.mxu0 0.0
  %167 = vmatpush1.msra.mxu0 0.0
  %168 = vmatprep.subr.mxu0 0.0
  %169 = vmatpush1.msra.mxu0 0.0
  %170 = vmatprep.subr.mxu0 0.0
  %171 = vmatpush1.msra.mxu0 0.0
  %172 = vmatprep.subr.mxu0 0.0
  %173 = vmatpush1.msra.mxu0 0.0
  %174 = vmatprep.subr.mxu0 0.0
  %175 = vmatpush1.msra.mxu0 0.0
  %176 = vmatprep.subr.mxu0 0.0
  %177 = vmatpush1.msra.mxu0 0.0
  %178 = vmatprep.subr.mxu0 0.0
  %179 = vmatpush1.msra.mxu0 0.0
  %180 = vmatprep.subr.mxu0 0.0
  %181 = vmatpush1.msra.mxu0 0.0
  %182 = vmatprep.mubr.f32.mxu0 0.0
  %183 = vmatmul.mubr.f32.gmra.mrb[0].mxu0 %v17
  %v184 = vpop.f32.mrb[0].mxu0
  %v185 = vadd.f32 0.0, %v184
  %v186 = vpop.f32.mrb[0].mxu0
  %187 = vmatprep.mubr.f32.mxu0 0.0
  %188 = vmatmul.mubr.f32.gmra.mrb[0].mxu0 %v18
  %v189 = vpop.f32.mrb[0].mxu0
  %v190 = vadd.f32 0.0, %v189
  %v191 = vpop.f32.mrb[0].mxu0
  %192 = vdwg.mxu0
  %193 = vst.msk [vmem:[%s3] sm:$0xff] %vm25, %v185
  %194 = vst.msk [vmem:[%s3 + $0x8] sm:$0xff] %vm25, %v190
  %v195 = vmul.f32 %v185, %v19
  %v196 = vmul.f32 %v190, %v20
  %v197 = vsel %vm25, %v195, 0.0
  %198 = vadd.xlane.f32.xlu0 %v197
  %v199 = vpop.xlane.xlu0 %198
  %v200 = vsel %vm25, %v196, 0.0
  %201 = vadd.xlane.f32.xlu0 %v200
  %v202 = vpop.xlane.xlu0 %201
  %v203 = vadd.f32 %v199, 0.0
  %v204 = vadd.f32 %v202, 0.0
  %v205 = vmul.f32 %v195, %v185
  %v206 = vmul.f32 %v196, %v190
  %v207 = vsel %vm25, %v205, 0.0
  %208 = vadd.xlane.f32.xlu0 %v207
  %v209 = vpop.xlane.xlu0 %208
  %v210 = vsel %vm25, %v206, 0.0
  %211 = vadd.xlane.f32.xlu0 %v210
  %v212 = vpop.xlane.xlu0 %211
  %v213 = vadd.f32 %v209, 0.0
  %v214 = vadd.f32 %v212, 0.0
  %s215 = scalar_lea.vmem %s0, 32
  %v216 = vld [vmem:[%s215] sm:$0xff]
  %v217 = vld [vmem:[%s215 + $0x8] sm:$0xff]
  %v218 = vld [vmem:[%s215 + $0x10] sm:$0xff]
  %v219 = vld [vmem:[%s215 + $0x18] sm:$0xff]
  %220 = vst.msk [vmem:[#allocation2] sm:$0xff] %vm25, %v216
  %221 = vst.msk [vmem:[#allocation2 + $0x8] sm:$0xff] %vm25, %v217
  %222 = vst.msk [vmem:[#allocation2 + $0x10] sm:$0xff] %vm25, %v218
  %223 = vst.msk [vmem:[#allocation2 + $0x18] sm:$0xff] %vm25, %v219
  %v224 = vld [vmem:[%s215] sm:$0xff]
  %v225 = vld [vmem:[%s215 + $0x8] sm:$0xff]
  %v226 = vld [vmem:[%s215 + $0x10] sm:$0xff]
  %v227 = vld [vmem:[%s215 + $0x18] sm:$0xff]
  %232 = vrot.lane.b32.xlu0 %v224, 127
  %v233 = vpop.permute.xlu0 %232
  %234 = vrot.lane.b32.xlu0 %v225, 127
  %v235 = vpop.permute.xlu0 %234
  %236 = vrot.lane.b32.xlu0 %v226, 127
  %v237 = vpop.permute.xlu0 %236
  %238 = vrot.lane.b32.xlu0 %v227, 127
  %v239 = vpop.permute.xlu0 %238
  %244 = vst.msk [vmem:[#allocation2 + $0x20] sm:$0xff] %vm25, %v233
  %245 = vst.msk [vmem:[#allocation2 + $0x28] sm:$0xff] %vm25, %v235
  %246 = vst.msk [vmem:[#allocation2 + $0x30] sm:$0xff] %vm25, %v237
  %247 = vst.msk [vmem:[#allocation2 + $0x38] sm:$0xff] %vm25, %v239
  %v248 = vld [vmem:[%s215] sm:$0xff]
  %v249 = vld [vmem:[%s215 + $0x8] sm:$0xff]
  %v250 = vld [vmem:[%s215 + $0x10] sm:$0xff]
  %v251 = vld [vmem:[%s215 + $0x18] sm:$0xff]
  %256 = vrot.lane.b32.xlu0 %v248, 120
  %v257 = vpop.permute.xlu0 %256
  %258 = vrot.lane.b32.xlu0 %v249, 120
  %v259 = vpop.permute.xlu0 %258
  %260 = vrot.lane.b32.xlu0 %v250, 120
  %v261 = vpop.permute.xlu0 %260
  %262 = vrot.lane.b32.xlu0 %v251, 120
  %v263 = vpop.permute.xlu0 %262
  %268 = vst.msk [vmem:[#allocation2 + $0x40] sm:$0xff] %vm25, %v257
  %269 = vst.msk [vmem:[#allocation2 + $0x48] sm:$0xff] %vm25, %v259
  %270 = vst.msk [vmem:[#allocation2 + $0x50] sm:$0xff] %vm25, %v261
  %271 = vst.msk [vmem:[#allocation2 + $0x58] sm:$0xff] %vm25, %v263
  %v272 = vld [vmem:[%s215] sm:$0xff]
  %v273 = vld [vmem:[%s215 + $0x8] sm:$0xff]
  %v274 = vld [vmem:[%s215 + $0x10] sm:$0xff]
  %v275 = vld [vmem:[%s215 + $0x18] sm:$0xff]
  %280 = vrot.lane.b32.xlu0 %v272, 119
  %v281 = vpop.permute.xlu0 %280
  %282 = vrot.lane.b32.xlu0 %v273, 119
  %v283 = vpop.permute.xlu0 %282
  %284 = vrot.lane.b32.xlu0 %v274, 119
  %v285 = vpop.permute.xlu0 %284
  %286 = vrot.lane.b32.xlu0 %v275, 119
  %v287 = vpop.permute.xlu0 %286
  %292 = vst.msk [vmem:[#allocation2 + $0x60] sm:$0xff] %vm25, %v281
  %293 = vst.msk [vmem:[#allocation2 + $0x68] sm:$0xff] %vm25, %v283
  %294 = vst.msk [vmem:[#allocation2 + $0x70] sm:$0xff] %vm25, %v285
  %295 = vst.msk [vmem:[#allocation2 + $0x78] sm:$0xff] %vm25, %v287
  %v296 = vld [vmem:[#allocation2] sm:$0xff]
  %v297 = vld [vmem:[#allocation2 + $0x8] sm:$0xff]
  %v298 = vld [vmem:[#allocation2 + $0x10] sm:$0xff]
  %v299 = vld [vmem:[#allocation2 + $0x18] sm:$0xff]
  %v300 = vld [vmem:[#allocation2 + $0x20] sm:$0xff]
  %v301 = vld [vmem:[#allocation2 + $0x28] sm:$0xff]
  %v302 = vld [vmem:[#allocation2 + $0x30] sm:$0xff]
  %v303 = vld [vmem:[#allocation2 + $0x38] sm:$0xff]
  %v304 = vld [vmem:[#allocation2 + $0x40] sm:$0xff]
  %v305 = vld [vmem:[#allocation2 + $0x48] sm:$0xff]
  %v306 = vld [vmem:[#allocation2 + $0x50] sm:$0xff]
  %v307 = vld [vmem:[#allocation2 + $0x58] sm:$0xff]
  %v308 = vld [vmem:[#allocation2 + $0x60] sm:$0xff]
  %v309 = vld [vmem:[#allocation2 + $0x68] sm:$0xff]
  %v310 = vld [vmem:[#allocation2 + $0x70] sm:$0xff]
  %v311 = vld [vmem:[#allocation2 + $0x78] sm:$0xff]
  %312 = vmatprep.subr.mxu0 0.0
  %313 = vmatpush1.msra.mxu0 %v296
  %314 = vmatprep.subr.mxu0 0.0
  %315 = vmatpush1.msra.mxu0 %v297
  %316 = vmatprep.subr.mxu0 0.0
  %317 = vmatpush1.msra.mxu0 %v298
  %318 = vmatprep.subr.mxu0 0.0
  %319 = vmatpush1.msra.mxu0 %v299
  %320 = vmatprep.subr.mxu0 0.0
  %321 = vmatpush1.msra.mxu0 %v300
  %322 = vmatprep.subr.mxu0 0.0
  %323 = vmatpush1.msra.mxu0 %v301
  %324 = vmatprep.subr.mxu0 0.0
  %325 = vmatpush1.msra.mxu0 %v302
  %326 = vmatprep.subr.mxu0 0.0
  %327 = vmatpush1.msra.mxu0 %v303
  %328 = vmatprep.subr.mxu0 0.0
  %329 = vmatpush1.msra.mxu0 %v304
  %330 = vmatprep.subr.mxu0 0.0
  %331 = vmatpush1.msra.mxu0 %v305
  %332 = vmatprep.subr.mxu0 0.0
  %333 = vmatpush1.msra.mxu0 %v306
  %334 = vmatprep.subr.mxu0 0.0
  %335 = vmatpush1.msra.mxu0 %v307
  %336 = vmatprep.subr.mxu0 0.0
  %337 = vmatpush1.msra.mxu0 %v308
  %338 = vmatprep.subr.mxu0 0.0
  %339 = vmatpush1.msra.mxu0 %v309
  %340 = vmatprep.subr.mxu0 0.0
  %341 = vmatpush1.msra.mxu0 %v310
  %342 = vmatprep.subr.mxu0 0.0
  %343 = vmatpush1.msra.mxu0 %v311
  %344 = vmatprep.subr.mxu0 0.0
  %345 = vmatpush1.msra.mxu0 0.0
  %346 = vmatprep.subr.mxu0 0.0
  %347 = vmatpush1.msra.mxu0 0.0
  %348 = vmatprep.subr.mxu0 0.0
  %349 = vmatpush1.msra.mxu0 0.0
  %350 = vmatprep.subr.mxu0 0.0
  %351 = vmatpush1.msra.mxu0 0.0
  %352 = vmatprep.subr.mxu0 0.0
  %353 = vmatpush1.msra.mxu0 0.0
  %354 = vmatprep.subr.mxu0 0.0
  %355 = vmatpush1.msra.mxu0 0.0
  %356 = vmatprep.subr.mxu0 0.0
  %357 = vmatpush1.msra.mxu0 0.0
  %358 = vmatprep.subr.mxu0 0.0
  %359 = vmatpush1.msra.mxu0 0.0
  %360 = vmatprep.subr.mxu0 0.0
  %361 = vmatpush1.msra.mxu0 0.0
  %362 = vmatprep.subr.mxu0 0.0
  %363 = vmatpush1.msra.mxu0 0.0
  %364 = vmatprep.subr.mxu0 0.0
  %365 = vmatpush1.msra.mxu0 0.0
  %366 = vmatprep.subr.mxu0 0.0
  %367 = vmatpush1.msra.mxu0 0.0
  %368 = vmatprep.subr.mxu0 0.0
  %369 = vmatpush1.msra.mxu0 0.0
  %370 = vmatprep.subr.mxu0 0.0
  %371 = vmatpush1.msra.mxu0 0.0
  %372 = vmatprep.subr.mxu0 0.0
  %373 = vmatpush1.msra.mxu0 0.0
  %374 = vmatprep.subr.mxu0 0.0
  %375 = vmatpush1.msra.mxu0 0.0
  %376 = vmatprep.mubr.f32.mxu0 0.0
  %377 = vmatmul.mubr.f32.gmra.mrb[0].mxu0 %v17
  %v378 = vpop.f32.mrb[0].mxu0
  %v379 = vadd.f32 0.0, %v378
  %v380 = vpop.f32.mrb[0].mxu0
  %381 = vmatprep.mubr.f32.mxu0 0.0
  %382 = vmatmul.mubr.f32.gmra.mrb[0].mxu0 %v18
  %v383 = vpop.f32.mrb[0].mxu0
  %v384 = vadd.f32 0.0, %v383
  %v385 = vpop.f32.mrb[0].mxu0
  %386 = vdwg.mxu0
  %s387 = scalar_lea.vmem %s3, 16
  %388 = vst.msk [vmem:[%s387] sm:$0xff] %vm25, %v379
  %389 = vst.msk [vmem:[%s387 + $0x8] sm:$0xff] %vm25, %v384
  %v390 = vmul.f32 %v379, %v19
  %v391 = vmul.f32 %v384, %v20
  %v392 = vsel %vm25, %v390, 0.0
  %393 = vadd.xlane.f32.xlu0 %v392
  %v394 = vpop.xlane.xlu0 %393
  %v395 = vsel %vm25, %v391, 0.0
  %396 = vadd.xlane.f32.xlu0 %v395
  %v397 = vpop.xlane.xlu0 %396
  %v398 = vadd.f32 %v203, %v394
  %v399 = vadd.f32 %v204, %v397
  %v400 = vmul.f32 %v390, %v379
  %v401 = vmul.f32 %v391, %v384
  %v402 = vsel %vm25, %v400, 0.0
  %403 = vadd.xlane.f32.xlu0 %v402
  %v404 = vpop.xlane.xlu0 %403
  %v405 = vsel %vm25, %v401, 0.0
  %406 = vadd.xlane.f32.xlu0 %v405
  %v407 = vpop.xlane.xlu0 %406
  %v408 = vadd.f32 %v213, %v404
  %v409 = vadd.f32 %v214, %v407
  %vm410 = vcmask 7168
  %411 = vst.msk [vmem:[%s4] sm:$0xff] %vm410, %v398
  %412 = vst.msk [vmem:[%s4 + $0x8] sm:$0xff] %vm410, %v399
  %413 = vst.msk [vmem:[%s5] sm:$0xff] %vm410, %v408
  %414 = vst.msk [vmem:[%s5 + $0x8] sm:$0xff] %vm410, %v409
  // Predicated region
  $region14: #{torus_conv_ae_forward.12} parent=0 // pred_check
    _
  $region15: #{torus_conv_ae_forward.12} parent=0 // pred_check_branch
    %416 = sbr.rel (0) target = $region17
  $region16: #{torus_conv_ae_forward.12} parent=0 // pred_region
    _
  $region17: #{torus_conv_ae_forward.12} parent=0 // pred_fallthru
    _
  // Predicated region
  $region18: #{torus_conv_ae_forward.12} parent=0 // pred_check
    _
  $region19: #{torus_conv_ae_forward.12} parent=0 // pred_check_branch
    %418 = sbr.rel (0) target = $region21
  $region20: #{torus_conv_ae_forward.12} parent=0 // pred_region
    _
  $region21: #{torus_conv_ae_forward.12} parent=0 // pred_fallthru
    _
  // Predicated region
  $region22: #{torus_conv_ae_forward.12} parent=0 // pred_check
    _
  $region23: #{torus_conv_ae_forward.12} parent=0 // pred_check_branch
    %420 = sbr.rel (0) target = $region25
  $region24: #{torus_conv_ae_forward.12} parent=0 // pred_region
    _
  $region25: #{torus_conv_ae_forward.12} parent=0 // pred_fallthru
    _
  // Predicated region
  $region26: #{torus_conv_ae_forward.12} parent=0 // pred_check
    _
  $region27: #{torus_conv_ae_forward.12} parent=0 // pred_check_branch
    %422 = sbr.rel (0) target = $region29
  $region28: #{torus_conv_ae_forward.12} parent=0 // pred_region
    _
  $region29: #{torus_conv_ae_forward.12} parent=0 // pred_fallthru
    _
  // Predicated region
  $region30: #{torus_conv_ae_forward.12} parent=0 // pred_check
    _
  $region31: #{torus_conv_ae_forward.12} parent=0 // pred_check_branch
    %424 = sbr.rel (0) target = $region33
  $region32: #{torus_conv_ae_forward.12} parent=0 // pred_region
    _
  $region33: #{torus_conv_ae_forward.12} parent=0 // pred_fallthru
    _
  // Predicated region
  $region34: #{torus_conv_ae_forward.12} parent=0 // pred_check
    _
  $region35: #{torus_conv_ae_forward.12} parent=0 // pred_check_branch
    %426 = sbr.rel (0) target = $region37
  $region36: #{torus_conv_ae_forward.12} parent=0 // pred_region
    _
  $region37: #{torus_conv_ae_forward.12} parent=0 // pred_fallthru
    _

// kernel: torus_conv_ae_forward.13
$region0: #{torus_conv_ae_forward.13}
  #allocation0 [shape = 'u32[]', space=smem, size = 0x4, offset = 0x4, fixed_abs, tag = 'smem constant byte address 0x4 - core index']
  #allocation1 [shape = 'u32[144,128]{1,0:T(1,128)}', space=vmem, size = 0x12000, scoped, tag = 'internal scratch']
  #allocation2 [shape = 'f32[256,12]{1,0:T(8,128)}', space=vmem, size = 0x20000, scoped, tag = 'scratch operand']
  %s0 = inlined_call_operand.vmem [shape: f32[2,64,17], index: 0, kind: input, shape index: {}]
  %s1 = inlined_call_operand.vmem [shape: f32[32,256], index: 1, kind: input, shape index: {}]
  %s2 = inlined_call_operand.vmem [shape: f32[32,1], index: 2, kind: input, shape index: {}]
  %s3 = inlined_call_operand.vmem [shape: f32[2,32,12], index: 3, kind: output, shape index: {}]
  %s4 = sld [smem:[#allocation0]]
  $region22: #{torus_conv_ae_forward.13} parent=0
    _
  %s6 = ssub.s32 1, %s4
  %s7 = scalar_select 0, %s6, %s4
  // Predicated region
  $region2: #{torus_conv_ae_forward.13} parent=0 // pred_check
    _
  $region3: #{torus_conv_ae_forward.13} parent=0 // pred_check_branch
    %9 = sbr.rel (0) target = $region5
  $region4: #{torus_conv_ae_forward.13} parent=0 // pred_region
    _
  $region5: #{torus_conv_ae_forward.13} parent=0 // pred_fallthru
    _
  // Predicated region
  $region6: #{torus_conv_ae_forward.13} parent=0 // pred_check
    _
  $region7: #{torus_conv_ae_forward.13} parent=0 // pred_check_branch
    %11 = sbr.rel (0) target = $region9
  $region8: #{torus_conv_ae_forward.13} parent=0 // pred_region
    _
  $region9: #{torus_conv_ae_forward.13} parent=0 // pred_fallthru
    _
  // Predicated region
  $region10: #{torus_conv_ae_forward.13} parent=0 // pred_check
    _
  $region11: #{torus_conv_ae_forward.13} parent=0 // pred_check_branch
    %13 = sbr.rel (0) target = $region13
  $region12: #{torus_conv_ae_forward.13} parent=0 // pred_region
    _
  $region13: #{torus_conv_ae_forward.13} parent=0 // pred_fallthru
    _
  %v14 = vld [vmem:[%s1] sm:$0xff]
  %v15 = vld [vmem:[%s1 + $0x8] sm:$0xff]
  %v16 = vld [vmem:[%s1 + $0x10] sm:$0xff]
  %v17 = vld [vmem:[%s1 + $0x18] sm:$0xff]
  %v18 = vld [vmem:[%s1 + $0x20] sm:$0xff]
  %v19 = vld [vmem:[%s1 + $0x28] sm:$0xff]
  %v20 = vld [vmem:[%s1 + $0x30] sm:$0xff]
  %v21 = vld [vmem:[%s1 + $0x38] sm:$0xff]
  %v22 = vld [vmem:[%s2] sm:$0xff]
  %v23 = vld [vmem:[%s2 + $0x8] sm:$0xff]
  %v24 = vld [vmem:[%s2 + $0x10] sm:$0xff]
  %v25 = vld [vmem:[%s2 + $0x18] sm:$0xff]
  %v26 = vld [vmem:[%s0] sm:$0xff]
  %v27 = vld [vmem:[%s0 + $0x8] sm:$0xff]
  %v28 = vld [vmem:[%s0 + $0x10] sm:$0xff]
  %v29 = vld [vmem:[%s0 + $0x18] sm:$0xff]
  %v30 = vld [vmem:[%s0 + $0x20] sm:$0xff]
  %v31 = vld [vmem:[%s0 + $0x28] sm:$0xff]
  %v32 = vld [vmem:[%s0 + $0x30] sm:$0xff]
  %v33 = vld [vmem:[%s0 + $0x38] sm:$0xff]
  %vm34 = vcmask 97280
  %35 = vst.msk [vmem:[#allocation2] sm:$0xff] %vm34, %v26
  %36 = vst.msk [vmem:[#allocation2 + $0x8] sm:$0xff] %vm34, %v27
  %37 = vst.msk [vmem:[#allocation2 + $0x10] sm:$0xff] %vm34, %v28
  %38 = vst.msk [vmem:[#allocation2 + $0x18] sm:$0xff] %vm34, %v29
  %39 = vst.msk [vmem:[#allocation2 + $0x20] sm:$0xff] %vm34, %v30
  %40 = vst.msk [vmem:[#allocation2 + $0x28] sm:$0xff] %vm34, %v31
  %41 = vst.msk [vmem:[#allocation2 + $0x30] sm:$0xff] %vm34, %v32
  %42 = vst.msk [vmem:[#allocation2 + $0x38] sm:$0xff] %vm34, %v33
  %v43 = vld [vmem:[%s0] sm:$0xff]
  %v44 = vld [vmem:[%s0 + $0x8] sm:$0xff]
  %v45 = vld [vmem:[%s0 + $0x10] sm:$0xff]
  %v46 = vld [vmem:[%s0 + $0x18] sm:$0xff]
  %v47 = vld [vmem:[%s0 + $0x20] sm:$0xff]
  %v48 = vld [vmem:[%s0 + $0x28] sm:$0xff]
  %v49 = vld [vmem:[%s0 + $0x30] sm:$0xff]
  %v50 = vld [vmem:[%s0 + $0x38] sm:$0xff]
  %59 = vrot.lane.b32.xlu0 %v43, 127
  %v60 = vpop.permute.xlu0 %59
  %61 = vrot.lane.b32.xlu0 %v44, 127
  %v62 = vpop.permute.xlu0 %61
  %63 = vrot.lane.b32.xlu0 %v45, 127
  %v64 = vpop.permute.xlu0 %63
  %65 = vrot.lane.b32.xlu0 %v46, 127
  %v66 = vpop.permute.xlu0 %65
  %67 = vrot.lane.b32.xlu0 %v47, 127
  %v68 = vpop.permute.xlu0 %67
  %69 = vrot.lane.b32.xlu0 %v48, 127
  %v70 = vpop.permute.xlu0 %69
  %71 = vrot.lane.b32.xlu0 %v49, 127
  %v72 = vpop.permute.xlu0 %71
  %73 = vrot.lane.b32.xlu0 %v50, 127
  %v74 = vpop.permute.xlu0 %73
  %83 = vst.msk [vmem:[#allocation2 + $0x40] sm:$0xff] %vm34, %v60
  %84 = vst.msk [vmem:[#allocation2 + $0x48] sm:$0xff] %vm34, %v62
  %85 = vst.msk [vmem:[#allocation2 + $0x50] sm:$0xff] %vm34, %v64
  %86 = vst.msk [vmem:[#allocation2 + $0x58] sm:$0xff] %vm34, %v66
  %87 = vst.msk [vmem:[#allocation2 + $0x60] sm:$0xff] %vm34, %v68
  %88 = vst.msk [vmem:[#allocation2 + $0x68] sm:$0xff] %vm34, %v70
  %89 = vst.msk [vmem:[#allocation2 + $0x70] sm:$0xff] %vm34, %v72
  %90 = vst.msk [vmem:[#allocation2 + $0x78] sm:$0xff] %vm34, %v74
  %v91 = vld [vmem:[%s0] sm:$0xff]
  %v92 = vld [vmem:[%s0 + $0x8] sm:$0xff]
  %v93 = vld [vmem:[%s0 + $0x10] sm:$0xff]
  %v94 = vld [vmem:[%s0 + $0x18] sm:$0xff]
  %v95 = vld [vmem:[%s0 + $0x20] sm:$0xff]
  %v96 = vld [vmem:[%s0 + $0x28] sm:$0xff]
  %v97 = vld [vmem:[%s0 + $0x30] sm:$0xff]
  %v98 = vld [vmem:[%s0 + $0x38] sm:$0xff]
  %107 = vrot.lane.b32.xlu0 %v91, 124
  %v108 = vpop.permute.xlu0 %107
  %109 = vrot.lane.b32.xlu0 %v92, 124
  %v110 = vpop.permute.xlu0 %109
  %111 = vrot.lane.b32.xlu0 %v93, 124
  %v112 = vpop.permute.xlu0 %111
  %113 = vrot.lane.b32.xlu0 %v94, 124
  %v114 = vpop.permute.xlu0 %113
  %115 = vrot.lane.b32.xlu0 %v95, 124
  %v116 = vpop.permute.xlu0 %115
  %117 = vrot.lane.b32.xlu0 %v96, 124
  %v118 = vpop.permute.xlu0 %117
  %119 = vrot.lane.b32.xlu0 %v97, 124
  %v120 = vpop.permute.xlu0 %119
  %121 = vrot.lane.b32.xlu0 %v98, 124
  %v122 = vpop.permute.xlu0 %121
  %131 = vst.msk [vmem:[#allocation2 + $0x80] sm:$0xff] %vm34, %v108
  %132 = vst.msk [vmem:[#allocation2 + $0x88] sm:$0xff] %vm34, %v110
  %133 = vst.msk [vmem:[#allocation2 + $0x90] sm:$0xff] %vm34, %v112
  %134 = vst.msk [vmem:[#allocation2 + $0x98] sm:$0xff] %vm34, %v114
  %135 = vst.msk [vmem:[#allocation2 + $0xa0] sm:$0xff] %vm34, %v116
  %136 = vst.msk [vmem:[#allocation2 + $0xa8] sm:$0xff] %vm34, %v118
  %137 = vst.msk [vmem:[#allocation2 + $0xb0] sm:$0xff] %vm34, %v120
  %138 = vst.msk [vmem:[#allocation2 + $0xb8] sm:$0xff] %vm34, %v122
  %v139 = vld [vmem:[%s0] sm:$0xff]
  %v140 = vld [vmem:[%s0 + $0x8] sm:$0xff]
  %v141 = vld [vmem:[%s0 + $0x10] sm:$0xff]
  %v142 = vld [vmem:[%s0 + $0x18] sm:$0xff]
  %v143 = vld [vmem:[%s0 + $0x20] sm:$0xff]
  %v144 = vld [vmem:[%s0 + $0x28] sm:$0xff]
  %v145 = vld [vmem:[%s0 + $0x30] sm:$0xff]
  %v146 = vld [vmem:[%s0 + $0x38] sm:$0xff]
  %155 = vrot.lane.b32.xlu0 %v139, 123
  %v156 = vpop.permute.xlu0 %155
  %157 = vrot.lane.b32.xlu0 %v140, 123
  %v158 = vpop.permute.xlu0 %157
  %159 = vrot.lane.b32.xlu0 %v141, 123
  %v160 = vpop.permute.xlu0 %159
  %161 = vrot.lane.b32.xlu0 %v142, 123
  %v162 = vpop.permute.xlu0 %161
  %163 = vrot.lane.b32.xlu0 %v143, 123
  %v164 = vpop.permute.xlu0 %163
  %165 = vrot.lane.b32.xlu0 %v144, 123
  %v166 = vpop.permute.xlu0 %165
  %167 = vrot.lane.b32.xlu0 %v145, 123
  %v168 = vpop.permute.xlu0 %167
  %169 = vrot.lane.b32.xlu0 %v146, 123
  %v170 = vpop.permute.xlu0 %169
  %179 = vst.msk [vmem:[#allocation2 + $0xc0] sm:$0xff] %vm34, %v156
  %180 = vst.msk [vmem:[#allocation2 + $0xc8] sm:$0xff] %vm34, %v158
  %181 = vst.msk [vmem:[#allocation2 + $0xd0] sm:$0xff] %vm34, %v160
  %182 = vst.msk [vmem:[#allocation2 + $0xd8] sm:$0xff] %vm34, %v162
  %183 = vst.msk [vmem:[#allocation2 + $0xe0] sm:$0xff] %vm34, %v164
  %184 = vst.msk [vmem:[#allocation2 + $0xe8] sm:$0xff] %vm34, %v166
  %185 = vst.msk [vmem:[#allocation2 + $0xf0] sm:$0xff] %vm34, %v168
  %186 = vst.msk [vmem:[#allocation2 + $0xf8] sm:$0xff] %vm34, %v170
  %v187 = vld [vmem:[#allocation2] sm:$0xff]
  %v188 = vld [vmem:[#allocation2 + $0x8] sm:$0xff]
  %v189 = vld [vmem:[#allocation2 + $0x10] sm:$0xff]
  %v190 = vld [vmem:[#allocation2 + $0x18] sm:$0xff]
  %v191 = vld [vmem:[#allocation2 + $0x20] sm:$0xff]
  %v192 = vld [vmem:[#allocation2 + $0x28] sm:$0xff]
  %v193 = vld [vmem:[#allocation2 + $0x30] sm:$0xff]
  %v194 = vld [vmem:[#allocation2 + $0x38] sm:$0xff]
  %v195 = vld [vmem:[#allocation2 + $0x40] sm:$0xff]
  %v196 = vld [vmem:[#allocation2 + $0x48] sm:$0xff]
  %v197 = vld [vmem:[#allocation2 + $0x50] sm:$0xff]
  %v198 = vld [vmem:[#allocation2 + $0x58] sm:$0xff]
  %v199 = vld [vmem:[#allocation2 + $0x60] sm:$0xff]
  %v200 = vld [vmem:[#allocation2 + $0x68] sm:$0xff]
  %v201 = vld [vmem:[#allocation2 + $0x70] sm:$0xff]
  %v202 = vld [vmem:[#allocation2 + $0x78] sm:$0xff]
  %v203 = vld [vmem:[#allocation2 + $0x80] sm:$0xff]
  %v204 = vld [vmem:[#allocation2 + $0x88] sm:$0xff]
  %v205 = vld [vmem:[#allocation2 + $0x90] sm:$0xff]
  %v206 = vld [vmem:[#allocation2 + $0x98] sm:$0xff]
  %v207 = vld [vmem:[#allocation2 + $0xa0] sm:$0xff]
  %v208 = vld [vmem:[#allocation2 + $0xa8] sm:$0xff]
  %v209 = vld [vmem:[#allocation2 + $0xb0] sm:$0xff]
  %v210 = vld [vmem:[#allocation2 + $0xb8] sm:$0xff]
  %v211 = vld [vmem:[#allocation2 + $0xc0] sm:$0xff]
  %v212 = vld [vmem:[#allocation2 + $0xc8] sm:$0xff]
  %v213 = vld [vmem:[#allocation2 + $0xd0] sm:$0xff]
  %v214 = vld [vmem:[#allocation2 + $0xd8] sm:$0xff]
  %v215 = vld [vmem:[#allocation2 + $0xe0] sm:$0xff]
  %v216 = vld [vmem:[#allocation2 + $0xe8] sm:$0xff]
  %v217 = vld [vmem:[#allocation2 + $0xf0] sm:$0xff]
  %v218 = vld [vmem:[#allocation2 + $0xf8] sm:$0xff]
  %220 = vset.pattern.permute.xlu0 0
  %221 = vperm.xlu0 %220, %v22
  %v222 = vpop.permute.xlu0 %221
  %225 = vset.pattern.permute.xlu0 0
  %226 = vperm.xlu0 %225, %v23
  %v227 = vpop.permute.xlu0 %226
  %230 = vset.pattern.permute.xlu0 0
  %231 = vperm.xlu0 %230, %v24
  %v232 = vpop.permute.xlu0 %231
  %235 = vset.pattern.permute.xlu0 0
  %236 = vperm.xlu0 %235, %v25
  %v237 = vpop.permute.xlu0 %236
  %239 = vmatprep.subr.mxu0 0.0
  %240 = vmatpush1.msra.mxu0 %v187
  %241 = vmatprep.subr.mxu0 0.0
  %242 = vmatpush1.msra.mxu0 %v188
  %243 = vmatprep.subr.mxu0 0.0
  %244 = vmatpush1.msra.mxu0 %v189
  %245 = vmatprep.subr.mxu0 0.0
  %246 = vmatpush1.msra.mxu0 %v190
  %247 = vmatprep.subr.mxu0 0.0
  %248 = vmatpush1.msra.mxu0 %v191
  %249 = vmatprep.subr.mxu0 0.0
  %250 = vmatpush1.msra.mxu0 %v192
  %251 = vmatprep.subr.mxu0 0.0
  %252 = vmatpush1.msra.mxu0 %v193
  %253 = vmatprep.subr.mxu0 0.0
  %254 = vmatpush1.msra.mxu0 %v194
  %255 = vmatprep.subr.mxu0 0.0
  %256 = vmatpush1.msra.mxu0 %v195
  %257 = vmatprep.subr.mxu0 0.0
  %258 = vmatpush1.msra.mxu0 %v196
  %259 = vmatprep.subr.mxu0 0.0
  %260 = vmatpush1.msra.mxu0 %v197
  %261 = vmatprep.subr.mxu0 0.0
  %262 = vmatpush1.msra.mxu0 %v198
  %263 = vmatprep.subr.mxu0 0.0
  %264 = vmatpush1.msra.mxu0 %v199
  %265 = vmatprep.subr.mxu0 0.0
  %266 = vmatpush1.msra.mxu0 %v200
  %267 = vmatprep.subr.mxu0 0.0
  %268 = vmatpush1.msra.mxu0 %v201
  %269 = vmatprep.subr.mxu0 0.0
  %270 = vmatpush1.msra.mxu0 %v202
  %271 = vmatprep.subr.mxu0 0.0
  %272 = vmatpush1.msra.mxu0 %v203
  %273 = vmatprep.subr.mxu0 0.0
  %274 = vmatpush1.msra.mxu0 %v204
  %275 = vmatprep.subr.mxu0 0.0
  %276 = vmatpush1.msra.mxu0 %v205
  %277 = vmatprep.subr.mxu0 0.0
  %278 = vmatpush1.msra.mxu0 %v206
  %279 = vmatprep.subr.mxu0 0.0
  %280 = vmatpush1.msra.mxu0 %v207
  %281 = vmatprep.subr.mxu0 0.0
  %282 = vmatpush1.msra.mxu0 %v208
  %283 = vmatprep.subr.mxu0 0.0
  %284 = vmatpush1.msra.mxu0 %v209
  %285 = vmatprep.subr.mxu0 0.0
  %286 = vmatpush1.msra.mxu0 %v210
  %287 = vmatprep.subr.mxu0 0.0
  %288 = vmatpush1.msra.mxu0 %v211
  %289 = vmatprep.subr.mxu0 0.0
  %290 = vmatpush1.msra.mxu0 %v212
  %291 = vmatprep.subr.mxu0 0.0
  %292 = vmatpush1.msra.mxu0 %v213
  %293 = vmatprep.subr.mxu0 0.0
  %294 = vmatpush1.msra.mxu0 %v214
  %295 = vmatprep.subr.mxu0 0.0
  %296 = vmatpush1.msra.mxu0 %v215
  %297 = vmatprep.subr.mxu0 0.0
  %298 = vmatpush1.msra.mxu0 %v216
  %299 = vmatprep.subr.mxu0 0.0
  %300 = vmatpush1.msra.mxu0 %v217
  %301 = vmatprep.subr.mxu0 0.0
  %302 = vmatpush1.msra.mxu0 %v218
  %303 = vmatprep.mubr.f32.mxu0 %v15
  %304 = vmatmul.mubr.f32.gmra.mrb[0].mxu0 %v14
  %v305 = vpop.f32.mrb[0].mxu0
  %v306 = vadd.f32 %v222, %v305
  %v307 = vpop.f32.mrb[0].mxu0
  %308 = vmatprep.mubr.f32.mxu0 %v17
  %309 = vmatmul.mubr.f32.gmra.mrb[0].mxu0 %v16
  %v310 = vpop.f32.mrb[0].mxu0
  %v311 = vadd.f32 %v227, %v310
  %v312 = vpop.f32.mrb[0].mxu0
  %313 = vmatprep.mubr.f32.mxu0 %v19
  %314 = vmatmul.mubr.f32.gmra.mrb[0].mxu0 %v18
  %v315 = vpop.f32.mrb[0].mxu0
  %v316 = vadd.f32 %v232, %v315
  %v317 = vpop.f32.mrb[0].mxu0
  %318 = vmatprep.mubr.f32.mxu0 %v21
  %319 = vmatmul.mubr.f32.gmra.mrb[0].mxu0 %v20
  %v320 = vpop.f32.mrb[0].mxu0
  %v321 = vadd.f32 %v237, %v320
  %v322 = vpop.f32.mrb[0].mxu0
  %323 = vdwg.mxu0
  %v324 = vmax.f32 %v306, 0.0
  %v325 = vmax.f32 %v311, 0.0
  %v326 = vmax.f32 %v316, 0.0
  %v327 = vmax.f32 %v321, 0.0
  %328 = vst.msk [vmem:[%s3] sm:$0xff] %vm34, %v324
  %329 = vst.msk [vmem:[%s3 + $0x8] sm:$0xff] %vm34, %v325
  %330 = vst.msk [vmem:[%s3 + $0x10] sm:$0xff] %vm34, %v326
  %331 = vst.msk [vmem:[%s3 + $0x18] sm:$0xff] %vm34, %v327
  %s332 = scalar_lea.vmem %s0, 64
  %v333 = vld [vmem:[%s332] sm:$0xff]
  %v334 = vld [vmem:[%s332 + $0x8] sm:$0xff]
  %v335 = vld [vmem:[%s332 + $0x10] sm:$0xff]
  %v336 = vld [vmem:[%s332 + $0x18] sm:$0xff]
  %v337 = vld [vmem:[%s332 + $0x20] sm:$0xff]
  %v338 = vld [vmem:[%s332 + $0x28] sm:$0xff]
  %v339 = vld [vmem:[%s332 + $0x30] sm:$0xff]
  %v340 = vld [vmem:[%s332 + $0x38] sm:$0xff]
  %341 = vst.msk [vmem:[#allocation2] sm:$0xff] %vm34, %v333
  %342 = vst.msk [vmem:[#allocation2 + $0x8] sm:$0xff] %vm34, %v334
  %343 = vst.msk [vmem:[#allocation2 + $0x10] sm:$0xff] %vm34, %v335
  %344 = vst.msk [vmem:[#allocation2 + $0x18] sm:$0xff] %vm34, %v336
  %345 = vst.msk [vmem:[#allocation2 + $0x20] sm:$0xff] %vm34, %v337
  %346 = vst.msk [vmem:[#allocation2 + $0x28] sm:$0xff] %vm34, %v338
  %347 = vst.msk [vmem:[#allocation2 + $0x30] sm:$0xff] %vm34, %v339
  %348 = vst.msk [vmem:[#allocation2 + $0x38] sm:$0xff] %vm34, %v340
  %v349 = vld [vmem:[%s332] sm:$0xff]
  %v350 = vld [vmem:[%s332 + $0x8] sm:$0xff]
  %v351 = vld [vmem:[%s332 + $0x10] sm:$0xff]
  %v352 = vld [vmem:[%s332 + $0x18] sm:$0xff]
  %v353 = vld [vmem:[%s332 + $0x20] sm:$0xff]
  %v354 = vld [vmem:[%s332 + $0x28] sm:$0xff]
  %v355 = vld [vmem:[%s332 + $0x30] sm:$0xff]
  %v356 = vld [vmem:[%s332 + $0x38] sm:$0xff]
  %365 = vrot.lane.b32.xlu0 %v349, 127
  %v366 = vpop.permute.xlu0 %365
  %367 = vrot.lane.b32.xlu0 %v350, 127
  %v368 = vpop.permute.xlu0 %367
  %369 = vrot.lane.b32.xlu0 %v351, 127
  %v370 = vpop.permute.xlu0 %369
  %371 = vrot.lane.b32.xlu0 %v352, 127
  %v372 = vpop.permute.xlu0 %371
  %373 = vrot.lane.b32.xlu0 %v353, 127
  %v374 = vpop.permute.xlu0 %373
  %375 = vrot.lane.b32.xlu0 %v354, 127
  %v376 = vpop.permute.xlu0 %375
  %377 = vrot.lane.b32.xlu0 %v355, 127
  %v378 = vpop.permute.xlu0 %377
  %379 = vrot.lane.b32.xlu0 %v356, 127
  %v380 = vpop.permute.xlu0 %379
  %389 = vst.msk [vmem:[#allocation2 + $0x40] sm:$0xff] %vm34, %v366
  %390 = vst.msk [vmem:[#allocation2 + $0x48] sm:$0xff] %vm34, %v368
  %391 = vst.msk [vmem:[#allocation2 + $0x50] sm:$0xff] %vm34, %v370
  %392 = vst.msk [vmem:[#allocation2 + $0x58] sm:$0xff] %vm34, %v372
  %393 = vst.msk [vmem:[#allocation2 + $0x60] sm:$0xff] %vm34, %v374
  %394 = vst.msk [vmem:[#allocation2 + $0x68] sm:$0xff] %vm34, %v376
  %395 = vst.msk [vmem:[#allocation2 + $0x70] sm:$0xff] %vm34, %v378
  %396 = vst.msk [vmem:[#allocation2 + $0x78] sm:$0xff] %vm34, %v380
  %v397 = vld [vmem:[%s332] sm:$0xff]
  %v398 = vld [vmem:[%s332 + $0x8] sm:$0xff]
  %v399 = vld [vmem:[%s332 + $0x10] sm:$0xff]
  %v400 = vld [vmem:[%s332 + $0x18] sm:$0xff]
  %v401 = vld [vmem:[%s332 + $0x20] sm:$0xff]
  %v402 = vld [vmem:[%s332 + $0x28] sm:$0xff]
  %v403 = vld [vmem:[%s332 + $0x30] sm:$0xff]
  %v404 = vld [vmem:[%s332 + $0x38] sm:$0xff]
  %413 = vrot.lane.b32.xlu0 %v397, 124
  %v414 = vpop.permute.xlu0 %413
  %415 = vrot.lane.b32.xlu0 %v398, 124
  %v416 = vpop.permute.xlu0 %415
  %417 = vrot.lane.b32.xlu0 %v399, 124
  %v418 = vpop.permute.xlu0 %417
  %419 = vrot.lane.b32.xlu0 %v400, 124
  %v420 = vpop.permute.xlu0 %419
  %421 = vrot.lane.b32.xlu0 %v401, 124
  %v422 = vpop.permute.xlu0 %421
  %423 = vrot.lane.b32.xlu0 %v402, 124
  %v424 = vpop.permute.xlu0 %423
  %425 = vrot.lane.b32.xlu0 %v403, 124
  %v426 = vpop.permute.xlu0 %425
  %427 = vrot.lane.b32.xlu0 %v404, 124
  %v428 = vpop.permute.xlu0 %427
  %437 = vst.msk [vmem:[#allocation2 + $0x80] sm:$0xff] %vm34, %v414
  %438 = vst.msk [vmem:[#allocation2 + $0x88] sm:$0xff] %vm34, %v416
  %439 = vst.msk [vmem:[#allocation2 + $0x90] sm:$0xff] %vm34, %v418
  %440 = vst.msk [vmem:[#allocation2 + $0x98] sm:$0xff] %vm34, %v420
  %441 = vst.msk [vmem:[#allocation2 + $0xa0] sm:$0xff] %vm34, %v422
  %442 = vst.msk [vmem:[#allocation2 + $0xa8] sm:$0xff] %vm34, %v424
  %443 = vst.msk [vmem:[#allocation2 + $0xb0] sm:$0xff] %vm34, %v426
  %444 = vst.msk [vmem:[#allocation2 + $0xb8] sm:$0xff] %vm34, %v428
  %v445 = vld [vmem:[%s332] sm:$0xff]
  %v446 = vld [vmem:[%s332 + $0x8] sm:$0xff]
  %v447 = vld [vmem:[%s332 + $0x10] sm:$0xff]
  %v448 = vld [vmem:[%s332 + $0x18] sm:$0xff]
  %v449 = vld [vmem:[%s332 + $0x20] sm:$0xff]
  %v450 = vld [vmem:[%s332 + $0x28] sm:$0xff]
  %v451 = vld [vmem:[%s332 + $0x30] sm:$0xff]
  %v452 = vld [vmem:[%s332 + $0x38] sm:$0xff]
  %461 = vrot.lane.b32.xlu0 %v445, 123
  %v462 = vpop.permute.xlu0 %461
  %463 = vrot.lane.b32.xlu0 %v446, 123
  %v464 = vpop.permute.xlu0 %463
  %465 = vrot.lane.b32.xlu0 %v447, 123
  %v466 = vpop.permute.xlu0 %465
  %467 = vrot.lane.b32.xlu0 %v448, 123
  %v468 = vpop.permute.xlu0 %467
  %469 = vrot.lane.b32.xlu0 %v449, 123
  %v470 = vpop.permute.xlu0 %469
  %471 = vrot.lane.b32.xlu0 %v450, 123
  %v472 = vpop.permute.xlu0 %471
  %473 = vrot.lane.b32.xlu0 %v451, 123
  %v474 = vpop.permute.xlu0 %473
  %475 = vrot.lane.b32.xlu0 %v452, 123
  %v476 = vpop.permute.xlu0 %475
  %485 = vst.msk [vmem:[#allocation2 + $0xc0] sm:$0xff] %vm34, %v462
  %486 = vst.msk [vmem:[#allocation2 + $0xc8] sm:$0xff] %vm34, %v464
  %487 = vst.msk [vmem:[#allocation2 + $0xd0] sm:$0xff] %vm34, %v466
  %488 = vst.msk [vmem:[#allocation2 + $0xd8] sm:$0xff] %vm34, %v468
  %489 = vst.msk [vmem:[#allocation2 + $0xe0] sm:$0xff] %vm34, %v470
  %490 = vst.msk [vmem:[#allocation2 + $0xe8] sm:$0xff] %vm34, %v472
  %491 = vst.msk [vmem:[#allocation2 + $0xf0] sm:$0xff] %vm34, %v474
  %492 = vst.msk [vmem:[#allocation2 + $0xf8] sm:$0xff] %vm34, %v476
  %v493 = vld [vmem:[#allocation2] sm:$0xff]
  %v494 = vld [vmem:[#allocation2 + $0x8] sm:$0xff]
  %v495 = vld [vmem:[#allocation2 + $0x10] sm:$0xff]
  %v496 = vld [vmem:[#allocation2 + $0x18] sm:$0xff]
  %v497 = vld [vmem:[#allocation2 + $0x20] sm:$0xff]
  %v498 = vld [vmem:[#allocation2 + $0x28] sm:$0xff]
  %v499 = vld [vmem:[#allocation2 + $0x30] sm:$0xff]
  %v500 = vld [vmem:[#allocation2 + $0x38] sm:$0xff]
  %v501 = vld [vmem:[#allocation2 + $0x40] sm:$0xff]
  %v502 = vld [vmem:[#allocation2 + $0x48] sm:$0xff]
  %v503 = vld [vmem:[#allocation2 + $0x50] sm:$0xff]
  %v504 = vld [vmem:[#allocation2 + $0x58] sm:$0xff]
  %v505 = vld [vmem:[#allocation2 + $0x60] sm:$0xff]
  %v506 = vld [vmem:[#allocation2 + $0x68] sm:$0xff]
  %v507 = vld [vmem:[#allocation2 + $0x70] sm:$0xff]
  %v508 = vld [vmem:[#allocation2 + $0x78] sm:$0xff]
  %v509 = vld [vmem:[#allocation2 + $0x80] sm:$0xff]
  %v510 = vld [vmem:[#allocation2 + $0x88] sm:$0xff]
  %v511 = vld [vmem:[#allocation2 + $0x90] sm:$0xff]
  %v512 = vld [vmem:[#allocation2 + $0x98] sm:$0xff]
  %v513 = vld [vmem:[#allocation2 + $0xa0] sm:$0xff]
  %v514 = vld [vmem:[#allocation2 + $0xa8] sm:$0xff]
  %v515 = vld [vmem:[#allocation2 + $0xb0] sm:$0xff]
  %v516 = vld [vmem:[#allocation2 + $0xb8] sm:$0xff]
  %v517 = vld [vmem:[#allocation2 + $0xc0] sm:$0xff]
  %v518 = vld [vmem:[#allocation2 + $0xc8] sm:$0xff]
  %v519 = vld [vmem:[#allocation2 + $0xd0] sm:$0xff]
  %v520 = vld [vmem:[#allocation2 + $0xd8] sm:$0xff]
  %v521 = vld [vmem:[#allocation2 + $0xe0] sm:$0xff]
  %v522 = vld [vmem:[#allocation2 + $0xe8] sm:$0xff]
  %v523 = vld [vmem:[#allocation2 + $0xf0] sm:$0xff]
  %v524 = vld [vmem:[#allocation2 + $0xf8] sm:$0xff]
  %525 = vmatprep.subr.mxu0 0.0
  %526 = vmatpush1.msra.mxu0 %v493
  %527 = vmatprep.subr.mxu0 0.0
  %528 = vmatpush1.msra.mxu0 %v494
  %529 = vmatprep.subr.mxu0 0.0
  %530 = vmatpush1.msra.mxu0 %v495
  %531 = vmatprep.subr.mxu0 0.0
  %532 = vmatpush1.msra.mxu0 %v496
  %533 = vmatprep.subr.mxu0 0.0
  %534 = vmatpush1.msra.mxu0 %v497
  %535 = vmatprep.subr.mxu0 0.0
  %536 = vmatpush1.msra.mxu0 %v498
  %537 = vmatprep.subr.mxu0 0.0
  %538 = vmatpush1.msra.mxu0 %v499
  %539 = vmatprep.subr.mxu0 0.0
  %540 = vmatpush1.msra.mxu0 %v500
  %541 = vmatprep.subr.mxu0 0.0
  %542 = vmatpush1.msra.mxu0 %v501
  %543 = vmatprep.subr.mxu0 0.0
  %544 = vmatpush1.msra.mxu0 %v502
  %545 = vmatprep.subr.mxu0 0.0
  %546 = vmatpush1.msra.mxu0 %v503
  %547 = vmatprep.subr.mxu0 0.0
  %548 = vmatpush1.msra.mxu0 %v504
  %549 = vmatprep.subr.mxu0 0.0
  %550 = vmatpush1.msra.mxu0 %v505
  %551 = vmatprep.subr.mxu0 0.0
  %552 = vmatpush1.msra.mxu0 %v506
  %553 = vmatprep.subr.mxu0 0.0
  %554 = vmatpush1.msra.mxu0 %v507
  %555 = vmatprep.subr.mxu0 0.0
  %556 = vmatpush1.msra.mxu0 %v508
  %557 = vmatprep.subr.mxu0 0.0
  %558 = vmatpush1.msra.mxu0 %v509
  %559 = vmatprep.subr.mxu0 0.0
  %560 = vmatpush1.msra.mxu0 %v510
  %561 = vmatprep.subr.mxu0 0.0
  %562 = vmatpush1.msra.mxu0 %v511
  %563 = vmatprep.subr.mxu0 0.0
  %564 = vmatpush1.msra.mxu0 %v512
  %565 = vmatprep.subr.mxu0 0.0
  %566 = vmatpush1.msra.mxu0 %v513
  %567 = vmatprep.subr.mxu0 0.0
  %568 = vmatpush1.msra.mxu0 %v514
  %569 = vmatprep.subr.mxu0 0.0
  %570 = vmatpush1.msra.mxu0 %v515
  %571 = vmatprep.subr.mxu0 0.0
  %572 = vmatpush1.msra.mxu0 %v516
  %573 = vmatprep.subr.mxu0 0.0
  %574 = vmatpush1.msra.mxu0 %v517
  %575 = vmatprep.subr.mxu0 0.0
  %576 = vmatpush1.msra.mxu0 %v518
  %577 = vmatprep.subr.mxu0 0.0
  %578 = vmatpush1.msra.mxu0 %v519
  %579 = vmatprep.subr.mxu0 0.0
  %580 = vmatpush1.msra.mxu0 %v520
  %581 = vmatprep.subr.mxu0 0.0
  %582 = vmatpush1.msra.mxu0 %v521
  %583 = vmatprep.subr.mxu0 0.0
  %584 = vmatpush1.msra.mxu0 %v522
  %585 = vmatprep.subr.mxu0 0.0
  %586 = vmatpush1.msra.mxu0 %v523
  %587 = vmatprep.subr.mxu0 0.0
  %588 = vmatpush1.msra.mxu0 %v524
  %589 = vmatprep.mubr.f32.mxu0 %v15
  %590 = vmatmul.mubr.f32.gmra.mrb[0].mxu0 %v14
  %v591 = vpop.f32.mrb[0].mxu0
  %v592 = vadd.f32 %v222, %v591
  %v593 = vpop.f32.mrb[0].mxu0
  %594 = vmatprep.mubr.f32.mxu0 %v17
  %595 = vmatmul.mubr.f32.gmra.mrb[0].mxu0 %v16
  %v596 = vpop.f32.mrb[0].mxu0
  %v597 = vadd.f32 %v227, %v596
  %v598 = vpop.f32.mrb[0].mxu0
  %599 = vmatprep.mubr.f32.mxu0 %v19
  %600 = vmatmul.mubr.f32.gmra.mrb[0].mxu0 %v18
  %v601 = vpop.f32.mrb[0].mxu0
  %v602 = vadd.f32 %v232, %v601
  %v603 = vpop.f32.mrb[0].mxu0
  %604 = vmatprep.mubr.f32.mxu0 %v21
  %605 = vmatmul.mubr.f32.gmra.mrb[0].mxu0 %v20
  %v606 = vpop.f32.mrb[0].mxu0
  %v607 = vadd.f32 %v237, %v606
  %v608 = vpop.f32.mrb[0].mxu0
  %609 = vdwg.mxu0
  %v610 = vmax.f32 %v592, 0.0
  %v611 = vmax.f32 %v597, 0.0
  %v612 = vmax.f32 %v602, 0.0
  %v613 = vmax.f32 %v607, 0.0
  %s614 = scalar_lea.vmem %s3, 32
  %615 = vst.msk [vmem:[%s614] sm:$0xff] %vm34, %v610
  %616 = vst.msk [vmem:[%s614 + $0x8] sm:$0xff] %vm34, %v611
  %617 = vst.msk [vmem:[%s614 + $0x10] sm:$0xff] %vm34, %v612
  %618 = vst.msk [vmem:[%s614 + $0x18] sm:$0xff] %vm34, %v613
  // Predicated region
  $region14: #{torus_conv_ae_forward.13} parent=0 // pred_check
    _
  $region15: #{torus_conv_ae_forward.13} parent=0 // pred_check_branch
    %620 = sbr.rel (0) target = $region17
  $region16: #{torus_conv_ae_forward.13} parent=0 // pred_region
    _
  $region17: #{torus_conv_ae_forward.13} parent=0 // pred_fallthru
    _
  // Predicated region
  $region18: #{torus_conv_ae_forward.13} parent=0 // pred_check
    _
  $region19: #{torus_conv_ae_forward.13} parent=0 // pred_check_branch
    %622 = sbr.rel (0) target = $region21
  $region20: #{torus_conv_ae_forward.13} parent=0 // pred_region
    _
  $region21: #{torus_conv_ae_forward.13} parent=0 // pred_fallthru
    _

// kernel: torus_conv_ae_forward.14
$region0: #{torus_conv_ae_forward.14}
  #allocation0 [shape = 'u32[]', space=smem, size = 0x4, offset = 0x4, fixed_abs, tag = 'smem constant byte address 0x4 - core index']
  #allocation1 [shape = 'u32[144,128]{1,0:T(1,128)}', space=vmem, size = 0x12000, scoped, tag = 'internal scratch']
  %s0 = inlined_call_operand.vmem [shape: f32[8,288], index: 0, kind: input, shape index: {}]
  %s1 = inlined_call_operand.vmem [shape: f32[288,128], index: 1, kind: input, shape index: {}]
  %s2 = inlined_call_operand.vmem [shape: f32[1,128], index: 2, kind: input, shape index: {}]
  %s3 = inlined_call_operand.vmem [shape: f32[128,2], index: 3, kind: input, shape index: {}]
  %s4 = inlined_call_operand.vmem [shape: f32[1,2], index: 4, kind: input, shape index: {}]
  %s5 = inlined_call_operand.vmem [shape: f32[4,128], index: 5, kind: input, shape index: {}]
  %s6 = inlined_call_operand.vmem [shape: f32[1,128], index: 6, kind: input, shape index: {}]
  %s7 = inlined_call_operand.vmem [shape: f32[128,288], index: 7, kind: input, shape index: {}]
  %s8 = inlined_call_operand.vmem [shape: f32[1,288], index: 8, kind: input, shape index: {}]
  %s9 = inlined_call_operand.vmem [shape: f32[8,4], index: 9, kind: output, shape index: {0}]
  %s10 = inlined_call_operand.vmem [shape: f32[8,288], index: 10, kind: output, shape index: {1}]
  %11 = xla_tuple %s9, %s10
  %s12 = sld [smem:[#allocation0]]
  $region54: #{torus_conv_ae_forward.14} parent=0
    _
  %s14 = ssub.s32 1, %s12
  %s15 = scalar_select 0, %s14, %s12
  // Predicated region
  $region2: #{torus_conv_ae_forward.14} parent=0 // pred_check
    _
  $region3: #{torus_conv_ae_forward.14} parent=0 // pred_check_branch
    %17 = sbr.rel (0) target = $region5
  $region4: #{torus_conv_ae_forward.14} parent=0 // pred_region
    _
  $region5: #{torus_conv_ae_forward.14} parent=0 // pred_fallthru
    _
  // Predicated region
  $region6: #{torus_conv_ae_forward.14} parent=0 // pred_check
    _
  $region7: #{torus_conv_ae_forward.14} parent=0 // pred_check_branch
    %19 = sbr.rel (0) target = $region9
  $region8: #{torus_conv_ae_forward.14} parent=0 // pred_region
    _
  $region9: #{torus_conv_ae_forward.14} parent=0 // pred_fallthru
    _
  // Predicated region
  $region10: #{torus_conv_ae_forward.14} parent=0 // pred_check
    _
  $region11: #{torus_conv_ae_forward.14} parent=0 // pred_check_branch
    %21 = sbr.rel (0) target = $region13
  $region12: #{torus_conv_ae_forward.14} parent=0 // pred_region
    _
  $region13: #{torus_conv_ae_forward.14} parent=0 // pred_fallthru
    _
  // Predicated region
  $region14: #{torus_conv_ae_forward.14} parent=0 // pred_check
    _
  $region15: #{torus_conv_ae_forward.14} parent=0 // pred_check_branch
    %23 = sbr.rel (0) target = $region17
  $region16: #{torus_conv_ae_forward.14} parent=0 // pred_region
    _
  $region17: #{torus_conv_ae_forward.14} parent=0 // pred_fallthru
    _
  // Predicated region
  $region18: #{torus_conv_ae_forward.14} parent=0 // pred_check
    _
  $region19: #{torus_conv_ae_forward.14} parent=0 // pred_check_branch
    %25 = sbr.rel (0) target = $region21
  $region20: #{torus_conv_ae_forward.14} parent=0 // pred_region
    _
  $region21: #{torus_conv_ae_forward.14} parent=0 // pred_fallthru
    _
  // Predicated region
  $region22: #{torus_conv_ae_forward.14} parent=0 // pred_check
    _
  $region23: #{torus_conv_ae_forward.14} parent=0 // pred_check_branch
    %27 = sbr.rel (0) target = $region25
  $region24: #{torus_conv_ae_forward.14} parent=0 // pred_region
    _
  $region25: #{torus_conv_ae_forward.14} parent=0 // pred_fallthru
    _
  // Predicated region
  $region26: #{torus_conv_ae_forward.14} parent=0 // pred_check
    _
  $region27: #{torus_conv_ae_forward.14} parent=0 // pred_check_branch
    %29 = sbr.rel (0) target = $region29
  $region28: #{torus_conv_ae_forward.14} parent=0 // pred_region
    _
  $region29: #{torus_conv_ae_forward.14} parent=0 // pred_fallthru
    _
  // Predicated region
  $region30: #{torus_conv_ae_forward.14} parent=0 // pred_check
    _
  $region31: #{torus_conv_ae_forward.14} parent=0 // pred_check_branch
    %31 = sbr.rel (0) target = $region33
  $region32: #{torus_conv_ae_forward.14} parent=0 // pred_region
    _
  $region33: #{torus_conv_ae_forward.14} parent=0 // pred_fallthru
    _
  // Predicated region
  $region34: #{torus_conv_ae_forward.14} parent=0 // pred_check
    _
  $region35: #{torus_conv_ae_forward.14} parent=0 // pred_check_branch
    %33 = sbr.rel (0) target = $region37
  $region36: #{torus_conv_ae_forward.14} parent=0 // pred_region
    _
  $region37: #{torus_conv_ae_forward.14} parent=0 // pred_fallthru
    _
  %v34 = vld [vmem:[%s0] sm:$0xff]
  %v35 = vld [vmem:[%s0 + $0x8] sm:$0xff]
  %v36 = vld [vmem:[%s0 + $0x10] sm:$0xff]
  %v37 = vld [vmem:[%s1] sm:$0xff]
  %v38 = vld [vmem:[%s1 + $0x8] sm:$0xff]
  %v39 = vld [vmem:[%s1 + $0x10] sm:$0xff]
  %v40 = vld [vmem:[%s1 + $0x18] sm:$0xff]
  %v41 = vld [vmem:[%s1 + $0x20] sm:$0xff]
  %v42 = vld [vmem:[%s1 + $0x28] sm:$0xff]
  %v43 = vld [vmem:[%s1 + $0x30] sm:$0xff]
  %v44 = vld [vmem:[%s1 + $0x38] sm:$0xff]
  %v45 = vld [vmem:[%s1 + $0x40] sm:$0xff]
  %v46 = vld [vmem:[%s1 + $0x48] sm:$0xff]
  %v47 = vld [vmem:[%s1 + $0x50] sm:$0xff]
  %v48 = vld [vmem:[%s1 + $0x58] sm:$0xff]
  %v49 = vld [vmem:[%s1 + $0x60] sm:$0xff]
  %v50 = vld [vmem:[%s1 + $0x68] sm:$0xff]
  %v51 = vld [vmem:[%s1 + $0x70] sm:$0xff]
  %v52 = vld [vmem:[%s1 + $0x78] sm:$0xff]
  %v53 = vld [vmem:[%s1 + $0x80] sm:$0xff]
  %v54 = vld [vmem:[%s1 + $0x88] sm:$0xff]
  %v55 = vld [vmem:[%s1 + $0x90] sm:$0xff]
  %v56 = vld [vmem:[%s1 + $0x98] sm:$0xff]
  %v57 = vld [vmem:[%s1 + $0xa0] sm:$0xff]
  %v58 = vld [vmem:[%s1 + $0xa8] sm:$0xff]
  %v59 = vld [vmem:[%s1 + $0xb0] sm:$0xff]
  %v60 = vld [vmem:[%s1 + $0xb8] sm:$0xff]
  %v61 = vld [vmem:[%s1 + $0xc0] sm:$0xff]
  %v62 = vld [vmem:[%s1 + $0xc8] sm:$0xff]
  %v63 = vld [vmem:[%s1 + $0xd0] sm:$0xff]
  %v64 = vld [vmem:[%s1 + $0xd8] sm:$0xff]
  %v65 = vld [vmem:[%s1 + $0xe0] sm:$0xff]
  %v66 = vld [vmem:[%s1 + $0xe8] sm:$0xff]
  %v67 = vld [vmem:[%s1 + $0xf0] sm:$0xff]
  %v68 = vld [vmem:[%s1 + $0xf8] sm:$0xff]
  %v69 = vld [vmem:[%s1 + $0x100] sm:$0xff]
  %v70 = vld [vmem:[%s1 + $0x108] sm:$0xff]
  %v71 = vld [vmem:[%s1 + $0x110] sm:$0xff]
  %v72 = vld [vmem:[%s1 + $0x118] sm:$0xff]
  %v73 = vld [vmem:[%s2] sm:$0x1]
  %v75 = vlaneseq
  %v76 = vshrl.u32 %v75, 7
  %v77 = vsub.s32 0, %v76
  %v78 = vrot.slane %v73, %v77
  %vm80 = vcmask 261120
  %v82 = vsel %vm80, %v36, 0
  %84 = vmatprep.subr.mxu0 0.0
  %85 = vmatpush1.msra.mxu0 %v37
  %86 = vmatprep.subr.mxu0 0.0
  %87 = vmatpush1.msra.mxu0 %v38
  %88 = vmatprep.subr.mxu0 0.0
  %89 = vmatpush1.msra.mxu0 %v39
  %90 = vmatprep.subr.mxu0 0.0
  %91 = vmatpush1.msra.mxu0 %v40
  %92 = vmatprep.subr.mxu0 0.0
  %93 = vmatpush1.msra.mxu0 %v41
  %94 = vmatprep.subr.mxu0 0.0
  %95 = vmatpush1.msra.mxu0 %v42
  %96 = vmatprep.subr.mxu0 0.0
  %97 = vmatpush1.msra.mxu0 %v43
  %98 = vmatprep.subr.mxu0 0.0
  %99 = vmatpush1.msra.mxu0 %v44
  %100 = vmatprep.subr.mxu0 0.0
  %101 = vmatpush1.msra.mxu0 %v45
  %102 = vmatprep.subr.mxu0 0.0
  %103 = vmatpush1.msra.mxu0 %v46
  %104 = vmatprep.subr.mxu0 0.0
  %105 = vmatpush1.msra.mxu0 %v47
  %106 = vmatprep.subr.mxu0 0.0
  %107 = vmatpush1.msra.mxu0 %v48
  %108 = vmatprep.subr.mxu0 0.0
  %109 = vmatpush1.msra.mxu0 %v49
  %110 = vmatprep.subr.mxu0 0.0
  %111 = vmatpush1.msra.mxu0 %v50
  %112 = vmatprep.subr.mxu0 0.0
  %113 = vmatpush1.msra.mxu0 %v51
  %114 = vmatprep.subr.mxu0 0.0
  %115 = vmatpush1.msra.mxu0 %v52
  %116 = vmatprep.subr.mxu0 0.0
  %117 = vmatpush1.msra.mxu0 %v53
  %118 = vmatprep.subr.mxu0 0.0
  %119 = vmatpush1.msra.mxu0 %v54
  %120 = vmatprep.subr.mxu0 0.0
  %121 = vmatpush1.msra.mxu0 %v55
  %122 = vmatprep.subr.mxu0 0.0
  %123 = vmatpush1.msra.mxu0 %v56
  %124 = vmatprep.subr.mxu0 0.0
  %125 = vmatpush1.msra.mxu0 %v57
  %126 = vmatprep.subr.mxu0 0.0
  %127 = vmatpush1.msra.mxu0 %v58
  %128 = vmatprep.subr.mxu0 0.0
  %129 = vmatpush1.msra.mxu0 %v59
  %130 = vmatprep.subr.mxu0 0.0
  %131 = vmatpush1.msra.mxu0 %v60
  %132 = vmatprep.subr.mxu0 0.0
  %133 = vmatpush1.msra.mxu0 %v61
  %134 = vmatprep.subr.mxu0 0.0
  %135 = vmatpush1.msra.mxu0 %v62
  %136 = vmatprep.subr.mxu0 0.0
  %137 = vmatpush1.msra.mxu0 %v63
  %138 = vmatprep.subr.mxu0 0.0
  %139 = vmatpush1.msra.mxu0 %v64
  %140 = vmatprep.subr.mxu0 0.0
  %141 = vmatpush1.msra.mxu0 %v65
  %142 = vmatprep.subr.mxu0 0.0
  %143 = vmatpush1.msra.mxu0 %v66
  %144 = vmatprep.subr.mxu0 0.0
  %145 = vmatpush1.msra.mxu0 %v67
  %146 = vmatprep.subr.mxu0 0.0
  %147 = vmatpush1.msra.mxu0 %v68
  %148 = vmatprep.mubr.f32.mxu0 %v35
  %149 = vmatmul.mubr.f32.gmra.mrb[0].mxu0 %v34
  %v150 = vpop.f32.mrb[0].mxu0
  %v151 = vadd.f32 %v78, %v150
  %v152 = vpop.f32.mrb[0].mxu0
  %153 = vdwg.mxu0
  %154 = vmatprep.subr.mxu0 0.0
  %155 = vmatpush1.msra.mxu0 %v69
  %156 = vmatprep.subr.mxu0 0.0
  %157 = vmatpush1.msra.mxu0 %v70
  %158 = vmatprep.subr.mxu0 0.0
  %159 = vmatpush1.msra.mxu0 %v71
  %160 = vmatprep.subr.mxu0 0.0
  %161 = vmatpush1.msra.mxu0 %v72
  %162 = vmatprep.subr.mxu0 0.0
  %163 = vmatpush1.msra.mxu0 0.0
  %164 = vmatprep.subr.mxu0 0.0
  %165 = vmatpush1.msra.mxu0 0.0
  %166 = vmatprep.subr.mxu0 0.0
  %167 = vmatpush1.msra.mxu0 0.0
  %168 = vmatprep.subr.mxu0 0.0
  %169 = vmatpush1.msra.mxu0 0.0
  %170 = vmatprep.subr.mxu0 0.0
  %171 = vmatpush1.msra.mxu0 0.0
  %172 = vmatprep.subr.mxu0 0.0
  %173 = vmatpush1.msra.mxu0 0.0
  %174 = vmatprep.subr.mxu0 0.0
  %175 = vmatpush1.msra.mxu0 0.0
  %176 = vmatprep.subr.mxu0 0.0
  %177 = vmatpush1.msra.mxu0 0.0
  %178 = vmatprep.subr.mxu0 0.0
  %179 = vmatpush1.msra.mxu0 0.0
  %180 = vmatprep.subr.mxu0 0.0
  %181 = vmatpush1.msra.mxu0 0.0
  %182 = vmatprep.subr.mxu0 0.0
  %183 = vmatpush1.msra.mxu0 0.0
  %184 = vmatprep.subr.mxu0 0.0
  %185 = vmatpush1.msra.mxu0 0.0
  %186 = vmatprep.subr.mxu0 0.0
  %187 = vmatpush1.msra.mxu0 0.0
  %188 = vmatprep.subr.mxu0 0.0
  %189 = vmatpush1.msra.mxu0 0.0
  %190 = vmatprep.subr.mxu0 0.0
  %191 = vmatpush1.msra.mxu0 0.0
  %192 = vmatprep.subr.mxu0 0.0
  %193 = vmatpush1.msra.mxu0 0.0
  %194 = vmatprep.subr.mxu0 0.0
  %195 = vmatpush1.msra.mxu0 0.0
  %196 = vmatprep.subr.mxu0 0.0
  %197 = vmatpush1.msra.mxu0 0.0
  %198 = vmatprep.subr.mxu0 0.0
  %199 = vmatpush1.msra.mxu0 0.0
  %200 = vmatprep.subr.mxu0 0.0
  %201 = vmatpush1.msra.mxu0 0.0
  %202 = vmatprep.subr.mxu0 0.0
  %203 = vmatpush1.msra.mxu0 0.0
  %204 = vmatprep.subr.mxu0 0.0
  %205 = vmatpush1.msra.mxu0 0.0
  %206 = vmatprep.subr.mxu0 0.0
  %207 = vmatpush1.msra.mxu0 0.0
  %208 = vmatprep.subr.mxu0 0.0
  %209 = vmatpush1.msra.mxu0 0.0
  %210 = vmatprep.subr.mxu0 0.0
  %211 = vmatpush1.msra.mxu0 0.0
  %212 = vmatprep.subr.mxu0 0.0
  %213 = vmatpush1.msra.mxu0 0.0
  %214 = vmatprep.subr.mxu0 0.0
  %215 = vmatpush1.msra.mxu0 0.0
  %216 = vmatprep.subr.mxu0 0.0
  %217 = vmatpush1.msra.mxu0 0.0
  %218 = vmatprep.mubr.f32.mxu0 0.0
  %219 = vmatmul.mubr.f32.gmra.mrb[0].mxu0 %v82
  %v220 = vpop.f32.mrb[0].mxu0
  %v221 = vadd.f32 %v151, %v220
  %v222 = vpop.f32.mrb[0].mxu0
  %223 = vdwg.mxu0
  %v224 = vmax.f32 %v221, 0.0
  %v225 = vld [vmem:[%s3] sm:$0xff]
  %v226 = vld [vmem:[%s3 + $0x8] sm:$0xff]
  %v227 = vld [vmem:[%s3 + $0x10] sm:$0xff]
  %v228 = vld [vmem:[%s3 + $0x18] sm:$0xff]
  %v229 = vld [vmem:[%s3 + $0x20] sm:$0xff]
  %v230 = vld [vmem:[%s3 + $0x28] sm:$0xff]
  %v231 = vld [vmem:[%s3 + $0x30] sm:$0xff]
  %v232 = vld [vmem:[%s3 + $0x38] sm:$0xff]
  %v233 = vld [vmem:[%s3 + $0x40] sm:$0xff]
  %v234 = vld [vmem:[%s3 + $0x48] sm:$0xff]
  %v235 = vld [vmem:[%s3 + $0x50] sm:$0xff]
  %v236 = vld [vmem:[%s3 + $0x58] sm:$0xff]
  %v237 = vld [vmem:[%s3 + $0x60] sm:$0xff]
  %v238 = vld [vmem:[%s3 + $0x68] sm:$0xff]
  %v239 = vld [vmem:[%s3 + $0x70] sm:$0xff]
  %v240 = vld [vmem:[%s3 + $0x78] sm:$0xff]
  %v241 = vld [vmem:[%s4] sm:$0x1]
  %v243 = vlaneseq
  %v244 = vshrl.u32 %v243, 7
  %v245 = vsub.s32 0, %v244
  %v246 = vrot.slane %v241, %v245
  %248 = vmatprep.subr.mxu0 0.0
  %249 = vmatpush1.msra.mxu0 %v225
  %250 = vmatprep.subr.mxu0 0.0
  %251 = vmatpush1.msra.mxu0 %v226
  %252 = vmatprep.subr.mxu0 0.0
  %253 = vmatpush1.msra.mxu0 %v227
  %254 = vmatprep.subr.mxu0 0.0
  %255 = vmatpush1.msra.mxu0 %v228
  %256 = vmatprep.subr.mxu0 0.0
  %257 = vmatpush1.msra.mxu0 %v229
  %258 = vmatprep.subr.mxu0 0.0
  %259 = vmatpush1.msra.mxu0 %v230
  %260 = vmatprep.subr.mxu0 0.0
  %261 = vmatpush1.msra.mxu0 %v231
  %262 = vmatprep.subr.mxu0 0.0
  %263 = vmatpush1.msra.mxu0 %v232
  %264 = vmatprep.subr.mxu0 0.0
  %265 = vmatpush1.msra.mxu0 %v233
  %266 = vmatprep.subr.mxu0 0.0
  %267 = vmatpush1.msra.mxu0 %v234
  %268 = vmatprep.subr.mxu0 0.0
  %269 = vmatpush1.msra.mxu0 %v235
  %270 = vmatprep.subr.mxu0 0.0
  %271 = vmatpush1.msra.mxu0 %v236
  %272 = vmatprep.subr.mxu0 0.0
  %273 = vmatpush1.msra.mxu0 %v237
  %274 = vmatprep.subr.mxu0 0.0
  %275 = vmatpush1.msra.mxu0 %v238
  %276 = vmatprep.subr.mxu0 0.0
  %277 = vmatpush1.msra.mxu0 %v239
  %278 = vmatprep.subr.mxu0 0.0
  %279 = vmatpush1.msra.mxu0 %v240
  %280 = vmatprep.subr.mxu0 0.0
  %281 = vmatpush1.msra.mxu0 0.0
  %282 = vmatprep.subr.mxu0 0.0
  %283 = vmatpush1.msra.mxu0 0.0
  %284 = vmatprep.subr.mxu0 0.0
  %285 = vmatpush1.msra.mxu0 0.0
  %286 = vmatprep.subr.mxu0 0.0
  %287 = vmatpush1.msra.mxu0 0.0
  %288 = vmatprep.subr.mxu0 0.0
  %289 = vmatpush1.msra.mxu0 0.0
  %290 = vmatprep.subr.mxu0 0.0
  %291 = vmatpush1.msra.mxu0 0.0
  %292 = vmatprep.subr.mxu0 0.0
  %293 = vmatpush1.msra.mxu0 0.0
  %294 = vmatprep.subr.mxu0 0.0
  %295 = vmatpush1.msra.mxu0 0.0
  %296 = vmatprep.subr.mxu0 0.0
  %297 = vmatpush1.msra.mxu0 0.0
  %298 = vmatprep.subr.mxu0 0.0
  %299 = vmatpush1.msra.mxu0 0.0
  %300 = vmatprep.subr.mxu0 0.0
  %301 = vmatpush1.msra.mxu0 0.0
  %302 = vmatprep.subr.mxu0 0.0
  %303 = vmatpush1.msra.mxu0 0.0
  %304 = vmatprep.subr.mxu0 0.0
  %305 = vmatpush1.msra.mxu0 0.0
  %306 = vmatprep.subr.mxu0 0.0
  %307 = vmatpush1.msra.mxu0 0.0
  %308 = vmatprep.subr.mxu0 0.0
  %309 = vmatpush1.msra.mxu0 0.0
  %310 = vmatprep.subr.mxu0 0.0
  %311 = vmatpush1.msra.mxu0 0.0
  %312 = vmatprep.mubr.f32.mxu0 0.0
  %313 = vmatmul.mubr.f32.gmra.mrb[0].mxu0 %v224
  %v314 = vpop.f32.mrb[0].mxu0
  %v315 = vadd.f32 %v246, %v314
  %v316 = vpop.f32.mrb[0].mxu0
  %317 = vdwg.mxu0
  %v318 = vand.u32 2147483647, %v315
  %vm319 = vcmp.le.f32.partialorder %v318, 0.7853982
  %vm320 = vcmp.lt.s32.totalorder %v315, 0
  %v321 = vand.u32 %v315, 2139095040
  %v322 = vshrl.u32 %v321, 23
  %v323 = vsub.s32 %v322, 127
  %v324 = vand.u32 2147483647, %v315
  %v325 = vand.u32 %v324, 8388607
  %v326 = vor.u32 %v325, 8388608
  %v327 = vsub.s32 0, %v326
  %v328 = vadd.s32 %v323, 1
  %vm329 = vcmp.gt.s32.totalorder %v328, 0
  %v330 = vsel %vm329, %v328, 0
  %v331 = vshrl.u32 %v330, 5
  %v332 = vand.u32 %v330, 31
  %v333 = vsub.s32 32, %v332
  %v334 = vshrl.u32 683565275, %v333
  %v335 = vshll.u32 683565275, %v332
  %v336 = vshrl.u32 2475754826, %v333
  %v337 = vor.u32 %v335, %v336
  %v338 = vshll.u32 2475754826, %v332
  %v339 = vshrl.u32 2131351028, %v333
  %v340 = vor.u32 %v338, %v339
  %v341 = vshll.u32 2131351028, %v332
  %v342 = vshrl.u32 2102212464, %v333
  %v343 = vor.u32 %v341, %v342
  %v344 = vshll.u32 2102212464, %v332
  %v345 = vshrl.u32 920167782, %v333
  %v346 = vor.u32 %v344, %v345
  %v347 = vshll.u32 920167782, %v332
  %v348 = vshrl.u32 1326507024, %v333
  %v349 = vor.u32 %v347, %v348
  %vm350 = vcmp.lt.s32.totalorder %v331, 1
  %vm351 = vcmp.lt.s32.totalorder %v331, 2
  %vm352 = vcmp.lt.s32.totalorder %v331, 3
  %vm353 = vcmp.lt.s32.totalorder %v331, 4
  %v354 = vsel %vm350, %v334, %v337
  %v355 = vsel %vm353, %v343, 2102212464
  %v356 = vsel %vm352, %v340, %v355
  %v357 = vsel %vm351, %v354, %v356
  %v358 = vsel %vm350, %v337, %v340
  %v359 = vsel %vm353, %v346, 920167782
  %v360 = vsel %vm352, %v343, %v359
  %v361 = vsel %vm351, %v358, %v360
  %v362 = vsel %vm350, %v340, %v343
  %v363 = vsel %vm353, %v349, 1326507024
  %v364 = vsel %vm352, %v346, %v363
  %v365 = vsel %vm351, %v362, %v364
  %v366 = vshll.u32 %v326, 8
  %v367 = vmul.u32.u64.compose %v366, %v365
  %v368 = vextract.low.u32 %v367
  %v369 = vextract.high.u32 %v367
  %v370 = vmul.u32.u64.compose %v366, %v361
  %v371 = vextract.low.u32 %v370
  %v372 = vextract.high.u32 %v370
  %v373 = vmul.u32 %v366, %v357
  %v374 = vadd.s32 %v369, %v371
  %vm375 = vc.u32 %v369, %v371
  %v376 = vadd.s32 %v372, 1
  %v377 = vsel %vm375, %v376, %v372
  %v378 = vadd.s32 %v373, %v377
  %v379 = vadd.s32 %v378, 536870912
  %v380 = vshrl.u32 %v379, 30
  %v381 = vshll.u32 %v380, 30
  %v382 = vsub.s32 %v378, %v381
  %vm383 = vcmp.lt.s32.totalorder %v382, 0
  %v384 = vsub.s32 0, %v382
  %v385 = vsel %vm383, %v384, %v382
  %v386 = vclz %v385
  %v387 = vsub.s32 %v386, 2
  %vm388 = vcmp.gt.s32.totalorder 0, %v387
  %v389 = vsel %vm388, 0, %v387
  %v390 = vsub.s32 32, %v389
  %v391 = vshll.u32 %v382, %v389
  %v392 = vshrl.u32 %v374, %v390
  %v393 = vor.u32 %v391, %v392
  %v394 = vsub.s32 4294967266, %v389
  %v395 = vadd.s32 %v394, 127
  %v396 = vshll.u32 %v395, 23
  %v397 = vor.u32 4788187, %v396
  %v398 = vand.u32 2147483647, %v397
  %v400 = vcvt.s32.f32 %v393
  %v401 = vmul.f32 %v400, %v398
  %v402 = vxor.u32 %v401, 2147483648
  %v403 = vsel %vm320, %v402, %v401
  %v404 = vsub.s32 4, %v380
  %v405 = vsel %vm320, %v404, %v380
  %v406 = vsel %vm319, %v315, %v403
  %v407 = vsel %vm319, 0, %v405
  %v408 = vcosq.f32.pop %v406
  %v409 = vsinq.f32.pop %v406
  %vm410 = vweird.f32 %v315
  %v411 = vand.u32 %v407, 3
  %vm412 = vcmp.lt.s32.totalorder %v411, 2
  %vm413 = vcmp.eq.s32.totalorder %v411, 0
  %v414 = vxor.u32 %v409, 2147483648
  %v415 = vsel %vm413, %v408, %v414
  %vm416 = vcmp.eq.s32.totalorder %v411, 2
  %v417 = vxor.u32 %v408, 2147483648
  %v418 = vsel %vm416, %v417, %v409
  %v419 = vsel %vm412, %v415, %v418
  %v420 = vsel %vm410, nan, %v419
  %v421 = vand.u32 2147483647, %v315
  %vm422 = vcmp.le.f32.partialorder %v421, 0.7853982
  %vm423 = vcmp.lt.s32.totalorder %v315, 0
  %v424 = vand.u32 %v315, 2139095040
  %v425 = vshrl.u32 %v424, 23
  %v426 = vsub.s32 %v425, 127
  %v427 = vand.u32 2147483647, %v315
  %v428 = vand.u32 %v427, 8388607
  %v429 = vor.u32 %v428, 8388608
  %v430 = vsub.s32 0, %v429
  %v431 = vadd.s32 %v426, 1
  %vm432 = vcmp.gt.s32.totalorder %v431, 0
  %v433 = vsel %vm432, %v431, 0
  %v434 = vshrl.u32 %v433, 5
  %v435 = vand.u32 %v433, 31
  %v436 = vsub.s32 32, %v435
  %v437 = vshrl.u32 683565275, %v436
  %v438 = vshll.u32 683565275, %v435
  %v439 = vshrl.u32 2475754826, %v436
  %v440 = vor.u32 %v438, %v439
  %v441 = vshll.u32 2475754826, %v435
  %v442 = vshrl.u32 2131351028, %v436
  %v443 = vor.u32 %v441, %v442
  %v444 = vshll.u32 2131351028, %v435
  %v445 = vshrl.u32 2102212464, %v436
  %v446 = vor.u32 %v444, %v445
  %v447 = vshll.u32 2102212464, %v435
  %v448 = vshrl.u32 920167782, %v436
  %v449 = vor.u32 %v447, %v448
  %v450 = vshll.u32 920167782, %v435
  %v451 = vshrl.u32 1326507024, %v436
  %v452 = vor.u32 %v450, %v451
  %vm453 = vcmp.lt.s32.totalorder %v434, 1
  %vm454 = vcmp.lt.s32.totalorder %v434, 2
  %vm455 = vcmp.lt.s32.totalorder %v434, 3
  %vm456 = vcmp.lt.s32.totalorder %v434, 4
  %v457 = vsel %vm453, %v437, %v440
  %v458 = vsel %vm456, %v446, 2102212464
  %v459 = vsel %vm455, %v443, %v458
  %v460 = vsel %vm454, %v457, %v459
  %v461 = vsel %vm453, %v440, %v443
  %v462 = vsel %vm456, %v449, 920167782
  %v463 = vsel %vm455, %v446, %v462
  %v464 = vsel %vm454, %v461, %v463
  %v465 = vsel %vm453, %v443, %v446
  %v466 = vsel %vm456, %v452, 1326507024
  %v467 = vsel %vm455, %v449, %v466
  %v468 = vsel %vm454, %v465, %v467
  %v469 = vshll.u32 %v429, 8
  %v470 = vmul.u32.u64.compose %v469, %v468
  %v471 = vextract.low.u32 %v470
  %v472 = vextract.high.u32 %v470
  %v473 = vmul.u32.u64.compose %v469, %v464
  %v474 = vextract.low.u32 %v473
  %v475 = vextract.high.u32 %v473
  %v476 = vmul.u32 %v469, %v460
  %v477 = vadd.s32 %v472, %v474
  %vm478 = vc.u32 %v472, %v474
  %v479 = vadd.s32 %v475, 1
  %v480 = vsel %vm478, %v479, %v475
  %v481 = vadd.s32 %v476, %v480
  %v482 = vadd.s32 %v481, 536870912
  %v483 = vshrl.u32 %v482, 30
  %v484 = vshll.u32 %v483, 30
  %v485 = vsub.s32 %v481, %v484
  %vm486 = vcmp.lt.s32.totalorder %v485, 0
  %v487 = vsub.s32 0, %v485
  %v488 = vsel %vm486, %v487, %v485
  %v489 = vclz %v488
  %v490 = vsub.s32 %v489, 2
  %vm491 = vcmp.gt.s32.totalorder 0, %v490
  %v492 = vsel %vm491, 0, %v490
  %v493 = vsub.s32 32, %v492
  %v494 = vshll.u32 %v485, %v492
  %v495 = vshrl.u32 %v477, %v493
  %v496 = vor.u32 %v494, %v495
  %v497 = vsub.s32 4294967266, %v492
  %v498 = vadd.s32 %v497, 127
  %v499 = vshll.u32 %v498, 23
  %v500 = vor.u32 4788187, %v499
  %v501 = vand.u32 2147483647, %v500
  %v503 = vcvt.s32.f32 %v496
  %v504 = vmul.f32 %v503, %v501
  %v505 = vxor.u32 %v504, 2147483648
  %v506 = vsel %vm423, %v505, %v504
  %v507 = vsub.s32 4, %v483
  %v508 = vsel %vm423, %v507, %v483
  %v509 = vsel %vm422, %v315, %v506
  %v510 = vsel %vm422, 0, %v508
  %v511 = vcosq.f32.pop %v509
  %v512 = vsinq.f32.pop %v509
  %vm513 = vweird.f32 %v315
  %v514 = vadd.s32 %v510, 3
  %v515 = vand.u32 %v514, 3
  %vm516 = vcmp.lt.s32.totalorder %v515, 2
  %vm517 = vcmp.eq.s32.totalorder %v515, 0
  %v518 = vxor.u32 %v512, 2147483648
  %v519 = vsel %vm517, %v511, %v518
  %vm520 = vcmp.eq.s32.totalorder %v515, 2
  %v521 = vxor.u32 %v511, 2147483648
  %v522 = vsel %vm520, %v521, %v512
  %v523 = vsel %vm516, %v519, %v522
  %v524 = vsel %vm513, nan, %v523
  %vm525 = vcmask 15360
  %526 = vst.msk [vmem:[%s9] sm:$0xff] %vm525, %v420
  %528 = vrot.lane.b32.xlu0 %v524, 2
  %v529 = vpop.permute.xlu0 %528
  %vm531 = vcmask 31760
  %532 = vst.msk [vmem:[%s9] sm:$0xff] %vm531, %v529
  %v533 = vld [vmem:[%s5] sm:$0x3]
  %v534 = vld [vmem:[%s5 + $0x2] sm:$0x3]
  %v535 = vsel %vm525, %v524, 0
  %vm537 = vcmask 1041408
  %v539 = vsel %vm537, %v534, 0
  %541 = vmatprep.subr.mxu0 0.0
  %542 = vmatpush1.msra.mxu0 %v539
  %543 = vmatprep.subr.mxu0 0.0
  %544 = vmatpush1.msra.mxu0 0.0
  %545 = vmatprep.subr.mxu0 0.0
  %546 = vmatpush1.msra.mxu0 0.0
  %547 = vmatprep.subr.mxu0 0.0
  %548 = vmatpush1.msra.mxu0 0.0
  %549 = vmatprep.subr.mxu0 0.0
  %550 = vmatpush1.msra.mxu0 0.0
  %551 = vmatprep.subr.mxu0 0.0
  %552 = vmatpush1.msra.mxu0 0.0
  %553 = vmatprep.subr.mxu0 0.0
  %554 = vmatpush1.msra.mxu0 0.0
  %555 = vmatprep.subr.mxu0 0.0
  %556 = vmatpush1.msra.mxu0 0.0
  %557 = vmatprep.subr.mxu0 0.0
  %558 = vmatpush1.msra.mxu0 0.0
  %559 = vmatprep.subr.mxu0 0.0
  %560 = vmatpush1.msra.mxu0 0.0
  %561 = vmatprep.subr.mxu0 0.0
  %562 = vmatpush1.msra.mxu0 0.0
  %563 = vmatprep.subr.mxu0 0.0
  %564 = vmatpush1.msra.mxu0 0.0
  %565 = vmatprep.subr.mxu0 0.0
  %566 = vmatpush1.msra.mxu0 0.0
  %567 = vmatprep.subr.mxu0 0.0
  %568 = vmatpush1.msra.mxu0 0.0
  %569 = vmatprep.subr.mxu0 0.0
  %570 = vmatpush1.msra.mxu0 0.0
  %571 = vmatprep.subr.mxu0 0.0
  %572 = vmatpush1.msra.mxu0 0.0
  %573 = vmatprep.subr.mxu0 0.0
  %574 = vmatpush1.msra.mxu0 0.0
  %575 = vmatprep.subr.mxu0 0.0
  %576 = vmatpush1.msra.mxu0 0.0
  %577 = vmatprep.subr.mxu0 0.0
  %578 = vmatpush1.msra.mxu0 0.0
  %579 = vmatprep.subr.mxu0 0.0
  %580 = vmatpush1.msra.mxu0 0.0
  %581 = vmatprep.subr.mxu0 0.0
  %582 = vmatpush1.msra.mxu0 0.0
  %583 = vmatprep.subr.mxu0 0.0
  %584 = vmatpush1.msra.mxu0 0.0
  %585 = vmatprep.subr.mxu0 0.0
  %586 = vmatpush1.msra.mxu0 0.0
  %587 = vmatprep.subr.mxu0 0.0
  %588 = vmatpush1.msra.mxu0 0.0
  %589 = vmatprep.subr.mxu0 0.0
  %590 = vmatpush1.msra.mxu0 0.0
  %591 = vmatprep.subr.mxu0 0.0
  %592 = vmatpush1.msra.mxu0 0.0
  %593 = vmatprep.subr.mxu0 0.0
  %594 = vmatpush1.msra.mxu0 0.0
  %595 = vmatprep.subr.mxu0 0.0
  %596 = vmatpush1.msra.mxu0 0.0
  %597 = vmatprep.subr.mxu0 0.0
  %598 = vmatpush1.msra.mxu0 0.0
  %599 = vmatprep.subr.mxu0 0.0
  %600 = vmatpush1.msra.mxu0 0.0
  %601 = vmatprep.subr.mxu0 0.0
  %602 = vmatpush1.msra.mxu0 0.0
  %603 = vmatprep.subr.mxu0 0.0
  %604 = vmatpush1.msra.mxu0 0.0
  %605 = vmatprep.mubr.f32.mxu0 0.0
  %606 = vmatmul.mubr.f32.gmra.mrb[0].mxu0 %v535
  %v607 = vpop.f32.mrb[0].mxu0
  %v608 = vadd.f32 0.0, %v607
  %v609 = vpop.f32.mrb[0].mxu0
  %610 = vdwg.mxu0
  %v612 = vsel %vm525, %v420, 0
  %v615 = vsel %vm537, %v533, 0
  %617 = vmatprep.subr.mxu0 0.0
  %618 = vmatpush1.msra.mxu0 %v615
  %619 = vmatprep.subr.mxu0 0.0
  %620 = vmatpush1.msra.mxu0 0.0
  %621 = vmatprep.subr.mxu0 0.0
  %622 = vmatpush1.msra.mxu0 0.0
  %623 = vmatprep.subr.mxu0 0.0
  %624 = vmatpush1.msra.mxu0 0.0
  %625 = vmatprep.subr.mxu0 0.0
  %626 = vmatpush1.msra.mxu0 0.0
  %627 = vmatprep.subr.mxu0 0.0
  %628 = vmatpush1.msra.mxu0 0.0
  %629 = vmatprep.subr.mxu0 0.0
  %630 = vmatpush1.msra.mxu0 0.0
  %631 = vmatprep.subr.mxu0 0.0
  %632 = vmatpush1.msra.mxu0 0.0
  %633 = vmatprep.subr.mxu0 0.0
  %634 = vmatpush1.msra.mxu0 0.0
  %635 = vmatprep.subr.mxu0 0.0
  %636 = vmatpush1.msra.mxu0 0.0
  %637 = vmatprep.subr.mxu0 0.0
  %638 = vmatpush1.msra.mxu0 0.0
  %639 = vmatprep.subr.mxu0 0.0
  %640 = vmatpush1.msra.mxu0 0.0
  %641 = vmatprep.subr.mxu0 0.0
  %642 = vmatpush1.msra.mxu0 0.0
  %643 = vmatprep.subr.mxu0 0.0
  %644 = vmatpush1.msra.mxu0 0.0
  %645 = vmatprep.subr.mxu0 0.0
  %646 = vmatpush1.msra.mxu0 0.0
  %647 = vmatprep.subr.mxu0 0.0
  %648 = vmatpush1.msra.mxu0 0.0
  %649 = vmatprep.subr.mxu0 0.0
  %650 = vmatpush1.msra.mxu0 0.0
  %651 = vmatprep.subr.mxu0 0.0
  %652 = vmatpush1.msra.mxu0 0.0
  %653 = vmatprep.subr.mxu0 0.0
  %654 = vmatpush1.msra.mxu0 0.0
  %655 = vmatprep.subr.mxu0 0.0
  %656 = vmatpush1.msra.mxu0 0.0
  %657 = vmatprep.subr.mxu0 0.0
  %658 = vmatpush1.msra.mxu0 0.0
  %659 = vmatprep.subr.mxu0 0.0
  %660 = vmatpush1.msra.mxu0 0.0
  %661 = vmatprep.subr.mxu0 0.0
  %662 = vmatpush1.msra.mxu0 0.0
  %663 = vmatprep.subr.mxu0 0.0
  %664 = vmatpush1.msra.mxu0 0.0
  %665 = vmatprep.subr.mxu0 0.0
  %666 = vmatpush1.msra.mxu0 0.0
  %667 = vmatprep.subr.mxu0 0.0
  %668 = vmatpush1.msra.mxu0 0.0
  %669 = vmatprep.subr.mxu0 0.0
  %670 = vmatpush1.msra.mxu0 0.0
  %671 = vmatprep.subr.mxu0 0.0
  %672 = vmatpush1.msra.mxu0 0.0
  %673 = vmatprep.subr.mxu0 0.0
  %674 = vmatpush1.msra.mxu0 0.0
  %675 = vmatprep.subr.mxu0 0.0
  %676 = vmatpush1.msra.mxu0 0.0
  %677 = vmatprep.subr.mxu0 0.0
  %678 = vmatpush1.msra.mxu0 0.0
  %679 = vmatprep.subr.mxu0 0.0
  %680 = vmatpush1.msra.mxu0 0.0
  %681 = vmatprep.mubr.f32.mxu0 0.0
  %682 = vmatmul.mubr.f32.gmra.mrb[0].mxu0 %v612
  %v683 = vpop.f32.mrb[0].mxu0
  %v684 = vadd.f32 %v608, %v683
  %v685 = vpop.f32.mrb[0].mxu0
  %686 = vdwg.mxu0
  %v687 = vld [vmem:[%s6] sm:$0x1]
  %v689 = vlaneseq
  %v690 = vshrl.u32 %v689, 7
  %v691 = vsub.s32 0, %v690
  %v692 = vrot.slane %v687, %v691
  %v694 = vadd.f32 %v684, %v692
  %v695 = vmax.f32 %v694, 0.0
  %v696 = vld [vmem:[%s7] sm:$0xff]
  %v697 = vld [vmem:[%s7 + $0x8] sm:$0xff]
  %v698 = vld [vmem:[%s7 + $0x10] sm:$0xff]
  %v699 = vld [vmem:[%s7 + $0x18] sm:$0xff]
  %v700 = vld [vmem:[%s7 + $0x20] sm:$0xff]
  %v701 = vld [vmem:[%s7 + $0x28] sm:$0xff]
  %v702 = vld [vmem:[%s7 + $0x30] sm:$0xff]
  %v703 = vld [vmem:[%s7 + $0x38] sm:$0xff]
  %v704 = vld [vmem:[%s7 + $0x40] sm:$0xff]
  %v705 = vld [vmem:[%s7 + $0x48] sm:$0xff]
  %v706 = vld [vmem:[%s7 + $0x50] sm:$0xff]
  %v707 = vld [vmem:[%s7 + $0x58] sm:$0xff]
  %v708 = vld [vmem:[%s7 + $0x60] sm:$0xff]
  %v709 = vld [vmem:[%s7 + $0x68] sm:$0xff]
  %v710 = vld [vmem:[%s7 + $0x70] sm:$0xff]
  %v711 = vld [vmem:[%s7 + $0x78] sm:$0xff]
  %v712 = vld [vmem:[%s7 + $0x80] sm:$0xff]
  %v713 = vld [vmem:[%s7 + $0x88] sm:$0xff]
  %v714 = vld [vmem:[%s7 + $0x90] sm:$0xff]
  %v715 = vld [vmem:[%s7 + $0x98] sm:$0xff]
  %v716 = vld [vmem:[%s7 + $0xa0] sm:$0xff]
  %v717 = vld [vmem:[%s7 + $0xa8] sm:$0xff]
  %v718 = vld [vmem:[%s7 + $0xb0] sm:$0xff]
  %v719 = vld [vmem:[%s7 + $0xb8] sm:$0xff]
  %v720 = vld [vmem:[%s7 + $0xc0] sm:$0xff]
  %v721 = vld [vmem:[%s7 + $0xc8] sm:$0xff]
  %v722 = vld [vmem:[%s7 + $0xd0] sm:$0xff]
  %v723 = vld [vmem:[%s7 + $0xd8] sm:$0xff]
  %v724 = vld [vmem:[%s7 + $0xe0] sm:$0xff]
  %v725 = vld [vmem:[%s7 + $0xe8] sm:$0xff]
  %v726 = vld [vmem:[%s7 + $0xf0] sm:$0xff]
  %v727 = vld [vmem:[%s7 + $0xf8] sm:$0xff]
  %v728 = vld [vmem:[%s7 + $0x100] sm:$0xff]
  %v729 = vld [vmem:[%s7 + $0x108] sm:$0xff]
  %v730 = vld [vmem:[%s7 + $0x110] sm:$0xff]
  %v731 = vld [vmem:[%s7 + $0x118] sm:$0xff]
  %v732 = vld [vmem:[%s7 + $0x120] sm:$0xff]
  %v733 = vld [vmem:[%s7 + $0x128] sm:$0xff]
  %v734 = vld [vmem:[%s7 + $0x130] sm:$0xff]
  %v735 = vld [vmem:[%s7 + $0x138] sm:$0xff]
  %v736 = vld [vmem:[%s7 + $0x140] sm:$0xff]
  %v737 = vld [vmem:[%s7 + $0x148] sm:$0xff]
  %v738 = vld [vmem:[%s7 + $0x150] sm:$0xff]
  %v739 = vld [vmem:[%s7 + $0x158] sm:$0xff]
  %v740 = vld [vmem:[%s7 + $0x160] sm:$0xff]
  %v741 = vld [vmem:[%s7 + $0x168] sm:$0xff]
  %v742 = vld [vmem:[%s7 + $0x170] sm:$0xff]
  %v743 = vld [vmem:[%s7 + $0x178] sm:$0xff]
  %v744 = vld [vmem:[%s8] sm:$0x7]
  %v746 = vlaneseq
  %v747 = vshrl.u32 %v746, 7
  %v748 = vsub.s32 0, %v747
  %v749 = vrot.slane %v744, %v748
  %v750 = vlaneseq
  %v751 = vshrl.u32 %v750, 7
  %v752 = vsub.s32 1, %v751
  %v753 = vrot.slane %v744, %v752
  %v754 = vlaneseq
  %v755 = vshrl.u32 %v754, 7
  %v756 = vsub.s32 2, %v755
  %v757 = vrot.slane %v744, %v756
  %761 = vmatprep.subr.mxu0 %v697
  %762 = vmatpush1.msra.mxu0 %v696
  %763 = vmatprep.subr.mxu0 %v700
  %764 = vmatpush1.msra.mxu0 %v699
  %765 = vmatprep.subr.mxu0 %v703
  %766 = vmatpush1.msra.mxu0 %v702
  %767 = vmatprep.subr.mxu0 %v706
  %768 = vmatpush1.msra.mxu0 %v705
  %769 = vmatprep.subr.mxu0 %v709
  %770 = vmatpush1.msra.mxu0 %v708
  %771 = vmatprep.subr.mxu0 %v712
  %772 = vmatpush1.msra.mxu0 %v711
  %773 = vmatprep.subr.mxu0 %v715
  %774 = vmatpush1.msra.mxu0 %v714
  %775 = vmatprep.subr.mxu0 %v718
  %776 = vmatpush1.msra.mxu0 %v717
  %777 = vmatprep.subr.mxu0 %v721
  %778 = vmatpush1.msra.mxu0 %v720
  %779 = vmatprep.subr.mxu0 %v724
  %780 = vmatpush1.msra.mxu0 %v723
  %781 = vmatprep.subr.mxu0 %v727
  %782 = vmatpush1.msra.mxu0 %v726
  %783 = vmatprep.subr.mxu0 %v730
  %784 = vmatpush1.msra.mxu0 %v729
  %785 = vmatprep.subr.mxu0 %v733
  %786 = vmatpush1.msra.mxu0 %v732
  %787 = vmatprep.subr.mxu0 %v736
  %788 = vmatpush1.msra.mxu0 %v735
  %789 = vmatprep.subr.mxu0 %v739
  %790 = vmatpush1.msra.mxu0 %v738
  %791 = vmatprep.subr.mxu0 %v742
  %792 = vmatpush1.msra.mxu0 %v741
  %793 = vmatprep.subr.mxu0 0.0
  %794 = vmatpush1.msra.mxu0 0.0
  %795 = vmatprep.subr.mxu0 0.0
  %796 = vmatpush1.msra.mxu0 0.0
  %797 = vmatprep.subr.mxu0 0.0
  %798 = vmatpush1.msra.mxu0 0.0
  %799 = vmatprep.subr.mxu0 0.0
  %800 = vmatpush1.msra.mxu0 0.0
  %801 = vmatprep.subr.mxu0 0.0
  %802 = vmatpush1.msra.mxu0 0.0
  %803 = vmatprep.subr.mxu0 0.0
  %804 = vmatpush1.msra.mxu0 0.0
  %805 = vmatprep.subr.mxu0 0.0
  %806 = vmatpush1.msra.mxu0 0.0
  %807 = vmatprep.subr.mxu0 0.0
  %808 = vmatpush1.msra.mxu0 0.0
  %809 = vmatprep.subr.mxu0 0.0
  %810 = vmatpush1.msra.mxu0 0.0
  %811 = vmatprep.subr.mxu0 0.0
  %812 = vmatpush1.msra.mxu0 0.0
  %813 = vmatprep.subr.mxu0 0.0
  %814 = vmatpush1.msra.mxu0 0.0
  %815 = vmatprep.subr.mxu0 0.0
  %816 = vmatpush1.msra.mxu0 0.0
  %817 = vmatprep.subr.mxu0 0.0
  %818 = vmatpush1.msra.mxu0 0.0
  %819 = vmatprep.subr.mxu0 0.0
  %820 = vmatpush1.msra.mxu0 0.0
  %821 = vmatprep.subr.mxu0 0.0
  %822 = vmatpush1.msra.mxu0 0.0
  %823 = vmatprep.subr.mxu0 0.0
  %824 = vmatpush1.msra.mxu0 0.0
  %825 = vmatprep.mubr.f32.mxu0 0.0
  %826 = vmatmul.mubr.f32.gmra.mrb[0].mxu0 %v695
  %v827 = vpop.f32.mrb[0].mxu0
  %v828 = vadd.f32 %v749, %v827
  %v829 = vpop.f32.mrb[0].mxu0
  %v830 = vadd.f32 %v753, %v829
  %831 = vdwg.mxu0
  %832 = vmatprep.subr.mxu0 0.0
  %833 = vmatpush1.msra.mxu0 %v698
  %834 = vmatprep.subr.mxu0 0.0
  %835 = vmatpush1.msra.mxu0 %v701
  %836 = vmatprep.subr.mxu0 0.0
  %837 = vmatpush1.msra.mxu0 %v704
  %838 = vmatprep.subr.mxu0 0.0
  %839 = vmatpush1.msra.mxu0 %v707
  %840 = vmatprep.subr.mxu0 0.0
  %841 = vmatpush1.msra.mxu0 %v710
  %842 = vmatprep.subr.mxu0 0.0
  %843 = vmatpush1.msra.mxu0 %v713
  %844 = vmatprep.subr.mxu0 0.0
  %845 = vmatpush1.msra.mxu0 %v716
  %846 = vmatprep.subr.mxu0 0.0
  %847 = vmatpush1.msra.mxu0 %v719
  %848 = vmatprep.subr.mxu0 0.0
  %849 = vmatpush1.msra.mxu0 %v722
  %850 = vmatprep.subr.mxu0 0.0
  %851 = vmatpush1.msra.mxu0 %v725
  %852 = vmatprep.subr.mxu0 0.0
  %853 = vmatpush1.msra.mxu0 %v728
  %854 = vmatprep.subr.mxu0 0.0
  %855 = vmatpush1.msra.mxu0 %v731
  %856 = vmatprep.subr.mxu0 0.0
  %857 = vmatpush1.msra.mxu0 %v734
  %858 = vmatprep.subr.mxu0 0.0
  %859 = vmatpush1.msra.mxu0 %v737
  %860 = vmatprep.subr.mxu0 0.0
  %861 = vmatpush1.msra.mxu0 %v740
  %862 = vmatprep.subr.mxu0 0.0
  %863 = vmatpush1.msra.mxu0 %v743
  %864 = vmatprep.subr.mxu0 0.0
  %865 = vmatpush1.msra.mxu0 0.0
  %866 = vmatprep.subr.mxu0 0.0
  %867 = vmatpush1.msra.mxu0 0.0
  %868 = vmatprep.subr.mxu0 0.0
  %869 = vmatpush1.msra.mxu0 0.0
  %870 = vmatprep.subr.mxu0 0.0
  %871 = vmatpush1.msra.mxu0 0.0
  %872 = vmatprep.subr.mxu0 0.0
  %873 = vmatpush1.msra.mxu0 0.0
  %874 = vmatprep.subr.mxu0 0.0
  %875 = vmatpush1.msra.mxu0 0.0
  %876 = vmatprep.subr.mxu0 0.0
  %877 = vmatpush1.msra.mxu0 0.0
  %878 = vmatprep.subr.mxu0 0.0
  %879 = vmatpush1.msra.mxu0 0.0
  %880 = vmatprep.subr.mxu0 0.0
  %881 = vmatpush1.msra.mxu0 0.0
  %882 = vmatprep.subr.mxu0 0.0
  %883 = vmatpush1.msra.mxu0 0.0
  %884 = vmatprep.subr.mxu0 0.0
  %885 = vmatpush1.msra.mxu0 0.0
  %886 = vmatprep.subr.mxu0 0.0
  %887 = vmatpush1.msra.mxu0 0.0
  %888 = vmatprep.subr.mxu0 0.0
  %889 = vmatpush1.msra.mxu0 0.0
  %890 = vmatprep.subr.mxu0 0.0
  %891 = vmatpush1.msra.mxu0 0.0
  %892 = vmatprep.subr.mxu0 0.0
  %893 = vmatpush1.msra.mxu0 0.0
  %894 = vmatprep.subr.mxu0 0.0
  %895 = vmatpush1.msra.mxu0 0.0
  %896 = vmatprep.mubr.f32.mxu0 0.0
  %897 = vmatmul.mubr.f32.gmra.mrb[0].mxu0 %v695
  %v898 = vpop.f32.mrb[0].mxu0
  %v899 = vadd.f32 %v757, %v898
  %v900 = vpop.f32.mrb[0].mxu0
  %901 = vdwg.mxu0
  %v902 = vmax.f32 %v828, 0.0
  %v903 = vmax.f32 %v830, 0.0
  %v904 = vmax.f32 %v899, 0.0
  %905 = vst [vmem:[%s10] sm:$0xff] %v902
  %906 = vst [vmem:[%s10 + $0x8] sm:$0xff] %v903
  %907 = vst.msk [vmem:[%s10 + $0x10] sm:$0xff] %vm80, %v904
  // Predicated region
  $region38: #{torus_conv_ae_forward.14} parent=0 // pred_check
    _
  $region39: #{torus_conv_ae_forward.14} parent=0 // pred_check_branch
    %909 = sbr.rel (0) target = $region41
  $region40: #{torus_conv_ae_forward.14} parent=0 // pred_region
    _
  $region41: #{torus_conv_ae_forward.14} parent=0 // pred_fallthru
    _
  // Predicated region
  $region42: #{torus_conv_ae_forward.14} parent=0 // pred_check
    _
  $region43: #{torus_conv_ae_forward.14} parent=0 // pred_check_branch
    %911 = sbr.rel (0) target = $region45
  $region44: #{torus_conv_ae_forward.14} parent=0 // pred_region
    _
  $region45: #{torus_conv_ae_forward.14} parent=0 // pred_fallthru
    _
  // Predicated region
  $region46: #{torus_conv_ae_forward.14} parent=0 // pred_check
    _
  $region47: #{torus_conv_ae_forward.14} parent=0 // pred_check_branch
    %913 = sbr.rel (0) target = $region49
  $region48: #{torus_conv_ae_forward.14} parent=0 // pred_region
    _
  $region49: #{torus_conv_ae_forward.14} parent=0 // pred_fallthru
    _
  // Predicated region
  $region50: #{torus_conv_ae_forward.14} parent=0 // pred_check
    _
  $region51: #{torus_conv_ae_forward.14} parent=0 // pred_check_branch
    %915 = sbr.rel (0) target = $region53
  $region52: #{torus_conv_ae_forward.14} parent=0 // pred_region
    _
  $region53: #{torus_conv_ae_forward.14} parent=0 // pred_fallthru
    _

// kernel: torus_conv_ae_forward.15
$region0: #{torus_conv_ae_forward.15}
  #allocation0 [shape = 'u32[]', space=smem, size = 0x4, offset = 0x4, fixed_abs, tag = 'smem constant byte address 0x4 - core index']
  #allocation1 [shape = 'u32[144,128]{1,0:T(1,128)}', space=vmem, size = 0x12000, scoped, tag = 'internal scratch']
  #allocation2 [shape = 'f32[128,20]{1,0:T(8,128)}', space=vmem, size = 0x10000, scoped, tag = 'scratch operand']
  %s0 = inlined_call_operand.vmem [shape: f32[2,32,26], index: 0, kind: input, shape index: {}]
  %s1 = inlined_call_operand.vmem [shape: f32[64,128], index: 1, kind: input, shape index: {}]
  %s2 = inlined_call_operand.vmem [shape: f32[64,20], index: 2, kind: input, shape index: {}]
  %s3 = inlined_call_operand.vmem [shape: f32[2,64,20], index: 3, kind: output, shape index: {0}]
  %s4 = inlined_call_operand.vmem [shape: f32[1,64,1], index: 4, kind: output, shape index: {1}]
  %s5 = inlined_call_operand.vmem [shape: f32[1,64,1], index: 5, kind: output, shape index: {2}]
  %6 = xla_tuple %s3, %s4, %s5
  %s7 = sld [smem:[#allocation0]]
  $region38: #{torus_conv_ae_forward.15} parent=0
    _
  %s9 = ssub.s32 1, %s7
  %s10 = scalar_select 0, %s9, %s7
  // Predicated region
  $region2: #{torus_conv_ae_forward.15} parent=0 // pred_check
    _
  $region3: #{torus_conv_ae_forward.15} parent=0 // pred_check_branch
    %12 = sbr.rel (0) target = $region5
  $region4: #{torus_conv_ae_forward.15} parent=0 // pred_region
    _
  $region5: #{torus_conv_ae_forward.15} parent=0 // pred_fallthru
    _
  // Predicated region
  $region6: #{torus_conv_ae_forward.15} parent=0 // pred_check
    _
  $region7: #{torus_conv_ae_forward.15} parent=0 // pred_check_branch
    %14 = sbr.rel (0) target = $region9
  $region8: #{torus_conv_ae_forward.15} parent=0 // pred_region
    _
  $region9: #{torus_conv_ae_forward.15} parent=0 // pred_fallthru
    _
  // Predicated region
  $region10: #{torus_conv_ae_forward.15} parent=0 // pred_check
    _
  $region11: #{torus_conv_ae_forward.15} parent=0 // pred_check_branch
    %16 = sbr.rel (0) target = $region13
  $region12: #{torus_conv_ae_forward.15} parent=0 // pred_region
    _
  $region13: #{torus_conv_ae_forward.15} parent=0 // pred_fallthru
    _
  %v17 = vld [vmem:[%s1] sm:$0xff]
  %v18 = vld [vmem:[%s1 + $0x8] sm:$0xff]
  %v19 = vld [vmem:[%s1 + $0x10] sm:$0xff]
  %v20 = vld [vmem:[%s1 + $0x18] sm:$0xff]
  %v21 = vld [vmem:[%s1 + $0x20] sm:$0xff]
  %v22 = vld [vmem:[%s1 + $0x28] sm:$0xff]
  %v23 = vld [vmem:[%s1 + $0x30] sm:$0xff]
  %v24 = vld [vmem:[%s1 + $0x38] sm:$0xff]
  %v25 = vld [vmem:[%s2] sm:$0xff]
  %v26 = vld [vmem:[%s2 + $0x8] sm:$0xff]
  %v27 = vld [vmem:[%s2 + $0x10] sm:$0xff]
  %v28 = vld [vmem:[%s2 + $0x18] sm:$0xff]
  %v29 = vld [vmem:[%s2 + $0x20] sm:$0xff]
  %v30 = vld [vmem:[%s2 + $0x28] sm:$0xff]
  %v31 = vld [vmem:[%s2 + $0x30] sm:$0xff]
  %v32 = vld [vmem:[%s2 + $0x38] sm:$0xff]
  %v33 = vld [vmem:[%s0] sm:$0xff]
  %v34 = vld [vmem:[%s0 + $0x8] sm:$0xff]
  %v35 = vld [vmem:[%s0 + $0x10] sm:$0xff]
  %v36 = vld [vmem:[%s0 + $0x18] sm:$0xff]
  %vm37 = vcmask 162816
  %38 = vst.msk [vmem:[#allocation2] sm:$0xff] %vm37, %v33
  %39 = vst.msk [vmem:[#allocation2 + $0x8] sm:$0xff] %vm37, %v34
  %40 = vst.msk [vmem:[#allocation2 + $0x10] sm:$0xff] %vm37, %v35
  %41 = vst.msk [vmem:[#allocation2 + $0x18] sm:$0xff] %vm37, %v36
  %v42 = vld [vmem:[%s0] sm:$0xff]
  %v43 = vld [vmem:[%s0 + $0x8] sm:$0xff]
  %v44 = vld [vmem:[%s0 + $0x10] sm:$0xff]
  %v45 = vld [vmem:[%s0 + $0x18] sm:$0xff]
  %50 = vrot.lane.b32.xlu0 %v42, 127
  %v51 = vpop.permute.xlu0 %50
  %52 = vrot.lane.b32.xlu0 %v43, 127
  %v53 = vpop.permute.xlu0 %52
  %54 = vrot.lane.b32.xlu0 %v44, 127
  %v55 = vpop.permute.xlu0 %54
  %56 = vrot.lane.b32.xlu0 %v45, 127
  %v57 = vpop.permute.xlu0 %56
  %62 = vst.msk [vmem:[#allocation2 + $0x20] sm:$0xff] %vm37, %v51
  %63 = vst.msk [vmem:[#allocation2 + $0x28] sm:$0xff] %vm37, %v53
  %64 = vst.msk [vmem:[#allocation2 + $0x30] sm:$0xff] %vm37, %v55
  %65 = vst.msk [vmem:[#allocation2 + $0x38] sm:$0xff] %vm37, %v57
  %v66 = vld [vmem:[%s0] sm:$0xff]
  %v67 = vld [vmem:[%s0 + $0x8] sm:$0xff]
  %v68 = vld [vmem:[%s0 + $0x10] sm:$0xff]
  %v69 = vld [vmem:[%s0 + $0x18] sm:$0xff]
  %74 = vrot.lane.b32.xlu0 %v66, 123
  %v75 = vpop.permute.xlu0 %74
  %76 = vrot.lane.b32.xlu0 %v67, 123
  %v77 = vpop.permute.xlu0 %76
  %78 = vrot.lane.b32.xlu0 %v68, 123
  %v79 = vpop.permute.xlu0 %78
  %80 = vrot.lane.b32.xlu0 %v69, 123
  %v81 = vpop.permute.xlu0 %80
  %86 = vst.msk [vmem:[#allocation2 + $0x40] sm:$0xff] %vm37, %v75
  %87 = vst.msk [vmem:[#allocation2 + $0x48] sm:$0xff] %vm37, %v77
  %88 = vst.msk [vmem:[#allocation2 + $0x50] sm:$0xff] %vm37, %v79
  %89 = vst.msk [vmem:[#allocation2 + $0x58] sm:$0xff] %vm37, %v81
  %v90 = vld [vmem:[%s0] sm:$0xff]
  %v91 = vld [vmem:[%s0 + $0x8] sm:$0xff]
  %v92 = vld [vmem:[%s0 + $0x10] sm:$0xff]
  %v93 = vld [vmem:[%s0 + $0x18] sm:$0xff]
  %98 = vrot.lane.b32.xlu0 %v90, 122
  %v99 = vpop.permute.xlu0 %98
  %100 = vrot.lane.b32.xlu0 %v91, 122
  %v101 = vpop.permute.xlu0 %100
  %102 = vrot.lane.b32.xlu0 %v92, 122
  %v103 = vpop.permute.xlu0 %102
  %104 = vrot.lane.b32.xlu0 %v93, 122
  %v105 = vpop.permute.xlu0 %104
  %110 = vst.msk [vmem:[#allocation2 + $0x60] sm:$0xff] %vm37, %v99
  %111 = vst.msk [vmem:[#allocation2 + $0x68] sm:$0xff] %vm37, %v101
  %112 = vst.msk [vmem:[#allocation2 + $0x70] sm:$0xff] %vm37, %v103
  %113 = vst.msk [vmem:[#allocation2 + $0x78] sm:$0xff] %vm37, %v105
  %v114 = vld [vmem:[#allocation2] sm:$0xff]
  %v115 = vld [vmem:[#allocation2 + $0x8] sm:$0xff]
  %v116 = vld [vmem:[#allocation2 + $0x10] sm:$0xff]
  %v117 = vld [vmem:[#allocation2 + $0x18] sm:$0xff]
  %v118 = vld [vmem:[#allocation2 + $0x20] sm:$0xff]
  %v119 = vld [vmem:[#allocation2 + $0x28] sm:$0xff]
  %v120 = vld [vmem:[#allocation2 + $0x30] sm:$0xff]
  %v121 = vld [vmem:[#allocation2 + $0x38] sm:$0xff]
  %v122 = vld [vmem:[#allocation2 + $0x40] sm:$0xff]
  %v123 = vld [vmem:[#allocation2 + $0x48] sm:$0xff]
  %v124 = vld [vmem:[#allocation2 + $0x50] sm:$0xff]
  %v125 = vld [vmem:[#allocation2 + $0x58] sm:$0xff]
  %v126 = vld [vmem:[#allocation2 + $0x60] sm:$0xff]
  %v127 = vld [vmem:[#allocation2 + $0x68] sm:$0xff]
  %v128 = vld [vmem:[#allocation2 + $0x70] sm:$0xff]
  %v129 = vld [vmem:[#allocation2 + $0x78] sm:$0xff]
  %130 = vmatprep.subr.mxu0 0.0
  %131 = vmatpush1.msra.mxu0 %v114
  %132 = vmatprep.subr.mxu0 0.0
  %133 = vmatpush1.msra.mxu0 %v115
  %134 = vmatprep.subr.mxu0 0.0
  %135 = vmatpush1.msra.mxu0 %v116
  %136 = vmatprep.subr.mxu0 0.0
  %137 = vmatpush1.msra.mxu0 %v117
  %138 = vmatprep.subr.mxu0 0.0
  %139 = vmatpush1.msra.mxu0 %v118
  %140 = vmatprep.subr.mxu0 0.0
  %141 = vmatpush1.msra.mxu0 %v119
  %142 = vmatprep.subr.mxu0 0.0
  %143 = vmatpush1.msra.mxu0 %v120
  %144 = vmatprep.subr.mxu0 0.0
  %145 = vmatpush1.msra.mxu0 %v121
  %146 = vmatprep.subr.mxu0 0.0
  %147 = vmatpush1.msra.mxu0 %v122
  %148 = vmatprep.subr.mxu0 0.0
  %149 = vmatpush1.msra.mxu0 %v123
  %150 = vmatprep.subr.mxu0 0.0
  %151 = vmatpush1.msra.mxu0 %v124
  %152 = vmatprep.subr.mxu0 0.0
  %153 = vmatpush1.msra.mxu0 %v125
  %154 = vmatprep.subr.mxu0 0.0
  %155 = vmatpush1.msra.mxu0 %v126
  %156 = vmatprep.subr.mxu0 0.0
  %157 = vmatpush1.msra.mxu0 %v127
  %158 = vmatprep.subr.mxu0 0.0
  %159 = vmatpush1.msra.mxu0 %v128
  %160 = vmatprep.subr.mxu0 0.0
  %161 = vmatpush1.msra.mxu0 %v129
  %162 = vmatprep.subr.mxu0 0.0
  %163 = vmatpush1.msra.mxu0 0.0
  %164 = vmatprep.subr.mxu0 0.0
  %165 = vmatpush1.msra.mxu0 0.0
  %166 = vmatprep.subr.mxu0 0.0
  %167 = vmatpush1.msra.mxu0 0.0
  %168 = vmatprep.subr.mxu0 0.0
  %169 = vmatpush1.msra.mxu0 0.0
  %170 = vmatprep.subr.mxu0 0.0
  %171 = vmatpush1.msra.mxu0 0.0
  %172 = vmatprep.subr.mxu0 0.0
  %173 = vmatpush1.msra.mxu0 0.0
  %174 = vmatprep.subr.mxu0 0.0
  %175 = vmatpush1.msra.mxu0 0.0
  %176 = vmatprep.subr.mxu0 0.0
  %177 = vmatpush1.msra.mxu0 0.0
  %178 = vmatprep.subr.mxu0 0.0
  %179 = vmatpush1.msra.mxu0 0.0
  %180 = vmatprep.subr.mxu0 0.0
  %181 = vmatpush1.msra.mxu0 0.0
  %182 = vmatprep.subr.mxu0 0.0
  %183 = vmatpush1.msra.mxu0 0.0
  %184 = vmatprep.subr.mxu0 0.0
  %185 = vmatpush1.msra.mxu0 0.0
  %186 = vmatprep.subr.mxu0 0.0
  %187 = vmatpush1.msra.mxu0 0.0
  %188 = vmatprep.subr.mxu0 0.0
  %189 = vmatpush1.msra.mxu0 0.0
  %190 = vmatprep.subr.mxu0 0.0
  %191 = vmatpush1.msra.mxu0 0.0
  %192 = vmatprep.subr.mxu0 0.0
  %193 = vmatpush1.msra.mxu0 0.0
  %194 = vmatprep.mubr.f32.mxu0 0.0
  %195 = vmatmul.mubr.f32.gmra.mrb[0].mxu0 %v17
  %v196 = vpop.f32.mrb[0].mxu0
  %v197 = vadd.f32 0.0, %v196
  %v198 = vpop.f32.mrb[0].mxu0
  %199 = vmatprep.mubr.f32.mxu0 0.0
  %200 = vmatmul.mubr.f32.gmra.mrb[0].mxu0 %v18
  %v201 = vpop.f32.mrb[0].mxu0
  %v202 = vadd.f32 0.0, %v201
  %v203 = vpop.f32.mrb[0].mxu0
  %204 = vmatprep.mubr.f32.mxu0 0.0
  %205 = vmatmul.mubr.f32.gmra.mrb[0].mxu0 %v19
  %v206 = vpop.f32.mrb[0].mxu0
  %v207 = vadd.f32 0.0, %v206
  %v208 = vpop.f32.mrb[0].mxu0
  %209 = vmatprep.mubr.f32.mxu0 0.0
  %210 = vmatmul.mubr.f32.gmra.mrb[0].mxu0 %v20
  %v211 = vpop.f32.mrb[0].mxu0
  %v212 = vadd.f32 0.0, %v211
  %v213 = vpop.f32.mrb[0].mxu0
  %214 = vmatprep.mubr.f32.mxu0 0.0
  %215 = vmatmul.mubr.f32.gmra.mrb[0].mxu0 %v21
  %v216 = vpop.f32.mrb[0].mxu0
  %v217 = vadd.f32 0.0, %v216
  %v218 = vpop.f32.mrb[0].mxu0
  %219 = vmatprep.mubr.f32.mxu0 0.0
  %220 = vmatmul.mubr.f32.gmra.mrb[0].mxu0 %v22
  %v221 = vpop.f32.mrb[0].mxu0
  %v222 = vadd.f32 0.0, %v221
  %v223 = vpop.f32.mrb[0].mxu0
  %224 = vmatprep.mubr.f32.mxu0 0.0
  %225 = vmatmul.mubr.f32.gmra.mrb[0].mxu0 %v23
  %v226 = vpop.f32.mrb[0].mxu0
  %v227 = vadd.f32 0.0, %v226
  %v228 = vpop.f32.mrb[0].mxu0
  %229 = vmatprep.mubr.f32.mxu0 0.0
  %230 = vmatmul.mubr.f32.gmra.mrb[0].mxu0 %v24
  %v231 = vpop.f32.mrb[0].mxu0
  %v232 = vadd.f32 0.0, %v231
  %v233 = vpop.f32.mrb[0].mxu0
  %234 = vdwg.mxu0
  %235 = vst.msk [vmem:[%s3] sm:$0xff] %vm37, %v197
  %236 = vst.msk [vmem:[%s3 + $0x8] sm:$0xff] %vm37, %v202
  %237 = vst.msk [vmem:[%s3 + $0x10] sm:$0xff] %vm37, %v207
  %238 = vst.msk [vmem:[%s3 + $0x18] sm:$0xff] %vm37, %v212
  %239 = vst.msk [vmem:[%s3 + $0x20] sm:$0xff] %vm37, %v217
  %240 = vst.msk [vmem:[%s3 + $0x28] sm:$0xff] %vm37, %v222
  %241 = vst.msk [vmem:[%s3 + $0x30] sm:$0xff] %vm37, %v227
  %242 = vst.msk [vmem:[%s3 + $0x38] sm:$0xff] %vm37, %v232
  %v243 = vmul.f32 %v197, %v25
  %v244 = vmul.f32 %v202, %v26
  %v245 = vmul.f32 %v207, %v27
  %v246 = vmul.f32 %v212, %v28
  %v247 = vmul.f32 %v217, %v29
  %v248 = vmul.f32 %v222, %v30
  %v249 = vmul.f32 %v227, %v31
  %v250 = vmul.f32 %v232, %v32
  %v251 = vsel %vm37, %v243, 0.0
  %252 = vadd.xlane.f32.xlu0 %v251
  %v253 = vpop.xlane.xlu0 %252
  %v254 = vsel %vm37, %v244, 0.0
  %255 = vadd.xlane.f32.xlu0 %v254
  %v256 = vpop.xlane.xlu0 %255
  %v257 = vsel %vm37, %v245, 0.0
  %258 = vadd.xlane.f32.xlu0 %v257
  %v259 = vpop.xlane.xlu0 %258
  %v260 = vsel %vm37, %v246, 0.0
  %261 = vadd.xlane.f32.xlu0 %v260
  %v262 = vpop.xlane.xlu0 %261
  %v263 = vsel %vm37, %v247, 0.0
  %264 = vadd.xlane.f32.xlu0 %v263
  %v265 = vpop.xlane.xlu0 %264
  %v266 = vsel %vm37, %v248, 0.0
  %267 = vadd.xlane.f32.xlu0 %v266
  %v268 = vpop.xlane.xlu0 %267
  %v269 = vsel %vm37, %v249, 0.0
  %270 = vadd.xlane.f32.xlu0 %v269
  %v271 = vpop.xlane.xlu0 %270
  %v272 = vsel %vm37, %v250, 0.0
  %273 = vadd.xlane.f32.xlu0 %v272
  %v274 = vpop.xlane.xlu0 %273
  %v275 = vadd.f32 %v253, 0.0
  %v276 = vadd.f32 %v256, 0.0
  %v277 = vadd.f32 %v259, 0.0
  %v278 = vadd.f32 %v262, 0.0
  %v279 = vadd.f32 %v265, 0.0
  %v280 = vadd.f32 %v268, 0.0
  %v281 = vadd.f32 %v271, 0.0
  %v282 = vadd.f32 %v274, 0.0
  %v283 = vmul.f32 %v243, %v197
  %v284 = vmul.f32 %v244, %v202
  %v285 = vmul.f32 %v245, %v207
  %v286 = vmul.f32 %v246, %v212
  %v287 = vmul.f32 %v247, %v217
  %v288 = vmul.f32 %v248, %v222
  %v289 = vmul.f32 %v249, %v227
  %v290 = vmul.f32 %v250, %v232
  %v291 = vsel %vm37, %v283, 0.0
  %292 = vadd.xlane.f32.xlu0 %v291
  %v293 = vpop.xlane.xlu0 %292
  %v294 = vsel %vm37, %v284, 0.0
  %295 = vadd.xlane.f32.xlu0 %v294
  %v296 = vpop.xlane.xlu0 %295
  %v297 = vsel %vm37, %v285, 0.0
  %298 = vadd.xlane.f32.xlu0 %v297
  %v299 = vpop.xlane.xlu0 %298
  %v300 = vsel %vm37, %v286, 0.0
  %301 = vadd.xlane.f32.xlu0 %v300
  %v302 = vpop.xlane.xlu0 %301
  %v303 = vsel %vm37, %v287, 0.0
  %304 = vadd.xlane.f32.xlu0 %v303
  %v305 = vpop.xlane.xlu0 %304
  %v306 = vsel %vm37, %v288, 0.0
  %307 = vadd.xlane.f32.xlu0 %v306
  %v308 = vpop.xlane.xlu0 %307
  %v309 = vsel %vm37, %v289, 0.0
  %310 = vadd.xlane.f32.xlu0 %v309
  %v311 = vpop.xlane.xlu0 %310
  %v312 = vsel %vm37, %v290, 0.0
  %313 = vadd.xlane.f32.xlu0 %v312
  %v314 = vpop.xlane.xlu0 %313
  %v315 = vadd.f32 %v293, 0.0
  %v316 = vadd.f32 %v296, 0.0
  %v317 = vadd.f32 %v299, 0.0
  %v318 = vadd.f32 %v302, 0.0
  %v319 = vadd.f32 %v305, 0.0
  %v320 = vadd.f32 %v308, 0.0
  %v321 = vadd.f32 %v311, 0.0
  %v322 = vadd.f32 %v314, 0.0
  %s323 = scalar_lea.vmem %s0, 32
  %v324 = vld [vmem:[%s323] sm:$0xff]
  %v325 = vld [vmem:[%s323 + $0x8] sm:$0xff]
  %v326 = vld [vmem:[%s323 + $0x10] sm:$0xff]
  %v327 = vld [vmem:[%s323 + $0x18] sm:$0xff]
  %328 = vst.msk [vmem:[#allocation2] sm:$0xff] %vm37, %v324
  %329 = vst.msk [vmem:[#allocation2 + $0x8] sm:$0xff] %vm37, %v325
  %330 = vst.msk [vmem:[#allocation2 + $0x10] sm:$0xff] %vm37, %v326
  %331 = vst.msk [vmem:[#allocation2 + $0x18] sm:$0xff] %vm37, %v327
  %v332 = vld [vmem:[%s323] sm:$0xff]
  %v333 = vld [vmem:[%s323 + $0x8] sm:$0xff]
  %v334 = vld [vmem:[%s323 + $0x10] sm:$0xff]
  %v335 = vld [vmem:[%s323 + $0x18] sm:$0xff]
  %340 = vrot.lane.b32.xlu0 %v332, 127
  %v341 = vpop.permute.xlu0 %340
  %342 = vrot.lane.b32.xlu0 %v333, 127
  %v343 = vpop.permute.xlu0 %342
  %344 = vrot.lane.b32.xlu0 %v334, 127
  %v345 = vpop.permute.xlu0 %344
  %346 = vrot.lane.b32.xlu0 %v335, 127
  %v347 = vpop.permute.xlu0 %346
  %352 = vst.msk [vmem:[#allocation2 + $0x20] sm:$0xff] %vm37, %v341
  %353 = vst.msk [vmem:[#allocation2 + $0x28] sm:$0xff] %vm37, %v343
  %354 = vst.msk [vmem:[#allocation2 + $0x30] sm:$0xff] %vm37, %v345
  %355 = vst.msk [vmem:[#allocation2 + $0x38] sm:$0xff] %vm37, %v347
  %v356 = vld [vmem:[%s323] sm:$0xff]
  %v357 = vld [vmem:[%s323 + $0x8] sm:$0xff]
  %v358 = vld [vmem:[%s323 + $0x10] sm:$0xff]
  %v359 = vld [vmem:[%s323 + $0x18] sm:$0xff]
  %364 = vrot.lane.b32.xlu0 %v356, 123
  %v365 = vpop.permute.xlu0 %364
  %366 = vrot.lane.b32.xlu0 %v357, 123
  %v367 = vpop.permute.xlu0 %366
  %368 = vrot.lane.b32.xlu0 %v358, 123
  %v369 = vpop.permute.xlu0 %368
  %370 = vrot.lane.b32.xlu0 %v359, 123
  %v371 = vpop.permute.xlu0 %370
  %376 = vst.msk [vmem:[#allocation2 + $0x40] sm:$0xff] %vm37, %v365
  %377 = vst.msk [vmem:[#allocation2 + $0x48] sm:$0xff] %vm37, %v367
  %378 = vst.msk [vmem:[#allocation2 + $0x50] sm:$0xff] %vm37, %v369
  %379 = vst.msk [vmem:[#allocation2 + $0x58] sm:$0xff] %vm37, %v371
  %v380 = vld [vmem:[%s323] sm:$0xff]
  %v381 = vld [vmem:[%s323 + $0x8] sm:$0xff]
  %v382 = vld [vmem:[%s323 + $0x10] sm:$0xff]
  %v383 = vld [vmem:[%s323 + $0x18] sm:$0xff]
  %388 = vrot.lane.b32.xlu0 %v380, 122
  %v389 = vpop.permute.xlu0 %388
  %390 = vrot.lane.b32.xlu0 %v381, 122
  %v391 = vpop.permute.xlu0 %390
  %392 = vrot.lane.b32.xlu0 %v382, 122
  %v393 = vpop.permute.xlu0 %392
  %394 = vrot.lane.b32.xlu0 %v383, 122
  %v395 = vpop.permute.xlu0 %394
  %400 = vst.msk [vmem:[#allocation2 + $0x60] sm:$0xff] %vm37, %v389
  %401 = vst.msk [vmem:[#allocation2 + $0x68] sm:$0xff] %vm37, %v391
  %402 = vst.msk [vmem:[#allocation2 + $0x70] sm:$0xff] %vm37, %v393
  %403 = vst.msk [vmem:[#allocation2 + $0x78] sm:$0xff] %vm37, %v395
  %v404 = vld [vmem:[#allocation2] sm:$0xff]
  %v405 = vld [vmem:[#allocation2 + $0x8] sm:$0xff]
  %v406 = vld [vmem:[#allocation2 + $0x10] sm:$0xff]
  %v407 = vld [vmem:[#allocation2 + $0x18] sm:$0xff]
  %v408 = vld [vmem:[#allocation2 + $0x20] sm:$0xff]
  %v409 = vld [vmem:[#allocation2 + $0x28] sm:$0xff]
  %v410 = vld [vmem:[#allocation2 + $0x30] sm:$0xff]
  %v411 = vld [vmem:[#allocation2 + $0x38] sm:$0xff]
  %v412 = vld [vmem:[#allocation2 + $0x40] sm:$0xff]
  %v413 = vld [vmem:[#allocation2 + $0x48] sm:$0xff]
  %v414 = vld [vmem:[#allocation2 + $0x50] sm:$0xff]
  %v415 = vld [vmem:[#allocation2 + $0x58] sm:$0xff]
  %v416 = vld [vmem:[#allocation2 + $0x60] sm:$0xff]
  %v417 = vld [vmem:[#allocation2 + $0x68] sm:$0xff]
  %v418 = vld [vmem:[#allocation2 + $0x70] sm:$0xff]
  %v419 = vld [vmem:[#allocation2 + $0x78] sm:$0xff]
  %420 = vmatprep.subr.mxu0 0.0
  %421 = vmatpush1.msra.mxu0 %v404
  %422 = vmatprep.subr.mxu0 0.0
  %423 = vmatpush1.msra.mxu0 %v405
  %424 = vmatprep.subr.mxu0 0.0
  %425 = vmatpush1.msra.mxu0 %v406
  %426 = vmatprep.subr.mxu0 0.0
  %427 = vmatpush1.msra.mxu0 %v407
  %428 = vmatprep.subr.mxu0 0.0
  %429 = vmatpush1.msra.mxu0 %v408
  %430 = vmatprep.subr.mxu0 0.0
  %431 = vmatpush1.msra.mxu0 %v409
  %432 = vmatprep.subr.mxu0 0.0
  %433 = vmatpush1.msra.mxu0 %v410
  %434 = vmatprep.subr.mxu0 0.0
  %435 = vmatpush1.msra.mxu0 %v411
  %436 = vmatprep.subr.mxu0 0.0
  %437 = vmatpush1.msra.mxu0 %v412
  %438 = vmatprep.subr.mxu0 0.0
  %439 = vmatpush1.msra.mxu0 %v413
  %440 = vmatprep.subr.mxu0 0.0
  %441 = vmatpush1.msra.mxu0 %v414
  %442 = vmatprep.subr.mxu0 0.0
  %443 = vmatpush1.msra.mxu0 %v415
  %444 = vmatprep.subr.mxu0 0.0
  %445 = vmatpush1.msra.mxu0 %v416
  %446 = vmatprep.subr.mxu0 0.0
  %447 = vmatpush1.msra.mxu0 %v417
  %448 = vmatprep.subr.mxu0 0.0
  %449 = vmatpush1.msra.mxu0 %v418
  %450 = vmatprep.subr.mxu0 0.0
  %451 = vmatpush1.msra.mxu0 %v419
  %452 = vmatprep.subr.mxu0 0.0
  %453 = vmatpush1.msra.mxu0 0.0
  %454 = vmatprep.subr.mxu0 0.0
  %455 = vmatpush1.msra.mxu0 0.0
  %456 = vmatprep.subr.mxu0 0.0
  %457 = vmatpush1.msra.mxu0 0.0
  %458 = vmatprep.subr.mxu0 0.0
  %459 = vmatpush1.msra.mxu0 0.0
  %460 = vmatprep.subr.mxu0 0.0
  %461 = vmatpush1.msra.mxu0 0.0
  %462 = vmatprep.subr.mxu0 0.0
  %463 = vmatpush1.msra.mxu0 0.0
  %464 = vmatprep.subr.mxu0 0.0
  %465 = vmatpush1.msra.mxu0 0.0
  %466 = vmatprep.subr.mxu0 0.0
  %467 = vmatpush1.msra.mxu0 0.0
  %468 = vmatprep.subr.mxu0 0.0
  %469 = vmatpush1.msra.mxu0 0.0
  %470 = vmatprep.subr.mxu0 0.0
  %471 = vmatpush1.msra.mxu0 0.0
  %472 = vmatprep.subr.mxu0 0.0
  %473 = vmatpush1.msra.mxu0 0.0
  %474 = vmatprep.subr.mxu0 0.0
  %475 = vmatpush1.msra.mxu0 0.0
  %476 = vmatprep.subr.mxu0 0.0
  %477 = vmatpush1.msra.mxu0 0.0
  %478 = vmatprep.subr.mxu0 0.0
  %479 = vmatpush1.msra.mxu0 0.0
  %480 = vmatprep.subr.mxu0 0.0
  %481 = vmatpush1.msra.mxu0 0.0
  %482 = vmatprep.subr.mxu0 0.0
  %483 = vmatpush1.msra.mxu0 0.0
  %484 = vmatprep.mubr.f32.mxu0 0.0
  %485 = vmatmul.mubr.f32.gmra.mrb[0].mxu0 %v17
  %v486 = vpop.f32.mrb[0].mxu0
  %v487 = vadd.f32 0.0, %v486
  %v488 = vpop.f32.mrb[0].mxu0
  %489 = vmatprep.mubr.f32.mxu0 0.0
  %490 = vmatmul.mubr.f32.gmra.mrb[0].mxu0 %v18
  %v491 = vpop.f32.mrb[0].mxu0
  %v492 = vadd.f32 0.0, %v491
  %v493 = vpop.f32.mrb[0].mxu0
  %494 = vmatprep.mubr.f32.mxu0 0.0
  %495 = vmatmul.mubr.f32.gmra.mrb[0].mxu0 %v19
  %v496 = vpop.f32.mrb[0].mxu0
  %v497 = vadd.f32 0.0, %v496
  %v498 = vpop.f32.mrb[0].mxu0
  %499 = vmatprep.mubr.f32.mxu0 0.0
  %500 = vmatmul.mubr.f32.gmra.mrb[0].mxu0 %v20
  %v501 = vpop.f32.mrb[0].mxu0
  %v502 = vadd.f32 0.0, %v501
  %v503 = vpop.f32.mrb[0].mxu0
  %504 = vmatprep.mubr.f32.mxu0 0.0
  %505 = vmatmul.mubr.f32.gmra.mrb[0].mxu0 %v21
  %v506 = vpop.f32.mrb[0].mxu0
  %v507 = vadd.f32 0.0, %v506
  %v508 = vpop.f32.mrb[0].mxu0
  %509 = vmatprep.mubr.f32.mxu0 0.0
  %510 = vmatmul.mubr.f32.gmra.mrb[0].mxu0 %v22
  %v511 = vpop.f32.mrb[0].mxu0
  %v512 = vadd.f32 0.0, %v511
  %v513 = vpop.f32.mrb[0].mxu0
  %514 = vmatprep.mubr.f32.mxu0 0.0
  %515 = vmatmul.mubr.f32.gmra.mrb[0].mxu0 %v23
  %v516 = vpop.f32.mrb[0].mxu0
  %v517 = vadd.f32 0.0, %v516
  %v518 = vpop.f32.mrb[0].mxu0
  %519 = vmatprep.mubr.f32.mxu0 0.0
  %520 = vmatmul.mubr.f32.gmra.mrb[0].mxu0 %v24
  %v521 = vpop.f32.mrb[0].mxu0
  %v522 = vadd.f32 0.0, %v521
  %v523 = vpop.f32.mrb[0].mxu0
  %524 = vdwg.mxu0
  %s525 = scalar_lea.vmem %s3, 64
  %526 = vst.msk [vmem:[%s525] sm:$0xff] %vm37, %v487
  %527 = vst.msk [vmem:[%s525 + $0x8] sm:$0xff] %vm37, %v492
  %528 = vst.msk [vmem:[%s525 + $0x10] sm:$0xff] %vm37, %v497
  %529 = vst.msk [vmem:[%s525 + $0x18] sm:$0xff] %vm37, %v502
  %530 = vst.msk [vmem:[%s525 + $0x20] sm:$0xff] %vm37, %v507
  %531 = vst.msk [vmem:[%s525 + $0x28] sm:$0xff] %vm37, %v512
  %532 = vst.msk [vmem:[%s525 + $0x30] sm:$0xff] %vm37, %v517
  %533 = vst.msk [vmem:[%s525 + $0x38] sm:$0xff] %vm37, %v522
  %v534 = vmul.f32 %v487, %v25
  %v535 = vmul.f32 %v492, %v26
  %v536 = vmul.f32 %v497, %v27
  %v537 = vmul.f32 %v502, %v28
  %v538 = vmul.f32 %v507, %v29
  %v539 = vmul.f32 %v512, %v30
  %v540 = vmul.f32 %v517, %v31
  %v541 = vmul.f32 %v522, %v32
  %v542 = vsel %vm37, %v534, 0.0
  %543 = vadd.xlane.f32.xlu0 %v542
  %v544 = vpop.xlane.xlu0 %543
  %v545 = vsel %vm37, %v535, 0.0
  %546 = vadd.xlane.f32.xlu0 %v545
  %v547 = vpop.xlane.xlu0 %546
  %v548 = vsel %vm37, %v536, 0.0
  %549 = vadd.xlane.f32.xlu0 %v548
  %v550 = vpop.xlane.xlu0 %549
  %v551 = vsel %vm37, %v537, 0.0
  %552 = vadd.xlane.f32.xlu0 %v551
  %v553 = vpop.xlane.xlu0 %552
  %v554 = vsel %vm37, %v538, 0.0
  %555 = vadd.xlane.f32.xlu0 %v554
  %v556 = vpop.xlane.xlu0 %555
  %v557 = vsel %vm37, %v539, 0.0
  %558 = vadd.xlane.f32.xlu0 %v557
  %v559 = vpop.xlane.xlu0 %558
  %v560 = vsel %vm37, %v540, 0.0
  %561 = vadd.xlane.f32.xlu0 %v560
  %v562 = vpop.xlane.xlu0 %561
  %v563 = vsel %vm37, %v541, 0.0
  %564 = vadd.xlane.f32.xlu0 %v563
  %v565 = vpop.xlane.xlu0 %564
  %v566 = vadd.f32 %v275, %v544
  %v567 = vadd.f32 %v276, %v547
  %v568 = vadd.f32 %v277, %v550
  %v569 = vadd.f32 %v278, %v553
  %v570 = vadd.f32 %v279, %v556
  %v571 = vadd.f32 %v280, %v559
  %v572 = vadd.f32 %v281, %v562
  %v573 = vadd.f32 %v282, %v565
  %v574 = vmul.f32 %v534, %v487
  %v575 = vmul.f32 %v535, %v492
  %v576 = vmul.f32 %v536, %v497
  %v577 = vmul.f32 %v537, %v502
  %v578 = vmul.f32 %v538, %v507
  %v579 = vmul.f32 %v539, %v512
  %v580 = vmul.f32 %v540, %v517
  %v581 = vmul.f32 %v541, %v522
  %v582 = vsel %vm37, %v574, 0.0
  %583 = vadd.xlane.f32.xlu0 %v582
  %v584 = vpop.xlane.xlu0 %583
  %v585 = vsel %vm37, %v575, 0.0
  %586 = vadd.xlane.f32.xlu0 %v585
  %v587 = vpop.xlane.xlu0 %586
  %v588 = vsel %vm37, %v576, 0.0
  %589 = vadd.xlane.f32.xlu0 %v588
  %v590 = vpop.xlane.xlu0 %589
  %v591 = vsel %vm37, %v577, 0.0
  %592 = vadd.xlane.f32.xlu0 %v591
  %v593 = vpop.xlane.xlu0 %592
  %v594 = vsel %vm37, %v578, 0.0
  %595 = vadd.xlane.f32.xlu0 %v594
  %v596 = vpop.xlane.xlu0 %595
  %v597 = vsel %vm37, %v579, 0.0
  %598 = vadd.xlane.f32.xlu0 %v597
  %v599 = vpop.xlane.xlu0 %598
  %v600 = vsel %vm37, %v580, 0.0
  %601 = vadd.xlane.f32.xlu0 %v600
  %v602 = vpop.xlane.xlu0 %601
  %v603 = vsel %vm37, %v581, 0.0
  %604 = vadd.xlane.f32.xlu0 %v603
  %v605 = vpop.xlane.xlu0 %604
  %v606 = vadd.f32 %v315, %v584
  %v607 = vadd.f32 %v316, %v587
  %v608 = vadd.f32 %v317, %v590
  %v609 = vadd.f32 %v318, %v593
  %v610 = vadd.f32 %v319, %v596
  %v611 = vadd.f32 %v320, %v599
  %v612 = vadd.f32 %v321, %v602
  %v613 = vadd.f32 %v322, %v605
  %vm614 = vcmask 7168
  %615 = vst.msk [vmem:[%s4] sm:$0xff] %vm614, %v566
  %616 = vst.msk [vmem:[%s4 + $0x8] sm:$0xff] %vm614, %v567
  %617 = vst.msk [vmem:[%s4 + $0x10] sm:$0xff] %vm614, %v568
  %618 = vst.msk [vmem:[%s4 + $0x18] sm:$0xff] %vm614, %v569
  %619 = vst.msk [vmem:[%s4 + $0x20] sm:$0xff] %vm614, %v570
  %620 = vst.msk [vmem:[%s4 + $0x28] sm:$0xff] %vm614, %v571
  %621 = vst.msk [vmem:[%s4 + $0x30] sm:$0xff] %vm614, %v572
  %622 = vst.msk [vmem:[%s4 + $0x38] sm:$0xff] %vm614, %v573
  %623 = vst.msk [vmem:[%s5] sm:$0xff] %vm614, %v606
  %624 = vst.msk [vmem:[%s5 + $0x8] sm:$0xff] %vm614, %v607
  %625 = vst.msk [vmem:[%s5 + $0x10] sm:$0xff] %vm614, %v608
  %626 = vst.msk [vmem:[%s5 + $0x18] sm:$0xff] %vm614, %v609
  %627 = vst.msk [vmem:[%s5 + $0x20] sm:$0xff] %vm614, %v610
  %628 = vst.msk [vmem:[%s5 + $0x28] sm:$0xff] %vm614, %v611
  %629 = vst.msk [vmem:[%s5 + $0x30] sm:$0xff] %vm614, %v612
  %630 = vst.msk [vmem:[%s5 + $0x38] sm:$0xff] %vm614, %v613
  // Predicated region
  $region14: #{torus_conv_ae_forward.15} parent=0 // pred_check
    _
  $region15: #{torus_conv_ae_forward.15} parent=0 // pred_check_branch
    %632 = sbr.rel (0) target = $region17
  $region16: #{torus_conv_ae_forward.15} parent=0 // pred_region
    _
  $region17: #{torus_conv_ae_forward.15} parent=0 // pred_fallthru
    _
  // Predicated region
  $region18: #{torus_conv_ae_forward.15} parent=0 // pred_check
    _
  $region19: #{torus_conv_ae_forward.15} parent=0 // pred_check_branch
    %634 = sbr.rel (0) target = $region21
  $region20: #{torus_conv_ae_forward.15} parent=0 // pred_region
    _
  $region21: #{torus_conv_ae_forward.15} parent=0 // pred_fallthru
    _
  // Predicated region
  $region22: #{torus_conv_ae_forward.15} parent=0 // pred_check
    _
  $region23: #{torus_conv_ae_forward.15} parent=0 // pred_check_branch
    %636 = sbr.rel (0) target = $region25
  $region24: #{torus_conv_ae_forward.15} parent=0 // pred_region
    _
  $region25: #{torus_conv_ae_forward.15} parent=0 // pred_fallthru
    _
  // Predicated region
  $region26: #{torus_conv_ae_forward.15} parent=0 // pred_check
    _
  $region27: #{torus_conv_ae_forward.15} parent=0 // pred_check_branch
    %638 = sbr.rel (0) target = $region29
  $region28: #{torus_conv_ae_forward.15} parent=0 // pred_region
    _
  $region29: #{torus_conv_ae_forward.15} parent=0 // pred_fallthru
    _
  // Predicated region
  $region30: #{torus_conv_ae_forward.15} parent=0 // pred_check
    _
  $region31: #{torus_conv_ae_forward.15} parent=0 // pred_check_branch
    %640 = sbr.rel (0) target = $region33
  $region32: #{torus_conv_ae_forward.15} parent=0 // pred_region
    _
  $region33: #{torus_conv_ae_forward.15} parent=0 // pred_fallthru
    _
  // Predicated region
  $region34: #{torus_conv_ae_forward.15} parent=0 // pred_check
    _
  $region35: #{torus_conv_ae_forward.15} parent=0 // pred_check_branch
    %642 = sbr.rel (0) target = $region37
  $region36: #{torus_conv_ae_forward.15} parent=0 // pred_region
    _
  $region37: #{torus_conv_ae_forward.15} parent=0 // pred_fallthru
    _

// kernel: torus_conv_ae_forward.16
$region0: #{torus_conv_ae_forward.16}
  #allocation0 [shape = 'u32[]', space=smem, size = 0x4, offset = 0x4, fixed_abs, tag = 'smem constant byte address 0x4 - core index']
  #allocation1 [shape = 'u32[144,128]{1,0:T(1,128)}', space=vmem, size = 0x12000, scoped, tag = 'internal scratch']
  #allocation2 [shape = 'f32[64,56]{1,0:T(8,128)}', space=vmem, size = 0x8000, scoped, tag = 'scratch operand']
  %s0 = inlined_call_operand.vmem [shape: f32[2,16,65], index: 0, kind: input, shape index: {}]
  %s1 = inlined_call_operand.vmem [shape: f32[32,64], index: 1, kind: input, shape index: {}]
  %s2 = inlined_call_operand.vmem [shape: f32[32,56], index: 2, kind: input, shape index: {}]
  %s3 = inlined_call_operand.vmem [shape: f32[2,32,56], index: 3, kind: output, shape index: {0}]
  %s4 = inlined_call_operand.vmem [shape: f32[1,32,1], index: 4, kind: output, shape index: {1}]
  %s5 = inlined_call_operand.vmem [shape: f32[1,32,1], index: 5, kind: output, shape index: {2}]
  %6 = xla_tuple %s3, %s4, %s5
  %s7 = sld [smem:[#allocation0]]
  $region38: #{torus_conv_ae_forward.16} parent=0
    _
  %s9 = ssub.s32 1, %s7
  %s10 = scalar_select 0, %s9, %s7
  // Predicated region
  $region2: #{torus_conv_ae_forward.16} parent=0 // pred_check
    _
  $region3: #{torus_conv_ae_forward.16} parent=0 // pred_check_branch
    %12 = sbr.rel (0) target = $region5
  $region4: #{torus_conv_ae_forward.16} parent=0 // pred_region
    _
  $region5: #{torus_conv_ae_forward.16} parent=0 // pred_fallthru
    _
  // Predicated region
  $region6: #{torus_conv_ae_forward.16} parent=0 // pred_check
    _
  $region7: #{torus_conv_ae_forward.16} parent=0 // pred_check_branch
    %14 = sbr.rel (0) target = $region9
  $region8: #{torus_conv_ae_forward.16} parent=0 // pred_region
    _
  $region9: #{torus_conv_ae_forward.16} parent=0 // pred_fallthru
    _
  // Predicated region
  $region10: #{torus_conv_ae_forward.16} parent=0 // pred_check
    _
  $region11: #{torus_conv_ae_forward.16} parent=0 // pred_check_branch
    %16 = sbr.rel (0) target = $region13
  $region12: #{torus_conv_ae_forward.16} parent=0 // pred_region
    _
  $region13: #{torus_conv_ae_forward.16} parent=0 // pred_fallthru
    _
  %v17 = vld [vmem:[%s1] sm:$0xff]
  %v18 = vld [vmem:[%s1 + $0x8] sm:$0xff]
  %v19 = vld [vmem:[%s1 + $0x10] sm:$0xff]
  %v20 = vld [vmem:[%s1 + $0x18] sm:$0xff]
  %v21 = vld [vmem:[%s2] sm:$0xff]
  %v22 = vld [vmem:[%s2 + $0x8] sm:$0xff]
  %v23 = vld [vmem:[%s2 + $0x10] sm:$0xff]
  %v24 = vld [vmem:[%s2 + $0x18] sm:$0xff]
  %v25 = vld [vmem:[%s0] sm:$0xff]
  %v26 = vld [vmem:[%s0 + $0x8] sm:$0xff]
  %vm27 = vcmask 457728
  %28 = vst.msk [vmem:[#allocation2] sm:$0xff] %vm27, %v25
  %29 = vst.msk [vmem:[#allocation2 + $0x8] sm:$0xff] %vm27, %v26
  %v30 = vld [vmem:[%s0] sm:$0xff]
  %v31 = vld [vmem:[%s0 + $0x8] sm:$0xff]
  %34 = vrot.lane.b32.xlu0 %v30, 127
  %v35 = vpop.permute.xlu0 %34
  %36 = vrot.lane.b32.xlu0 %v31, 127
  %v37 = vpop.permute.xlu0 %36
  %40 = vst.msk [vmem:[#allocation2 + $0x10] sm:$0xff] %vm27, %v35
  %41 = vst.msk [vmem:[#allocation2 + $0x18] sm:$0xff] %vm27, %v37
  %v42 = vld [vmem:[%s0] sm:$0xff]
  %v43 = vld [vmem:[%s0 + $0x8] sm:$0xff]
  %46 = vrot.lane.b32.xlu0 %v42, 120
  %v47 = vpop.permute.xlu0 %46
  %48 = vrot.lane.b32.xlu0 %v43, 120
  %v49 = vpop.permute.xlu0 %48
  %52 = vst.msk [vmem:[#allocation2 + $0x20] sm:$0xff] %vm27, %v47
  %53 = vst.msk [vmem:[#allocation2 + $0x28] sm:$0xff] %vm27, %v49
  %v54 = vld [vmem:[%s0] sm:$0xff]
  %v55 = vld [vmem:[%s0 + $0x8] sm:$0xff]
  %58 = vrot.lane.b32.xlu0 %v54, 119
  %v59 = vpop.permute.xlu0 %58
  %60 = vrot.lane.b32.xlu0 %v55, 119
  %v61 = vpop.permute.xlu0 %60
  %64 = vst.msk [vmem:[#allocation2 + $0x30] sm:$0xff] %vm27, %v59
  %65 = vst.msk [vmem:[#allocation2 + $0x38] sm:$0xff] %vm27, %v61
  %v66 = vld [vmem:[#allocation2] sm:$0xff]
  %v67 = vld [vmem:[#allocation2 + $0x8] sm:$0xff]
  %v68 = vld [vmem:[#allocation2 + $0x10] sm:$0xff]
  %v69 = vld [vmem:[#allocation2 + $0x18] sm:$0xff]
  %v70 = vld [vmem:[#allocation2 + $0x20] sm:$0xff]
  %v71 = vld [vmem:[#allocation2 + $0x28] sm:$0xff]
  %v72 = vld [vmem:[#allocation2 + $0x30] sm:$0xff]
  %v73 = vld [vmem:[#allocation2 + $0x38] sm:$0xff]
  %vm74 = vcmask 523264
  %v76 = vsel %vm74, %v17, 0
  %v79 = vsel %vm74, %v18, 0
  %v82 = vsel %vm74, %v19, 0
  %v85 = vsel %vm74, %v20, 0
  %87 = vmatprep.subr.mxu0 0.0
  %88 = vmatpush1.msra.mxu0 %v66
  %89 = vmatprep.subr.mxu0 0.0
  %90 = vmatpush1.msra.mxu0 %v67
  %91 = vmatprep.subr.mxu0 0.0
  %92 = vmatpush1.msra.mxu0 %v68
  %93 = vmatprep.subr.mxu0 0.0
  %94 = vmatpush1.msra.mxu0 %v69
  %95 = vmatprep.subr.mxu0 0.0
  %96 = vmatpush1.msra.mxu0 %v70
  %97 = vmatprep.subr.mxu0 0.0
  %98 = vmatpush1.msra.mxu0 %v71
  %99 = vmatprep.subr.mxu0 0.0
  %100 = vmatpush1.msra.mxu0 %v72
  %101 = vmatprep.subr.mxu0 0.0
  %102 = vmatpush1.msra.mxu0 %v73
  %103 = vmatprep.subr.mxu0 0.0
  %104 = vmatpush1.msra.mxu0 0.0
  %105 = vmatprep.subr.mxu0 0.0
  %106 = vmatpush1.msra.mxu0 0.0
  %107 = vmatprep.subr.mxu0 0.0
  %108 = vmatpush1.msra.mxu0 0.0
  %109 = vmatprep.subr.mxu0 0.0
  %110 = vmatpush1.msra.mxu0 0.0
  %111 = vmatprep.subr.mxu0 0.0
  %112 = vmatpush1.msra.mxu0 0.0
  %113 = vmatprep.subr.mxu0 0.0
  %114 = vmatpush1.msra.mxu0 0.0
  %115 = vmatprep.subr.mxu0 0.0
  %116 = vmatpush1.msra.mxu0 0.0
  %117 = vmatprep.subr.mxu0 0.0
  %118 = vmatpush1.msra.mxu0 0.0
  %119 = vmatprep.subr.mxu0 0.0
  %120 = vmatpush1.msra.mxu0 0.0
  %121 = vmatprep.subr.mxu0 0.0
  %122 = vmatpush1.msra.mxu0 0.0
  %123 = vmatprep.subr.mxu0 0.0
  %124 = vmatpush1.msra.mxu0 0.0
  %125 = vmatprep.subr.mxu0 0.0
  %126 = vmatpush1.msra.mxu0 0.0
  %127 = vmatprep.subr.mxu0 0.0
  %128 = vmatpush1.msra.mxu0 0.0
  %129 = vmatprep.subr.mxu0 0.0
  %130 = vmatpush1.msra.mxu0 0.0
  %131 = vmatprep.subr.mxu0 0.0
  %132 = vmatpush1.msra.mxu0 0.0
  %133 = vmatprep.subr.mxu0 0.0
  %134 = vmatpush1.msra.mxu0 0.0
  %135 = vmatprep.subr.mxu0 0.0
  %136 = vmatpush1.msra.mxu0 0.0
  %137 = vmatprep.subr.mxu0 0.0
  %138 = vmatpush1.msra.mxu0 0.0
  %139 = vmatprep.subr.mxu0 0.0
  %140 = vmatpush1.msra.mxu0 0.0
  %141 = vmatprep.subr.mxu0 0.0
  %142 = vmatpush1.msra.mxu0 0.0
  %143 = vmatprep.subr.mxu0 0.0
  %144 = vmatpush1.msra.mxu0 0.0
  %145 = vmatprep.subr.mxu0 0.0
  %146 = vmatpush1.msra.mxu0 0.0
  %147 = vmatprep.subr.mxu0 0.0
  %148 = vmatpush1.msra.mxu0 0.0
  %149 = vmatprep.subr.mxu0 0.0
  %150 = vmatpush1.msra.mxu0 0.0
  %151 = vmatprep.mubr.f32.mxu0 0.0
  %152 = vmatmul.mubr.f32.gmra.mrb[0].mxu0 %v76
  %v153 = vpop.f32.mrb[0].mxu0
  %v154 = vadd.f32 0.0, %v153
  %v155 = vpop.f32.mrb[0].mxu0
  %156 = vmatprep.mubr.f32.mxu0 0.0
  %157 = vmatmul.mubr.f32.gmra.mrb[0].mxu0 %v79
  %v158 = vpop.f32.mrb[0].mxu0
  %v159 = vadd.f32 0.0, %v158
  %v160 = vpop.f32.mrb[0].mxu0
  %161 = vmatprep.mubr.f32.mxu0 0.0
  %162 = vmatmul.mubr.f32.gmra.mrb[0].mxu0 %v82
  %v163 = vpop.f32.mrb[0].mxu0
  %v164 = vadd.f32 0.0, %v163
  %v165 = vpop.f32.mrb[0].mxu0
  %166 = vmatprep.mubr.f32.mxu0 0.0
  %167 = vmatmul.mubr.f32.gmra.mrb[0].mxu0 %v85
  %v168 = vpop.f32.mrb[0].mxu0
  %v169 = vadd.f32 0.0, %v168
  %v170 = vpop.f32.mrb[0].mxu0
  %171 = vdwg.mxu0
  %172 = vst.msk [vmem:[%s3] sm:$0xff] %vm27, %v154
  %173 = vst.msk [vmem:[%s3 + $0x8] sm:$0xff] %vm27, %v159
  %174 = vst.msk [vmem:[%s3 + $0x10] sm:$0xff] %vm27, %v164
  %175 = vst.msk [vmem:[%s3 + $0x18] sm:$0xff] %vm27, %v169
  %v176 = vmul.f32 %v154, %v21
  %v177 = vmul.f32 %v159, %v22
  %v178 = vmul.f32 %v164, %v23
  %v179 = vmul.f32 %v169, %v24
  %v180 = vsel %vm27, %v176, 0.0
  %181 = vadd.xlane.f32.xlu0 %v180
  %v182 = vpop.xlane.xlu0 %181
  %v183 = vsel %vm27, %v177, 0.0
  %184 = vadd.xlane.f32.xlu0 %v183
  %v185 = vpop.xlane.xlu0 %184
  %v186 = vsel %vm27, %v178, 0.0
  %187 = vadd.xlane.f32.xlu0 %v186
  %v188 = vpop.xlane.xlu0 %187
  %v189 = vsel %vm27, %v179, 0.0
  %190 = vadd.xlane.f32.xlu0 %v189
  %v191 = vpop.xlane.xlu0 %190
  %v192 = vadd.f32 %v182, 0.0
  %v193 = vadd.f32 %v185, 0.0
  %v194 = vadd.f32 %v188, 0.0
  %v195 = vadd.f32 %v191, 0.0
  %v196 = vmul.f32 %v176, %v154
  %v197 = vmul.f32 %v177, %v159
  %v198 = vmul.f32 %v178, %v164
  %v199 = vmul.f32 %v179, %v169
  %v200 = vsel %vm27, %v196, 0.0
  %201 = vadd.xlane.f32.xlu0 %v200
  %v202 = vpop.xlane.xlu0 %201
  %v203 = vsel %vm27, %v197, 0.0
  %204 = vadd.xlane.f32.xlu0 %v203
  %v205 = vpop.xlane.xlu0 %204
  %v206 = vsel %vm27, %v198, 0.0
  %207 = vadd.xlane.f32.xlu0 %v206
  %v208 = vpop.xlane.xlu0 %207
  %v209 = vsel %vm27, %v199, 0.0
  %210 = vadd.xlane.f32.xlu0 %v209
  %v211 = vpop.xlane.xlu0 %210
  %v212 = vadd.f32 %v202, 0.0
  %v213 = vadd.f32 %v205, 0.0
  %v214 = vadd.f32 %v208, 0.0
  %v215 = vadd.f32 %v211, 0.0
  %s216 = scalar_lea.vmem %s0, 16
  %v217 = vld [vmem:[%s216] sm:$0xff]
  %v218 = vld [vmem:[%s216 + $0x8] sm:$0xff]
  %219 = vst.msk [vmem:[#allocation2] sm:$0xff] %vm27, %v217
  %220 = vst.msk [vmem:[#allocation2 + $0x8] sm:$0xff] %vm27, %v218
  %v221 = vld [vmem:[%s216] sm:$0xff]
  %v222 = vld [vmem:[%s216 + $0x8] sm:$0xff]
  %225 = vrot.lane.b32.xlu0 %v221, 127
  %v226 = vpop.permute.xlu0 %225
  %227 = vrot.lane.b32.xlu0 %v222, 127
  %v228 = vpop.permute.xlu0 %227
  %231 = vst.msk [vmem:[#allocation2 + $0x10] sm:$0xff] %vm27, %v226
  %232 = vst.msk [vmem:[#allocation2 + $0x18] sm:$0xff] %vm27, %v228
  %v233 = vld [vmem:[%s216] sm:$0xff]
  %v234 = vld [vmem:[%s216 + $0x8] sm:$0xff]
  %237 = vrot.lane.b32.xlu0 %v233, 120
  %v238 = vpop.permute.xlu0 %237
  %239 = vrot.lane.b32.xlu0 %v234, 120
  %v240 = vpop.permute.xlu0 %239
  %243 = vst.msk [vmem:[#allocation2 + $0x20] sm:$0xff] %vm27, %v238
  %244 = vst.msk [vmem:[#allocation2 + $0x28] sm:$0xff] %vm27, %v240
  %v245 = vld [vmem:[%s216] sm:$0xff]
  %v246 = vld [vmem:[%s216 + $0x8] sm:$0xff]
  %249 = vrot.lane.b32.xlu0 %v245, 119
  %v250 = vpop.permute.xlu0 %249
  %251 = vrot.lane.b32.xlu0 %v246, 119
  %v252 = vpop.permute.xlu0 %251
  %255 = vst.msk [vmem:[#allocation2 + $0x30] sm:$0xff] %vm27, %v250
  %256 = vst.msk [vmem:[#allocation2 + $0x38] sm:$0xff] %vm27, %v252
  %v257 = vld [vmem:[#allocation2] sm:$0xff]
  %v258 = vld [vmem:[#allocation2 + $0x8] sm:$0xff]
  %v259 = vld [vmem:[#allocation2 + $0x10] sm:$0xff]
  %v260 = vld [vmem:[#allocation2 + $0x18] sm:$0xff]
  %v261 = vld [vmem:[#allocation2 + $0x20] sm:$0xff]
  %v262 = vld [vmem:[#allocation2 + $0x28] sm:$0xff]
  %v263 = vld [vmem:[#allocation2 + $0x30] sm:$0xff]
  %v264 = vld [vmem:[#allocation2 + $0x38] sm:$0xff]
  %265 = vmatprep.subr.mxu0 0.0
  %266 = vmatpush1.msra.mxu0 %v257
  %267 = vmatprep.subr.mxu0 0.0
  %268 = vmatpush1.msra.mxu0 %v258
  %269 = vmatprep.subr.mxu0 0.0
  %270 = vmatpush1.msra.mxu0 %v259
  %271 = vmatprep.subr.mxu0 0.0
  %272 = vmatpush1.msra.mxu0 %v260
  %273 = vmatprep.subr.mxu0 0.0
  %274 = vmatpush1.msra.mxu0 %v261
  %275 = vmatprep.subr.mxu0 0.0
  %276 = vmatpush1.msra.mxu0 %v262
  %277 = vmatprep.subr.mxu0 0.0
  %278 = vmatpush1.msra.mxu0 %v263
  %279 = vmatprep.subr.mxu0 0.0
  %280 = vmatpush1.msra.mxu0 %v264
  %281 = vmatprep.subr.mxu0 0.0
  %282 = vmatpush1.msra.mxu0 0.0
  %283 = vmatprep.subr.mxu0 0.0
  %284 = vmatpush1.msra.mxu0 0.0
  %285 = vmatprep.subr.mxu0 0.0
  %286 = vmatpush1.msra.mxu0 0.0
  %287 = vmatprep.subr.mxu0 0.0
  %288 = vmatpush1.msra.mxu0 0.0
  %289 = vmatprep.subr.mxu0 0.0
  %290 = vmatpush1.msra.mxu0 0.0
  %291 = vmatprep.subr.mxu0 0.0
  %292 = vmatpush1.msra.mxu0 0.0
  %293 = vmatprep.subr.mxu0 0.0
  %294 = vmatpush1.msra.mxu0 0.0
  %295 = vmatprep.subr.mxu0 0.0
  %296 = vmatpush1.msra.mxu0 0.0
  %297 = vmatprep.subr.mxu0 0.0
  %298 = vmatpush1.msra.mxu0 0.0
  %299 = vmatprep.subr.mxu0 0.0
  %300 = vmatpush1.msra.mxu0 0.0
  %301 = vmatprep.subr.mxu0 0.0
  %302 = vmatpush1.msra.mxu0 0.0
  %303 = vmatprep.subr.mxu0 0.0
  %304 = vmatpush1.msra.mxu0 0.0
  %305 = vmatprep.subr.mxu0 0.0
  %306 = vmatpush1.msra.mxu0 0.0
  %307 = vmatprep.subr.mxu0 0.0
  %308 = vmatpush1.msra.mxu0 0.0
  %309 = vmatprep.subr.mxu0 0.0
  %310 = vmatpush1.msra.mxu0 0.0
  %311 = vmatprep.subr.mxu0 0.0
  %312 = vmatpush1.msra.mxu0 0.0
  %313 = vmatprep.subr.mxu0 0.0
  %314 = vmatpush1.msra.mxu0 0.0
  %315 = vmatprep.subr.mxu0 0.0
  %316 = vmatpush1.msra.mxu0 0.0
  %317 = vmatprep.subr.mxu0 0.0
  %318 = vmatpush1.msra.mxu0 0.0
  %319 = vmatprep.subr.mxu0 0.0
  %320 = vmatpush1.msra.mxu0 0.0
  %321 = vmatprep.subr.mxu0 0.0
  %322 = vmatpush1.msra.mxu0 0.0
  %323 = vmatprep.subr.mxu0 0.0
  %324 = vmatpush1.msra.mxu0 0.0
  %325 = vmatprep.subr.mxu0 0.0
  %326 = vmatpush1.msra.mxu0 0.0
  %327 = vmatprep.subr.mxu0 0.0
  %328 = vmatpush1.msra.mxu0 0.0
  %329 = vmatprep.mubr.f32.mxu0 0.0
  %330 = vmatmul.mubr.f32.gmra.mrb[0].mxu0 %v76
  %v331 = vpop.f32.mrb[0].mxu0
  %v332 = vadd.f32 0.0, %v331
  %v333 = vpop.f32.mrb[0].mxu0
  %334 = vmatprep.mubr.f32.mxu0 0.0
  %335 = vmatmul.mubr.f32.gmra.mrb[0].mxu0 %v79
  %v336 = vpop.f32.mrb[0].mxu0
  %v337 = vadd.f32 0.0, %v336
  %v338 = vpop.f32.mrb[0].mxu0
  %339 = vmatprep.mubr.f32.mxu0 0.0
  %340 = vmatmul.mubr.f32.gmra.mrb[0].mxu0 %v82
  %v341 = vpop.f32.mrb[0].mxu0
  %v342 = vadd.f32 0.0, %v341
  %v343 = vpop.f32.mrb[0].mxu0
  %344 = vmatprep.mubr.f32.mxu0 0.0
  %345 = vmatmul.mubr.f32.gmra.mrb[0].mxu0 %v85
  %v346 = vpop.f32.mrb[0].mxu0
  %v347 = vadd.f32 0.0, %v346
  %v348 = vpop.f32.mrb[0].mxu0
  %349 = vdwg.mxu0
  %s350 = scalar_lea.vmem %s3, 32
  %351 = vst.msk [vmem:[%s350] sm:$0xff] %vm27, %v332
  %352 = vst.msk [vmem:[%s350 + $0x8] sm:$0xff] %vm27, %v337
  %353 = vst.msk [vmem:[%s350 + $0x10] sm:$0xff] %vm27, %v342
  %354 = vst.msk [vmem:[%s350 + $0x18] sm:$0xff] %vm27, %v347
  %v355 = vmul.f32 %v332, %v21
  %v356 = vmul.f32 %v337, %v22
  %v357 = vmul.f32 %v342, %v23
  %v358 = vmul.f32 %v347, %v24
  %v359 = vsel %vm27, %v355, 0.0
  %360 = vadd.xlane.f32.xlu0 %v359
  %v361 = vpop.xlane.xlu0 %360
  %v362 = vsel %vm27, %v356, 0.0
  %363 = vadd.xlane.f32.xlu0 %v362
  %v364 = vpop.xlane.xlu0 %363
  %v365 = vsel %vm27, %v357, 0.0
  %366 = vadd.xlane.f32.xlu0 %v365
  %v367 = vpop.xlane.xlu0 %366
  %v368 = vsel %vm27, %v358, 0.0
  %369 = vadd.xlane.f32.xlu0 %v368
  %v370 = vpop.xlane.xlu0 %369
  %v371 = vadd.f32 %v192, %v361
  %v372 = vadd.f32 %v193, %v364
  %v373 = vadd.f32 %v194, %v367
  %v374 = vadd.f32 %v195, %v370
  %v375 = vmul.f32 %v355, %v332
  %v376 = vmul.f32 %v356, %v337
  %v377 = vmul.f32 %v357, %v342
  %v378 = vmul.f32 %v358, %v347
  %v379 = vsel %vm27, %v375, 0.0
  %380 = vadd.xlane.f32.xlu0 %v379
  %v381 = vpop.xlane.xlu0 %380
  %v382 = vsel %vm27, %v376, 0.0
  %383 = vadd.xlane.f32.xlu0 %v382
  %v384 = vpop.xlane.xlu0 %383
  %v385 = vsel %vm27, %v377, 0.0
  %386 = vadd.xlane.f32.xlu0 %v385
  %v387 = vpop.xlane.xlu0 %386
  %v388 = vsel %vm27, %v378, 0.0
  %389 = vadd.xlane.f32.xlu0 %v388
  %v390 = vpop.xlane.xlu0 %389
  %v391 = vadd.f32 %v212, %v381
  %v392 = vadd.f32 %v213, %v384
  %v393 = vadd.f32 %v214, %v387
  %v394 = vadd.f32 %v215, %v390
  %vm395 = vcmask 7168
  %396 = vst.msk [vmem:[%s4] sm:$0xff] %vm395, %v371
  %397 = vst.msk [vmem:[%s4 + $0x8] sm:$0xff] %vm395, %v372
  %398 = vst.msk [vmem:[%s4 + $0x10] sm:$0xff] %vm395, %v373
  %399 = vst.msk [vmem:[%s4 + $0x18] sm:$0xff] %vm395, %v374
  %400 = vst.msk [vmem:[%s5] sm:$0xff] %vm395, %v391
  %401 = vst.msk [vmem:[%s5 + $0x8] sm:$0xff] %vm395, %v392
  %402 = vst.msk [vmem:[%s5 + $0x10] sm:$0xff] %vm395, %v393
  %403 = vst.msk [vmem:[%s5 + $0x18] sm:$0xff] %vm395, %v394
  // Predicated region
  $region14: #{torus_conv_ae_forward.16} parent=0 // pred_check
    _
  $region15: #{torus_conv_ae_forward.16} parent=0 // pred_check_branch
    %405 = sbr.rel (0) target = $region17
  $region16: #{torus_conv_ae_forward.16} parent=0 // pred_region
    _
  $region17: #{torus_conv_ae_forward.16} parent=0 // pred_fallthru
    _
  // Predicated region
  $region18: #{torus_conv_ae_forward.16} parent=0 // pred_check
    _
  $region19: #{torus_conv_ae_forward.16} parent=0 // pred_check_branch
    %407 = sbr.rel (0) target = $region21
  $region20: #{torus_conv_ae_forward.16} parent=0 // pred_region
    _
  $region21: #{torus_conv_ae_forward.16} parent=0 // pred_fallthru
    _
  // Predicated region
  $region22: #{torus_conv_ae_forward.16} parent=0 // pred_check
    _
  $region23: #{torus_conv_ae_forward.16} parent=0 // pred_check_branch
    %409 = sbr.rel (0) target = $region25
  $region24: #{torus_conv_ae_forward.16} parent=0 // pred_region
    _
  $region25: #{torus_conv_ae_forward.16} parent=0 // pred_fallthru
    _
  // Predicated region
  $region26: #{torus_conv_ae_forward.16} parent=0 // pred_check
    _
  $region27: #{torus_conv_ae_forward.16} parent=0 // pred_check_branch
    %411 = sbr.rel (0) target = $region29
  $region28: #{torus_conv_ae_forward.16} parent=0 // pred_region
    _
  $region29: #{torus_conv_ae_forward.16} parent=0 // pred_fallthru
    _
  // Predicated region
  $region30: #{torus_conv_ae_forward.16} parent=0 // pred_check
    _
  $region31: #{torus_conv_ae_forward.16} parent=0 // pred_check_branch
    %413 = sbr.rel (0) target = $region33
  $region32: #{torus_conv_ae_forward.16} parent=0 // pred_region
    _
  $region33: #{torus_conv_ae_forward.16} parent=0 // pred_fallthru
    _
  // Predicated region
  $region34: #{torus_conv_ae_forward.16} parent=0 // pred_check
    _
  $region35: #{torus_conv_ae_forward.16} parent=0 // pred_check_branch
    %415 = sbr.rel (0) target = $region37
  $region36: #{torus_conv_ae_forward.16} parent=0 // pred_region
    _
  $region37: #{torus_conv_ae_forward.16} parent=0 // pred_fallthru
    _

// kernel: torus_conv_ae_forward.17
$region0: #{torus_conv_ae_forward.17}
  #allocation0 [shape = 'u32[]', space=smem, size = 0x4, offset = 0x4, fixed_abs, tag = 'smem constant byte address 0x4 - core index']
  #allocation1 [shape = 'u32[144,128]{1,0:T(1,128)}', space=vmem, size = 0x12000, scoped, tag = 'internal scratch']
  #allocation2 [shape = 'f32[32,210]{1,0:T(8,128)}', space=vmem, size = 0x8000, scoped, tag = 'scratch operand']
  %s0 = inlined_call_operand.vmem [shape: f32[2,8,226], index: 0, kind: input, shape index: {}]
  %s1 = inlined_call_operand.vmem [shape: f32[4,32], index: 1, kind: input, shape index: {}]
  %s2 = inlined_call_operand.vmem [shape: f32[4,1], index: 2, kind: input, shape index: {}]
  %s3 = inlined_call_operand.vmem [shape: f32[2,4,210], index: 3, kind: output, shape index: {}]
  %s4 = sld [smem:[#allocation0]]
  $region22: #{torus_conv_ae_forward.17} parent=0
    _
  %s6 = ssub.s32 1, %s4
  %s7 = scalar_select 0, %s6, %s4
  // Predicated region
  $region2: #{torus_conv_ae_forward.17} parent=0 // pred_check
    _
  $region3: #{torus_conv_ae_forward.17} parent=0 // pred_check_branch
    %9 = sbr.rel (0) target = $region5
  $region4: #{torus_conv_ae_forward.17} parent=0 // pred_region
    _
  $region5: #{torus_conv_ae_forward.17} parent=0 // pred_fallthru
    _
  // Predicated region
  $region6: #{torus_conv_ae_forward.17} parent=0 // pred_check
    _
  $region7: #{torus_conv_ae_forward.17} parent=0 // pred_check_branch
    %11 = sbr.rel (0) target = $region9
  $region8: #{torus_conv_ae_forward.17} parent=0 // pred_region
    _
  $region9: #{torus_conv_ae_forward.17} parent=0 // pred_fallthru
    _
  // Predicated region
  $region10: #{torus_conv_ae_forward.17} parent=0 // pred_check
    _
  $region11: #{torus_conv_ae_forward.17} parent=0 // pred_check_branch
    %13 = sbr.rel (0) target = $region13
  $region12: #{torus_conv_ae_forward.17} parent=0 // pred_region
    _
  $region13: #{torus_conv_ae_forward.17} parent=0 // pred_fallthru
    _
  %v14 = vld [vmem:[%s1] sm:$0xf]
  %v15 = vld [vmem:[%s2] sm:$0xf]
  %v16 = vld [vmem:[%s0] sm:$0xff]
  %v17 = vld [vmem:[%s0 + $0x8] sm:$0xff]
  %18 = vst [vmem:[#allocation2] sm:$0xff] %v16
  %vm19 = vcmask 670720
  %20 = vst.msk [vmem:[#allocation2 + $0x8] sm:$0xff] %vm19, %v17
  %v21 = vld [vmem:[%s0] sm:$0xff]
  %v22 = vld [vmem:[%s0 + $0x8] sm:$0xff]
  %25 = vrot.lane.b32.xlu0 %v21, 127
  %v26 = vpop.permute.xlu0 %25
  %27 = vrot.lane.b32.xlu0 %v22, 127
  %v28 = vpop.permute.xlu0 %27
  %vm29 = vcmask 1039360
  %v30 = vsel %vm29, %v26, %v28
  %33 = vst [vmem:[#allocation2 + $0x10] sm:$0xff] %v30
  %34 = vst.msk [vmem:[#allocation2 + $0x18] sm:$0xff] %vm19, %v28
  %v35 = vld [vmem:[%s0] sm:$0xff]
  %v36 = vld [vmem:[%s0 + $0x8] sm:$0xff]
  %39 = vrot.lane.b32.xlu0 %v35, 113
  %v40 = vpop.permute.xlu0 %39
  %41 = vrot.lane.b32.xlu0 %v36, 113
  %v42 = vpop.permute.xlu0 %41
  %vm43 = vcmask 924672
  %v44 = vsel %vm43, %v40, %v42
  %47 = vst [vmem:[#allocation2 + $0x20] sm:$0xff] %v44
  %48 = vst.msk [vmem:[#allocation2 + $0x28] sm:$0xff] %vm19, %v42
  %v49 = vld [vmem:[%s0] sm:$0xff]
  %v50 = vld [vmem:[%s0 + $0x8] sm:$0xff]
  %53 = vrot.lane.b32.xlu0 %v49, 112
  %v54 = vpop.permute.xlu0 %53
  %55 = vrot.lane.b32.xlu0 %v50, 112
  %v56 = vpop.permute.xlu0 %55
  %vm57 = vcmask 916480
  %v58 = vsel %vm57, %v54, %v56
  %61 = vst [vmem:[#allocation2 + $0x30] sm:$0xff] %v58
  %62 = vst.msk [vmem:[#allocation2 + $0x38] sm:$0xff] %vm19, %v56
  %v63 = vld [vmem:[#allocation2] sm:$0xff]
  %v64 = vld [vmem:[#allocation2 + $0x8] sm:$0xff]
  %v65 = vld [vmem:[#allocation2 + $0x10] sm:$0xff]
  %v66 = vld [vmem:[#allocation2 + $0x18] sm:$0xff]
  %v67 = vld [vmem:[#allocation2 + $0x20] sm:$0xff]
  %v68 = vld [vmem:[#allocation2 + $0x28] sm:$0xff]
  %v69 = vld [vmem:[#allocation2 + $0x30] sm:$0xff]
  %v70 = vld [vmem:[#allocation2 + $0x38] sm:$0xff]
  %72 = vset.pattern.permute.xlu0 0
  %73 = vperm.xlu0 %72, %v15
  %v74 = vpop.permute.xlu0 %73
  %vm76 = vcmask 261120
  %v78 = vsel %vm76, %v14, 0
  %80 = vmatprep.subr.mxu0 %v64
  %81 = vmatpush1.msra.mxu0 %v63
  %82 = vmatprep.subr.mxu0 %v66
  %83 = vmatpush1.msra.mxu0 %v65
  %84 = vmatprep.subr.mxu0 %v68
  %85 = vmatpush1.msra.mxu0 %v67
  %86 = vmatprep.subr.mxu0 %v70
  %87 = vmatpush1.msra.mxu0 %v69
  %88 = vmatprep.subr.mxu0 0.0
  %89 = vmatpush1.msra.mxu0 0.0
  %90 = vmatprep.subr.mxu0 0.0
  %91 = vmatpush1.msra.mxu0 0.0
  %92 = vmatprep.subr.mxu0 0.0
  %93 = vmatpush1.msra.mxu0 0.0
  %94 = vmatprep.subr.mxu0 0.0
  %95 = vmatpush1.msra.mxu0 0.0
  %96 = vmatprep.subr.mxu0 0.0
  %97 = vmatpush1.msra.mxu0 0.0
  %98 = vmatprep.subr.mxu0 0.0
  %99 = vmatpush1.msra.mxu0 0.0
  %100 = vmatprep.subr.mxu0 0.0
  %101 = vmatpush1.msra.mxu0 0.0
  %102 = vmatprep.subr.mxu0 0.0
  %103 = vmatpush1.msra.mxu0 0.0
  %104 = vmatprep.subr.mxu0 0.0
  %105 = vmatpush1.msra.mxu0 0.0
  %106 = vmatprep.subr.mxu0 0.0
  %107 = vmatpush1.msra.mxu0 0.0
  %108 = vmatprep.subr.mxu0 0.0
  %109 = vmatpush1.msra.mxu0 0.0
  %110 = vmatprep.subr.mxu0 0.0
  %111 = vmatpush1.msra.mxu0 0.0
  %112 = vmatprep.subr.mxu0 0.0
  %113 = vmatpush1.msra.mxu0 0.0
  %114 = vmatprep.subr.mxu0 0.0
  %115 = vmatpush1.msra.mxu0 0.0
  %116 = vmatprep.subr.mxu0 0.0
  %117 = vmatpush1.msra.mxu0 0.0
  %118 = vmatprep.subr.mxu0 0.0
  %119 = vmatpush1.msra.mxu0 0.0
  %120 = vmatprep.subr.mxu0 0.0
  %121 = vmatpush1.msra.mxu0 0.0
  %122 = vmatprep.subr.mxu0 0.0
  %123 = vmatpush1.msra.mxu0 0.0
  %124 = vmatprep.subr.mxu0 0.0
  %125 = vmatpush1.msra.mxu0 0.0
  %126 = vmatprep.subr.mxu0 0.0
  %127 = vmatpush1.msra.mxu0 0.0
  %128 = vmatprep.subr.mxu0 0.0
  %129 = vmatpush1.msra.mxu0 0.0
  %130 = vmatprep.subr.mxu0 0.0
  %131 = vmatpush1.msra.mxu0 0.0
  %132 = vmatprep.subr.mxu0 0.0
  %133 = vmatpush1.msra.mxu0 0.0
  %134 = vmatprep.subr.mxu0 0.0
  %135 = vmatpush1.msra.mxu0 0.0
  %136 = vmatprep.subr.mxu0 0.0
  %137 = vmatpush1.msra.mxu0 0.0
  %138 = vmatprep.subr.mxu0 0.0
  %139 = vmatpush1.msra.mxu0 0.0
  %140 = vmatprep.subr.mxu0 0.0
  %141 = vmatpush1.msra.mxu0 0.0
  %142 = vmatprep.subr.mxu0 0.0
  %143 = vmatpush1.msra.mxu0 0.0
  %144 = vmatprep.mubr.f32.mxu0 0.0
  %145 = vmatmul.mubr.f32.gmra.mrb[0].mxu0 %v78
  %v146 = vpop.f32.mrb[0].mxu0
  %v147 = vadd.f32 %v74, %v146
  %v148 = vpop.f32.mrb[0].mxu0
  %v149 = vadd.f32 %v74, %v148
  %150 = vdwg.mxu0
  %v151 = vxor.u32 %v147, 2147483648
  %v152 = vxor.u32 %v149, 2147483648
  %v153 = vmul.f32 %v151, 1.442695
  %v154 = vpow.pop %v153
  %v155 = vmul.f32 %v152, 1.442695
  %v156 = vpow.pop %v155
  %v157 = vadd.f32 %v154, 1.0
  %v158 = vadd.f32 %v156, 1.0
  %v159 = vrcp.pop %v157
  %v160 = vmul.f32 1.0, %v159
  %v161 = vrcp.pop %v158
  %v162 = vmul.f32 1.0, %v161
  %v165 = vcombine.low %v160, %v162
  %vm167 = vcmask 1043456
  %vm168 = vcmask 670724
  %vm169 = vmor %vm168, %vm167
  %170 = vst.msk [vmem:[%s3] sm:$0xff] %vm169, %v165
  %s171 = scalar_lea.vmem %s0, 16
  %v172 = vld [vmem:[%s171] sm:$0xff]
  %v173 = vld [vmem:[%s171 + $0x8] sm:$0xff]
  %174 = vst [vmem:[#allocation2] sm:$0xff] %v172
  %175 = vst.msk [vmem:[#allocation2 + $0x8] sm:$0xff] %vm19, %v173
  %v176 = vld [vmem:[%s171] sm:$0xff]
  %v177 = vld [vmem:[%s171 + $0x8] sm:$0xff]
  %180 = vrot.lane.b32.xlu0 %v176, 127
  %v181 = vpop.permute.xlu0 %180
  %182 = vrot.lane.b32.xlu0 %v177, 127
  %v183 = vpop.permute.xlu0 %182
  %v184 = vsel %vm29, %v181, %v183
  %187 = vst [vmem:[#allocation2 + $0x10] sm:$0xff] %v184
  %188 = vst.msk [vmem:[#allocation2 + $0x18] sm:$0xff] %vm19, %v183
  %v189 = vld [vmem:[%s171] sm:$0xff]
  %v190 = vld [vmem:[%s171 + $0x8] sm:$0xff]
  %193 = vrot.lane.b32.xlu0 %v189, 113
  %v194 = vpop.permute.xlu0 %193
  %195 = vrot.lane.b32.xlu0 %v190, 113
  %v196 = vpop.permute.xlu0 %195
  %v197 = vsel %vm43, %v194, %v196
  %200 = vst [vmem:[#allocation2 + $0x20] sm:$0xff] %v197
  %201 = vst.msk [vmem:[#allocation2 + $0x28] sm:$0xff] %vm19, %v196
  %v202 = vld [vmem:[%s171] sm:$0xff]
  %v203 = vld [vmem:[%s171 + $0x8] sm:$0xff]
  %206 = vrot.lane.b32.xlu0 %v202, 112
  %v207 = vpop.permute.xlu0 %206
  %208 = vrot.lane.b32.xlu0 %v203, 112
  %v209 = vpop.permute.xlu0 %208
  %v210 = vsel %vm57, %v207, %v209
  %213 = vst [vmem:[#allocation2 + $0x30] sm:$0xff] %v210
  %214 = vst.msk [vmem:[#allocation2 + $0x38] sm:$0xff] %vm19, %v209
  %v215 = vld [vmem:[#allocation2] sm:$0xff]
  %v216 = vld [vmem:[#allocation2 + $0x8] sm:$0xff]
  %v217 = vld [vmem:[#allocation2 + $0x10] sm:$0xff]
  %v218 = vld [vmem:[#allocation2 + $0x18] sm:$0xff]
  %v219 = vld [vmem:[#allocation2 + $0x20] sm:$0xff]
  %v220 = vld [vmem:[#allocation2 + $0x28] sm:$0xff]
  %v221 = vld [vmem:[#allocation2 + $0x30] sm:$0xff]
  %v222 = vld [vmem:[#allocation2 + $0x38] sm:$0xff]
  %223 = vmatprep.subr.mxu0 %v216
  %224 = vmatpush1.msra.mxu0 %v215
  %225 = vmatprep.subr.mxu0 %v218
  %226 = vmatpush1.msra.mxu0 %v217
  %227 = vmatprep.subr.mxu0 %v220
  %228 = vmatpush1.msra.mxu0 %v219
  %229 = vmatprep.subr.mxu0 %v222
  %230 = vmatpush1.msra.mxu0 %v221
  %231 = vmatprep.subr.mxu0 0.0
  %232 = vmatpush1.msra.mxu0 0.0
  %233 = vmatprep.subr.mxu0 0.0
  %234 = vmatpush1.msra.mxu0 0.0
  %235 = vmatprep.subr.mxu0 0.0
  %236 = vmatpush1.msra.mxu0 0.0
  %237 = vmatprep.subr.mxu0 0.0
  %238 = vmatpush1.msra.mxu0 0.0
  %239 = vmatprep.subr.mxu0 0.0
  %240 = vmatpush1.msra.mxu0 0.0
  %241 = vmatprep.subr.mxu0 0.0
  %242 = vmatpush1.msra.mxu0 0.0
  %243 = vmatprep.subr.mxu0 0.0
  %244 = vmatpush1.msra.mxu0 0.0
  %245 = vmatprep.subr.mxu0 0.0
  %246 = vmatpush1.msra.mxu0 0.0
  %247 = vmatprep.subr.mxu0 0.0
  %248 = vmatpush1.msra.mxu0 0.0
  %249 = vmatprep.subr.mxu0 0.0
  %250 = vmatpush1.msra.mxu0 0.0
  %251 = vmatprep.subr.mxu0 0.0
  %252 = vmatpush1.msra.mxu0 0.0
  %253 = vmatprep.subr.mxu0 0.0
  %254 = vmatpush1.msra.mxu0 0.0
  %255 = vmatprep.subr.mxu0 0.0
  %256 = vmatpush1.msra.mxu0 0.0
  %257 = vmatprep.subr.mxu0 0.0
  %258 = vmatpush1.msra.mxu0 0.0
  %259 = vmatprep.subr.mxu0 0.0
  %260 = vmatpush1.msra.mxu0 0.0
  %261 = vmatprep.subr.mxu0 0.0
  %262 = vmatpush1.msra.mxu0 0.0
  %263 = vmatprep.subr.mxu0 0.0
  %264 = vmatpush1.msra.mxu0 0.0
  %265 = vmatprep.subr.mxu0 0.0
  %266 = vmatpush1.msra.mxu0 0.0
  %267 = vmatprep.subr.mxu0 0.0
  %268 = vmatpush1.msra.mxu0 0.0
  %269 = vmatprep.subr.mxu0 0.0
  %270 = vmatpush1.msra.mxu0 0.0
  %271 = vmatprep.subr.mxu0 0.0
  %272 = vmatpush1.msra.mxu0 0.0
  %273 = vmatprep.subr.mxu0 0.0
  %274 = vmatpush1.msra.mxu0 0.0
  %275 = vmatprep.subr.mxu0 0.0
  %276 = vmatpush1.msra.mxu0 0.0
  %277 = vmatprep.subr.mxu0 0.0
  %278 = vmatpush1.msra.mxu0 0.0
  %279 = vmatprep.subr.mxu0 0.0
  %280 = vmatpush1.msra.mxu0 0.0
  %281 = vmatprep.subr.mxu0 0.0
  %282 = vmatpush1.msra.mxu0 0.0
  %283 = vmatprep.subr.mxu0 0.0
  %284 = vmatpush1.msra.mxu0 0.0
  %285 = vmatprep.subr.mxu0 0.0
  %286 = vmatpush1.msra.mxu0 0.0
  %287 = vmatprep.mubr.f32.mxu0 0.0
  %288 = vmatmul.mubr.f32.gmra.mrb[0].mxu0 %v78
  %v289 = vpop.f32.mrb[0].mxu0
  %v290 = vadd.f32 %v74, %v289
  %v291 = vpop.f32.mrb[0].mxu0
  %v292 = vadd.f32 %v74, %v291
  %293 = vdwg.mxu0
  %v294 = vxor.u32 %v290, 2147483648
  %v295 = vxor.u32 %v292, 2147483648
  %v296 = vmul.f32 %v294, 1.442695
  %v297 = vpow.pop %v296
  %v298 = vmul.f32 %v295, 1.442695
  %v299 = vpow.pop %v298
  %v300 = vadd.f32 %v297, 1.0
  %v301 = vadd.f32 %v299, 1.0
  %v302 = vrcp.pop %v300
  %v303 = vmul.f32 1.0, %v302
  %v304 = vrcp.pop %v301
  %v305 = vmul.f32 1.0, %v304
  %v308 = vcombine.low %v303, %v305
  %s310 = scalar_lea.vmem %s3, 8
  %311 = vst.msk [vmem:[%s310] sm:$0xff] %vm169, %v308
  // Predicated region
  $region14: #{torus_conv_ae_forward.17} parent=0 // pred_check
    _
  $region15: #{torus_conv_ae_forward.17} parent=0 // pred_check_branch
    %313 = sbr.rel (0) target = $region17
  $region16: #{torus_conv_ae_forward.17} parent=0 // pred_region
    _
  $region17: #{torus_conv_ae_forward.17} parent=0 // pred_fallthru
    _
  // Predicated region
  $region18: #{torus_conv_ae_forward.17} parent=0 // pred_check
    _
  $region19: #{torus_conv_ae_forward.17} parent=0 // pred_check_branch
    %315 = sbr.rel (0) target = $region21
  $region20: #{torus_conv_ae_forward.17} parent=0 // pred_region
    _
  $region21: #{torus_conv_ae_forward.17} parent=0 // pred_fallthru
    _

</llo_original>
